<compile_context>
chip_gen: v7x
topology: tpu7x:2x2x1
jax: 0.10.0
libtpu: 0.0.40
codegen_flags: <defaults>
</compile_context>

<pallas_src>
import math

import jax
import jax.numpy as jnp
from jax.experimental import pallas as pl
from jax.experimental.pallas import tpu as pltpu

LN_EPS = 1e-5


# --------------------------------- kernel -----------------------------------

def _build_kernel(num_heads, head_dim, self_mask_mode, cross_mask_mode,
                  separate_full, matmul_dtype, batched_heads, exact_gelu):
    cd = matmul_dtype

    def kernel(*refs):
        it = iter(refs)
        xq_ref = next(it)                                   # (1, Tq, D)
        xfull_ref = next(it) if separate_full else xq_ref   # (1, T,  D)
        enc_ref = next(it)                                  # (1, S,  D)
        smask_ref = next(it) if self_mask_mode != "none" else None
        cmask_ref = next(it) if cross_mask_mode != "none" else None
        (wq1, bq1, wk1, wv1, bv1, woh1, bo1, g1, be1,
         wq2, bq2, wk2, wv2, bv2, woh2, bo2, g2, be2,
         w_fc1, b_fc1, w_fc2, b_fc2, g3, be3) = [next(it) for _ in range(24)]
        out_ref = next(it)
        ks_ref = next(it)     # (T, H, hd) cd  -- self-attn keys   (scratch)
        vs_ref = next(it)     # (T, H, hd) cd  -- self-attn values (scratch)
        kc_ref = next(it)     # (S, H, hd) cd  -- cross-attn keys  (scratch)
        vc_ref = next(it)     # (S, H, hd) cd  -- cross-attn values(scratch)

        def mm(a, w_ref):
            # bf16 (cd) operands on the MXU, f32 accumulation.
            return jnp.dot(a.astype(cd), w_ref[...],
                           preferred_element_type=jnp.float32)

        def layer_norm(y, g_ref, b_ref):
            mu = jnp.mean(y, axis=-1, keepdims=True)
            var = jnp.mean(jnp.square(y - mu), axis=-1, keepdims=True)
            return (y - mu) * jax.lax.rsqrt(var + LN_EPS) * g_ref[...] + b_ref[...]

        # ---- K/V projections cached once per batch element (query tile 0) ----
        @pl.when(pl.program_id(1) == 0)
        def _cache_kv():
            xf = xfull_ref[0]                                # (T, D)
            enc = enc_ref[0]                                 # (S, D)
            ks_ref[...] = mm(xf, wk1).astype(cd).reshape(ks_ref.shape)
            vs_ref[...] = (mm(xf, wv1) + bv1[...]).astype(cd).reshape(vs_ref.shape)
            kc_ref[...] = mm(enc, wk2).astype(cd).reshape(kc_ref.shape)
            vc_ref[...] = (mm(enc, wv2) + bv2[...]).astype(cd).reshape(vc_ref.shape)

        def softmax(s):
            s = s - jnp.max(s, axis=-1, keepdims=True)
            p = jnp.exp(s)
            return p * pl.reciprocal(jnp.sum(p, axis=-1, keepdims=True),
                                     approx=True)

        def attention(q_rows, k_ref, v_ref, wq, bq, wo_h, bo, mask):
            # `scaling` is pre-folded into wq / bq by the wrapper.
            q = mm(q_rows, wq) + bq[...]                         # (Tq, D) f32
            tq = q.shape[0]
            qh = q.astype(cd).reshape(tq, num_heads, head_dim)   # (Tq, H, hd)
            if batched_heads:
                # Head-batched scores: (Tq,H,hd) x (Skv,H,hd) -> (H,Tq,Skv).
                s = jax.lax.dot_general(
                    qh, k_ref[...], (((2,), (2,)), ((1,), (1,))),
                    preferred_element_type=jnp.float32)
                if mask is not None:
                    s = s + mask[None]
                p = softmax(s).astype(cd)                        # (H, Tq, Skv)
                # Head-batched context: (H,Tq,Skv) x (Skv,H,hd) -> (H,Tq,hd).
                o = jax.lax.dot_general(
                    p, v_ref[...], (((2,), (0,)), ((0,), (1,))),
                    preferred_element_type=jnp.float32)
                ctx = [o[h] for h in range(num_heads)]
            else:
                # Conservative path: per-head 2-D MXU matmuls only.
                k_all = k_ref[...]
                v_all = v_ref[...]
                ctx = []
                for h in range(num_heads):
                    s = jax.lax.dot_general(
                        qh[:, h, :], k_all[:, h, :],
                        (((1,), (1,)), ((), ())),
                        preferred_element_type=jnp.float32)      # (Tq, Skv)
                    if mask is not None:
                        s = s + mask
                    p = softmax(s).astype(cd)
                    ctx.append(jnp.dot(p, v_all[:, h, :],
                                       preferred_element_type=jnp.float32))
            # Head merge fused into the output projection:
            #   out = sum_h ctx_h @ wo[h]  (wo stored head-major as (H, hd, D)).
            acc = None
            for h in range(num_heads):
                part = jnp.dot(ctx[h].astype(cd), wo_h[h],
                               preferred_element_type=jnp.float32)
                acc = part if acc is None else acc + part
            return acc + bo[...]

        def gelu(v):
            return jax.nn.gelu(v, approximate=not exact_gelu)

        def read_mask(ref, mode):
            if mode == "none":
                return None
            if mode == "shared":
                return ref[...].astype(jnp.float32)              # (Tq, Skv)
            return ref[0].astype(jnp.float32)                    # (Tq, Skv)

        x = xq_ref[0].astype(jnp.float32)                        # (Tq, D)

        # --- self-attention block ---
        attn = attention(x, ks_ref, vs_ref, wq1, bq1, woh1, bo1,
                         read_mask(smask_ref, self_mask_mode))
        h1 = layer_norm(x + attn, g1, be1)

        # --- cross-attention block ---
        cattn = attention(h1, kc_ref, vc_ref, wq2, bq2, woh2, bo2,
                          read_mask(cmask_ref, cross_mask_mode))
        h2 = layer_norm(h1 + cattn, g2, be2)

        # --- feed-forward block ---
        ff = gelu(mm(h2, w_fc1) + b_fc1[...])
        ff = mm(ff, w_fc2) + b_fc2[...]
        h3 = layer_norm(h2 + ff, g3, be3)

        out_ref[0] = h3.astype(out_ref.dtype)

    return kernel


# --------------------------------- wrapper ----------------------------------

def _normalize_mask(mask, B, T, S):
    """Return (array, mode) with mode in {'none', 'shared', 'batch'}."""
    if mask is None:
        return None, "none"
    mask = jnp.asarray(mask, jnp.float32)
    if mask.ndim == 2:
        assert mask.shape == (T, S)
        return mask, "shared"
    if mask.ndim == 4:
        assert mask.shape == (B, 1, T, S)
        return mask.reshape(B, T, S), "batch"
    if mask.ndim == 3:
        assert mask.shape == (B, T, S)
        return mask, "batch"
    raise ValueError(f"unsupported mask rank {mask.ndim}")


def vitlp_decoder_layer(hidden, attn_mask, enc_hidden, enc_mask, params,
                        num_heads, *, block_t=None,
                        matmul_dtype=jnp.bfloat16):
    B, T, D = hidden.shape
    S = enc_hidden.shape[1]
    head_dim = D // num_heads
    scaling = head_dim ** (-0.5)
    if block_t is None:
        block_t = T
    assert T % block_t == 0, "block_t must divide T"
    nt = T // block_t
    separate_full = (block_t != T)

    f32 = jnp.float32

    def wcast(x):
        return jnp.asarray(x, f32).astype(matmul_dtype)

    def fcast(x):
        return jnp.asarray(x, f32)

    # Attention scaling folded into the query projection (one-time const fold).
    wq1 = wcast(fcast(params["wq1"]) * scaling)
    bq1 = fcast(params["bq1"]) * scaling
    wq2 = wcast(fcast(params["wq2"]) * scaling)
    bq2 = fcast(params["bq2"]) * scaling
    # Output projection stored head-major (H, hd, D): head merge fused into it.
    wo1 = wcast(fcast(params["wo1"]).reshape(num_heads, head_dim, D))
    wo2 = wcast(fcast(params["wo2"]).reshape(num_heads, head_dim, D))

    weight_args = [
        wq1, bq1, wcast(params["wk1"]), wcast(params["wv1"]), fcast(params["bv1"]),
        wo1, fcast(params["bo1"]), fcast(params["ln1_g"]), fcast(params["ln1_b"]),
        wq2, bq2, wcast(params["wk2"]), wcast(params["wv2"]), fcast(params["bv2"]),
        wo2, fcast(params["bo2"]), fcast(params["ln2_g"]), fcast(params["ln2_b"]),
        wcast(params["w_fc1"]), fcast(params["b_fc1"]),
        wcast(params["w_fc2"]), fcast(params["b_fc2"]),
        fcast(params["ln3_g"]), fcast(params["ln3_b"]),
    ]

    self_mask, self_mode = _normalize_mask(attn_mask, B, T, T)
    cross_mask, cross_mode = _normalize_mask(enc_mask, B, T, S)

    # (array, block_shape, index_map, is_constant_weight) in kernel arg order.
    in_items = [(hidden, (1, block_t, D), lambda b, i: (b, i, 0), False)]
    if separate_full:
        # Full-sequence block for the per-batch K/V cache; index_map is
        # i-independent so Pallas only re-fetches it when b changes.
        in_items.append((hidden, (1, T, D), lambda b, i: (b, 0, 0), False))
    in_items.append((enc_hidden, (1, S, D), lambda b, i: (b, 0, 0), False))
    if self_mode == "shared":
        in_items.append((self_mask, (block_t, T), lambda b, i: (i, 0), False))
    elif self_mode == "batch":
        in_items.append((self_mask, (1, block_t, T), lambda b, i: (b, i, 0), False))
    if cross_mode == "shared":
        in_items.append((cross_mask, (block_t, S), lambda b, i: (i, 0), False))
    elif cross_mode == "batch":
        in_items.append((cross_mask, (1, block_t, S), lambda b, i: (b, i, 0), False))
    for w in weight_args:
        in_items.append((w, w.shape, (lambda b, i, _n=w.ndim: (0,) * _n), True))

    inputs = [arr for arr, _, _, _ in in_items]

    scratch_shapes = [
        pltpu.VMEM((T, num_heads, head_dim), matmul_dtype),   # self K
        pltpu.VMEM((T, num_heads, head_dim), matmul_dtype),   # self V
        pltpu.VMEM((S, num_heads, head_dim), matmul_dtype),   # cross K
        pltpu.VMEM((S, num_heads, head_dim), matmul_dtype),   # cross V
    ]

    # ---- VMEM budget derived from real per-core capacity (v7x = 64 MiB) ----
    def _nbytes(shape, dtype):
        return int(math.prod(shape)) * jnp.dtype(dtype).itemsize

    act_bytes = sum(_nbytes(s, a.dtype) for a, s, _, w in in_items if not w)
    w_bytes = sum(_nbytes(s, a.dtype) for a, s, _, w in in_items if w)
    out_bytes = _nbytes((1, block_t, D), hidden.dtype)
    kv_bytes = 2 * (T + S) * D * jnp.dtype(matmul_dtype).itemsize
    F = params["w_fc1"].shape[1]
    tmp_bytes = 4 * (block_t * F + num_heads * block_t * max(T, S)
                     + 8 * block_t * D + 2 * max(T, S) * D)
    need = 2 * (act_bytes + out_bytes) + 2 * w_bytes + kv_bytes + tmp_bytes + (4 << 20)
    try:
        vmem_cap = int(pltpu.get_tpu_info().vmem_capacity_bytes)
    except Exception:
        vmem_cap = 64 << 20
    ceiling = max(vmem_cap - (8 << 20), 32 << 20)
    vmem_limit = int(min(max(need, 32 << 20), ceiling))

    def _call(batched_heads, single_buffer_weights, exact_gelu):
        def make_spec(shape, imap, is_weight):
            if is_weight and single_buffer_weights and hasattr(pl, "Buffered"):
                try:
                    # Constant-index weight blocks: a single buffer is enough.
                    return pl.BlockSpec(shape, imap, pipeline_mode=pl.Buffered(1))
                except TypeError:
                    pass
            return pl.BlockSpec(shape, imap)

        in_specs = [make_spec(s, m, w) for _, s, m, w in in_items]
        kernel = _build_kernel(num_heads, head_dim, self_mode, cross_mode,
                               separate_full, matmul_dtype, batched_heads,
                               exact_gelu)
        return pl.pallas_call(
            kernel,
            out_shape=jax.ShapeDtypeStruct((B, T, D), hidden.dtype),
            grid_spec=pltpu.PrefetchScalarGridSpec(
                num_scalar_prefetch=0,
                grid=(B, nt),
                in_specs=in_specs,
                out_specs=pl.BlockSpec((1, block_t, D), lambda b, i: (b, i, 0)),
                scratch_shapes=scratch_shapes),
            compiler_params=pltpu.CompilerParams(
                # Query-tile axis is "arbitrary" (K/V scratch reused across
                # tiles of one batch element); batch axis stays parallel.
                dimension_semantics=("parallel", "arbitrary"),
                vmem_limit_bytes=vmem_limit),
        )(*inputs)

    try:
        # Preferred config: head-batched MXU dots, single-buffered weights,
        # exact (erf) GELU.
        return _call(True, True, True)
    except Exception:
        # Conservative fallback for Mosaic builds that reject batched
        # dot_general / Buffered(1) / erf: per-head 2-D matmuls, default
        # double-buffered weights, tanh GELU.
        return _call(False, False, False)


# ----------------------------- pure-JAX reference ---------------------------

def _ref_layer_norm(x, g, b):
    mu = jnp.mean(x, axis=-1, keepdims=True)
    var = jnp.mean((x - mu) ** 2, axis=-1, keepdims=True)
    return (x - mu) * jax.lax.rsqrt(var + LN_EPS) * g + b


def _ref_mha(xq, xkv, wq, bq, wk, wv, bv, wo, bo, mask, num_heads, cd):
    B, T, D = xq.shape
    S = xkv.shape[1]
    hd = D // num_heads
    scaling = hd ** (-0.5)

    def mm(a, w):
        return jnp.einsum("btd,de->bte", a.astype(cd), w.astype(cd),
                          preferred_element_type=jnp.float32)

    q = (mm(xq, wq) + bq) * scaling
    k = mm(xkv, wk)
    v = mm(xkv, wv) + bv
    q = q.reshape(B, T, num_heads, hd).transpose(0, 2, 1, 3).astype(cd)
    k = k.reshape(B, S, num_heads, hd).transpose(0, 2, 1, 3).astype(cd)
    v = v.reshape(B, S, num_heads, hd).transpose(0, 2, 1, 3).astype(cd)
    s = jnp.einsum("bhqd,bhkd->bhqk", q, k, preferred_element_type=jnp.float32)
    if mask is not None:
        s = s + mask
    p = jax.nn.softmax(s, axis=-1)
    o = jnp.einsum("bhqk,bhkd->bhqd", p.astype(cd), v,
                   preferred_element_type=jnp.float32)
    o = o.transpose(0, 2, 1, 3).reshape(B, T, D)
    return jnp.einsum("btd,de->bte", o.astype(cd), wo.astype(cd),
                      preferred_element_type=jnp.float32) + bo


def reference(hidden, attn_mask, enc_hidden, enc_mask, p, num_heads,
              matmul_dtype=jnp.float32):
    cd = matmul_dtype

    def mm(a, w):
        return jnp.einsum("btd,de->bte", a.astype(cd), w.astype(cd),
                          preferred_element_type=jnp.float32)

    x = hidden.astype(jnp.float32)
    a = _ref_mha(x, x, p["wq1"], p["bq1"], p["wk1"], p["wv1"], p["bv1"],
                 p["wo1"], p["bo1"], attn_mask, num_heads, cd)
    h1 = _ref_layer_norm(x + a, p["ln1_g"], p["ln1_b"])
    c = _ref_mha(h1, enc_hidden.astype(jnp.float32), p["wq2"], p["bq2"],
                 p["wk2"], p["wv2"], p["bv2"], p["wo2"], p["bo2"],
                 enc_mask, num_heads, cd)
    h2 = _ref_layer_norm(h1 + c, p["ln2_g"], p["ln2_b"])
    ff = jax.nn.gelu(mm(h2, p["w_fc1"]) + p["b_fc1"], approximate=False)
    ff = mm(ff, p["w_fc2"]) + p["b_fc2"]
    return _ref_layer_norm(h2 + ff, p["ln3_g"], p["ln3_b"])


# ----------------------------------- main -----------------------------------

if __name__ == "__main__":
    B, T, S = 2, 16, 16         # batch, decoder seq, encoder seq
    D, H, F = 128, 4, 256       # lane-dense hidden_size, heads, ffn_dim
    BLOCK_T = 8                 # query tile -> grid (B, T // BLOCK_T); exercises KV cache reuse

    key = jax.random.PRNGKey(0)
    ks = iter(jax.random.split(key, 40))

    def w(shape):
        return (0.02 * jax.random.normal(next(ks), shape)).astype(jnp.float32)

    params = {
        # self attention
        "wq1": w((D, D)), "bq1": w((1, D)),
        "wk1": w((D, D)),                       # k_proj has no bias
        "wv1": w((D, D)), "bv1": w((1, D)),
        "wo1": w((D, D)), "bo1": w((1, D)),
        "ln1_g": jnp.ones((1, D), jnp.float32), "ln1_b": jnp.zeros((1, D), jnp.float32),
        # cross attention
        "wq2": w((D, D)), "bq2": w((1, D)),
        "wk2": w((D, D)),
        "wv2": w((D, D)), "bv2": w((1, D)),
        "wo2": w((D, D)), "bo2": w((1, D)),
        "ln2_g": jnp.ones((1, D), jnp.float32), "ln2_b": jnp.zeros((1, D), jnp.float32),
        # FFN + final layer norm
        "w_fc1": w((D, F)), "b_fc1": w((1, F)),
        "w_fc2": w((F, D)), "b_fc2": w((1, D)),
        "ln3_g": jnp.ones((1, D), jnp.float32), "ln3_b": jnp.zeros((1, D), jnp.float32),
    }

    hidden = jax.random.normal(next(ks), (B, T, D), jnp.float32)
    enc_hidden = jax.random.normal(next(ks), (B, S, D), jnp.float32)

    # Shared causal additive mask (no per-batch broadcast DMA); the
    # cross-attention mask is all-zero in this layer -> dropped (None).
    causal = jnp.where(jnp.tril(jnp.ones((T, T), bool)), 0.0, -1e9).astype(jnp.float32)

    out = vitlp_decoder_layer(hidden, causal, enc_hidden, None, params,
                              num_heads=H, block_t=BLOCK_T,
                              matmul_dtype=jnp.bfloat16)
    out = jax.block_until_ready(out)

    ref = reference(hidden, causal, enc_hidden, None, params, H,
                    matmul_dtype=jnp.bfloat16)
    assert out.shape == (B, T, D)
    max_err = float(jnp.max(jnp.abs(out - ref)))
    assert jnp.allclose(out, ref, atol=1e-2, rtol=1e-2), f"max abs err {max_err}"

    print("KERNEL_OK")
</pallas_src>

<mosaic_0001>
module attributes {stable_mosaic.version = 11 : i64} {
  func.func @kernel(%arg0: i32, %arg1: i32, %arg2: memref<1x8x128xf32, #tpu.memory_space<vmem>>, %arg3: memref<1x16x128xf32, #tpu.memory_space<vmem>>, %arg4: memref<1x16x128xf32, #tpu.memory_space<vmem>>, %arg5: memref<8x16xf32, #tpu.memory_space<vmem>>, %arg6: memref<128x128xbf16, #tpu.memory_space<vmem>>, %arg7: memref<1x128xf32, #tpu.memory_space<vmem>>, %arg8: memref<128x128xbf16, #tpu.memory_space<vmem>>, %arg9: memref<128x128xbf16, #tpu.memory_space<vmem>>, %arg10: memref<1x128xf32, #tpu.memory_space<vmem>>, %arg11: memref<4x32x128xbf16, #tpu.memory_space<vmem>>, %arg12: memref<1x128xf32, #tpu.memory_space<vmem>>, %arg13: memref<1x128xf32, #tpu.memory_space<vmem>>, %arg14: memref<1x128xf32, #tpu.memory_space<vmem>>, %arg15: memref<128x128xbf16, #tpu.memory_space<vmem>>, %arg16: memref<1x128xf32, #tpu.memory_space<vmem>>, %arg17: memref<128x128xbf16, #tpu.memory_space<vmem>>, %arg18: memref<128x128xbf16, #tpu.memory_space<vmem>>, %arg19: memref<1x128xf32, #tpu.memory_space<vmem>>, %arg20: memref<4x32x128xbf16, #tpu.memory_space<vmem>>, %arg21: memref<1x128xf32, #tpu.memory_space<vmem>>, %arg22: memref<1x128xf32, #tpu.memory_space<vmem>>, %arg23: memref<1x128xf32, #tpu.memory_space<vmem>>, %arg24: memref<128x256xbf16, #tpu.memory_space<vmem>>, %arg25: memref<1x256xf32, #tpu.memory_space<vmem>>, %arg26: memref<256x128xbf16, #tpu.memory_space<vmem>>, %arg27: memref<1x128xf32, #tpu.memory_space<vmem>>, %arg28: memref<1x128xf32, #tpu.memory_space<vmem>>, %arg29: memref<1x128xf32, #tpu.memory_space<vmem>>, %arg30: memref<1x8x128xf32, #tpu.memory_space<vmem>>, %arg31: memref<16x4x32xbf16, #tpu.memory_space<vmem>>, %arg32: memref<16x4x32xbf16, #tpu.memory_space<vmem>>, %arg33: memref<16x4x32xbf16, #tpu.memory_space<vmem>>, %arg34: memref<16x4x32xbf16, #tpu.memory_space<vmem>>) attributes {dimension_semantics = [#tpu.dimension_semantics<parallel>, #tpu.dimension_semantics<arbitrary>], iteration_bounds = array<i64: 2, 2>, scalar_prefetch = 0 : i64, scratch_operands = 4 : i64, tpu.core_type = #tpu.core_type<tc>, window_params = [{transform_indices = @transform_0, window_bounds = array<i64: 1, 8, 128>}, {transform_indices = @transform_1, window_bounds = array<i64: 1, 16, 128>}, {transform_indices = @transform_2, window_bounds = array<i64: 1, 16, 128>}, {transform_indices = @transform_3, window_bounds = array<i64: 8, 16>}, {pipeline_mode = #tpu.pipeline_mode<synchronous>, transform_indices = @transform_4, window_bounds = array<i64: 128, 128>}, {pipeline_mode = #tpu.pipeline_mode<synchronous>, transform_indices = @transform_5, window_bounds = array<i64: 1, 128>}, {pipeline_mode = #tpu.pipeline_mode<synchronous>, transform_indices = @transform_6, window_bounds = array<i64: 128, 128>}, {pipeline_mode = #tpu.pipeline_mode<synchronous>, transform_indices = @transform_7, window_bounds = array<i64: 128, 128>}, {pipeline_mode = #tpu.pipeline_mode<synchronous>, transform_indices = @transform_8, window_bounds = array<i64: 1, 128>}, {pipeline_mode = #tpu.pipeline_mode<synchronous>, transform_indices = @transform_9, window_bounds = array<i64: 4, 32, 128>}, {pipeline_mode = #tpu.pipeline_mode<synchronous>, transform_indices = @transform_10, window_bounds = array<i64: 1, 128>}, {pipeline_mode = #tpu.pipeline_mode<synchronous>, transform_indices = @transform_11, window_bounds = array<i64: 1, 128>}, {pipeline_mode = #tpu.pipeline_mode<synchronous>, transform_indices = @transform_12, window_bounds = array<i64: 1, 128>}, {pipeline_mode = #tpu.pipeline_mode<synchronous>, transform_indices = @transform_13, window_bounds = array<i64: 128, 128>}, {pipeline_mode = #tpu.pipeline_mode<synchronous>, transform_indices = @transform_14, window_bounds = array<i64: 1, 128>}, {pipeline_mode = #tpu.pipeline_mode<synchronous>, transform_indices = @transform_15, window_bounds = array<i64: 128, 128>}, {pipeline_mode = #tpu.pipeline_mode<synchronous>, transform_indices = @transform_16, window_bounds = array<i64: 128, 128>}, {pipeline_mode = #tpu.pipeline_mode<synchronous>, transform_indices = @transform_17, window_bounds = array<i64: 1, 128>}, {pipeline_mode = #tpu.pipeline_mode<synchronous>, transform_indices = @transform_18, window_bounds = array<i64: 4, 32, 128>}, {pipeline_mode = #tpu.pipeline_mode<synchronous>, transform_indices = @transform_19, window_bounds = array<i64: 1, 128>}, {pipeline_mode = #tpu.pipeline_mode<synchronous>, transform_indices = @transform_20, window_bounds = array<i64: 1, 128>}, {pipeline_mode = #tpu.pipeline_mode<synchronous>, transform_indices = @transform_21, window_bounds = array<i64: 1, 128>}, {pipeline_mode = #tpu.pipeline_mode<synchronous>, transform_indices = @transform_22, window_bounds = array<i64: 128, 256>}, {pipeline_mode = #tpu.pipeline_mode<synchronous>, transform_indices = @transform_23, window_bounds = array<i64: 1, 256>}, {pipeline_mode = #tpu.pipeline_mode<synchronous>, transform_indices = @transform_24, window_bounds = array<i64: 256, 128>}, {pipeline_mode = #tpu.pipeline_mode<synchronous>, transform_indices = @transform_25, window_bounds = array<i64: 1, 128>}, {pipeline_mode = #tpu.pipeline_mode<synchronous>, transform_indices = @transform_26, window_bounds = array<i64: 1, 128>}, {pipeline_mode = #tpu.pipeline_mode<synchronous>, transform_indices = @transform_27, window_bounds = array<i64: 1, 128>}, {transform_indices = @transform_28, window_bounds = array<i64: 1, 8, 128>}]} {
    %c0_i32 = arith.constant 0 : i32
    %0 = arith.cmpi eq, %arg1, %c0_i32 : i32
    %1 = arith.extui %0 : i1 to i32
    %c0_i32_0 = arith.constant 0 : i32
    %2 = arith.cmpi ne, %1, %c0_i32_0 : i32
    scf.if %2 {
      %c0_135 = arith.constant 0 : index
      %c0_136 = arith.constant 0 : index
      %c0_137 = arith.constant 0 : index
      %329 = vector.load %arg3[%c0_135, %c0_136, %c0_137] : memref<1x16x128xf32, #tpu.memory_space<vmem>>, vector<1x16x128xf32>
      %330 = vector.shape_cast %329 : vector<1x16x128xf32> to vector<16x128xf32>
      %c0_138 = arith.constant 0 : index
      %c0_139 = arith.constant 0 : index
      %c0_140 = arith.constant 0 : index
      %331 = vector.load %arg4[%c0_138, %c0_139, %c0_140] : memref<1x16x128xf32, #tpu.memory_space<vmem>>, vector<1x16x128xf32>
      %332 = vector.shape_cast %331 : vector<1x16x128xf32> to vector<16x128xf32>
      %333 = arith.truncf %330 : vector<16x128xf32> to vector<16x128xbf16>
      %c0_141 = arith.constant 0 : index
      %c0_142 = arith.constant 0 : index
      %334 = vector.load %arg8[%c0_141, %c0_142] : memref<128x128xbf16, #tpu.memory_space<vmem>>, vector<128x128xbf16>
      %cst_143 = arith.constant dense<0.000000e+00> : vector<16x128xf32>
      %335 = tpu.matmul %333, %334, %cst_143 {dimension_numbers = #tpu.dot_dimension_numbers<[1], [0], [0], [1], [0, 0, 1, 1], [], []>} : vector<16x128xbf16>, vector<128x128xbf16>, vector<16x128xf32> -> vector<16x128xf32>
      %336 = arith.truncf %335 : vector<16x128xf32> to vector<16x128xbf16>
      %337 = vector.shape_cast %336 : vector<16x128xbf16> to vector<16x4x32xbf16>
      %c0_144 = arith.constant 0 : index
      %c0_145 = arith.constant 0 : index
      %c0_146 = arith.constant 0 : index
      %338 = vector.load %arg31[%c0_144, %c0_145, %c0_146] : memref<16x4x32xbf16, #tpu.memory_space<vmem>>, vector<16x4x32xbf16>
      tpu.vector_store %arg31[%c0_144, %c0_145, %c0_146], %337 {strides = array<i32>} : memref<16x4x32xbf16, #tpu.memory_space<vmem>>, vector<16x4x32xbf16>,
      %339 = arith.truncf %330 : vector<16x128xf32> to vector<16x128xbf16>
      %c0_147 = arith.constant 0 : index
      %c0_148 = arith.constant 0 : index
      %340 = vector.load %arg9[%c0_147, %c0_148] : memref<128x128xbf16, #tpu.memory_space<vmem>>, vector<128x128xbf16>
      %cst_149 = arith.constant dense<0.000000e+00> : vector<16x128xf32>
      %341 = tpu.matmul %339, %340, %cst_149 {dimension_numbers = #tpu.dot_dimension_numbers<[1], [0], [0], [1], [0, 0, 1, 1], [], []>} : vector<16x128xbf16>, vector<128x128xbf16>, vector<16x128xf32> -> vector<16x128xf32>
      %c0_150 = arith.constant 0 : index
      %c0_151 = arith.constant 0 : index
      %342 = vector.load %arg10[%c0_150, %c0_151] : memref<1x128xf32, #tpu.memory_space<vmem>>, vector<1x128xf32>
      %343 = vector.broadcast %342 : vector<1x128xf32> to vector<16x128xf32>
      %344 = arith.addf %341, %343 : vector<16x128xf32>
      %345 = arith.truncf %344 : vector<16x128xf32> to vector<16x128xbf16>
      %346 = vector.shape_cast %345 : vector<16x128xbf16> to vector<16x4x32xbf16>
      %c0_152 = arith.constant 0 : index
      %c0_153 = arith.constant 0 : index
      %c0_154 = arith.constant 0 : index
      %347 = vector.load %arg32[%c0_152, %c0_153, %c0_154] : memref<16x4x32xbf16, #tpu.memory_space<vmem>>, vector<16x4x32xbf16>
      tpu.vector_store %arg32[%c0_152, %c0_153, %c0_154], %346 {strides = array<i32>} : memref<16x4x32xbf16, #tpu.memory_space<vmem>>, vector<16x4x32xbf16>,
      %348 = arith.truncf %332 : vector<16x128xf32> to vector<16x128xbf16>
      %c0_155 = arith.constant 0 : index
      %c0_156 = arith.constant 0 : index
      %349 = vector.load %arg17[%c0_155, %c0_156] : memref<128x128xbf16, #tpu.memory_space<vmem>>, vector<128x128xbf16>
      %cst_157 = arith.constant dense<0.000000e+00> : vector<16x128xf32>
      %350 = tpu.matmul %348, %349, %cst_157 {dimension_numbers = #tpu.dot_dimension_numbers<[1], [0], [0], [1], [0, 0, 1, 1], [], []>} : vector<16x128xbf16>, vector<128x128xbf16>, vector<16x128xf32> -> vector<16x128xf32>
      %351 = arith.truncf %350 : vector<16x128xf32> to vector<16x128xbf16>
      %352 = vector.shape_cast %351 : vector<16x128xbf16> to vector<16x4x32xbf16>
      %c0_158 = arith.constant 0 : index
      %c0_159 = arith.constant 0 : index
      %c0_160 = arith.constant 0 : index
      %353 = vector.load %arg33[%c0_158, %c0_159, %c0_160] : memref<16x4x32xbf16, #tpu.memory_space<vmem>>, vector<16x4x32xbf16>
      tpu.vector_store %arg33[%c0_158, %c0_159, %c0_160], %352 {strides = array<i32>} : memref<16x4x32xbf16, #tpu.memory_space<vmem>>, vector<16x4x32xbf16>,
      %354 = arith.truncf %332 : vector<16x128xf32> to vector<16x128xbf16>
      %c0_161 = arith.constant 0 : index
      %c0_162 = arith.constant 0 : index
      %355 = vector.load %arg18[%c0_161, %c0_162] : memref<128x128xbf16, #tpu.memory_space<vmem>>, vector<128x128xbf16>
      %cst_163 = arith.constant dense<0.000000e+00> : vector<16x128xf32>
      %356 = tpu.matmul %354, %355, %cst_163 {dimension_numbers = #tpu.dot_dimension_numbers<[1], [0], [0], [1], [0, 0, 1, 1], [], []>} : vector<16x128xbf16>, vector<128x128xbf16>, vector<16x128xf32> -> vector<16x128xf32>
      %c0_164 = arith.constant 0 : index
      %c0_165 = arith.constant 0 : index
      %357 = vector.load %arg19[%c0_164, %c0_165] : memref<1x128xf32, #tpu.memory_space<vmem>>, vector<1x128xf32>
      %358 = vector.broadcast %357 : vector<1x128xf32> to vector<16x128xf32>
      %359 = arith.addf %356, %358 : vector<16x128xf32>
      %360 = arith.truncf %359 : vector<16x128xf32> to vector<16x128xbf16>
      %361 = vector.shape_cast %360 : vector<16x128xbf16> to vector<16x4x32xbf16>
      %c0_166 = arith.constant 0 : index
      %c0_167 = arith.constant 0 : index
      %c0_168 = arith.constant 0 : index
      %362 = vector.load %arg34[%c0_166, %c0_167, %c0_168] : memref<16x4x32xbf16, #tpu.memory_space<vmem>>, vector<16x4x32xbf16>
      tpu.vector_store %arg34[%c0_166, %c0_167, %c0_168], %361 {strides = array<i32>} : memref<16x4x32xbf16, #tpu.memory_space<vmem>>, vector<16x4x32xbf16>,
    } else {
    }
    %c0 = arith.constant 0 : index
    %c0_1 = arith.constant 0 : index
    %c0_2 = arith.constant 0 : index
    %3 = vector.load %arg2[%c0, %c0_1, %c0_2] : memref<1x8x128xf32, #tpu.memory_space<vmem>>, vector<1x8x128xf32>
    %4 = vector.shape_cast %3 : vector<1x8x128xf32> to vector<8x128xf32>
    %c0_3 = arith.constant 0 : index
    %c0_4 = arith.constant 0 : index
    %5 = vector.load %arg5[%c0_3, %c0_4] : memref<8x16xf32, #tpu.memory_space<vmem>>, vector<8x16xf32>
    %6 = arith.truncf %4 : vector<8x128xf32> to vector<8x128xbf16>
    %c0_5 = arith.constant 0 : index
    %c0_6 = arith.constant 0 : index
    %7 = vector.load %arg6[%c0_5, %c0_6] : memref<128x128xbf16, #tpu.memory_space<vmem>>, vector<128x128xbf16>
    %cst = arith.constant dense<0.000000e+00> : vector<8x128xf32>
    %8 = tpu.matmul %6, %7, %cst {dimension_numbers = #tpu.dot_dimension_numbers<[1], [0], [0], [1], [0, 0, 1, 1], [], []>} : vector<8x128xbf16>, vector<128x128xbf16>, vector<8x128xf32> -> vector<8x128xf32>
    %c0_7 = arith.constant 0 : index
    %c0_8 = arith.constant 0 : index
    %9 = vector.load %arg7[%c0_7, %c0_8] : memref<1x128xf32, #tpu.memory_space<vmem>>, vector<1x128xf32>
    %10 = vector.broadcast %9 : vector<1x128xf32> to vector<8x128xf32>
    %11 = arith.addf %8, %10 : vector<8x128xf32>
    %12 = arith.truncf %11 : vector<8x128xf32> to vector<8x128xbf16>
    %13 = vector.shape_cast %12 : vector<8x128xbf16> to vector<8x4x32xbf16>
    %c0_9 = arith.constant 0 : index
    %c0_10 = arith.constant 0 : index
    %c0_11 = arith.constant 0 : index
    %14 = vector.load %arg31[%c0_9, %c0_10, %c0_11] : memref<16x4x32xbf16, #tpu.memory_space<vmem>>, vector<16x4x32xbf16>
    %c0_12 = arith.constant 0 : index
    %c0_13 = arith.constant 0 : index
    %c0_14 = arith.constant 0 : index
    %15 = vector.load %arg32[%c0_12, %c0_13, %c0_14] : memref<16x4x32xbf16, #tpu.memory_space<vmem>>, vector<16x4x32xbf16>
    %16 = vector.extract_strided_slice %13 {offsets = [0, 0, 0], sizes = [8, 1, 32], strides = [1, 1, 1]} : vector<8x4x32xbf16> to vector<8x1x32xbf16>
    %17 = vector.shape_cast %16 : vector<8x1x32xbf16> to vector<8x32xbf16>
    %18 = vector.extract_strided_slice %14 {offsets = [0, 0, 0], sizes = [16, 1, 32], strides = [1, 1, 1]} : vector<16x4x32xbf16> to vector<16x1x32xbf16>
    %19 = vector.shape_cast %18 : vector<16x1x32xbf16> to vector<16x32xbf16>
    %cst_15 = arith.constant dense<0.000000e+00> : vector<8x16xf32>
    %20 = tpu.matmul %17, %19, %cst_15 {dimension_numbers = #tpu.dot_dimension_numbers<[1], [1], [0], [0], [0, 0, 1, 0], [], []>} : vector<8x32xbf16>, vector<16x32xbf16>, vector<8x16xf32> -> vector<8x16xf32>
    %21 = arith.addf %20, %5 : vector<8x16xf32>
    %cst_16 = arith.constant dense<0xFF800000> : vector<8xf32>
    %22 = vector.multi_reduction <maximumf>, %21, %cst_16 [1] : vector<8x16xf32> to vector<8xf32>
    %23 = vector.shape_cast %22 : vector<8xf32> to vector<8x1xf32>
    %24 = vector.broadcast %23 : vector<8x1xf32> to vector<8x16xf32>
    %25 = arith.subf %21, %24 : vector<8x16xf32>
    %26 = math.exp %25 : vector<8x16xf32>
    %cst_17 = arith.constant dense<0.000000e+00> : vector<8xf32>
    %27 = vector.multi_reduction <add>, %26, %cst_17 [1] : vector<8x16xf32> to vector<8xf32>
    %28 = vector.shape_cast %27 : vector<8xf32> to vector<8x1xf32>
    %29 = tpu.reciprocal %28 {approx = true} : vector<8x1xf32> -> vector<8x1xf32>
    %30 = vector.broadcast %29 : vector<8x1xf32> to vector<8x16xf32>
    %31 = arith.mulf %26, %30 : vector<8x16xf32>
    %32 = arith.truncf %31 : vector<8x16xf32> to vector<8x16xbf16>
    %33 = vector.extract_strided_slice %15 {offsets = [0, 0, 0], sizes = [16, 1, 32], strides = [1, 1, 1]} : vector<16x4x32xbf16> to vector<16x1x32xbf16>
    %34 = vector.shape_cast %33 : vector<16x1x32xbf16> to vector<16x32xbf16>
    %cst_18 = arith.constant dense<0.000000e+00> : vector<8x32xf32>
    %35 = tpu.matmul %32, %34, %cst_18 {dimension_numbers = #tpu.dot_dimension_numbers<[1], [0], [0], [1], [0, 0, 1, 1], [], []>} : vector<8x16xbf16>, vector<16x32xbf16>, vector<8x32xf32> -> vector<8x32xf32>
    %36 = vector.extract_strided_slice %13 {offsets = [0, 1, 0], sizes = [8, 1, 32], strides = [1, 1, 1]} : vector<8x4x32xbf16> to vector<8x1x32xbf16>
    %37 = vector.shape_cast %36 : vector<8x1x32xbf16> to vector<8x32xbf16>
    %38 = vector.extract_strided_slice %14 {offsets = [0, 1, 0], sizes = [16, 1, 32], strides = [1, 1, 1]} : vector<16x4x32xbf16> to vector<16x1x32xbf16>
    %39 = vector.shape_cast %38 : vector<16x1x32xbf16> to vector<16x32xbf16>
    %cst_19 = arith.constant dense<0.000000e+00> : vector<8x16xf32>
    %40 = tpu.matmul %37, %39, %cst_19 {dimension_numbers = #tpu.dot_dimension_numbers<[1], [1], [0], [0], [0, 0, 1, 0], [], []>} : vector<8x32xbf16>, vector<16x32xbf16>, vector<8x16xf32> -> vector<8x16xf32>
    %41 = arith.addf %40, %5 : vector<8x16xf32>
    %cst_20 = arith.constant dense<0xFF800000> : vector<8xf32>
    %42 = vector.multi_reduction <maximumf>, %41, %cst_20 [1] : vector<8x16xf32> to vector<8xf32>
    %43 = vector.shape_cast %42 : vector<8xf32> to vector<8x1xf32>
    %44 = vector.broadcast %43 : vector<8x1xf32> to vector<8x16xf32>
    %45 = arith.subf %41, %44 : vector<8x16xf32>
    %46 = math.exp %45 : vector<8x16xf32>
    %cst_21 = arith.constant dense<0.000000e+00> : vector<8xf32>
    %47 = vector.multi_reduction <add>, %46, %cst_21 [1] : vector<8x16xf32> to vector<8xf32>
    %48 = vector.shape_cast %47 : vector<8xf32> to vector<8x1xf32>
    %49 = tpu.reciprocal %48 {approx = true} : vector<8x1xf32> -> vector<8x1xf32>
    %50 = vector.broadcast %49 : vector<8x1xf32> to vector<8x16xf32>
    %51 = arith.mulf %46, %50 : vector<8x16xf32>
    %52 = arith.truncf %51 : vector<8x16xf32> to vector<8x16xbf16>
    %53 = vector.extract_strided_slice %15 {offsets = [0, 1, 0], sizes = [16, 1, 32], strides = [1, 1, 1]} : vector<16x4x32xbf16> to vector<16x1x32xbf16>
    %54 = vector.shape_cast %53 : vector<16x1x32xbf16> to vector<16x32xbf16>
    %cst_22 = arith.constant dense<0.000000e+00> : vector<8x32xf32>
    %55 = tpu.matmul %52, %54, %cst_22 {dimension_numbers = #tpu.dot_dimension_numbers<[1], [0], [0], [1], [0, 0, 1, 1], [], []>} : vector<8x16xbf16>, vector<16x32xbf16>, vector<8x32xf32> -> vector<8x32xf32>
    %56 = vector.extract_strided_slice %13 {offsets = [0, 2, 0], sizes = [8, 1, 32], strides = [1, 1, 1]} : vector<8x4x32xbf16> to vector<8x1x32xbf16>
    %57 = vector.shape_cast %56 : vector<8x1x32xbf16> to vector<8x32xbf16>
    %58 = vector.extract_strided_slice %14 {offsets = [0, 2, 0], sizes = [16, 1, 32], strides = [1, 1, 1]} : vector<16x4x32xbf16> to vector<16x1x32xbf16>
    %59 = vector.shape_cast %58 : vector<16x1x32xbf16> to vector<16x32xbf16>
    %cst_23 = arith.constant dense<0.000000e+00> : vector<8x16xf32>
    %60 = tpu.matmul %57, %59, %cst_23 {dimension_numbers = #tpu.dot_dimension_numbers<[1], [1], [0], [0], [0, 0, 1, 0], [], []>} : vector<8x32xbf16>, vector<16x32xbf16>, vector<8x16xf32> -> vector<8x16xf32>
    %61 = arith.addf %60, %5 : vector<8x16xf32>
    %cst_24 = arith.constant dense<0xFF800000> : vector<8xf32>
    %62 = vector.multi_reduction <maximumf>, %61, %cst_24 [1] : vector<8x16xf32> to vector<8xf32>
    %63 = vector.shape_cast %62 : vector<8xf32> to vector<8x1xf32>
    %64 = vector.broadcast %63 : vector<8x1xf32> to vector<8x16xf32>
    %65 = arith.subf %61, %64 : vector<8x16xf32>
    %66 = math.exp %65 : vector<8x16xf32>
    %cst_25 = arith.constant dense<0.000000e+00> : vector<8xf32>
    %67 = vector.multi_reduction <add>, %66, %cst_25 [1] : vector<8x16xf32> to vector<8xf32>
    %68 = vector.shape_cast %67 : vector<8xf32> to vector<8x1xf32>
    %69 = tpu.reciprocal %68 {approx = true} : vector<8x1xf32> -> vector<8x1xf32>
    %70 = vector.broadcast %69 : vector<8x1xf32> to vector<8x16xf32>
    %71 = arith.mulf %66, %70 : vector<8x16xf32>
    %72 = arith.truncf %71 : vector<8x16xf32> to vector<8x16xbf16>
    %73 = vector.extract_strided_slice %15 {offsets = [0, 2, 0], sizes = [16, 1, 32], strides = [1, 1, 1]} : vector<16x4x32xbf16> to vector<16x1x32xbf16>
    %74 = vector.shape_cast %73 : vector<16x1x32xbf16> to vector<16x32xbf16>
    %cst_26 = arith.constant dense<0.000000e+00> : vector<8x32xf32>
    %75 = tpu.matmul %72, %74, %cst_26 {dimension_numbers = #tpu.dot_dimension_numbers<[1], [0], [0], [1], [0, 0, 1, 1], [], []>} : vector<8x16xbf16>, vector<16x32xbf16>, vector<8x32xf32> -> vector<8x32xf32>
    %76 = vector.extract_strided_slice %13 {offsets = [0, 3, 0], sizes = [8, 1, 32], strides = [1, 1, 1]} : vector<8x4x32xbf16> to vector<8x1x32xbf16>
    %77 = vector.shape_cast %76 : vector<8x1x32xbf16> to vector<8x32xbf16>
    %78 = vector.extract_strided_slice %14 {offsets = [0, 3, 0], sizes = [16, 1, 32], strides = [1, 1, 1]} : vector<16x4x32xbf16> to vector<16x1x32xbf16>
    %79 = vector.shape_cast %78 : vector<16x1x32xbf16> to vector<16x32xbf16>
    %cst_27 = arith.constant dense<0.000000e+00> : vector<8x16xf32>
    %80 = tpu.matmul %77, %79, %cst_27 {dimension_numbers = #tpu.dot_dimension_numbers<[1], [1], [0], [0], [0, 0, 1, 0], [], []>} : vector<8x32xbf16>, vector<16x32xbf16>, vector<8x16xf32> -> vector<8x16xf32>
    %81 = arith.addf %80, %5 : vector<8x16xf32>
    %cst_28 = arith.constant dense<0xFF800000> : vector<8xf32>
    %82 = vector.multi_reduction <maximumf>, %81, %cst_28 [1] : vector<8x16xf32> to vector<8xf32>
    %83 = vector.shape_cast %82 : vector<8xf32> to vector<8x1xf32>
    %84 = vector.broadcast %83 : vector<8x1xf32> to vector<8x16xf32>
    %85 = arith.subf %81, %84 : vector<8x16xf32>
    %86 = math.exp %85 : vector<8x16xf32>
    %cst_29 = arith.constant dense<0.000000e+00> : vector<8xf32>
    %87 = vector.multi_reduction <add>, %86, %cst_29 [1] : vector<8x16xf32> to vector<8xf32>
    %88 = vector.shape_cast %87 : vector<8xf32> to vector<8x1xf32>
    %89 = tpu.reciprocal %88 {approx = true} : vector<8x1xf32> -> vector<8x1xf32>
    %90 = vector.broadcast %89 : vector<8x1xf32> to vector<8x16xf32>
    %91 = arith.mulf %86, %90 : vector<8x16xf32>
    %92 = arith.truncf %91 : vector<8x16xf32> to vector<8x16xbf16>
    %93 = vector.extract_strided_slice %15 {offsets = [0, 3, 0], sizes = [16, 1, 32], strides = [1, 1, 1]} : vector<16x4x32xbf16> to vector<16x1x32xbf16>
    %94 = vector.shape_cast %93 : vector<16x1x32xbf16> to vector<16x32xbf16>
    %cst_30 = arith.constant dense<0.000000e+00> : vector<8x32xf32>
    %95 = tpu.matmul %92, %94, %cst_30 {dimension_numbers = #tpu.dot_dimension_numbers<[1], [0], [0], [1], [0, 0, 1, 1], [], []>} : vector<8x16xbf16>, vector<16x32xbf16>, vector<8x32xf32> -> vector<8x32xf32>
    %96 = arith.truncf %35 : vector<8x32xf32> to vector<8x32xbf16>
    %c0_31 = arith.constant 0 : index
    %c0_32 = arith.constant 0 : index
    %c0_33 = arith.constant 0 : index
    %97 = vector.load %arg11[%c0_31, %c0_32, %c0_33] : memref<4x32x128xbf16, #tpu.memory_space<vmem>>, vector<1x32x128xbf16>
    %98 = vector.shape_cast %97 : vector<1x32x128xbf16> to vector<32x128xbf16>
    %cst_34 = arith.constant dense<0.000000e+00> : vector<8x128xf32>
    %99 = tpu.matmul %96, %98, %cst_34 {dimension_numbers = #tpu.dot_dimension_numbers<[1], [0], [0], [1], [0, 0, 1, 1], [], []>} : vector<8x32xbf16>, vector<32x128xbf16>, vector<8x128xf32> -> vector<8x128xf32>
    %100 = arith.truncf %55 : vector<8x32xf32> to vector<8x32xbf16>
    %c1 = arith.constant 1 : index
    %c0_35 = arith.constant 0 : index
    %c0_36 = arith.constant 0 : index
    %101 = vector.load %arg11[%c1, %c0_35, %c0_36] : memref<4x32x128xbf16, #tpu.memory_space<vmem>>, vector<1x32x128xbf16>
    %102 = vector.shape_cast %101 : vector<1x32x128xbf16> to vector<32x128xbf16>
    %cst_37 = arith.constant dense<0.000000e+00> : vector<8x128xf32>
    %103 = tpu.matmul %100, %102, %cst_37 {dimension_numbers = #tpu.dot_dimension_numbers<[1], [0], [0], [1], [0, 0, 1, 1], [], []>} : vector<8x32xbf16>, vector<32x128xbf16>, vector<8x128xf32> -> vector<8x128xf32>
    %104 = arith.addf %99, %103 : vector<8x128xf32>
    %105 = arith.truncf %75 : vector<8x32xf32> to vector<8x32xbf16>
    %c2 = arith.constant 2 : index
    %c0_38 = arith.constant 0 : index
    %c0_39 = arith.constant 0 : index
    %106 = vector.load %arg11[%c2, %c0_38, %c0_39] : memref<4x32x128xbf16, #tpu.memory_space<vmem>>, vector<1x32x128xbf16>
    %107 = vector.shape_cast %106 : vector<1x32x128xbf16> to vector<32x128xbf16>
    %cst_40 = arith.constant dense<0.000000e+00> : vector<8x128xf32>
    %108 = tpu.matmul %105, %107, %cst_40 {dimension_numbers = #tpu.dot_dimension_numbers<[1], [0], [0], [1], [0, 0, 1, 1], [], []>} : vector<8x32xbf16>, vector<32x128xbf16>, vector<8x128xf32> -> vector<8x128xf32>
    %109 = arith.addf %104, %108 : vector<8x128xf32>
    %110 = arith.truncf %95 : vector<8x32xf32> to vector<8x32xbf16>
    %c3 = arith.constant 3 : index
    %c0_41 = arith.constant 0 : index
    %c0_42 = arith.constant 0 : index
    %111 = vector.load %arg11[%c3, %c0_41, %c0_42] : memref<4x32x128xbf16, #tpu.memory_space<vmem>>, vector<1x32x128xbf16>
    %112 = vector.shape_cast %111 : vector<1x32x128xbf16> to vector<32x128xbf16>
    %cst_43 = arith.constant dense<0.000000e+00> : vector<8x128xf32>
    %113 = tpu.matmul %110, %112, %cst_43 {dimension_numbers = #tpu.dot_dimension_numbers<[1], [0], [0], [1], [0, 0, 1, 1], [], []>} : vector<8x32xbf16>, vector<32x128xbf16>, vector<8x128xf32> -> vector<8x128xf32>
    %114 = arith.addf %109, %113 : vector<8x128xf32>
    %c0_44 = arith.constant 0 : index
    %c0_45 = arith.constant 0 : index
    %115 = vector.load %arg12[%c0_44, %c0_45] : memref<1x128xf32, #tpu.memory_space<vmem>>, vector<1x128xf32>
    %116 = vector.broadcast %115 : vector<1x128xf32> to vector<8x128xf32>
    %117 = arith.addf %114, %116 : vector<8x128xf32>
    %118 = arith.addf %4, %117 : vector<8x128xf32>
    %cst_46 = arith.constant dense<0.000000e+00> : vector<8xf32>
    %119 = vector.multi_reduction <add>, %118, %cst_46 [1] : vector<8x128xf32> to vector<8xf32>
    %120 = vector.shape_cast %119 : vector<8xf32> to vector<8x1xf32>
    %cst_47 = arith.constant 1.280000e+02 : f32
    %121 = vector.broadcast %cst_47 : f32 to vector<8x1xf32>
    %122 = arith.divf %120, %121 : vector<8x1xf32>
    %123 = vector.broadcast %122 : vector<8x1xf32> to vector<8x128xf32>
    %124 = arith.subf %118, %123 : vector<8x128xf32>
    %125 = arith.mulf %124, %124 : vector<8x128xf32>
    %cst_48 = arith.constant dense<0.000000e+00> : vector<8xf32>
    %126 = vector.multi_reduction <add>, %125, %cst_48 [1] : vector<8x128xf32> to vector<8xf32>
    %127 = vector.shape_cast %126 : vector<8xf32> to vector<8x1xf32>
    %cst_49 = arith.constant 1.280000e+02 : f32
    %128 = vector.broadcast %cst_49 : f32 to vector<8x1xf32>
    %129 = arith.divf %127, %128 : vector<8x1xf32>
    %130 = vector.broadcast %122 : vector<8x1xf32> to vector<8x128xf32>
    %131 = arith.subf %118, %130 : vector<8x128xf32>
    %cst_50 = arith.constant 9.99999974E-6 : f32
    %132 = vector.broadcast %cst_50 : f32 to vector<8x1xf32>
    %133 = arith.addf %129, %132 : vector<8x1xf32>
    %134 = math.rsqrt %133 : vector<8x1xf32>
    %135 = vector.broadcast %134 : vector<8x1xf32> to vector<8x128xf32>
    %136 = arith.mulf %131, %135 : vector<8x128xf32>
    %c0_51 = arith.constant 0 : index
    %c0_52 = arith.constant 0 : index
    %137 = vector.load %arg13[%c0_51, %c0_52] : memref<1x128xf32, #tpu.memory_space<vmem>>, vector<1x128xf32>
    %138 = vector.broadcast %137 : vector<1x128xf32> to vector<8x128xf32>
    %139 = arith.mulf %136, %138 : vector<8x128xf32>
    %c0_53 = arith.constant 0 : index
    %c0_54 = arith.constant 0 : index
    %140 = vector.load %arg14[%c0_53, %c0_54] : memref<1x128xf32, #tpu.memory_space<vmem>>, vector<1x128xf32>
    %141 = vector.broadcast %140 : vector<1x128xf32> to vector<8x128xf32>
    %142 = arith.addf %139, %141 : vector<8x128xf32>
    %143 = arith.truncf %142 : vector<8x128xf32> to vector<8x128xbf16>
    %c0_55 = arith.constant 0 : index
    %c0_56 = arith.constant 0 : index
    %144 = vector.load %arg15[%c0_55, %c0_56] : memref<128x128xbf16, #tpu.memory_space<vmem>>, vector<128x128xbf16>
    %cst_57 = arith.constant dense<0.000000e+00> : vector<8x128xf32>
    %145 = tpu.matmul %143, %144, %cst_57 {dimension_numbers = #tpu.dot_dimension_numbers<[1], [0], [0], [1], [0, 0, 1, 1], [], []>} : vector<8x128xbf16>, vector<128x128xbf16>, vector<8x128xf32> -> vector<8x128xf32>
    %c0_58 = arith.constant 0 : index
    %c0_59 = arith.constant 0 : index
    %146 = vector.load %arg16[%c0_58, %c0_59] : memref<1x128xf32, #tpu.memory_space<vmem>>, vector<1x128xf32>
    %147 = vector.broadcast %146 : vector<1x128xf32> to vector<8x128xf32>
    %148 = arith.addf %145, %147 : vector<8x128xf32>
    %149 = arith.truncf %148 : vector<8x128xf32> to vector<8x128xbf16>
    %150 = vector.shape_cast %149 : vector<8x128xbf16> to vector<8x4x32xbf16>
    %c0_60 = arith.constant 0 : index
    %c0_61 = arith.constant 0 : index
    %c0_62 = arith.constant 0 : index
    %151 = vector.load %arg33[%c0_60, %c0_61, %c0_62] : memref<16x4x32xbf16, #tpu.memory_space<vmem>>, vector<16x4x32xbf16>
    %c0_63 = arith.constant 0 : index
    %c0_64 = arith.constant 0 : index
    %c0_65 = arith.constant 0 : index
    %152 = vector.load %arg34[%c0_63, %c0_64, %c0_65] : memref<16x4x32xbf16, #tpu.memory_space<vmem>>, vector<16x4x32xbf16>
    %153 = vector.extract_strided_slice %150 {offsets = [0, 0, 0], sizes = [8, 1, 32], strides = [1, 1, 1]} : vector<8x4x32xbf16> to vector<8x1x32xbf16>
    %154 = vector.shape_cast %153 : vector<8x1x32xbf16> to vector<8x32xbf16>
    %155 = vector.extract_strided_slice %151 {offsets = [0, 0, 0], sizes = [16, 1, 32], strides = [1, 1, 1]} : vector<16x4x32xbf16> to vector<16x1x32xbf16>
    %156 = vector.shape_cast %155 : vector<16x1x32xbf16> to vector<16x32xbf16>
    %cst_66 = arith.constant dense<0.000000e+00> : vector<8x16xf32>
    %157 = tpu.matmul %154, %156, %cst_66 {dimension_numbers = #tpu.dot_dimension_numbers<[1], [1], [0], [0], [0, 0, 1, 0], [], []>} : vector<8x32xbf16>, vector<16x32xbf16>, vector<8x16xf32> -> vector<8x16xf32>
    %cst_67 = arith.constant dense<0xFF800000> : vector<8xf32>
    %158 = vector.multi_reduction <maximumf>, %157, %cst_67 [1] : vector<8x16xf32> to vector<8xf32>
    %159 = vector.shape_cast %158 : vector<8xf32> to vector<8x1xf32>
    %160 = vector.broadcast %159 : vector<8x1xf32> to vector<8x16xf32>
    %161 = arith.subf %157, %160 : vector<8x16xf32>
    %162 = math.exp %161 : vector<8x16xf32>
    %cst_68 = arith.constant dense<0.000000e+00> : vector<8xf32>
    %163 = vector.multi_reduction <add>, %162, %cst_68 [1] : vector<8x16xf32> to vector<8xf32>
    %164 = vector.shape_cast %163 : vector<8xf32> to vector<8x1xf32>
    %165 = tpu.reciprocal %164 {approx = true} : vector<8x1xf32> -> vector<8x1xf32>
    %166 = vector.broadcast %165 : vector<8x1xf32> to vector<8x16xf32>
    %167 = arith.mulf %162, %166 : vector<8x16xf32>
    %168 = arith.truncf %167 : vector<8x16xf32> to vector<8x16xbf16>
    %169 = vector.extract_strided_slice %152 {offsets = [0, 0, 0], sizes = [16, 1, 32], strides = [1, 1, 1]} : vector<16x4x32xbf16> to vector<16x1x32xbf16>
    %170 = vector.shape_cast %169 : vector<16x1x32xbf16> to vector<16x32xbf16>
    %cst_69 = arith.constant dense<0.000000e+00> : vector<8x32xf32>
    %171 = tpu.matmul %168, %170, %cst_69 {dimension_numbers = #tpu.dot_dimension_numbers<[1], [0], [0], [1], [0, 0, 1, 1], [], []>} : vector<8x16xbf16>, vector<16x32xbf16>, vector<8x32xf32> -> vector<8x32xf32>
    %172 = vector.extract_strided_slice %150 {offsets = [0, 1, 0], sizes = [8, 1, 32], strides = [1, 1, 1]} : vector<8x4x32xbf16> to vector<8x1x32xbf16>
    %173 = vector.shape_cast %172 : vector<8x1x32xbf16> to vector<8x32xbf16>
    %174 = vector.extract_strided_slice %151 {offsets = [0, 1, 0], sizes = [16, 1, 32], strides = [1, 1, 1]} : vector<16x4x32xbf16> to vector<16x1x32xbf16>
    %175 = vector.shape_cast %174 : vector<16x1x32xbf16> to vector<16x32xbf16>
    %cst_70 = arith.constant dense<0.000000e+00> : vector<8x16xf32>
    %176 = tpu.matmul %173, %175, %cst_70 {dimension_numbers = #tpu.dot_dimension_numbers<[1], [1], [0], [0], [0, 0, 1, 0], [], []>} : vector<8x32xbf16>, vector<16x32xbf16>, vector<8x16xf32> -> vector<8x16xf32>
    %cst_71 = arith.constant dense<0xFF800000> : vector<8xf32>
    %177 = vector.multi_reduction <maximumf>, %176, %cst_71 [1] : vector<8x16xf32> to vector<8xf32>
    %178 = vector.shape_cast %177 : vector<8xf32> to vector<8x1xf32>
    %179 = vector.broadcast %178 : vector<8x1xf32> to vector<8x16xf32>
    %180 = arith.subf %176, %179 : vector<8x16xf32>
    %181 = math.exp %180 : vector<8x16xf32>
    %cst_72 = arith.constant dense<0.000000e+00> : vector<8xf32>
    %182 = vector.multi_reduction <add>, %181, %cst_72 [1] : vector<8x16xf32> to vector<8xf32>
    %183 = vector.shape_cast %182 : vector<8xf32> to vector<8x1xf32>
    %184 = tpu.reciprocal %183 {approx = true} : vector<8x1xf32> -> vector<8x1xf32>
    %185 = vector.broadcast %184 : vector<8x1xf32> to vector<8x16xf32>
    %186 = arith.mulf %181, %185 : vector<8x16xf32>
    %187 = arith.truncf %186 : vector<8x16xf32> to vector<8x16xbf16>
    %188 = vector.extract_strided_slice %152 {offsets = [0, 1, 0], sizes = [16, 1, 32], strides = [1, 1, 1]} : vector<16x4x32xbf16> to vector<16x1x32xbf16>
    %189 = vector.shape_cast %188 : vector<16x1x32xbf16> to vector<16x32xbf16>
    %cst_73 = arith.constant dense<0.000000e+00> : vector<8x32xf32>
    %190 = tpu.matmul %187, %189, %cst_73 {dimension_numbers = #tpu.dot_dimension_numbers<[1], [0], [0], [1], [0, 0, 1, 1], [], []>} : vector<8x16xbf16>, vector<16x32xbf16>, vector<8x32xf32> -> vector<8x32xf32>
    %191 = vector.extract_strided_slice %150 {offsets = [0, 2, 0], sizes = [8, 1, 32], strides = [1, 1, 1]} : vector<8x4x32xbf16> to vector<8x1x32xbf16>
    %192 = vector.shape_cast %191 : vector<8x1x32xbf16> to vector<8x32xbf16>
    %193 = vector.extract_strided_slice %151 {offsets = [0, 2, 0], sizes = [16, 1, 32], strides = [1, 1, 1]} : vector<16x4x32xbf16> to vector<16x1x32xbf16>
    %194 = vector.shape_cast %193 : vector<16x1x32xbf16> to vector<16x32xbf16>
    %cst_74 = arith.constant dense<0.000000e+00> : vector<8x16xf32>
    %195 = tpu.matmul %192, %194, %cst_74 {dimension_numbers = #tpu.dot_dimension_numbers<[1], [1], [0], [0], [0, 0, 1, 0], [], []>} : vector<8x32xbf16>, vector<16x32xbf16>, vector<8x16xf32> -> vector<8x16xf32>
    %cst_75 = arith.constant dense<0xFF800000> : vector<8xf32>
    %196 = vector.multi_reduction <maximumf>, %195, %cst_75 [1] : vector<8x16xf32> to vector<8xf32>
    %197 = vector.shape_cast %196 : vector<8xf32> to vector<8x1xf32>
    %198 = vector.broadcast %197 : vector<8x1xf32> to vector<8x16xf32>
    %199 = arith.subf %195, %198 : vector<8x16xf32>
    %200 = math.exp %199 : vector<8x16xf32>
    %cst_76 = arith.constant dense<0.000000e+00> : vector<8xf32>
    %201 = vector.multi_reduction <add>, %200, %cst_76 [1] : vector<8x16xf32> to vector<8xf32>
    %202 = vector.shape_cast %201 : vector<8xf32> to vector<8x1xf32>
    %203 = tpu.reciprocal %202 {approx = true} : vector<8x1xf32> -> vector<8x1xf32>
    %204 = vector.broadcast %203 : vector<8x1xf32> to vector<8x16xf32>
    %205 = arith.mulf %200, %204 : vector<8x16xf32>
    %206 = arith.truncf %205 : vector<8x16xf32> to vector<8x16xbf16>
    %207 = vector.extract_strided_slice %152 {offsets = [0, 2, 0], sizes = [16, 1, 32], strides = [1, 1, 1]} : vector<16x4x32xbf16> to vector<16x1x32xbf16>
    %208 = vector.shape_cast %207 : vector<16x1x32xbf16> to vector<16x32xbf16>
    %cst_77 = arith.constant dense<0.000000e+00> : vector<8x32xf32>
    %209 = tpu.matmul %206, %208, %cst_77 {dimension_numbers = #tpu.dot_dimension_numbers<[1], [0], [0], [1], [0, 0, 1, 1], [], []>} : vector<8x16xbf16>, vector<16x32xbf16>, vector<8x32xf32> -> vector<8x32xf32>
    %210 = vector.extract_strided_slice %150 {offsets = [0, 3, 0], sizes = [8, 1, 32], strides = [1, 1, 1]} : vector<8x4x32xbf16> to vector<8x1x32xbf16>
    %211 = vector.shape_cast %210 : vector<8x1x32xbf16> to vector<8x32xbf16>
    %212 = vector.extract_strided_slice %151 {offsets = [0, 3, 0], sizes = [16, 1, 32], strides = [1, 1, 1]} : vector<16x4x32xbf16> to vector<16x1x32xbf16>
    %213 = vector.shape_cast %212 : vector<16x1x32xbf16> to vector<16x32xbf16>
    %cst_78 = arith.constant dense<0.000000e+00> : vector<8x16xf32>
    %214 = tpu.matmul %211, %213, %cst_78 {dimension_numbers = #tpu.dot_dimension_numbers<[1], [1], [0], [0], [0, 0, 1, 0], [], []>} : vector<8x32xbf16>, vector<16x32xbf16>, vector<8x16xf32> -> vector<8x16xf32>
    %cst_79 = arith.constant dense<0xFF800000> : vector<8xf32>
    %215 = vector.multi_reduction <maximumf>, %214, %cst_79 [1] : vector<8x16xf32> to vector<8xf32>
    %216 = vector.shape_cast %215 : vector<8xf32> to vector<8x1xf32>
    %217 = vector.broadcast %216 : vector<8x1xf32> to vector<8x16xf32>
    %218 = arith.subf %214, %217 : vector<8x16xf32>
    %219 = math.exp %218 : vector<8x16xf32>
    %cst_80 = arith.constant dense<0.000000e+00> : vector<8xf32>
    %220 = vector.multi_reduction <add>, %219, %cst_80 [1] : vector<8x16xf32> to vector<8xf32>
    %221 = vector.shape_cast %220 : vector<8xf32> to vector<8x1xf32>
    %222 = tpu.reciprocal %221 {approx = true} : vector<8x1xf32> -> vector<8x1xf32>
    %223 = vector.broadcast %222 : vector<8x1xf32> to vector<8x16xf32>
    %224 = arith.mulf %219, %223 : vector<8x16xf32>
    %225 = arith.truncf %224 : vector<8x16xf32> to vector<8x16xbf16>
    %226 = vector.extract_strided_slice %152 {offsets = [0, 3, 0], sizes = [16, 1, 32], strides = [1, 1, 1]} : vector<16x4x32xbf16> to vector<16x1x32xbf16>
    %227 = vector.shape_cast %226 : vector<16x1x32xbf16> to vector<16x32xbf16>
    %cst_81 = arith.constant dense<0.000000e+00> : vector<8x32xf32>
    %228 = tpu.matmul %225, %227, %cst_81 {dimension_numbers = #tpu.dot_dimension_numbers<[1], [0], [0], [1], [0, 0, 1, 1], [], []>} : vector<8x16xbf16>, vector<16x32xbf16>, vector<8x32xf32> -> vector<8x32xf32>
    %229 = arith.truncf %171 : vector<8x32xf32> to vector<8x32xbf16>
    %c0_82 = arith.constant 0 : index
    %c0_83 = arith.constant 0 : index
    %c0_84 = arith.constant 0 : index
    %230 = vector.load %arg20[%c0_82, %c0_83, %c0_84] : memref<4x32x128xbf16, #tpu.memory_space<vmem>>, vector<1x32x128xbf16>
    %231 = vector.shape_cast %230 : vector<1x32x128xbf16> to vector<32x128xbf16>
    %cst_85 = arith.constant dense<0.000000e+00> : vector<8x128xf32>
    %232 = tpu.matmul %229, %231, %cst_85 {dimension_numbers = #tpu.dot_dimension_numbers<[1], [0], [0], [1], [0, 0, 1, 1], [], []>} : vector<8x32xbf16>, vector<32x128xbf16>, vector<8x128xf32> -> vector<8x128xf32>
    %233 = arith.truncf %190 : vector<8x32xf32> to vector<8x32xbf16>
    %c1_86 = arith.constant 1 : index
    %c0_87 = arith.constant 0 : index
    %c0_88 = arith.constant 0 : index
    %234 = vector.load %arg20[%c1_86, %c0_87, %c0_88] : memref<4x32x128xbf16, #tpu.memory_space<vmem>>, vector<1x32x128xbf16>
    %235 = vector.shape_cast %234 : vector<1x32x128xbf16> to vector<32x128xbf16>
    %cst_89 = arith.constant dense<0.000000e+00> : vector<8x128xf32>
    %236 = tpu.matmul %233, %235, %cst_89 {dimension_numbers = #tpu.dot_dimension_numbers<[1], [0], [0], [1], [0, 0, 1, 1], [], []>} : vector<8x32xbf16>, vector<32x128xbf16>, vector<8x128xf32> -> vector<8x128xf32>
    %237 = arith.addf %232, %236 : vector<8x128xf32>
    %238 = arith.truncf %209 : vector<8x32xf32> to vector<8x32xbf16>
    %c2_90 = arith.constant 2 : index
    %c0_91 = arith.constant 0 : index
    %c0_92 = arith.constant 0 : index
    %239 = vector.load %arg20[%c2_90, %c0_91, %c0_92] : memref<4x32x128xbf16, #tpu.memory_space<vmem>>, vector<1x32x128xbf16>
    %240 = vector.shape_cast %239 : vector<1x32x128xbf16> to vector<32x128xbf16>
    %cst_93 = arith.constant dense<0.000000e+00> : vector<8x128xf32>
    %241 = tpu.matmul %238, %240, %cst_93 {dimension_numbers = #tpu.dot_dimension_numbers<[1], [0], [0], [1], [0, 0, 1, 1], [], []>} : vector<8x32xbf16>, vector<32x128xbf16>, vector<8x128xf32> -> vector<8x128xf32>
    %242 = arith.addf %237, %241 : vector<8x128xf32>
    %243 = arith.truncf %228 : vector<8x32xf32> to vector<8x32xbf16>
    %c3_94 = arith.constant 3 : index
    %c0_95 = arith.constant 0 : index
    %c0_96 = arith.constant 0 : index
    %244 = vector.load %arg20[%c3_94, %c0_95, %c0_96] : memref<4x32x128xbf16, #tpu.memory_space<vmem>>, vector<1x32x128xbf16>
    %245 = vector.shape_cast %244 : vector<1x32x128xbf16> to vector<32x128xbf16>
    %cst_97 = arith.constant dense<0.000000e+00> : vector<8x128xf32>
    %246 = tpu.matmul %243, %245, %cst_97 {dimension_numbers = #tpu.dot_dimension_numbers<[1], [0], [0], [1], [0, 0, 1, 1], [], []>} : vector<8x32xbf16>, vector<32x128xbf16>, vector<8x128xf32> -> vector<8x128xf32>
    %247 = arith.addf %242, %246 : vector<8x128xf32>
    %c0_98 = arith.constant 0 : index
    %c0_99 = arith.constant 0 : index
    %248 = vector.load %arg21[%c0_98, %c0_99] : memref<1x128xf32, #tpu.memory_space<vmem>>, vector<1x128xf32>
    %249 = vector.broadcast %248 : vector<1x128xf32> to vector<8x128xf32>
    %250 = arith.addf %247, %249 : vector<8x128xf32>
    %251 = arith.addf %142, %250 : vector<8x128xf32>
    %cst_100 = arith.constant dense<0.000000e+00> : vector<8xf32>
    %252 = vector.multi_reduction <add>, %251, %cst_100 [1] : vector<8x128xf32> to vector<8xf32>
    %253 = vector.shape_cast %252 : vector<8xf32> to vector<8x1xf32>
    %cst_101 = arith.constant 1.280000e+02 : f32
    %254 = vector.broadcast %cst_101 : f32 to vector<8x1xf32>
    %255 = arith.divf %253, %254 : vector<8x1xf32>
    %256 = vector.broadcast %255 : vector<8x1xf32> to vector<8x128xf32>
    %257 = arith.subf %251, %256 : vector<8x128xf32>
    %258 = arith.mulf %257, %257 : vector<8x128xf32>
    %cst_102 = arith.constant dense<0.000000e+00> : vector<8xf32>
    %259 = vector.multi_reduction <add>, %258, %cst_102 [1] : vector<8x128xf32> to vector<8xf32>
    %260 = vector.shape_cast %259 : vector<8xf32> to vector<8x1xf32>
    %cst_103 = arith.constant 1.280000e+02 : f32
    %261 = vector.broadcast %cst_103 : f32 to vector<8x1xf32>
    %262 = arith.divf %260, %261 : vector<8x1xf32>
    %263 = vector.broadcast %255 : vector<8x1xf32> to vector<8x128xf32>
    %264 = arith.subf %251, %263 : vector<8x128xf32>
    %cst_104 = arith.constant 9.99999974E-6 : f32
    %265 = vector.broadcast %cst_104 : f32 to vector<8x1xf32>
    %266 = arith.addf %262, %265 : vector<8x1xf32>
    %267 = math.rsqrt %266 : vector<8x1xf32>
    %268 = vector.broadcast %267 : vector<8x1xf32> to vector<8x128xf32>
    %269 = arith.mulf %264, %268 : vector<8x128xf32>
    %c0_105 = arith.constant 0 : index
    %c0_106 = arith.constant 0 : index
    %270 = vector.load %arg22[%c0_105, %c0_106] : memref<1x128xf32, #tpu.memory_space<vmem>>, vector<1x128xf32>
    %271 = vector.broadcast %270 : vector<1x128xf32> to vector<8x128xf32>
    %272 = arith.mulf %269, %271 : vector<8x128xf32>
    %c0_107 = arith.constant 0 : index
    %c0_108 = arith.constant 0 : index
    %273 = vector.load %arg23[%c0_107, %c0_108] : memref<1x128xf32, #tpu.memory_space<vmem>>, vector<1x128xf32>
    %274 = vector.broadcast %273 : vector<1x128xf32> to vector<8x128xf32>
    %275 = arith.addf %272, %274 : vector<8x128xf32>
    %276 = arith.truncf %275 : vector<8x128xf32> to vector<8x128xbf16>
    %c0_109 = arith.constant 0 : index
    %c0_110 = arith.constant 0 : index
    %277 = vector.load %arg24[%c0_109, %c0_110] : memref<128x256xbf16, #tpu.memory_space<vmem>>, vector<128x256xbf16>
    %cst_111 = arith.constant dense<0.000000e+00> : vector<8x256xf32>
    %278 = tpu.matmul %276, %277, %cst_111 {dimension_numbers = #tpu.dot_dimension_numbers<[1], [0], [0], [1], [0, 0, 1, 1], [], []>} : vector<8x128xbf16>, vector<128x256xbf16>, vector<8x256xf32> -> vector<8x256xf32>
    %c0_112 = arith.constant 0 : index
    %c0_113 = arith.constant 0 : index
    %279 = vector.load %arg25[%c0_112, %c0_113] : memref<1x256xf32, #tpu.memory_space<vmem>>, vector<1x256xf32>
    %280 = vector.broadcast %279 : vector<1x256xf32> to vector<8x256xf32>
    %281 = arith.addf %278, %280 : vector<8x256xf32>
    %282 = arith.mulf %281, %281 : vector<8x256xf32>
    %283 = arith.mulf %281, %282 : vector<8x256xf32>
    %cst_114 = arith.constant 4.471500e-02 : f32
    %284 = vector.broadcast %cst_114 : f32 to vector<8x256xf32>
    %285 = arith.mulf %284, %283 : vector<8x256xf32>
    %286 = arith.addf %281, %285 : vector<8x256xf32>
    %cst_115 = arith.constant 0.797884583 : f32
    %287 = vector.broadcast %cst_115 : f32 to vector<8x256xf32>
    %288 = arith.mulf %287, %286 : vector<8x256xf32>
    %289 = math.tanh %288 : vector<8x256xf32>
    %cst_116 = arith.constant 1.000000e+00 : f32
    %290 = vector.broadcast %cst_116 : f32 to vector<8x256xf32>
    %291 = arith.addf %290, %289 : vector<8x256xf32>
    %cst_117 = arith.constant 5.000000e-01 : f32
    %292 = vector.broadcast %cst_117 : f32 to vector<8x256xf32>
    %293 = arith.mulf %292, %291 : vector<8x256xf32>
    %294 = arith.mulf %281, %293 : vector<8x256xf32>
    %295 = arith.truncf %294 : vector<8x256xf32> to vector<8x256xbf16>
    %c0_118 = arith.constant 0 : index
    %c0_119 = arith.constant 0 : index
    %296 = vector.load %arg26[%c0_118, %c0_119] : memref<256x128xbf16, #tpu.memory_space<vmem>>, vector<256x128xbf16>
    %cst_120 = arith.constant dense<0.000000e+00> : vector<8x128xf32>
    %297 = tpu.matmul %295, %296, %cst_120 {dimension_numbers = #tpu.dot_dimension_numbers<[1], [0], [0], [1], [0, 0, 1, 1], [], []>} : vector<8x256xbf16>, vector<256x128xbf16>, vector<8x128xf32> -> vector<8x128xf32>
    %c0_121 = arith.constant 0 : index
    %c0_122 = arith.constant 0 : index
    %298 = vector.load %arg27[%c0_121, %c0_122] : memref<1x128xf32, #tpu.memory_space<vmem>>, vector<1x128xf32>
    %299 = vector.broadcast %298 : vector<1x128xf32> to vector<8x128xf32>
    %300 = arith.addf %297, %299 : vector<8x128xf32>
    %301 = arith.addf %275, %300 : vector<8x128xf32>
    %cst_123 = arith.constant dense<0.000000e+00> : vector<8xf32>
    %302 = vector.multi_reduction <add>, %301, %cst_123 [1] : vector<8x128xf32> to vector<8xf32>
    %303 = vector.shape_cast %302 : vector<8xf32> to vector<8x1xf32>
    %cst_124 = arith.constant 1.280000e+02 : f32
    %304 = vector.broadcast %cst_124 : f32 to vector<8x1xf32>
    %305 = arith.divf %303, %304 : vector<8x1xf32>
    %306 = vector.broadcast %305 : vector<8x1xf32> to vector<8x128xf32>
    %307 = arith.subf %301, %306 : vector<8x128xf32>
    %308 = arith.mulf %307, %307 : vector<8x128xf32>
    %cst_125 = arith.constant dense<0.000000e+00> : vector<8xf32>
    %309 = vector.multi_reduction <add>, %308, %cst_125 [1] : vector<8x128xf32> to vector<8xf32>
    %310 = vector.shape_cast %309 : vector<8xf32> to vector<8x1xf32>
    %cst_126 = arith.constant 1.280000e+02 : f32
    %311 = vector.broadcast %cst_126 : f32 to vector<8x1xf32>
    %312 = arith.divf %310, %311 : vector<8x1xf32>
    %313 = vector.broadcast %305 : vector<8x1xf32> to vector<8x128xf32>
    %314 = arith.subf %301, %313 : vector<8x128xf32>
    %cst_127 = arith.constant 9.99999974E-6 : f32
    %315 = vector.broadcast %cst_127 : f32 to vector<8x1xf32>
    %316 = arith.addf %312, %315 : vector<8x1xf32>
    %317 = math.rsqrt %316 : vector<8x1xf32>
    %318 = vector.broadcast %317 : vector<8x1xf32> to vector<8x128xf32>
    %319 = arith.mulf %314, %318 : vector<8x128xf32>
    %c0_128 = arith.constant 0 : index
    %c0_129 = arith.constant 0 : index
    %320 = vector.load %arg28[%c0_128, %c0_129] : memref<1x128xf32, #tpu.memory_space<vmem>>, vector<1x128xf32>
    %321 = vector.broadcast %320 : vector<1x128xf32> to vector<8x128xf32>
    %322 = arith.mulf %319, %321 : vector<8x128xf32>
    %c0_130 = arith.constant 0 : index
    %c0_131 = arith.constant 0 : index
    %323 = vector.load %arg29[%c0_130, %c0_131] : memref<1x128xf32, #tpu.memory_space<vmem>>, vector<1x128xf32>
    %324 = vector.broadcast %323 : vector<1x128xf32> to vector<8x128xf32>
    %325 = arith.addf %322, %324 : vector<8x128xf32>
    %c0_132 = arith.constant 0 : index
    %c0_133 = arith.constant 0 : index
    %c0_134 = arith.constant 0 : index
    %326 = vector.load %arg30[%c0_132, %c0_133, %c0_134] : memref<1x8x128xf32, #tpu.memory_space<vmem>>, vector<1x8x128xf32>
    %327 = vector.shape_cast %326 : vector<1x8x128xf32> to vector<8x128xf32>
    %328 = vector.shape_cast %325 : vector<8x128xf32> to vector<1x8x128xf32>
    tpu.vector_store %arg30[%c0_132, %c0_133, %c0_134], %328 {strides = array<i32>} : memref<1x8x128xf32, #tpu.memory_space<vmem>>, vector<1x8x128xf32>,
    return
  }
  func.func @transform_0(%arg0: i32, %arg1: i32) -> (i32, i32, i32) {
    %c0_i32 = arith.constant 0 : i32
    %c0_i32_0 = arith.constant 0 : i32
    return %arg0, %arg1, %c0_i32 : i32, i32, i32
  }
  func.func @transform_1(%arg0: i32, %arg1: i32) -> (i32, i32, i32) {
    %c0_i32 = arith.constant 0 : i32
    %c0_i32_0 = arith.constant 0 : i32
    %c0_i32_1 = arith.constant 0 : i32
    return %arg0, %c0_i32, %c0_i32_0 : i32, i32, i32
  }
  func.func @transform_2(%arg0: i32, %arg1: i32) -> (i32, i32, i32) {
    %c0_i32 = arith.constant 0 : i32
    %c0_i32_0 = arith.constant 0 : i32
    %c0_i32_1 = arith.constant 0 : i32
    return %arg0, %c0_i32, %c0_i32_0 : i32, i32, i32
  }
  func.func @transform_3(%arg0: i32, %arg1: i32) -> (i32, i32) {
    %c0_i32 = arith.constant 0 : i32
    %c0_i32_0 = arith.constant 0 : i32
    return %arg1, %c0_i32 : i32, i32
  }
  func.func @transform_4(%arg0: i32, %arg1: i32) -> (i32, i32) {
    %c0_i32 = arith.constant 0 : i32
    %c0_i32_0 = arith.constant 0 : i32
    %c0_i32_1 = arith.constant 0 : i32
    return %c0_i32, %c0_i32_0 : i32, i32
  }
  func.func @transform_5(%arg0: i32, %arg1: i32) -> (i32, i32) {
    %c0_i32 = arith.constant 0 : i32
    %c0_i32_0 = arith.constant 0 : i32
    %c0_i32_1 = arith.constant 0 : i32
    return %c0_i32, %c0_i32_0 : i32, i32
  }
  func.func @transform_6(%arg0: i32, %arg1: i32) -> (i32, i32) {
    %c0_i32 = arith.constant 0 : i32
    %c0_i32_0 = arith.constant 0 : i32
    %c0_i32_1 = arith.constant 0 : i32
    return %c0_i32, %c0_i32_0 : i32, i32
  }
  func.func @transform_7(%arg0: i32, %arg1: i32) -> (i32, i32) {
    %c0_i32 = arith.constant 0 : i32
    %c0_i32_0 = arith.constant 0 : i32
    %c0_i32_1 = arith.constant 0 : i32
    return %c0_i32, %c0_i32_0 : i32, i32
  }
  func.func @transform_8(%arg0: i32, %arg1: i32) -> (i32, i32) {
    %c0_i32 = arith.constant 0 : i32
    %c0_i32_0 = arith.constant 0 : i32
    %c0_i32_1 = arith.constant 0 : i32
    return %c0_i32, %c0_i32_0 : i32, i32
  }
  func.func @transform_9(%arg0: i32, %arg1: i32) -> (i32, i32, i32) {
    %c0_i32 = arith.constant 0 : i32
    %c0_i32_0 = arith.constant 0 : i32
    %c0_i32_1 = arith.constant 0 : i32
    %c0_i32_2 = arith.constant 0 : i32
    return %c0_i32, %c0_i32_0, %c0_i32_1 : i32, i32, i32
  }
  func.func @transform_10(%arg0: i32, %arg1: i32) -> (i32, i32) {
    %c0_i32 = arith.constant 0 : i32
    %c0_i32_0 = arith.constant 0 : i32
    %c0_i32_1 = arith.constant 0 : i32
    return %c0_i32, %c0_i32_0 : i32, i32
  }
  func.func @transform_11(%arg0: i32, %arg1: i32) -> (i32, i32) {
    %c0_i32 = arith.constant 0 : i32
    %c0_i32_0 = arith.constant 0 : i32
    %c0_i32_1 = arith.constant 0 : i32
    return %c0_i32, %c0_i32_0 : i32, i32
  }
  func.func @transform_12(%arg0: i32, %arg1: i32) -> (i32, i32) {
    %c0_i32 = arith.constant 0 : i32
    %c0_i32_0 = arith.constant 0 : i32
    %c0_i32_1 = arith.constant 0 : i32
    return %c0_i32, %c0_i32_0 : i32, i32
  }
  func.func @transform_13(%arg0: i32, %arg1: i32) -> (i32, i32) {
    %c0_i32 = arith.constant 0 : i32
    %c0_i32_0 = arith.constant 0 : i32
    %c0_i32_1 = arith.constant 0 : i32
    return %c0_i32, %c0_i32_0 : i32, i32
  }
  func.func @transform_14(%arg0: i32, %arg1: i32) -> (i32, i32) {
    %c0_i32 = arith.constant 0 : i32
    %c0_i32_0 = arith.constant 0 : i32
    %c0_i32_1 = arith.constant 0 : i32
    return %c0_i32, %c0_i32_0 : i32, i32
  }
  func.func @transform_15(%arg0: i32, %arg1: i32) -> (i32, i32) {
    %c0_i32 = arith.constant 0 : i32
    %c0_i32_0 = arith.constant 0 : i32
    %c0_i32_1 = arith.constant 0 : i32
    return %c0_i32, %c0_i32_0 : i32, i32
  }
  func.func @transform_16(%arg0: i32, %arg1: i32) -> (i32, i32) {
    %c0_i32 = arith.constant 0 : i32
    %c0_i32_0 = arith.constant 0 : i32
    %c0_i32_1 = arith.constant 0 : i32
    return %c0_i32, %c0_i32_0 : i32, i32
  }
  func.func @transform_17(%arg0: i32, %arg1: i32) -> (i32, i32) {
    %c0_i32 = arith.constant 0 : i32
    %c0_i32_0 = arith.constant 0 : i32
    %c0_i32_1 = arith.constant 0 : i32
    return %c0_i32, %c0_i32_0 : i32, i32
  }
  func.func @transform_18(%arg0: i32, %arg1: i32) -> (i32, i32, i32) {
    %c0_i32 = arith.constant 0 : i32
    %c0_i32_0 = arith.constant 0 : i32
    %c0_i32_1 = arith.constant 0 : i32
    %c0_i32_2 = arith.constant 0 : i32
    return %c0_i32, %c0_i32_0, %c0_i32_1 : i32, i32, i32
  }
  func.func @transform_19(%arg0: i32, %arg1: i32) -> (i32, i32) {
    %c0_i32 = arith.constant 0 : i32
    %c0_i32_0 = arith.constant 0 : i32
    %c0_i32_1 = arith.constant 0 : i32
    return %c0_i32, %c0_i32_0 : i32, i32
  }
  func.func @transform_20(%arg0: i32, %arg1: i32) -> (i32, i32) {
    %c0_i32 = arith.constant 0 : i32
    %c0_i32_0 = arith.constant 0 : i32
    %c0_i32_1 = arith.constant 0 : i32
    return %c0_i32, %c0_i32_0 : i32, i32
  }
  func.func @transform_21(%arg0: i32, %arg1: i32) -> (i32, i32) {
    %c0_i32 = arith.constant 0 : i32
    %c0_i32_0 = arith.constant 0 : i32
    %c0_i32_1 = arith.constant 0 : i32
    return %c0_i32, %c0_i32_0 : i32, i32
  }
  func.func @transform_22(%arg0: i32, %arg1: i32) -> (i32, i32) {
    %c0_i32 = arith.constant 0 : i32
    %c0_i32_0 = arith.constant 0 : i32
    %c0_i32_1 = arith.constant 0 : i32
    return %c0_i32, %c0_i32_0 : i32, i32
  }
  func.func @transform_23(%arg0: i32, %arg1: i32) -> (i32, i32) {
    %c0_i32 = arith.constant 0 : i32
    %c0_i32_0 = arith.constant 0 : i32
    %c0_i32_1 = arith.constant 0 : i32
    return %c0_i32, %c0_i32_0 : i32, i32
  }
  func.func @transform_24(%arg0: i32, %arg1: i32) -> (i32, i32) {
    %c0_i32 = arith.constant 0 : i32
    %c0_i32_0 = arith.constant 0 : i32
    %c0_i32_1 = arith.constant 0 : i32
    return %c0_i32, %c0_i32_0 : i32, i32
  }
  func.func @transform_25(%arg0: i32, %arg1: i32) -> (i32, i32) {
    %c0_i32 = arith.constant 0 : i32
    %c0_i32_0 = arith.constant 0 : i32
    %c0_i32_1 = arith.constant 0 : i32
    return %c0_i32, %c0_i32_0 : i32, i32
  }
  func.func @transform_26(%arg0: i32, %arg1: i32) -> (i32, i32) {
    %c0_i32 = arith.constant 0 : i32
    %c0_i32_0 = arith.constant 0 : i32
    %c0_i32_1 = arith.constant 0 : i32
    return %c0_i32, %c0_i32_0 : i32, i32
  }
  func.func @transform_27(%arg0: i32, %arg1: i32) -> (i32, i32) {
    %c0_i32 = arith.constant 0 : i32
    %c0_i32_0 = arith.constant 0 : i32
    %c0_i32_1 = arith.constant 0 : i32
    return %c0_i32, %c0_i32_0 : i32, i32
  }
  func.func @transform_28(%arg0: i32, %arg1: i32) -> (i32, i32, i32) {
    %c0_i32 = arith.constant 0 : i32
    %c0_i32_0 = arith.constant 0 : i32
    return %arg0, %arg1, %c0_i32 : i32, i32, i32
  }
}

</mosaic_0001>

<llo_original>
// kernel: tpu_custom_call.1
$region0: #{tpu_custom_call.1}
  #allocation0 [shape = 'u32[]', space=smem, size = 0x4, offset = 0x4, fixed_abs, tag = 'smem constant byte address 0x4 - core index']
  #allocation1 [shape = 'u32[144,128]{1,0:T(1,128)}', space=vmem, size = 0x12000, scoped, tag = 'internal scratch']
  #allocation2 [shape = 'bf16[16,4,32]{2,1,0:T(4,128)(2,1)}', space=vmem, size = 0x4000, scoped, tag = 'scratch operand']
  #allocation3 [shape = 'bf16[16,4,32]{2,1,0:T(4,128)(2,1)}', space=vmem, size = 0x4000, scoped, tag = 'scratch operand']
  #allocation4 [shape = 'bf16[16,4,32]{2,1,0:T(4,128)(2,1)}', space=vmem, size = 0x4000, scoped, tag = 'scratch operand']
  #allocation5 [shape = 'bf16[16,4,32]{2,1,0:T(4,128)(2,1)}', space=vmem, size = 0x4000, scoped, tag = 'scratch operand']
  %s0 = inlined_call_operand.hbm [shape: f32[2,16,128], index: 0, kind: input, shape index: {}]
  %s1 = inlined_call_operand.hbm [shape: f32[2,16,128], index: 1, kind: input, shape index: {}]
  %s2 = inlined_call_operand.hbm [shape: f32[2,16,128], index: 2, kind: input, shape index: {}]
  %s3 = inlined_call_operand.hbm [shape: f32[16,16], index: 3, kind: input, shape index: {}]
  %s4 = inlined_call_operand.hbm [shape: bf16[128,128], index: 4, kind: input, shape index: {}]
  %s5 = inlined_call_operand.vmem [shape: f32[1,128], index: 5, kind: input, shape index: {}]
  %s6 = inlined_call_operand.hbm [shape: bf16[128,128], index: 6, kind: input, shape index: {}]
  %s7 = inlined_call_operand.hbm [shape: bf16[128,128], index: 7, kind: input, shape index: {}]
  %s8 = inlined_call_operand.vmem [shape: f32[1,128], index: 8, kind: input, shape index: {}]
  %s9 = inlined_call_operand.hbm [shape: bf16[4,32,128], index: 9, kind: input, shape index: {}]
  %s10 = inlined_call_operand.hbm [shape: f32[1,128], index: 10, kind: input, shape index: {}]
  %s11 = inlined_call_operand.hbm [shape: f32[1,128], index: 11, kind: input, shape index: {}]
  %s12 = inlined_call_operand.hbm [shape: f32[1,128], index: 12, kind: input, shape index: {}]
  %s13 = inlined_call_operand.hbm [shape: bf16[128,128], index: 13, kind: input, shape index: {}]
  %s14 = inlined_call_operand.hbm [shape: f32[1,128], index: 14, kind: input, shape index: {}]
  %s15 = inlined_call_operand.hbm [shape: bf16[128,128], index: 15, kind: input, shape index: {}]
  %s16 = inlined_call_operand.hbm [shape: bf16[128,128], index: 16, kind: input, shape index: {}]
  %s17 = inlined_call_operand.hbm [shape: f32[1,128], index: 17, kind: input, shape index: {}]
  %s18 = inlined_call_operand.vmem [shape: bf16[4,32,128], index: 18, kind: input, shape index: {}]
  %s19 = inlined_call_operand.vmem [shape: f32[1,128], index: 19, kind: input, shape index: {}]
  %s20 = inlined_call_operand.vmem [shape: f32[1,128], index: 20, kind: input, shape index: {}]
  %s21 = inlined_call_operand.vmem [shape: f32[1,128], index: 21, kind: input, shape index: {}]
  %s22 = inlined_call_operand.hbm [shape: bf16[128,256], index: 22, kind: input, shape index: {}]
  %s23 = inlined_call_operand.vmem [shape: f32[1,256], index: 23, kind: input, shape index: {}]
  %s24 = inlined_call_operand.hbm [shape: bf16[256,128], index: 24, kind: input, shape index: {}]
  %s25 = inlined_call_operand.vmem [shape: f32[1,128], index: 25, kind: input, shape index: {}]
  %s26 = inlined_call_operand.vmem [shape: f32[1,128], index: 26, kind: input, shape index: {}]
  %s27 = inlined_call_operand.vmem [shape: f32[1,128], index: 27, kind: input, shape index: {}]
  %s28 = inlined_call_operand.hbm [shape: f32[2,16,128], index: 28, kind: output, shape index: {}]
  %s29 = sld [smem:[#allocation0]]
  $region221: #{tpu_custom_call.1} parent=0
    _
  %s31 = ssub.s32 1, %s29
  %s32 = scalar_select 0, %s31, %s29
  $region1: #{tpu_custom_call.1} parent=0
    #allocation6 [shape = 'u8[8192]{0}', space=vmem, size = 0x2000, scoped, tag = 'input window, operand 0']
    #allocation7 [shape = 's32[2]{0}', space=sflag, size = 0x8, scoped, tag = 'scoped memory for tpu_custom_call.1']
    #allocation8 [shape = 's32[2]{0}', space=sflag, size = 0x8, scoped, tag = 'scoped memory for tpu_custom_call.1']
    #allocation9 [shape = 'u8[16384]{0}', space=vmem, size = 0x4000, scoped, tag = 'input window, operand 1']
    #allocation10 [shape = 's32[2]{0}', space=sflag, size = 0x8, scoped, tag = 'scoped memory for tpu_custom_call.1']
    #allocation11 [shape = 'u8[16384]{0}', space=vmem, size = 0x4000, scoped, tag = 'input window, operand 2']
    #allocation12 [shape = 'u8[8192]{0}', space=vmem, size = 0x2000, scoped, tag = 'input window, operand 3']
    #allocation13 [shape = 's32[2]{0}', space=sflag, size = 0x8, scoped, tag = 'scoped memory for tpu_custom_call.1']
    #allocation14 [shape = 'u8[32768]{0}', space=vmem, size = 0x8000, scoped, tag = 'input window, operand 4, single buffered']
    #allocation15 [shape = 'u8[32768]{0}', space=vmem, size = 0x8000, scoped, tag = 'input window, operand 6, single buffered']
    #allocation16 [shape = 's32[1]{0}', space=sflag, size = 0x4, scoped, tag = 'scoped memory for tpu_custom_call.1']
    #allocation17 [shape = 'u8[32768]{0}', space=vmem, size = 0x8000, scoped, tag = 'input window, operand 7, single buffered']
    #allocation18 [shape = 'u8[32768]{0}', space=vmem, size = 0x8000, scoped, tag = 'input window, operand 9, single buffered']
    #allocation19 [shape = 's32[1]{0}', space=sflag, size = 0x4, scoped, tag = 'scoped memory for tpu_custom_call.1']
    #allocation20 [shape = 'u8[512]{0}', space=vmem, size = 0x400, scoped, tag = 'input window, operand 10, single buffered']
    #allocation21 [shape = 'u8[512]{0}', space=vmem, size = 0x400, scoped, tag = 'input window, operand 11, single buffered']
    #allocation22 [shape = 's32[1]{0}', space=sflag, size = 0x4, scoped, tag = 'scoped memory for tpu_custom_call.1']
    #allocation23 [shape = 'u8[512]{0}', space=vmem, size = 0x400, scoped, tag = 'input window, operand 12, single buffered']
    #allocation24 [shape = 'u8[32768]{0}', space=vmem, size = 0x8000, scoped, tag = 'input window, operand 13, single buffered']
    #allocation25 [shape = 's32[1]{0}', space=sflag, size = 0x4, scoped, tag = 'scoped memory for tpu_custom_call.1']
    #allocation26 [shape = 'u8[512]{0}', space=vmem, size = 0x400, scoped, tag = 'input window, operand 14, single buffered']
    #allocation27 [shape = 'u8[32768]{0}', space=vmem, size = 0x8000, scoped, tag = 'input window, operand 15, single buffered']
    #allocation28 [shape = 's32[1]{0}', space=sflag, size = 0x4, scoped, tag = 'scoped memory for tpu_custom_call.1']
    #allocation29 [shape = 'u8[32768]{0}', space=vmem, size = 0x8000, scoped, tag = 'input window, operand 16, single buffered']
    #allocation30 [shape = 'u8[512]{0}', space=vmem, size = 0x400, scoped, tag = 'input window, operand 17, single buffered']
    #allocation31 [shape = 's32[1]{0}', space=sflag, size = 0x4, scoped, tag = 'scoped memory for tpu_custom_call.1']
    #allocation32 [shape = 'u8[65536]{0}', space=vmem, size = 0x10000, scoped, tag = 'input window, operand 22, single buffered']
    #allocation33 [shape = 'u8[65536]{0}', space=vmem, size = 0x10000, scoped, tag = 'input window, operand 24, single buffered']
    #allocation34 [shape = 's32[1]{0}', space=sflag, size = 0x4, scoped, tag = 'scoped memory for tpu_custom_call.1']
    #allocation35 [shape = 'u8[8192]{0}', space=vmem, size = 0x2000, scoped, tag = 'output window, operand 0']
    %33 = vsyncpa [#allocation7], 0
    %s34 = scalar_lea.sflag [#allocation7], 1
    %35 = vsyncpa %s34, 0
    %36 = vsyncpa [#allocation10], 0
    %s37 = scalar_lea.sflag [#allocation10], 1
    %38 = vsyncpa %s37, 0
    %39 = vsyncpa [#allocation13], 0
    %s40 = scalar_lea.sflag [#allocation13], 1
    %41 = vsyncpa %s40, 0
    %42 = vsyncpa [#allocation16], 0
    %43 = vsyncpa [#allocation19], 0
    %44 = vsyncpa [#allocation22], 0
    %45 = vsyncpa [#allocation25], 0
    %46 = vsyncpa [#allocation28], 0
    %47 = vsyncpa [#allocation31], 0
    %48 = vsyncpa [#allocation34], 0
    %49 = vsyncpa [#allocation8], 0
    %s50 = scalar_lea.sflag [#allocation8], 1
    %51 = vsyncpa %s50, 0
    loop: start=0, step=1, limit=6
    $region2: #{tpu_custom_call.1} parent=1 // loop_pre_header
      _
    $region3: #{tpu_custom_call.1} parent=1 // loop_header
      %s53 = sphi 0, %s57
      %p54 = scmp.ge.s32.totalorder %s53, 6
      %s60 = sphi 0, %s72
      %s61 = sphi 0, %s68
      %s62 = sphi 0, %s60
      %s63 = sphi 0, %s61
      %s64 = sphi 0, %s62
      %s65 = sphi 0, %s63
      %s77 = sphi 0, %s79
      %s80 = sphi 0, %s77
      %s81 = sphi 0, %s80
      %s97 = sphi 0, %s81
      %s103 = sphi 0, %s105
      %s106 = sphi 0, %s103
      %s107 = sphi 0, %s106
      %s123 = sphi 0, %s107
      %s129 = sphi 0, %s131
      %s132 = sphi 0, %s129
      %s133 = sphi 0, %s132
      %s149 = sphi 0, %s133
      %s155 = sphi 0, %s157
      %s158 = sphi 0, %s155
      %s159 = sphi 0, %s158
      %s175 = sphi 0, %s159
      %s179 = sphi 0, %s179
      %s181 = sphi 0, %s179
      %s182 = sphi 0, %s181
      %s196 = sphi 0, %s182
      %s200 = sphi 0, %s200
      %s202 = sphi 0, %s200
      %s203 = sphi 0, %s202
      %s217 = sphi 0, %s203
      %s221 = sphi 0, %s221
      %s223 = sphi 0, %s221
      %s224 = sphi 0, %s223
      %s238 = sphi 0, %s224
      %s242 = sphi 0, %s242
      %s244 = sphi 0, %s242
      %s245 = sphi 0, %s244
      %s259 = sphi 0, %s245
      %s263 = sphi 0, %s263
      %s265 = sphi 0, %s263
      %s266 = sphi 0, %s265
      %s280 = sphi 0, %s266
      %s284 = sphi 0, %s284
      %s286 = sphi 0, %s284
      %s287 = sphi 0, %s286
      %s301 = sphi 0, %s287
      %s305 = sphi 0, %s305
      %s307 = sphi 0, %s305
      %s308 = sphi 0, %s307
      %s322 = sphi 0, %s308
      %s326 = sphi 0, %s326
      %s328 = sphi 0, %s326
      %s329 = sphi 0, %s328
      %s343 = sphi 0, %s329
      %s347 = sphi 0, %s347
      %s349 = sphi 0, %s347
      %s350 = sphi 0, %s349
      %s364 = sphi 0, %s350
      %s368 = sphi 0, %s368
      %s370 = sphi 0, %s368
      %s371 = sphi 0, %s370
      %s385 = sphi 0, %s371
      %s389 = sphi 0, %s389
      %s391 = sphi 0, %s389
      %s392 = sphi 0, %s391
      %s406 = sphi 0, %s392
      %s410 = sphi 0, %s410
      %s412 = sphi 0, %s410
      %s413 = sphi 0, %s412
      %s427 = sphi 0, %s413
      %s431 = sphi 0, %s431
      %s433 = sphi 0, %s431
      %s434 = sphi 0, %s433
      %s448 = sphi 0, %s434
      %s452 = sphi 0, %s452
      %s454 = sphi 0, %s452
      %s455 = sphi 0, %s454
      %s469 = sphi 0, %s455
      %s473 = sphi 0, %s473
      %s475 = sphi 0, %s473
      %s476 = sphi 0, %s475
      %s490 = sphi 0, %s476
      %s494 = sphi 0, %s494
      %s496 = sphi 0, %s494
      %s497 = sphi 0, %s496
      %s511 = sphi 0, %s497
      %s515 = sphi 0, %s515
      %s517 = sphi 0, %s515
      %s518 = sphi 0, %s517
      %s532 = sphi 0, %s518
      %s536 = sphi 0, %s536
      %s538 = sphi 0, %s536
      %s539 = sphi 0, %s538
      %s553 = sphi 0, %s539
      %s557 = sphi 0, %s557
      %s559 = sphi 0, %s557
      %s560 = sphi 0, %s559
      %s574 = sphi 0, %s560
      %s578 = sphi 0, %s578
      %s580 = sphi 0, %s578
      %s581 = sphi 0, %s580
      %s595 = sphi 0, %s581
      %s599 = sphi 0, %s599
      %s601 = sphi 0, %s599
      %s602 = sphi 0, %s601
      %s616 = sphi 0, %s602
      %s620 = sphi 0, %s620
      %s622 = sphi 0, %s620
      %s623 = sphi 0, %s622
      %s637 = sphi 0, %s623
      %s641 = sphi 0, %s641
      %s643 = sphi 0, %s641
      %s644 = sphi 0, %s643
      %s658 = sphi 0, %s644
      %s662 = sphi 0, %s662
      %s664 = sphi 0, %s662
      %s665 = sphi 0, %s664
      %s679 = sphi 0, %s665
      %s687 = sphi 0, %s689
      %s690 = sphi 0, %s687
      %s691 = sphi 0, %s690
      %s707 = sphi 0, %s691
    $region4: #{tpu_custom_call.1} parent=1 // loop_header_branch
      %56 = sbr.rel (%p54) target = $region8
    $region5: #{tpu_custom_call.1} parent=1 // loop_body
      %s58 = ssub.s32 %s53, 1
      %s59 = ssub.s32 %s53, 2
      %s66 = sadd.s32 1, %s61
      %p67 = scmp.ge.s32.totalorder %s66, 2
      %s68 = scalar_select %p67, 0, %s66
      %s69 = sadd.s32 1, %s60
      %s70 = scalar_select %p67, %s69, %s60
      %p71 = scmp.ge.s32.totalorder %s70, 2
      %s72 = scalar_select %p71, 0, %s70
      %s73 = ssub.s32 %s60, %s72
      %s74 = ssub.s32 %s61, %s68
      %s75 = sor.u32 %s73, %s74
      %p76 = scmp.eq.s32.totalorder %s75, 0
      %s78 = sadd.s32 %s77, 1
      %s79 = scalar_select %p76, %s77, %s78
      %p82 = pneg %p76
      %p83 = scmp.eq.s32.totalorder %s53, 3
      %p84 = por %p82, %p83
      %p85 = scmp.ne.s32.totalorder %s77, %s80
      %p86 = scmp.eq.s32.totalorder %s53, 0
      %p87 = por %p85, %p86
      %p88 = scmp.ne.s32.totalorder %s77, %s80
      %p89 = scmp.eq.s32.totalorder %s58, 3
      %p90 = por %p88, %p89
      %p91 = scmp.ne.s32.totalorder %s80, %s81
      %p92 = scmp.eq.s32.totalorder %s58, 0
      %p93 = por %p91, %p92
      %p94 = scmp.ne.s32.totalorder %s80, %s81
      %p95 = scmp.eq.s32.totalorder %s59, 3
      %p96 = por %p94, %p95
      %p98 = scmp.ne.s32.totalorder %s81, %s97
      %p99 = scmp.eq.s32.totalorder %s59, 0
      %p100 = por %p98, %p99
      %s101 = ssub.s32 %s60, %s72
      %p102 = scmp.eq.s32.totalorder %s101, 0
      %s104 = sadd.s32 %s103, 1
      %s105 = scalar_select %p102, %s103, %s104
      %p108 = pneg %p102
      %p109 = scmp.eq.s32.totalorder %s53, 3
      %p110 = por %p108, %p109
      %p111 = scmp.ne.s32.totalorder %s103, %s106
      %p112 = scmp.eq.s32.totalorder %s53, 0
      %p113 = por %p111, %p112
      %p114 = scmp.ne.s32.totalorder %s103, %s106
      %p115 = scmp.eq.s32.totalorder %s58, 3
      %p116 = por %p114, %p115
      %p117 = scmp.ne.s32.totalorder %s106, %s107
      %p118 = scmp.eq.s32.totalorder %s58, 0
      %p119 = por %p117, %p118
      %p120 = scmp.ne.s32.totalorder %s106, %s107
      %p121 = scmp.eq.s32.totalorder %s59, 3
      %p122 = por %p120, %p121
      %p124 = scmp.ne.s32.totalorder %s107, %s123
      %p125 = scmp.eq.s32.totalorder %s59, 0
      %p126 = por %p124, %p125
      %s127 = ssub.s32 %s60, %s72
      %p128 = scmp.eq.s32.totalorder %s127, 0
      %s130 = sadd.s32 %s129, 1
      %s131 = scalar_select %p128, %s129, %s130
      %p134 = pneg %p128
      %p135 = scmp.eq.s32.totalorder %s53, 3
      %p136 = por %p134, %p135
      %p137 = scmp.ne.s32.totalorder %s129, %s132
      %p138 = scmp.eq.s32.totalorder %s53, 0
      %p139 = por %p137, %p138
      %p140 = scmp.ne.s32.totalorder %s129, %s132
      %p141 = scmp.eq.s32.totalorder %s58, 3
      %p142 = por %p140, %p141
      %p143 = scmp.ne.s32.totalorder %s132, %s133
      %p144 = scmp.eq.s32.totalorder %s58, 0
      %p145 = por %p143, %p144
      %p146 = scmp.ne.s32.totalorder %s132, %s133
      %p147 = scmp.eq.s32.totalorder %s59, 3
      %p148 = por %p146, %p147
      %p150 = scmp.ne.s32.totalorder %s133, %s149
      %p151 = scmp.eq.s32.totalorder %s59, 0
      %p152 = por %p150, %p151
      %s153 = ssub.s32 %s61, %s68
      %p154 = scmp.eq.s32.totalorder %s153, 0
      %s156 = sadd.s32 %s155, 1
      %s157 = scalar_select %p154, %s155, %s156
      %p160 = pneg %p154
      %p161 = scmp.eq.s32.totalorder %s53, 3
      %p162 = por %p160, %p161
      %p163 = scmp.ne.s32.totalorder %s155, %s158
      %p164 = scmp.eq.s32.totalorder %s53, 0
      %p165 = por %p163, %p164
      %p166 = scmp.ne.s32.totalorder %s155, %s158
      %p167 = scmp.eq.s32.totalorder %s58, 3
      %p168 = por %p166, %p167
      %p169 = scmp.ne.s32.totalorder %s158, %s159
      %p170 = scmp.eq.s32.totalorder %s58, 0
      %p171 = por %p169, %p170
      %p172 = scmp.ne.s32.totalorder %s158, %s159
      %p173 = scmp.eq.s32.totalorder %s59, 3
      %p174 = por %p172, %p173
      %p176 = scmp.ne.s32.totalorder %s159, %s175
      %p177 = scmp.eq.s32.totalorder %s59, 0
      %p178 = por %p176, %p177
      %s180 = sadd.s32 %s179, 1
      %p183 = scmp.eq.s32.totalorder %s53, 3
      %p184 = scmp.ne.s32.totalorder %s179, %s181
      %p185 = scmp.eq.s32.totalorder %s53, 0
      %p186 = por %p184, %p185
      %p187 = scmp.ne.s32.totalorder %s179, %s181
      %p188 = scmp.eq.s32.totalorder %s58, 3
      %p189 = por %p187, %p188
      %p190 = scmp.ne.s32.totalorder %s181, %s182
      %p191 = scmp.eq.s32.totalorder %s58, 0
      %p192 = por %p190, %p191
      %p193 = scmp.ne.s32.totalorder %s181, %s182
      %p194 = scmp.eq.s32.totalorder %s59, 3
      %p195 = por %p193, %p194
      %p197 = scmp.ne.s32.totalorder %s182, %s196
      %p198 = scmp.eq.s32.totalorder %s59, 0
      %p199 = por %p197, %p198
      %s201 = sadd.s32 %s200, 1
      %p204 = scmp.eq.s32.totalorder %s53, 3
      %p205 = scmp.ne.s32.totalorder %s200, %s202
      %p206 = scmp.eq.s32.totalorder %s53, 0
      %p207 = por %p205, %p206
      %p208 = scmp.ne.s32.totalorder %s200, %s202
      %p209 = scmp.eq.s32.totalorder %s58, 3
      %p210 = por %p208, %p209
      %p211 = scmp.ne.s32.totalorder %s202, %s203
      %p212 = scmp.eq.s32.totalorder %s58, 0
      %p213 = por %p211, %p212
      %p214 = scmp.ne.s32.totalorder %s202, %s203
      %p215 = scmp.eq.s32.totalorder %s59, 3
      %p216 = por %p214, %p215
      %p218 = scmp.ne.s32.totalorder %s203, %s217
      %p219 = scmp.eq.s32.totalorder %s59, 0
      %p220 = por %p218, %p219
      %s222 = sadd.s32 %s221, 1
      %p225 = scmp.eq.s32.totalorder %s53, 3
      %p226 = scmp.ne.s32.totalorder %s221, %s223
      %p227 = scmp.eq.s32.totalorder %s53, 0
      %p228 = por %p226, %p227
      %p229 = scmp.ne.s32.totalorder %s221, %s223
      %p230 = scmp.eq.s32.totalorder %s58, 3
      %p231 = por %p229, %p230
      %p232 = scmp.ne.s32.totalorder %s223, %s224
      %p233 = scmp.eq.s32.totalorder %s58, 0
      %p234 = por %p232, %p233
      %p235 = scmp.ne.s32.totalorder %s223, %s224
      %p236 = scmp.eq.s32.totalorder %s59, 3
      %p237 = por %p235, %p236
      %p239 = scmp.ne.s32.totalorder %s224, %s238
      %p240 = scmp.eq.s32.totalorder %s59, 0
      %p241 = por %p239, %p240
      %s243 = sadd.s32 %s242, 1
      %p246 = scmp.eq.s32.totalorder %s53, 3
      %p247 = scmp.ne.s32.totalorder %s242, %s244
      %p248 = scmp.eq.s32.totalorder %s53, 0
      %p249 = por %p247, %p248
      %p250 = scmp.ne.s32.totalorder %s242, %s244
      %p251 = scmp.eq.s32.totalorder %s58, 3
      %p252 = por %p250, %p251
      %p253 = scmp.ne.s32.totalorder %s244, %s245
      %p254 = scmp.eq.s32.totalorder %s58, 0
      %p255 = por %p253, %p254
      %p256 = scmp.ne.s32.totalorder %s244, %s245
      %p257 = scmp.eq.s32.totalorder %s59, 3
      %p258 = por %p256, %p257
      %p260 = scmp.ne.s32.totalorder %s245, %s259
      %p261 = scmp.eq.s32.totalorder %s59, 0
      %p262 = por %p260, %p261
      %s264 = sadd.s32 %s263, 1
      %p267 = scmp.eq.s32.totalorder %s53, 3
      %p268 = scmp.ne.s32.totalorder %s263, %s265
      %p269 = scmp.eq.s32.totalorder %s53, 0
      %p270 = por %p268, %p269
      %p271 = scmp.ne.s32.totalorder %s263, %s265
      %p272 = scmp.eq.s32.totalorder %s58, 3
      %p273 = por %p271, %p272
      %p274 = scmp.ne.s32.totalorder %s265, %s266
      %p275 = scmp.eq.s32.totalorder %s58, 0
      %p276 = por %p274, %p275
      %p277 = scmp.ne.s32.totalorder %s265, %s266
      %p278 = scmp.eq.s32.totalorder %s59, 3
      %p279 = por %p277, %p278
      %p281 = scmp.ne.s32.totalorder %s266, %s280
      %p282 = scmp.eq.s32.totalorder %s59, 0
      %p283 = por %p281, %p282
      %s285 = sadd.s32 %s284, 1
      %p288 = scmp.eq.s32.totalorder %s53, 3
      %p289 = scmp.ne.s32.totalorder %s284, %s286
      %p290 = scmp.eq.s32.totalorder %s53, 0
      %p291 = por %p289, %p290
      %p292 = scmp.ne.s32.totalorder %s284, %s286
      %p293 = scmp.eq.s32.totalorder %s58, 3
      %p294 = por %p292, %p293
      %p295 = scmp.ne.s32.totalorder %s286, %s287
      %p296 = scmp.eq.s32.totalorder %s58, 0
      %p297 = por %p295, %p296
      %p298 = scmp.ne.s32.totalorder %s286, %s287
      %p299 = scmp.eq.s32.totalorder %s59, 3
      %p300 = por %p298, %p299
      %p302 = scmp.ne.s32.totalorder %s287, %s301
      %p303 = scmp.eq.s32.totalorder %s59, 0
      %p304 = por %p302, %p303
      %s306 = sadd.s32 %s305, 1
      %p309 = scmp.eq.s32.totalorder %s53, 3
      %p310 = scmp.ne.s32.totalorder %s305, %s307
      %p311 = scmp.eq.s32.totalorder %s53, 0
      %p312 = por %p310, %p311
      %p313 = scmp.ne.s32.totalorder %s305, %s307
      %p314 = scmp.eq.s32.totalorder %s58, 3
      %p315 = por %p313, %p314
      %p316 = scmp.ne.s32.totalorder %s307, %s308
      %p317 = scmp.eq.s32.totalorder %s58, 0
      %p318 = por %p316, %p317
      %p319 = scmp.ne.s32.totalorder %s307, %s308
      %p320 = scmp.eq.s32.totalorder %s59, 3
      %p321 = por %p319, %p320
      %p323 = scmp.ne.s32.totalorder %s308, %s322
      %p324 = scmp.eq.s32.totalorder %s59, 0
      %p325 = por %p323, %p324
      %s327 = sadd.s32 %s326, 1
      %p330 = scmp.eq.s32.totalorder %s53, 3
      %p331 = scmp.ne.s32.totalorder %s326, %s328
      %p332 = scmp.eq.s32.totalorder %s53, 0
      %p333 = por %p331, %p332
      %p334 = scmp.ne.s32.totalorder %s326, %s328
      %p335 = scmp.eq.s32.totalorder %s58, 3
      %p336 = por %p334, %p335
      %p337 = scmp.ne.s32.totalorder %s328, %s329
      %p338 = scmp.eq.s32.totalorder %s58, 0
      %p339 = por %p337, %p338
      %p340 = scmp.ne.s32.totalorder %s328, %s329
      %p341 = scmp.eq.s32.totalorder %s59, 3
      %p342 = por %p340, %p341
      %p344 = scmp.ne.s32.totalorder %s329, %s343
      %p345 = scmp.eq.s32.totalorder %s59, 0
      %p346 = por %p344, %p345
      %s348 = sadd.s32 %s347, 1
      %p351 = scmp.eq.s32.totalorder %s53, 3
      %p352 = scmp.ne.s32.totalorder %s347, %s349
      %p353 = scmp.eq.s32.totalorder %s53, 0
      %p354 = por %p352, %p353
      %p355 = scmp.ne.s32.totalorder %s347, %s349
      %p356 = scmp.eq.s32.totalorder %s58, 3
      %p357 = por %p355, %p356
      %p358 = scmp.ne.s32.totalorder %s349, %s350
      %p359 = scmp.eq.s32.totalorder %s58, 0
      %p360 = por %p358, %p359
      %p361 = scmp.ne.s32.totalorder %s349, %s350
      %p362 = scmp.eq.s32.totalorder %s59, 3
      %p363 = por %p361, %p362
      %p365 = scmp.ne.s32.totalorder %s350, %s364
      %p366 = scmp.eq.s32.totalorder %s59, 0
      %p367 = por %p365, %p366
      %s369 = sadd.s32 %s368, 1
      %p372 = scmp.eq.s32.totalorder %s53, 3
      %p373 = scmp.ne.s32.totalorder %s368, %s370
      %p374 = scmp.eq.s32.totalorder %s53, 0
      %p375 = por %p373, %p374
      %p376 = scmp.ne.s32.totalorder %s368, %s370
      %p377 = scmp.eq.s32.totalorder %s58, 3
      %p378 = por %p376, %p377
      %p379 = scmp.ne.s32.totalorder %s370, %s371
      %p380 = scmp.eq.s32.totalorder %s58, 0
      %p381 = por %p379, %p380
      %p382 = scmp.ne.s32.totalorder %s370, %s371
      %p383 = scmp.eq.s32.totalorder %s59, 3
      %p384 = por %p382, %p383
      %p386 = scmp.ne.s32.totalorder %s371, %s385
      %p387 = scmp.eq.s32.totalorder %s59, 0
      %p388 = por %p386, %p387
      %s390 = sadd.s32 %s389, 1
      %p393 = scmp.eq.s32.totalorder %s53, 3
      %p394 = scmp.ne.s32.totalorder %s389, %s391
      %p395 = scmp.eq.s32.totalorder %s53, 0
      %p396 = por %p394, %p395
      %p397 = scmp.ne.s32.totalorder %s389, %s391
      %p398 = scmp.eq.s32.totalorder %s58, 3
      %p399 = por %p397, %p398
      %p400 = scmp.ne.s32.totalorder %s391, %s392
      %p401 = scmp.eq.s32.totalorder %s58, 0
      %p402 = por %p400, %p401
      %p403 = scmp.ne.s32.totalorder %s391, %s392
      %p404 = scmp.eq.s32.totalorder %s59, 3
      %p405 = por %p403, %p404
      %p407 = scmp.ne.s32.totalorder %s392, %s406
      %p408 = scmp.eq.s32.totalorder %s59, 0
      %p409 = por %p407, %p408
      %s411 = sadd.s32 %s410, 1
      %p414 = scmp.eq.s32.totalorder %s53, 3
      %p415 = scmp.ne.s32.totalorder %s410, %s412
      %p416 = scmp.eq.s32.totalorder %s53, 0
      %p417 = por %p415, %p416
      %p418 = scmp.ne.s32.totalorder %s410, %s412
      %p419 = scmp.eq.s32.totalorder %s58, 3
      %p420 = por %p418, %p419
      %p421 = scmp.ne.s32.totalorder %s412, %s413
      %p422 = scmp.eq.s32.totalorder %s58, 0
      %p423 = por %p421, %p422
      %p424 = scmp.ne.s32.totalorder %s412, %s413
      %p425 = scmp.eq.s32.totalorder %s59, 3
      %p426 = por %p424, %p425
      %p428 = scmp.ne.s32.totalorder %s413, %s427
      %p429 = scmp.eq.s32.totalorder %s59, 0
      %p430 = por %p428, %p429
      %s432 = sadd.s32 %s431, 1
      %p435 = scmp.eq.s32.totalorder %s53, 3
      %p436 = scmp.ne.s32.totalorder %s431, %s433
      %p437 = scmp.eq.s32.totalorder %s53, 0
      %p438 = por %p436, %p437
      %p439 = scmp.ne.s32.totalorder %s431, %s433
      %p440 = scmp.eq.s32.totalorder %s58, 3
      %p441 = por %p439, %p440
      %p442 = scmp.ne.s32.totalorder %s433, %s434
      %p443 = scmp.eq.s32.totalorder %s58, 0
      %p444 = por %p442, %p443
      %p445 = scmp.ne.s32.totalorder %s433, %s434
      %p446 = scmp.eq.s32.totalorder %s59, 3
      %p447 = por %p445, %p446
      %p449 = scmp.ne.s32.totalorder %s434, %s448
      %p450 = scmp.eq.s32.totalorder %s59, 0
      %p451 = por %p449, %p450
      %s453 = sadd.s32 %s452, 1
      %p456 = scmp.eq.s32.totalorder %s53, 3
      %p457 = scmp.ne.s32.totalorder %s452, %s454
      %p458 = scmp.eq.s32.totalorder %s53, 0
      %p459 = por %p457, %p458
      %p460 = scmp.ne.s32.totalorder %s452, %s454
      %p461 = scmp.eq.s32.totalorder %s58, 3
      %p462 = por %p460, %p461
      %p463 = scmp.ne.s32.totalorder %s454, %s455
      %p464 = scmp.eq.s32.totalorder %s58, 0
      %p465 = por %p463, %p464
      %p466 = scmp.ne.s32.totalorder %s454, %s455
      %p467 = scmp.eq.s32.totalorder %s59, 3
      %p468 = por %p466, %p467
      %p470 = scmp.ne.s32.totalorder %s455, %s469
      %p471 = scmp.eq.s32.totalorder %s59, 0
      %p472 = por %p470, %p471
      %s474 = sadd.s32 %s473, 1
      %p477 = scmp.eq.s32.totalorder %s53, 3
      %p478 = scmp.ne.s32.totalorder %s473, %s475
      %p479 = scmp.eq.s32.totalorder %s53, 0
      %p480 = por %p478, %p479
      %p481 = scmp.ne.s32.totalorder %s473, %s475
      %p482 = scmp.eq.s32.totalorder %s58, 3
      %p483 = por %p481, %p482
      %p484 = scmp.ne.s32.totalorder %s475, %s476
      %p485 = scmp.eq.s32.totalorder %s58, 0
      %p486 = por %p484, %p485
      %p487 = scmp.ne.s32.totalorder %s475, %s476
      %p488 = scmp.eq.s32.totalorder %s59, 3
      %p489 = por %p487, %p488
      %p491 = scmp.ne.s32.totalorder %s476, %s490
      %p492 = scmp.eq.s32.totalorder %s59, 0
      %p493 = por %p491, %p492
      %s495 = sadd.s32 %s494, 1
      %p498 = scmp.eq.s32.totalorder %s53, 3
      %p499 = scmp.ne.s32.totalorder %s494, %s496
      %p500 = scmp.eq.s32.totalorder %s53, 0
      %p501 = por %p499, %p500
      %p502 = scmp.ne.s32.totalorder %s494, %s496
      %p503 = scmp.eq.s32.totalorder %s58, 3
      %p504 = por %p502, %p503
      %p505 = scmp.ne.s32.totalorder %s496, %s497
      %p506 = scmp.eq.s32.totalorder %s58, 0
      %p507 = por %p505, %p506
      %p508 = scmp.ne.s32.totalorder %s496, %s497
      %p509 = scmp.eq.s32.totalorder %s59, 3
      %p510 = por %p508, %p509
      %p512 = scmp.ne.s32.totalorder %s497, %s511
      %p513 = scmp.eq.s32.totalorder %s59, 0
      %p514 = por %p512, %p513
      %s516 = sadd.s32 %s515, 1
      %p519 = scmp.eq.s32.totalorder %s53, 3
      %p520 = scmp.ne.s32.totalorder %s515, %s517
      %p521 = scmp.eq.s32.totalorder %s53, 0
      %p522 = por %p520, %p521
      %p523 = scmp.ne.s32.totalorder %s515, %s517
      %p524 = scmp.eq.s32.totalorder %s58, 3
      %p525 = por %p523, %p524
      %p526 = scmp.ne.s32.totalorder %s517, %s518
      %p527 = scmp.eq.s32.totalorder %s58, 0
      %p528 = por %p526, %p527
      %p529 = scmp.ne.s32.totalorder %s517, %s518
      %p530 = scmp.eq.s32.totalorder %s59, 3
      %p531 = por %p529, %p530
      %p533 = scmp.ne.s32.totalorder %s518, %s532
      %p534 = scmp.eq.s32.totalorder %s59, 0
      %p535 = por %p533, %p534
      %s537 = sadd.s32 %s536, 1
      %p540 = scmp.eq.s32.totalorder %s53, 3
      %p541 = scmp.ne.s32.totalorder %s536, %s538
      %p542 = scmp.eq.s32.totalorder %s53, 0
      %p543 = por %p541, %p542
      %p544 = scmp.ne.s32.totalorder %s536, %s538
      %p545 = scmp.eq.s32.totalorder %s58, 3
      %p546 = por %p544, %p545
      %p547 = scmp.ne.s32.totalorder %s538, %s539
      %p548 = scmp.eq.s32.totalorder %s58, 0
      %p549 = por %p547, %p548
      %p550 = scmp.ne.s32.totalorder %s538, %s539
      %p551 = scmp.eq.s32.totalorder %s59, 3
      %p552 = por %p550, %p551
      %p554 = scmp.ne.s32.totalorder %s539, %s553
      %p555 = scmp.eq.s32.totalorder %s59, 0
      %p556 = por %p554, %p555
      %s558 = sadd.s32 %s557, 1
      %p561 = scmp.eq.s32.totalorder %s53, 3
      %p562 = scmp.ne.s32.totalorder %s557, %s559
      %p563 = scmp.eq.s32.totalorder %s53, 0
      %p564 = por %p562, %p563
      %p565 = scmp.ne.s32.totalorder %s557, %s559
      %p566 = scmp.eq.s32.totalorder %s58, 3
      %p567 = por %p565, %p566
      %p568 = scmp.ne.s32.totalorder %s559, %s560
      %p569 = scmp.eq.s32.totalorder %s58, 0
      %p570 = por %p568, %p569
      %p571 = scmp.ne.s32.totalorder %s559, %s560
      %p572 = scmp.eq.s32.totalorder %s59, 3
      %p573 = por %p571, %p572
      %p575 = scmp.ne.s32.totalorder %s560, %s574
      %p576 = scmp.eq.s32.totalorder %s59, 0
      %p577 = por %p575, %p576
      %s579 = sadd.s32 %s578, 1
      %p582 = scmp.eq.s32.totalorder %s53, 3
      %p583 = scmp.ne.s32.totalorder %s578, %s580
      %p584 = scmp.eq.s32.totalorder %s53, 0
      %p585 = por %p583, %p584
      %p586 = scmp.ne.s32.totalorder %s578, %s580
      %p587 = scmp.eq.s32.totalorder %s58, 3
      %p588 = por %p586, %p587
      %p589 = scmp.ne.s32.totalorder %s580, %s581
      %p590 = scmp.eq.s32.totalorder %s58, 0
      %p591 = por %p589, %p590
      %p592 = scmp.ne.s32.totalorder %s580, %s581
      %p593 = scmp.eq.s32.totalorder %s59, 3
      %p594 = por %p592, %p593
      %p596 = scmp.ne.s32.totalorder %s581, %s595
      %p597 = scmp.eq.s32.totalorder %s59, 0
      %p598 = por %p596, %p597
      %s600 = sadd.s32 %s599, 1
      %p603 = scmp.eq.s32.totalorder %s53, 3
      %p604 = scmp.ne.s32.totalorder %s599, %s601
      %p605 = scmp.eq.s32.totalorder %s53, 0
      %p606 = por %p604, %p605
      %p607 = scmp.ne.s32.totalorder %s599, %s601
      %p608 = scmp.eq.s32.totalorder %s58, 3
      %p609 = por %p607, %p608
      %p610 = scmp.ne.s32.totalorder %s601, %s602
      %p611 = scmp.eq.s32.totalorder %s58, 0
      %p612 = por %p610, %p611
      %p613 = scmp.ne.s32.totalorder %s601, %s602
      %p614 = scmp.eq.s32.totalorder %s59, 3
      %p615 = por %p613, %p614
      %p617 = scmp.ne.s32.totalorder %s602, %s616
      %p618 = scmp.eq.s32.totalorder %s59, 0
      %p619 = por %p617, %p618
      %s621 = sadd.s32 %s620, 1
      %p624 = scmp.eq.s32.totalorder %s53, 3
      %p625 = scmp.ne.s32.totalorder %s620, %s622
      %p626 = scmp.eq.s32.totalorder %s53, 0
      %p627 = por %p625, %p626
      %p628 = scmp.ne.s32.totalorder %s620, %s622
      %p629 = scmp.eq.s32.totalorder %s58, 3
      %p630 = por %p628, %p629
      %p631 = scmp.ne.s32.totalorder %s622, %s623
      %p632 = scmp.eq.s32.totalorder %s58, 0
      %p633 = por %p631, %p632
      %p634 = scmp.ne.s32.totalorder %s622, %s623
      %p635 = scmp.eq.s32.totalorder %s59, 3
      %p636 = por %p634, %p635
      %p638 = scmp.ne.s32.totalorder %s623, %s637
      %p639 = scmp.eq.s32.totalorder %s59, 0
      %p640 = por %p638, %p639
      %s642 = sadd.s32 %s641, 1
      %p645 = scmp.eq.s32.totalorder %s53, 3
      %p646 = scmp.ne.s32.totalorder %s641, %s643
      %p647 = scmp.eq.s32.totalorder %s53, 0
      %p648 = por %p646, %p647
      %p649 = scmp.ne.s32.totalorder %s641, %s643
      %p650 = scmp.eq.s32.totalorder %s58, 3
      %p651 = por %p649, %p650
      %p652 = scmp.ne.s32.totalorder %s643, %s644
      %p653 = scmp.eq.s32.totalorder %s58, 0
      %p654 = por %p652, %p653
      %p655 = scmp.ne.s32.totalorder %s643, %s644
      %p656 = scmp.eq.s32.totalorder %s59, 3
      %p657 = por %p655, %p656
      %p659 = scmp.ne.s32.totalorder %s644, %s658
      %p660 = scmp.eq.s32.totalorder %s59, 0
      %p661 = por %p659, %p660
      %s663 = sadd.s32 %s662, 1
      %p666 = scmp.eq.s32.totalorder %s53, 3
      %p667 = scmp.ne.s32.totalorder %s662, %s664
      %p668 = scmp.eq.s32.totalorder %s53, 0
      %p669 = por %p667, %p668
      %p670 = scmp.ne.s32.totalorder %s662, %s664
      %p671 = scmp.eq.s32.totalorder %s58, 3
      %p672 = por %p670, %p671
      %p673 = scmp.ne.s32.totalorder %s664, %s665
      %p674 = scmp.eq.s32.totalorder %s58, 0
      %p675 = por %p673, %p674
      %p676 = scmp.ne.s32.totalorder %s664, %s665
      %p677 = scmp.eq.s32.totalorder %s59, 3
      %p678 = por %p676, %p677
      %p680 = scmp.ne.s32.totalorder %s665, %s679
      %p681 = scmp.eq.s32.totalorder %s59, 0
      %p682 = por %p680, %p681
      %s683 = ssub.s32 %s60, %s72
      %s684 = ssub.s32 %s61, %s68
      %s685 = sor.u32 %s683, %s684
      %p686 = scmp.eq.s32.totalorder %s685, 0
      %s688 = sadd.s32 %s687, 1
      %s689 = scalar_select %p686, %s687, %s688
      %p692 = pneg %p686
      %p693 = scmp.eq.s32.totalorder %s53, 3
      %p694 = por %p692, %p693
      %p695 = scmp.ne.s32.totalorder %s687, %s690
      %p696 = scmp.eq.s32.totalorder %s53, 0
      %p697 = por %p695, %p696
      %p698 = scmp.ne.s32.totalorder %s687, %s690
      %p699 = scmp.eq.s32.totalorder %s58, 3
      %p700 = por %p698, %p699
      %p701 = scmp.ne.s32.totalorder %s690, %s691
      %p702 = scmp.eq.s32.totalorder %s58, 0
      %p703 = por %p701, %p702
      %p704 = scmp.ne.s32.totalorder %s690, %s691
      %p705 = scmp.eq.s32.totalorder %s59, 3
      %p706 = por %p704, %p705
      %p708 = scmp.ne.s32.totalorder %s691, %s707
      %p709 = scmp.eq.s32.totalorder %s59, 0
      %p710 = por %p708, %p709
      %p711 = scmp.le.s32.totalorder 1, %s53
      %p712 = scmp.lt.s32.totalorder %s53, 5
      %p713 = pnand %p711, %p712
      %p714 = pneg %p713
      // Predicated region
      $region9: #{tpu_custom_call.1} parent=5 // pred_check
        _
      $region10: #{tpu_custom_call.1} parent=5 // pred_check_branch
        %716 = sbr.rel (%p713) target = $region12
      $region11: #{tpu_custom_call.1} parent=5 // pred_region
        %s717 = ssub.s32 %s53, 1
        // Predicated region
        $region13: #{tpu_custom_call.1} parent=11 // pred_check
          %p718 = pneg %p192
        $region14: #{tpu_custom_call.1} parent=11 // pred_check_branch
          %720 = sbr.rel (%p718) target = $region16
        $region15: #{tpu_custom_call.1} parent=11 // pred_region
          %s722 = ssub.s32 1024, 1024
          %723 = vsyncadd [#allocation13], %s722
          %s724 = sshll.u32 [#allocation14], 4
          %s725 = int_to_ptr.vmem [resolvable:$true] %s724
          %730 = dma.hbm_to_vmem [thread:$0]  %s4, 1024, %s725, [#allocation13], 64, 64, 4
        $region16: #{tpu_custom_call.1} parent=11 // pred_fallthru
          _
        // Predicated region
        $region17: #{tpu_custom_call.1} parent=11 // pred_check
          %p731 = pneg %p213
        $region18: #{tpu_custom_call.1} parent=11 // pred_check_branch
          %733 = sbr.rel (%p731) target = $region20
        $region19: #{tpu_custom_call.1} parent=11 // pred_region
          _
        $region20: #{tpu_custom_call.1} parent=11 // pred_fallthru
          _
        // Predicated region
        $region21: #{tpu_custom_call.1} parent=11 // pred_check
          %p734 = pneg %p234
        $region22: #{tpu_custom_call.1} parent=11 // pred_check_branch
          %736 = sbr.rel (%p734) target = $region24
        $region23: #{tpu_custom_call.1} parent=11 // pred_region
          %s738 = ssub.s32 1024, 1024
          %739 = vsyncadd [#allocation16], %s738
          %s740 = sshll.u32 [#allocation15], 4
          %s741 = int_to_ptr.vmem [resolvable:$true] %s740
          %746 = dma.hbm_to_vmem [thread:$0]  %s6, 1024, %s741, [#allocation16], 64, 64, 4
        $region24: #{tpu_custom_call.1} parent=11 // pred_fallthru
          _
        // Predicated region
        $region25: #{tpu_custom_call.1} parent=11 // pred_check
          %p747 = pneg %p255
        $region26: #{tpu_custom_call.1} parent=11 // pred_check_branch
          %749 = sbr.rel (%p747) target = $region28
        $region27: #{tpu_custom_call.1} parent=11 // pred_region
          %s751 = ssub.s32 1024, 1024
          %752 = vsyncadd [#allocation16], %s751
          %s753 = sshll.u32 [#allocation17], 4
          %s754 = int_to_ptr.vmem [resolvable:$true] %s753
          %759 = dma.hbm_to_vmem [thread:$0]  %s7, 1024, %s754, [#allocation16], 64, 64, 4
        $region28: #{tpu_custom_call.1} parent=11 // pred_fallthru
          _
        // Predicated region
        $region29: #{tpu_custom_call.1} parent=11 // pred_check
          %p760 = pneg %p276
        $region30: #{tpu_custom_call.1} parent=11 // pred_check_branch
          %762 = sbr.rel (%p760) target = $region32
        $region31: #{tpu_custom_call.1} parent=11 // pred_region
          _
        $region32: #{tpu_custom_call.1} parent=11 // pred_fallthru
          _
        // Predicated region
        $region33: #{tpu_custom_call.1} parent=11 // pred_check
          %p763 = pneg %p297
        $region34: #{tpu_custom_call.1} parent=11 // pred_check_branch
          %765 = sbr.rel (%p763) target = $region36
        $region35: #{tpu_custom_call.1} parent=11 // pred_region
          %s767 = ssub.s32 1024, 1024
          %768 = vsyncadd [#allocation19], %s767
          %s769 = sshll.u32 [#allocation18], 4
          %s770 = int_to_ptr.vmem [resolvable:$true] %s769
          %775 = dma.hbm_to_vmem [thread:$0]  %s9, 1024, %s770, [#allocation19], 64, 64, 4
        $region36: #{tpu_custom_call.1} parent=11 // pred_fallthru
          _
        // Predicated region
        $region37: #{tpu_custom_call.1} parent=11 // pred_check
          %p776 = pneg %p318
        $region38: #{tpu_custom_call.1} parent=11 // pred_check_branch
          %778 = sbr.rel (%p776) target = $region40
        $region39: #{tpu_custom_call.1} parent=11 // pred_region
          %s780 = ssub.s32 16, 16
          %781 = vsyncadd [#allocation19], %s780
          %s783 = sshll.u32 [#allocation20], 4
          %s784 = int_to_ptr.vmem [resolvable:$true] %s783
          %786 = dma.hbm_to_vmem [thread:$0]  %s10, 16, %s784, [#allocation19]
        $region40: #{tpu_custom_call.1} parent=11 // pred_fallthru
          _
        // Predicated region
        $region41: #{tpu_custom_call.1} parent=11 // pred_check
          %p787 = pneg %p339
        $region42: #{tpu_custom_call.1} parent=11 // pred_check_branch
          %789 = sbr.rel (%p787) target = $region44
        $region43: #{tpu_custom_call.1} parent=11 // pred_region
          %s791 = ssub.s32 16, 16
          %792 = vsyncadd [#allocation22], %s791
          %s794 = sshll.u32 [#allocation21], 4
          %s795 = int_to_ptr.vmem [resolvable:$true] %s794
          %797 = dma.hbm_to_vmem [thread:$0]  %s11, 16, %s795, [#allocation22]
        $region44: #{tpu_custom_call.1} parent=11 // pred_fallthru
          _
        // Predicated region
        $region45: #{tpu_custom_call.1} parent=11 // pred_check
          %p798 = pneg %p360
        $region46: #{tpu_custom_call.1} parent=11 // pred_check_branch
          %800 = sbr.rel (%p798) target = $region48
        $region47: #{tpu_custom_call.1} parent=11 // pred_region
          %s802 = ssub.s32 16, 16
          %803 = vsyncadd [#allocation22], %s802
          %s805 = sshll.u32 [#allocation23], 4
          %s806 = int_to_ptr.vmem [resolvable:$true] %s805
          %808 = dma.hbm_to_vmem [thread:$0]  %s12, 16, %s806, [#allocation22]
        $region48: #{tpu_custom_call.1} parent=11 // pred_fallthru
          _
        // Predicated region
        $region49: #{tpu_custom_call.1} parent=11 // pred_check
          %p809 = pneg %p381
        $region50: #{tpu_custom_call.1} parent=11 // pred_check_branch
          %811 = sbr.rel (%p809) target = $region52
        $region51: #{tpu_custom_call.1} parent=11 // pred_region
          %s813 = ssub.s32 1024, 1024
          %814 = vsyncadd [#allocation25], %s813
          %s815 = sshll.u32 [#allocation24], 4
          %s816 = int_to_ptr.vmem [resolvable:$true] %s815
          %821 = dma.hbm_to_vmem [thread:$0]  %s13, 1024, %s816, [#allocation25], 64, 64, 4
        $region52: #{tpu_custom_call.1} parent=11 // pred_fallthru
          _
        // Predicated region
        $region53: #{tpu_custom_call.1} parent=11 // pred_check
          %p822 = pneg %p402
        $region54: #{tpu_custom_call.1} parent=11 // pred_check_branch
          %824 = sbr.rel (%p822) target = $region56
        $region55: #{tpu_custom_call.1} parent=11 // pred_region
          %s826 = ssub.s32 16, 16
          %827 = vsyncadd [#allocation25], %s826
          %s829 = sshll.u32 [#allocation26], 4
          %s830 = int_to_ptr.vmem [resolvable:$true] %s829
          %832 = dma.hbm_to_vmem [thread:$0]  %s14, 16, %s830, [#allocation25]
        $region56: #{tpu_custom_call.1} parent=11 // pred_fallthru
          _
        // Predicated region
        $region57: #{tpu_custom_call.1} parent=11 // pred_check
          %p833 = pneg %p423
        $region58: #{tpu_custom_call.1} parent=11 // pred_check_branch
          %835 = sbr.rel (%p833) target = $region60
        $region59: #{tpu_custom_call.1} parent=11 // pred_region
          %s837 = ssub.s32 1024, 1024
          %838 = vsyncadd [#allocation28], %s837
          %s839 = sshll.u32 [#allocation27], 4
          %s840 = int_to_ptr.vmem [resolvable:$true] %s839
          %845 = dma.hbm_to_vmem [thread:$0]  %s15, 1024, %s840, [#allocation28], 64, 64, 4
        $region60: #{tpu_custom_call.1} parent=11 // pred_fallthru
          _
        // Predicated region
        $region61: #{tpu_custom_call.1} parent=11 // pred_check
          %p846 = pneg %p444
        $region62: #{tpu_custom_call.1} parent=11 // pred_check_branch
          %848 = sbr.rel (%p846) target = $region64
        $region63: #{tpu_custom_call.1} parent=11 // pred_region
          %s850 = ssub.s32 1024, 1024
          %851 = vsyncadd [#allocation28], %s850
          %s852 = sshll.u32 [#allocation29], 4
          %s853 = int_to_ptr.vmem [resolvable:$true] %s852
          %858 = dma.hbm_to_vmem [thread:$0]  %s16, 1024, %s853, [#allocation28], 64, 64, 4
        $region64: #{tpu_custom_call.1} parent=11 // pred_fallthru
          _
        // Predicated region
        $region65: #{tpu_custom_call.1} parent=11 // pred_check
          %p859 = pneg %p465
        $region66: #{tpu_custom_call.1} parent=11 // pred_check_branch
          %861 = sbr.rel (%p859) target = $region68
        $region67: #{tpu_custom_call.1} parent=11 // pred_region
          %s863 = ssub.s32 16, 16
          %864 = vsyncadd [#allocation31], %s863
          %s866 = sshll.u32 [#allocation30], 4
          %s867 = int_to_ptr.vmem [resolvable:$true] %s866
          %869 = dma.hbm_to_vmem [thread:$0]  %s17, 16, %s867, [#allocation31]
        $region68: #{tpu_custom_call.1} parent=11 // pred_fallthru
          _
        // Predicated region
        $region69: #{tpu_custom_call.1} parent=11 // pred_check
          %p870 = pneg %p486
        $region70: #{tpu_custom_call.1} parent=11 // pred_check_branch
          %872 = sbr.rel (%p870) target = $region72
        $region71: #{tpu_custom_call.1} parent=11 // pred_region
          _
        $region72: #{tpu_custom_call.1} parent=11 // pred_fallthru
          _
        // Predicated region
        $region73: #{tpu_custom_call.1} parent=11 // pred_check
          %p873 = pneg %p507
        $region74: #{tpu_custom_call.1} parent=11 // pred_check_branch
          %875 = sbr.rel (%p873) target = $region76
        $region75: #{tpu_custom_call.1} parent=11 // pred_region
          _
        $region76: #{tpu_custom_call.1} parent=11 // pred_fallthru
          _
        // Predicated region
        $region77: #{tpu_custom_call.1} parent=11 // pred_check
          %p876 = pneg %p528
        $region78: #{tpu_custom_call.1} parent=11 // pred_check_branch
          %878 = sbr.rel (%p876) target = $region80
        $region79: #{tpu_custom_call.1} parent=11 // pred_region
          _
        $region80: #{tpu_custom_call.1} parent=11 // pred_fallthru
          _
        // Predicated region
        $region81: #{tpu_custom_call.1} parent=11 // pred_check
          %p879 = pneg %p549
        $region82: #{tpu_custom_call.1} parent=11 // pred_check_branch
          %881 = sbr.rel (%p879) target = $region84
        $region83: #{tpu_custom_call.1} parent=11 // pred_region
          _
        $region84: #{tpu_custom_call.1} parent=11 // pred_fallthru
          _
        // Predicated region
        $region85: #{tpu_custom_call.1} parent=11 // pred_check
          %p882 = pneg %p570
        $region86: #{tpu_custom_call.1} parent=11 // pred_check_branch
          %884 = sbr.rel (%p882) target = $region88
        $region87: #{tpu_custom_call.1} parent=11 // pred_region
          %s886 = ssub.s32 2048, 2048
          %887 = vsyncadd [#allocation31], %s886
          %s888 = sshll.u32 [#allocation32], 4
          %s889 = int_to_ptr.vmem [resolvable:$true] %s888
          %894 = dma.hbm_to_vmem [thread:$0]  %s22, 2048, %s889, [#allocation31], 128, 128, 8
        $region88: #{tpu_custom_call.1} parent=11 // pred_fallthru
          _
        // Predicated region
        $region89: #{tpu_custom_call.1} parent=11 // pred_check
          %p895 = pneg %p591
        $region90: #{tpu_custom_call.1} parent=11 // pred_check_branch
          %897 = sbr.rel (%p895) target = $region92
        $region91: #{tpu_custom_call.1} parent=11 // pred_region
          _
        $region92: #{tpu_custom_call.1} parent=11 // pred_fallthru
          _
        // Predicated region
        $region93: #{tpu_custom_call.1} parent=11 // pred_check
          %p898 = pneg %p612
        $region94: #{tpu_custom_call.1} parent=11 // pred_check_branch
          %900 = sbr.rel (%p898) target = $region96
        $region95: #{tpu_custom_call.1} parent=11 // pred_region
          %s902 = ssub.s32 2048, 2048
          %903 = vsyncadd [#allocation34], %s902
          %s904 = sshll.u32 [#allocation33], 4
          %s905 = int_to_ptr.vmem [resolvable:$true] %s904
          %910 = dma.hbm_to_vmem [thread:$0]  %s24, 2048, %s905, [#allocation34], 64, 64, 4
        $region96: #{tpu_custom_call.1} parent=11 // pred_fallthru
          _
        // Predicated region
        $region97: #{tpu_custom_call.1} parent=11 // pred_check
          %p911 = pneg %p633
        $region98: #{tpu_custom_call.1} parent=11 // pred_check_branch
          %913 = sbr.rel (%p911) target = $region100
        $region99: #{tpu_custom_call.1} parent=11 // pred_region
          _
        $region100: #{tpu_custom_call.1} parent=11 // pred_fallthru
          _
        // Predicated region
        $region101: #{tpu_custom_call.1} parent=11 // pred_check
          %p914 = pneg %p654
        $region102: #{tpu_custom_call.1} parent=11 // pred_check_branch
          %916 = sbr.rel (%p914) target = $region104
        $region103: #{tpu_custom_call.1} parent=11 // pred_region
          _
        $region104: #{tpu_custom_call.1} parent=11 // pred_fallthru
          _
        // Predicated region
        $region105: #{tpu_custom_call.1} parent=11 // pred_check
          %p917 = pneg %p675
        $region106: #{tpu_custom_call.1} parent=11 // pred_check_branch
          %919 = sbr.rel (%p917) target = $region108
        $region107: #{tpu_custom_call.1} parent=11 // pred_region
          _
        $region108: #{tpu_custom_call.1} parent=11 // pred_fallthru
          _
      $region12: #{tpu_custom_call.1} parent=5 // pred_fallthru
        _
      %p920 = scmp.lt.s32.totalorder %s53, 4
      // Predicated region
      $region109: #{tpu_custom_call.1} parent=5 // pred_check
        %p921 = pneg %p920
      $region110: #{tpu_custom_call.1} parent=5 // pred_check_branch
        %923 = sbr.rel (%p921) target = $region112
      $region111: #{tpu_custom_call.1} parent=5 // pred_region
        // Predicated region
        $region113: #{tpu_custom_call.1} parent=111 // pred_check
          %p924 = pneg %p87
        $region114: #{tpu_custom_call.1} parent=111 // pred_check_branch
          %926 = sbr.rel (%p924) target = $region116
        $region115: #{tpu_custom_call.1} parent=111 // pred_region
          %s927 = sand.u32 %s77, 1
          %s928 = scalar_lea.sflag [#allocation7], %s927
          %s929 = sand.u32 %s77, 1
          %s930 = smul.addr %s929, 8
          %s931 = scalar_lea.vmem [#allocation6], %s930
          %s933 = ssub.s32 128, 128
          %934 = vsyncadd %s928, %s933
          %s935 = smul.addr %s60, 2
          %s936 = sadd.s32 %s61, %s935
          %s937 = smul.addr %s936, 128
          %s938 = scalar_lea.hbm %s0, %s937
          %s940 = sshll.u32 %s931, 4
          %s941 = int_to_ptr.vmem [resolvable:$true] %s940
          %943 = dma.hbm_to_vmem [thread:$0]  %s938, 128, %s941, %s928
        $region116: #{tpu_custom_call.1} parent=111 // pred_fallthru
          _
        // Predicated region
        $region117: #{tpu_custom_call.1} parent=111 // pred_check
          %p944 = pneg %p113
        $region118: #{tpu_custom_call.1} parent=111 // pred_check_branch
          %946 = sbr.rel (%p944) target = $region120
        $region119: #{tpu_custom_call.1} parent=111 // pred_region
          %s947 = sand.u32 %s53, 1
          %s948 = scalar_lea.sflag [#allocation10], %s947
          %s949 = sand.u32 %s103, 1
          %s950 = smul.addr %s949, 16
          %s951 = scalar_lea.vmem [#allocation9], %s950
          %s953 = ssub.s32 256, 256
          %954 = vsyncadd %s948, %s953
          %s955 = smul.addr %s60, 2
          %s956 = smul.addr %s955, 128
          %s957 = scalar_lea.hbm %s1, %s956
          %s958 = sshll.u32 %s951, 4
          %s959 = int_to_ptr.vmem [resolvable:$true] %s958
          %964 = dma.hbm_to_vmem [thread:$0]  %s957, 256, %s959, %s948, 128, 128, 8
        $region120: #{tpu_custom_call.1} parent=111 // pred_fallthru
          _
        // Predicated region
        $region121: #{tpu_custom_call.1} parent=111 // pred_check
          %p965 = pneg %p139
        $region122: #{tpu_custom_call.1} parent=111 // pred_check_branch
          %967 = sbr.rel (%p965) target = $region124
        $region123: #{tpu_custom_call.1} parent=111 // pred_region
          %s968 = sand.u32 %s53, 1
          %s969 = scalar_lea.sflag [#allocation10], %s968
          %s970 = sand.u32 %s129, 1
          %s971 = smul.addr %s970, 16
          %s972 = scalar_lea.vmem [#allocation11], %s971
          %s974 = ssub.s32 256, 256
          %975 = vsyncadd %s969, %s974
          %s976 = smul.addr %s60, 2
          %s977 = smul.addr %s976, 128
          %s978 = scalar_lea.hbm %s2, %s977
          %s979 = sshll.u32 %s972, 4
          %s980 = int_to_ptr.vmem [resolvable:$true] %s979
          %985 = dma.hbm_to_vmem [thread:$0]  %s978, 256, %s980, %s969, 128, 128, 8
        $region124: #{tpu_custom_call.1} parent=111 // pred_fallthru
          _
        // Predicated region
        $region125: #{tpu_custom_call.1} parent=111 // pred_check
          %p986 = pneg %p165
        $region126: #{tpu_custom_call.1} parent=111 // pred_check_branch
          %988 = sbr.rel (%p986) target = $region128
        $region127: #{tpu_custom_call.1} parent=111 // pred_region
          %s989 = sand.u32 %s53, 1
          %s990 = scalar_lea.sflag [#allocation13], %s989
          %s991 = sand.u32 %s155, 1
          %s992 = smul.addr %s991, 8
          %s993 = scalar_lea.vmem [#allocation12], %s992
          %s995 = ssub.s32 128, 128
          %996 = vsyncadd %s990, %s995
          %s997 = smul.addr %s61, 128
          %s998 = scalar_lea.hbm %s3, %s997
          %s1000 = sshll.u32 %s993, 4
          %s1001 = int_to_ptr.vmem [resolvable:$true] %s1000
          %1003 = dma.hbm_to_vmem [thread:$0]  %s998, 128, %s1001, %s990
        $region128: #{tpu_custom_call.1} parent=111 // pred_fallthru
          _
      $region112: #{tpu_custom_call.1} parent=5 // pred_fallthru
        _
      %p1004 = scmp.le.s32.totalorder 1, %s53
      %p1005 = scmp.lt.s32.totalorder %s53, 5
      %p1006 = pnand %p1004, %p1005
      %p1007 = pneg %p1006
      // Predicated region
      $region129: #{tpu_custom_call.1} parent=5 // pred_check
        _
      $region130: #{tpu_custom_call.1} parent=5 // pred_check_branch
        %1009 = sbr.rel (%p1006) target = $region132
      $region131: #{tpu_custom_call.1} parent=5 // pred_region
        %s1010 = ssub.s32 %s53, 1
        %s1011 = sand.u32 %s80, 1
        %s1012 = scalar_lea.sflag [#allocation7], %s1011
        %s1013 = sand.u32 %s80, 1
        %s1014 = smul.addr %s1013, 8
        %s1015 = scalar_lea.vmem [#allocation6], %s1014
        // Predicated region
        $region133: #{tpu_custom_call.1} parent=131 // pred_check
          %p1016 = pneg %p93
        $region134: #{tpu_custom_call.1} parent=131 // pred_check_branch
          %1018 = sbr.rel (%p1016) target = $region136
        $region135: #{tpu_custom_call.1} parent=131 // pred_region
          %1019 = dma.done %s1012, 128
        $region136: #{tpu_custom_call.1} parent=131 // pred_fallthru
          _
        %s1020 = sand.u32 %s58, 1
        %s1021 = scalar_lea.sflag [#allocation10], %s1020
        %s1022 = sand.u32 %s106, 1
        %s1023 = smul.addr %s1022, 16
        %s1024 = scalar_lea.vmem [#allocation9], %s1023
        // Predicated region
        $region137: #{tpu_custom_call.1} parent=131 // pred_check
          %p1025 = pneg %p119
        $region138: #{tpu_custom_call.1} parent=131 // pred_check_branch
          %1027 = sbr.rel (%p1025) target = $region140
        $region139: #{tpu_custom_call.1} parent=131 // pred_region
          %1028 = dma.done %s1021, 256
        $region140: #{tpu_custom_call.1} parent=131 // pred_fallthru
          _
        %s1029 = sand.u32 %s58, 1
        %s1030 = scalar_lea.sflag [#allocation10], %s1029
        %s1031 = sand.u32 %s132, 1
        %s1032 = smul.addr %s1031, 16
        %s1033 = scalar_lea.vmem [#allocation11], %s1032
        // Predicated region
        $region141: #{tpu_custom_call.1} parent=131 // pred_check
          %p1034 = pneg %p145
        $region142: #{tpu_custom_call.1} parent=131 // pred_check_branch
          %1036 = sbr.rel (%p1034) target = $region144
        $region143: #{tpu_custom_call.1} parent=131 // pred_region
          %1037 = dma.done %s1030, 256
        $region144: #{tpu_custom_call.1} parent=131 // pred_fallthru
          _
        %s1038 = sand.u32 %s58, 1
        %s1039 = scalar_lea.sflag [#allocation13], %s1038
        %s1040 = sand.u32 %s158, 1
        %s1041 = smul.addr %s1040, 8
        %s1042 = scalar_lea.vmem [#allocation12], %s1041
        // Predicated region
        $region145: #{tpu_custom_call.1} parent=131 // pred_check
          %p1043 = pneg %p171
        $region146: #{tpu_custom_call.1} parent=131 // pred_check_branch
          %1045 = sbr.rel (%p1043) target = $region148
        $region147: #{tpu_custom_call.1} parent=131 // pred_region
          %1046 = dma.done %s1039, 128
        $region148: #{tpu_custom_call.1} parent=131 // pred_fallthru
          _
        // Predicated region
        $region149: #{tpu_custom_call.1} parent=131 // pred_check
          %p1047 = pneg %p192
        $region150: #{tpu_custom_call.1} parent=131 // pred_check_branch
          %1049 = sbr.rel (%p1047) target = $region152
        $region151: #{tpu_custom_call.1} parent=131 // pred_region
          %1050 = dma.done [#allocation13], 1024
        $region152: #{tpu_custom_call.1} parent=131 // pred_fallthru
          _
        // Predicated region
        $region153: #{tpu_custom_call.1} parent=131 // pred_check
          %p1051 = pneg %p234
        $region154: #{tpu_custom_call.1} parent=131 // pred_check_branch
          %1053 = sbr.rel (%p1051) target = $region156
        $region155: #{tpu_custom_call.1} parent=131 // pred_region
          %1054 = dma.done [#allocation16], 1024
        $region156: #{tpu_custom_call.1} parent=131 // pred_fallthru
          _
        // Predicated region
        $region157: #{tpu_custom_call.1} parent=131 // pred_check
          %p1055 = pneg %p255
        $region158: #{tpu_custom_call.1} parent=131 // pred_check_branch
          %1057 = sbr.rel (%p1055) target = $region160
        $region159: #{tpu_custom_call.1} parent=131 // pred_region
          %1058 = dma.done [#allocation16], 1024
        $region160: #{tpu_custom_call.1} parent=131 // pred_fallthru
          _
        // Predicated region
        $region161: #{tpu_custom_call.1} parent=131 // pred_check
          %p1059 = pneg %p297
        $region162: #{tpu_custom_call.1} parent=131 // pred_check_branch
          %1061 = sbr.rel (%p1059) target = $region164
        $region163: #{tpu_custom_call.1} parent=131 // pred_region
          %1062 = dma.done [#allocation19], 1024
        $region164: #{tpu_custom_call.1} parent=131 // pred_fallthru
          _
        // Predicated region
        $region165: #{tpu_custom_call.1} parent=131 // pred_check
          %p1063 = pneg %p318
        $region166: #{tpu_custom_call.1} parent=131 // pred_check_branch
          %1065 = sbr.rel (%p1063) target = $region168
        $region167: #{tpu_custom_call.1} parent=131 // pred_region
          %1066 = dma.done [#allocation19], 16
        $region168: #{tpu_custom_call.1} parent=131 // pred_fallthru
          _
        // Predicated region
        $region169: #{tpu_custom_call.1} parent=131 // pred_check
          %p1067 = pneg %p339
        $region170: #{tpu_custom_call.1} parent=131 // pred_check_branch
          %1069 = sbr.rel (%p1067) target = $region172
        $region171: #{tpu_custom_call.1} parent=131 // pred_region
          %1070 = dma.done [#allocation22], 16
        $region172: #{tpu_custom_call.1} parent=131 // pred_fallthru
          _
        // Predicated region
        $region173: #{tpu_custom_call.1} parent=131 // pred_check
          %p1071 = pneg %p360
        $region174: #{tpu_custom_call.1} parent=131 // pred_check_branch
          %1073 = sbr.rel (%p1071) target = $region176
        $region175: #{tpu_custom_call.1} parent=131 // pred_region
          %1074 = dma.done [#allocation22], 16
        $region176: #{tpu_custom_call.1} parent=131 // pred_fallthru
          _
        // Predicated region
        $region177: #{tpu_custom_call.1} parent=131 // pred_check
          %p1075 = pneg %p381
        $region178: #{tpu_custom_call.1} parent=131 // pred_check_branch
          %1077 = sbr.rel (%p1075) target = $region180
        $region179: #{tpu_custom_call.1} parent=131 // pred_region
          %1078 = dma.done [#allocation25], 1024
        $region180: #{tpu_custom_call.1} parent=131 // pred_fallthru
          _
        // Predicated region
        $region181: #{tpu_custom_call.1} parent=131 // pred_check
          %p1079 = pneg %p402
        $region182: #{tpu_custom_call.1} parent=131 // pred_check_branch
          %1081 = sbr.rel (%p1079) target = $region184
        $region183: #{tpu_custom_call.1} parent=131 // pred_region
          %1082 = dma.done [#allocation25], 16
        $region184: #{tpu_custom_call.1} parent=131 // pred_fallthru
          _
        // Predicated region
        $region185: #{tpu_custom_call.1} parent=131 // pred_check
          %p1083 = pneg %p423
        $region186: #{tpu_custom_call.1} parent=131 // pred_check_branch
          %1085 = sbr.rel (%p1083) target = $region188
        $region187: #{tpu_custom_call.1} parent=131 // pred_region
          %1086 = dma.done [#allocation28], 1024
        $region188: #{tpu_custom_call.1} parent=131 // pred_fallthru
          _
        // Predicated region
        $region189: #{tpu_custom_call.1} parent=131 // pred_check
          %p1087 = pneg %p444
        $region190: #{tpu_custom_call.1} parent=131 // pred_check_branch
          %1089 = sbr.rel (%p1087) target = $region192
        $region191: #{tpu_custom_call.1} parent=131 // pred_region
          %1090 = dma.done [#allocation28], 1024
        $region192: #{tpu_custom_call.1} parent=131 // pred_fallthru
          _
        // Predicated region
        $region193: #{tpu_custom_call.1} parent=131 // pred_check
          %p1091 = pneg %p465
        $region194: #{tpu_custom_call.1} parent=131 // pred_check_branch
          %1093 = sbr.rel (%p1091) target = $region196
        $region195: #{tpu_custom_call.1} parent=131 // pred_region
          %1094 = dma.done [#allocation31], 16
        $region196: #{tpu_custom_call.1} parent=131 // pred_fallthru
          _
        // Predicated region
        $region197: #{tpu_custom_call.1} parent=131 // pred_check
          %p1095 = pneg %p570
        $region198: #{tpu_custom_call.1} parent=131 // pred_check_branch
          %1097 = sbr.rel (%p1095) target = $region200
        $region199: #{tpu_custom_call.1} parent=131 // pred_region
          %1098 = dma.done [#allocation31], 2048
        $region200: #{tpu_custom_call.1} parent=131 // pred_fallthru
          _
        // Predicated region
        $region201: #{tpu_custom_call.1} parent=131 // pred_check
          %p1099 = pneg %p612
        $region202: #{tpu_custom_call.1} parent=131 // pred_check_branch
          %1101 = sbr.rel (%p1099) target = $region204
        $region203: #{tpu_custom_call.1} parent=131 // pred_region
          %1102 = dma.done [#allocation34], 2048
        $region204: #{tpu_custom_call.1} parent=131 // pred_fallthru
          _
        %s1103 = sand.u32 %s80, 1
        %s1104 = scalar_lea.sflag [#allocation7], %s1103
        %s1105 = sand.u32 %s80, 1
        %s1106 = smul.addr %s1105, 8
        %s1107 = scalar_lea.vmem [#allocation6], %s1106
        %p1108 = pneg %p93
        %p1109 = pneg %p90
        %s1110 = sand.u32 %s58, 1
        %s1111 = scalar_lea.sflag [#allocation10], %s1110
        %s1112 = sand.u32 %s106, 1
        %s1113 = smul.addr %s1112, 16
        %s1114 = scalar_lea.vmem [#allocation9], %s1113
        %p1115 = pneg %p119
        %p1116 = pneg %p116
        %s1117 = sand.u32 %s58, 1
        %s1118 = scalar_lea.sflag [#allocation10], %s1117
        %s1119 = sand.u32 %s132, 1
        %s1120 = smul.addr %s1119, 16
        %s1121 = scalar_lea.vmem [#allocation11], %s1120
        %p1122 = pneg %p145
        %p1123 = pneg %p142
        %s1124 = sand.u32 %s58, 1
        %s1125 = scalar_lea.sflag [#allocation13], %s1124
        %s1126 = sand.u32 %s158, 1
        %s1127 = smul.addr %s1126, 8
        %s1128 = scalar_lea.vmem [#allocation12], %s1127
        %p1129 = pneg %p171
        %p1130 = pneg %p168
        %p1131 = pneg %p192
        %p1132 = pneg %p189
        %p1133 = pneg %p213
        %p1134 = pneg %p210
        %p1135 = pneg %p234
        %p1136 = pneg %p231
        %p1137 = pneg %p255
        %p1138 = pneg %p252
        %p1139 = pneg %p276
        %p1140 = pneg %p273
        %p1141 = pneg %p297
        %p1142 = pneg %p294
        %p1143 = pneg %p318
        %p1144 = pneg %p315
        %p1145 = pneg %p339
        %p1146 = pneg %p336
        %p1147 = pneg %p360
        %p1148 = pneg %p357
        %p1149 = pneg %p381
        %p1150 = pneg %p378
        %p1151 = pneg %p402
        %p1152 = pneg %p399
        %p1153 = pneg %p423
        %p1154 = pneg %p420
        %p1155 = pneg %p444
        %p1156 = pneg %p441
        %p1157 = pneg %p465
        %p1158 = pneg %p462
        %p1159 = pneg %p486
        %p1160 = pneg %p483
        %p1161 = pneg %p507
        %p1162 = pneg %p504
        %p1163 = pneg %p528
        %p1164 = pneg %p525
        %p1165 = pneg %p549
        %p1166 = pneg %p546
        %p1167 = pneg %p570
        %p1168 = pneg %p567
        %p1169 = pneg %p591
        %p1170 = pneg %p588
        %p1171 = pneg %p612
        %p1172 = pneg %p609
        %p1173 = pneg %p633
        %p1174 = pneg %p630
        %p1175 = pneg %p654
        %p1176 = pneg %p651
        %p1177 = pneg %p675
        %p1178 = pneg %p672
        %p1179 = pneg %p703
        %p1180 = pneg %p700
        %s1181 = sand.u32 %s690, 1
        %s1182 = scalar_lea.sflag [#allocation8], %s1181
        %s1183 = sand.u32 %s690, 1
        %s1184 = smul.addr %s1183, 8
        %s1185 = scalar_lea.vmem [#allocation35], %s1184
        %p1187 = scmp.eq.s32.totalorder %s63, 0
        // Predicated region
        $region205: #{tpu_custom_call.1} parent=131 // pred_check
          %p1188 = pneg %p1187
        $region206: #{tpu_custom_call.1} parent=131 // pred_check_branch
          %1190 = sbr.rel (%p1188) target = $region208
        $region207: #{tpu_custom_call.1} parent=131 // pred_region
          %v1191 = vld [vmem:[%s1024] sm:$0xff]
          %v1192 = vld [vmem:[%s1024 + $0x8] sm:$0xff]
          %v1193 = vld [vmem:[%s1033] sm:$0xff]
          %v1194 = vld [vmem:[%s1033 + $0x8] sm:$0xff]
          %v1195 = vpack.c.bf16 %v1192, %v1191
          %v1196 = vld [vmem:[#allocation15] sm:$0xf]
          %v1197 = vld [vmem:[#allocation15 + $0x4] sm:$0xf]
          %v1198 = vld [vmem:[#allocation15 + $0x8] sm:$0xf]
          %v1199 = vld [vmem:[#allocation15 + $0xc] sm:$0xf]
          %v1200 = vld [vmem:[#allocation15 + $0x10] sm:$0xf]
          %v1201 = vld [vmem:[#allocation15 + $0x14] sm:$0xf]
          %v1202 = vld [vmem:[#allocation15 + $0x18] sm:$0xf]
          %v1203 = vld [vmem:[#allocation15 + $0x1c] sm:$0xf]
          %v1204 = vld [vmem:[#allocation15 + $0x20] sm:$0xf]
          %v1205 = vld [vmem:[#allocation15 + $0x24] sm:$0xf]
          %v1206 = vld [vmem:[#allocation15 + $0x28] sm:$0xf]
          %v1207 = vld [vmem:[#allocation15 + $0x2c] sm:$0xf]
          %v1208 = vld [vmem:[#allocation15 + $0x30] sm:$0xf]
          %v1209 = vld [vmem:[#allocation15 + $0x34] sm:$0xf]
          %v1210 = vld [vmem:[#allocation15 + $0x38] sm:$0xf]
          %v1211 = vld [vmem:[#allocation15 + $0x3c] sm:$0xf]
          %v1228 = vunpack.c.l.b16 %v1196
          %v1229 = vunpack.c.l.b16 %v1197
          %v1230 = vunpack.c.l.b16 %v1198
          %v1231 = vunpack.c.l.b16 %v1199
          %v1232 = vunpack.c.l.b16 %v1200
          %v1233 = vunpack.c.l.b16 %v1201
          %v1234 = vunpack.c.l.b16 %v1202
          %v1235 = vunpack.c.l.b16 %v1203
          %v1236 = vunpack.c.l.b16 %v1204
          %v1237 = vunpack.c.l.b16 %v1205
          %v1238 = vunpack.c.l.b16 %v1206
          %v1239 = vunpack.c.l.b16 %v1207
          %v1240 = vunpack.c.l.b16 %v1208
          %v1241 = vunpack.c.l.b16 %v1209
          %v1242 = vunpack.c.l.b16 %v1210
          %v1243 = vunpack.c.l.b16 %v1211
          %v1244 = vpack.c.b16 %v1229, %v1228
          %v1245 = vpack.c.b16 %v1231, %v1230
          %v1246 = vpack.c.b16 %v1233, %v1232
          %v1247 = vpack.c.b16 %v1235, %v1234
          %v1248 = vpack.c.b16 %v1237, %v1236
          %v1249 = vpack.c.b16 %v1239, %v1238
          %v1250 = vpack.c.b16 %v1241, %v1240
          %v1251 = vpack.c.b16 %v1243, %v1242
          %1260 = vmatprep.subr.bf16.mxu0 0
          %1261 = vmatpush1.bf16.msra.mxu0 %v1244
          %1262 = vmatprep.subr.bf16.mxu0 0
          %1263 = vmatpush1.bf16.msra.mxu0 %v1245
          %1264 = vmatprep.subr.bf16.mxu0 0
          %1265 = vmatpush1.bf16.msra.mxu0 %v1246
          %1266 = vmatprep.subr.bf16.mxu0 0
          %1267 = vmatpush1.bf16.msra.mxu0 %v1247
          %1268 = vmatprep.subr.bf16.mxu0 0
          %1269 = vmatpush1.bf16.msra.mxu0 %v1248
          %1270 = vmatprep.subr.bf16.mxu0 0
          %1271 = vmatpush1.bf16.msra.mxu0 %v1249
          %1272 = vmatprep.subr.bf16.mxu0 0
          %1273 = vmatpush1.bf16.msra.mxu0 %v1250
          %1274 = vmatprep.subr.bf16.mxu0 0
          %1275 = vmatpush1.bf16.msra.mxu0 %v1251
          %1276 = vmatprep.subr.bf16.mxu0 0
          %1277 = vmatpush1.bf16.msra.mxu0 0
          %1278 = vmatprep.subr.bf16.mxu0 0
          %1279 = vmatpush1.bf16.msra.mxu0 0
          %1280 = vmatprep.subr.bf16.mxu0 0
          %1281 = vmatpush1.bf16.msra.mxu0 0
          %1282 = vmatprep.subr.bf16.mxu0 0
          %1283 = vmatpush1.bf16.msra.mxu0 0
          %1284 = vmatprep.subr.bf16.mxu0 0
          %1285 = vmatpush1.bf16.msra.mxu0 0
          %1286 = vmatprep.subr.bf16.mxu0 0
          %1287 = vmatpush1.bf16.msra.mxu0 0
          %1288 = vmatprep.subr.bf16.mxu0 0
          %1289 = vmatpush1.bf16.msra.mxu0 0
          %1290 = vmatprep.subr.bf16.mxu0 0
          %1291 = vmatpush1.bf16.msra.mxu0 0
          %1292 = vmatprep.mubr.bf16.mxu0 0
          %1293 = vmatmul.mubr.bf16.gmra.mrb[0].mxu0 %v1195
          %v1294 = vpop.f32.mrb[0].mxu0
          %v1295 = vadd.f32 0.0, %v1294
          %v1296 = vpop.f32.mrb[0].mxu0
          %v1297 = vpop.f32.mrb[0].mxu0
          %v1298 = vadd.f32 0.0, %v1297
          %v1299 = vpop.f32.mrb[0].mxu0
          %1300 = vdwg.mxu0
          %v1301 = vpack.c.bf16 %v1298, %v1295
          %1303 = vrot.lane.b32.xlu0 %v1301, 96
          %v1304 = vpop.permute.xlu0 %1303
          %1305 = vrot.lane.b32.xlu0 %v1301, 64
          %v1306 = vpop.permute.xlu0 %1305
          %1307 = vrot.lane.b32.xlu0 %v1301, 32
          %v1308 = vpop.permute.xlu0 %1307
          %v1311 = vpack.i.b16 %v1304, %v1301
          %v1313 = vshrl.u32 %v1301, 16
          %v1314 = vshrl.u32 %v1304, 16
          %v1315 = vpack.i.b16 %v1314, %v1313
          %v1319 = vpack.i.b16 %v1308, %v1306
          %v1321 = vshrl.u32 %v1306, 16
          %v1322 = vshrl.u32 %v1308, 16
          %v1323 = vpack.i.b16 %v1322, %v1321
          %v1326 = vpack.i.b16 0, 0
          %v1328 = vshrl.u32 0, 16
          %v1329 = vpack.i.b16 %v1328, %v1328
          %v1331 = vcombine.high %v1311, %v1326
          %v1333 = vunpack.c.l.s4 1983009808
          %v1334 = vunpack.c.0.s8 %v1333
          %v1335 = vlaneseq
          %v1336 = vshrl.u32 %v1335, 7
          %v1337 = vsub.s32 %v1334, %v1336
          %v1338 = vrot.slane %v1311, %v1337
          %v1340 = vunpack.c.l.s4 1983009808
          %v1341 = vunpack.c.0.s8 %v1340
          %v1342 = vlaneseq
          %v1343 = vshrl.u32 %v1342, 7
          %v1344 = vsub.s32 %v1341, %v1343
          %v1345 = vrot.slane %v1331, %v1344
          %v1346 = vcombine.high %v1319, %v1326
          %v1348 = vunpack.c.l.s4 1983009808
          %v1349 = vunpack.c.0.s8 %v1348
          %v1350 = vlaneseq
          %v1351 = vshrl.u32 %v1350, 7
          %v1352 = vsub.s32 %v1349, %v1351
          %v1353 = vrot.slane %v1319, %v1352
          %v1355 = vunpack.c.l.s4 1983009808
          %v1356 = vunpack.c.0.s8 %v1355
          %v1357 = vlaneseq
          %v1358 = vshrl.u32 %v1357, 7
          %v1359 = vsub.s32 %v1356, %v1358
          %v1360 = vrot.slane %v1346, %v1359
          %v1361 = vcombine.low %v1338, %v1353
          %v1362 = vcombine.high %v1338, %v1353
          %v1364 = vunpack.c.l.s4 1934713408
          %v1365 = vunpack.c.0.s8 %v1364
          %v1366 = vlaneseq
          %v1367 = vshrl.u32 %v1366, 7
          %v1368 = vsub.s32 %v1365, %v1367
          %v1369 = vrot.slane %v1361, %v1368
          %v1371 = vunpack.c.l.s4 1934713408
          %v1372 = vunpack.c.0.s8 %v1371
          %v1373 = vlaneseq
          %v1374 = vshrl.u32 %v1373, 7
          %v1375 = vsub.s32 %v1372, %v1374
          %v1376 = vrot.slane %v1362, %v1375
          %v1377 = vcombine.low %v1345, %v1360
          %v1378 = vcombine.high %v1345, %v1360
          %v1380 = vunpack.c.l.s4 1934713408
          %v1381 = vunpack.c.0.s8 %v1380
          %v1382 = vlaneseq
          %v1383 = vshrl.u32 %v1382, 7
          %v1384 = vsub.s32 %v1381, %v1383
          %v1385 = vrot.slane %v1377, %v1384
          %v1387 = vunpack.c.l.s4 1934713408
          %v1388 = vunpack.c.0.s8 %v1387
          %v1389 = vlaneseq
          %v1390 = vshrl.u32 %v1389, 7
          %v1391 = vsub.s32 %v1388, %v1390
          %v1392 = vrot.slane %v1378, %v1391
          %v1393 = vcombine.high %v1369, 0
          %v1394 = vcombine.high %v1376, 0
          %v1395 = vcombine.high %v1385, 0
          %v1396 = vcombine.high %v1392, 0
          %v1397 = vcombine.high %v1315, %v1329
          %v1399 = vunpack.c.l.s4 1983009808
          %v1400 = vunpack.c.0.s8 %v1399
          %v1401 = vlaneseq
          %v1402 = vshrl.u32 %v1401, 7
          %v1403 = vsub.s32 %v1400, %v1402
          %v1404 = vrot.slane %v1315, %v1403
          %v1406 = vunpack.c.l.s4 1983009808
          %v1407 = vunpack.c.0.s8 %v1406
          %v1408 = vlaneseq
          %v1409 = vshrl.u32 %v1408, 7
          %v1410 = vsub.s32 %v1407, %v1409
          %v1411 = vrot.slane %v1397, %v1410
          %v1412 = vcombine.high %v1323, %v1329
          %v1414 = vunpack.c.l.s4 1983009808
          %v1415 = vunpack.c.0.s8 %v1414
          %v1416 = vlaneseq
          %v1417 = vshrl.u32 %v1416, 7
          %v1418 = vsub.s32 %v1415, %v1417
          %v1419 = vrot.slane %v1323, %v1418
          %v1421 = vunpack.c.l.s4 1983009808
          %v1422 = vunpack.c.0.s8 %v1421
          %v1423 = vlaneseq
          %v1424 = vshrl.u32 %v1423, 7
          %v1425 = vsub.s32 %v1422, %v1424
          %v1426 = vrot.slane %v1412, %v1425
          %v1427 = vcombine.low %v1404, %v1419
          %v1428 = vcombine.high %v1404, %v1419
          %v1430 = vunpack.c.l.s4 1934713408
          %v1431 = vunpack.c.0.s8 %v1430
          %v1432 = vlaneseq
          %v1433 = vshrl.u32 %v1432, 7
          %v1434 = vsub.s32 %v1431, %v1433
          %v1435 = vrot.slane %v1427, %v1434
          %v1437 = vunpack.c.l.s4 1934713408
          %v1438 = vunpack.c.0.s8 %v1437
          %v1439 = vlaneseq
          %v1440 = vshrl.u32 %v1439, 7
          %v1441 = vsub.s32 %v1438, %v1440
          %v1442 = vrot.slane %v1428, %v1441
          %v1443 = vcombine.low %v1411, %v1426
          %v1444 = vcombine.high %v1411, %v1426
          %v1446 = vunpack.c.l.s4 1934713408
          %v1447 = vunpack.c.0.s8 %v1446
          %v1448 = vlaneseq
          %v1449 = vshrl.u32 %v1448, 7
          %v1450 = vsub.s32 %v1447, %v1449
          %v1451 = vrot.slane %v1443, %v1450
          %v1453 = vunpack.c.l.s4 1934713408
          %v1454 = vunpack.c.0.s8 %v1453
          %v1455 = vlaneseq
          %v1456 = vshrl.u32 %v1455, 7
          %v1457 = vsub.s32 %v1454, %v1456
          %v1458 = vrot.slane %v1444, %v1457
          %v1459 = vcombine.high %v1435, 0
          %v1460 = vcombine.high %v1442, 0
          %v1461 = vcombine.high %v1451, 0
          %v1462 = vcombine.high %v1458, 0
          %vm1463 = vcmask 254976
          %1464 = vst.msk [vmem:[#allocation2] sm:$0x3] %vm1463, %v1369
          %1465 = vst.msk [vmem:[#allocation2 + $0x2] sm:$0x3] %vm1463, %v1435
          %1466 = vst.msk [vmem:[#allocation2 + $0x4] sm:$0x3] %vm1463, %v1393
          %1467 = vst.msk [vmem:[#allocation2 + $0x6] sm:$0x3] %vm1463, %v1459
          %1468 = vst.msk [vmem:[#allocation2 + $0x8] sm:$0x3] %vm1463, %v1376
          %1469 = vst.msk [vmem:[#allocation2 + $0xa] sm:$0x3] %vm1463, %v1442
          %1470 = vst.msk [vmem:[#allocation2 + $0xc] sm:$0x3] %vm1463, %v1394
          %1471 = vst.msk [vmem:[#allocation2 + $0xe] sm:$0x3] %vm1463, %v1460
          %1472 = vst.msk [vmem:[#allocation2 + $0x10] sm:$0x3] %vm1463, %v1385
          %1473 = vst.msk [vmem:[#allocation2 + $0x12] sm:$0x3] %vm1463, %v1451
          %1474 = vst.msk [vmem:[#allocation2 + $0x14] sm:$0x3] %vm1463, %v1395
          %1475 = vst.msk [vmem:[#allocation2 + $0x16] sm:$0x3] %vm1463, %v1461
          %1476 = vst.msk [vmem:[#allocation2 + $0x18] sm:$0x3] %vm1463, %v1392
          %1477 = vst.msk [vmem:[#allocation2 + $0x1a] sm:$0x3] %vm1463, %v1458
          %1478 = vst.msk [vmem:[#allocation2 + $0x1c] sm:$0x3] %vm1463, %v1396
          %1479 = vst.msk [vmem:[#allocation2 + $0x1e] sm:$0x3] %vm1463, %v1462
          %v1480 = vld [vmem:[#allocation17] sm:$0xf]
          %v1481 = vld [vmem:[#allocation17 + $0x4] sm:$0xf]
          %v1482 = vld [vmem:[#allocation17 + $0x8] sm:$0xf]
          %v1483 = vld [vmem:[#allocation17 + $0xc] sm:$0xf]
          %v1484 = vld [vmem:[#allocation17 + $0x10] sm:$0xf]
          %v1485 = vld [vmem:[#allocation17 + $0x14] sm:$0xf]
          %v1486 = vld [vmem:[#allocation17 + $0x18] sm:$0xf]
          %v1487 = vld [vmem:[#allocation17 + $0x1c] sm:$0xf]
          %v1488 = vld [vmem:[#allocation17 + $0x20] sm:$0xf]
          %v1489 = vld [vmem:[#allocation17 + $0x24] sm:$0xf]
          %v1490 = vld [vmem:[#allocation17 + $0x28] sm:$0xf]
          %v1491 = vld [vmem:[#allocation17 + $0x2c] sm:$0xf]
          %v1492 = vld [vmem:[#allocation17 + $0x30] sm:$0xf]
          %v1493 = vld [vmem:[#allocation17 + $0x34] sm:$0xf]
          %v1494 = vld [vmem:[#allocation17 + $0x38] sm:$0xf]
          %v1495 = vld [vmem:[#allocation17 + $0x3c] sm:$0xf]
          %v1496 = vld [vmem:[%s8] sm:$0x1]
          %v1498 = vlaneseq
          %v1499 = vshrl.u32 %v1498, 7
          %v1500 = vsub.s32 0, %v1499
          %v1501 = vrot.slane %v1496, %v1500
          %v1519 = vunpack.c.l.b16 %v1480
          %v1520 = vunpack.c.l.b16 %v1481
          %v1521 = vunpack.c.l.b16 %v1482
          %v1522 = vunpack.c.l.b16 %v1483
          %v1523 = vunpack.c.l.b16 %v1484
          %v1524 = vunpack.c.l.b16 %v1485
          %v1525 = vunpack.c.l.b16 %v1486
          %v1526 = vunpack.c.l.b16 %v1487
          %v1527 = vunpack.c.l.b16 %v1488
          %v1528 = vunpack.c.l.b16 %v1489
          %v1529 = vunpack.c.l.b16 %v1490
          %v1530 = vunpack.c.l.b16 %v1491
          %v1531 = vunpack.c.l.b16 %v1492
          %v1532 = vunpack.c.l.b16 %v1493
          %v1533 = vunpack.c.l.b16 %v1494
          %v1534 = vunpack.c.l.b16 %v1495
          %v1535 = vpack.c.b16 %v1520, %v1519
          %v1536 = vpack.c.b16 %v1522, %v1521
          %v1537 = vpack.c.b16 %v1524, %v1523
          %v1538 = vpack.c.b16 %v1526, %v1525
          %v1539 = vpack.c.b16 %v1528, %v1527
          %v1540 = vpack.c.b16 %v1530, %v1529
          %v1541 = vpack.c.b16 %v1532, %v1531
          %v1542 = vpack.c.b16 %v1534, %v1533
          %1551 = vmatprep.subr.bf16.mxu0 0
          %1552 = vmatpush1.bf16.msra.mxu0 %v1535
          %1553 = vmatprep.subr.bf16.mxu0 0
          %1554 = vmatpush1.bf16.msra.mxu0 %v1536
          %1555 = vmatprep.subr.bf16.mxu0 0
          %1556 = vmatpush1.bf16.msra.mxu0 %v1537
          %1557 = vmatprep.subr.bf16.mxu0 0
          %1558 = vmatpush1.bf16.msra.mxu0 %v1538
          %1559 = vmatprep.subr.bf16.mxu0 0
          %1560 = vmatpush1.bf16.msra.mxu0 %v1539
          %1561 = vmatprep.subr.bf16.mxu0 0
          %1562 = vmatpush1.bf16.msra.mxu0 %v1540
          %1563 = vmatprep.subr.bf16.mxu0 0
          %1564 = vmatpush1.bf16.msra.mxu0 %v1541
          %1565 = vmatprep.subr.bf16.mxu0 0
          %1566 = vmatpush1.bf16.msra.mxu0 %v1542
          %1567 = vmatprep.subr.bf16.mxu0 0
          %1568 = vmatpush1.bf16.msra.mxu0 0
          %1569 = vmatprep.subr.bf16.mxu0 0
          %1570 = vmatpush1.bf16.msra.mxu0 0
          %1571 = vmatprep.subr.bf16.mxu0 0
          %1572 = vmatpush1.bf16.msra.mxu0 0
          %1573 = vmatprep.subr.bf16.mxu0 0
          %1574 = vmatpush1.bf16.msra.mxu0 0
          %1575 = vmatprep.subr.bf16.mxu0 0
          %1576 = vmatpush1.bf16.msra.mxu0 0
          %1577 = vmatprep.subr.bf16.mxu0 0
          %1578 = vmatpush1.bf16.msra.mxu0 0
          %1579 = vmatprep.subr.bf16.mxu0 0
          %1580 = vmatpush1.bf16.msra.mxu0 0
          %1581 = vmatprep.subr.bf16.mxu0 0
          %1582 = vmatpush1.bf16.msra.mxu0 0
          %1583 = vmatprep.mubr.bf16.mxu0 0
          %1584 = vmatmul.mubr.bf16.gmra.mrb[0].mxu0 %v1195
          %v1585 = vpop.f32.mrb[0].mxu0
          %v1586 = vadd.f32 %v1501, %v1585
          %v1587 = vpop.f32.mrb[0].mxu0
          %v1588 = vpop.f32.mrb[0].mxu0
          %v1589 = vadd.f32 %v1501, %v1588
          %v1590 = vpop.f32.mrb[0].mxu0
          %1591 = vdwg.mxu0
          %v1592 = vpack.c.bf16 %v1589, %v1586
          %1594 = vrot.lane.b32.xlu0 %v1592, 96
          %v1595 = vpop.permute.xlu0 %1594
          %1596 = vrot.lane.b32.xlu0 %v1592, 64
          %v1597 = vpop.permute.xlu0 %1596
          %1598 = vrot.lane.b32.xlu0 %v1592, 32
          %v1599 = vpop.permute.xlu0 %1598
          %v1602 = vpack.i.b16 %v1595, %v1592
          %v1604 = vshrl.u32 %v1592, 16
          %v1605 = vshrl.u32 %v1595, 16
          %v1606 = vpack.i.b16 %v1605, %v1604
          %v1610 = vpack.i.b16 %v1599, %v1597
          %v1612 = vshrl.u32 %v1597, 16
          %v1613 = vshrl.u32 %v1599, 16
          %v1614 = vpack.i.b16 %v1613, %v1612
          %v1616 = vcombine.high %v1602, %v1326
          %v1618 = vunpack.c.l.s4 1983009808
          %v1619 = vunpack.c.0.s8 %v1618
          %v1620 = vlaneseq
          %v1621 = vshrl.u32 %v1620, 7
          %v1622 = vsub.s32 %v1619, %v1621
          %v1623 = vrot.slane %v1602, %v1622
          %v1625 = vunpack.c.l.s4 1983009808
          %v1626 = vunpack.c.0.s8 %v1625
          %v1627 = vlaneseq
          %v1628 = vshrl.u32 %v1627, 7
          %v1629 = vsub.s32 %v1626, %v1628
          %v1630 = vrot.slane %v1616, %v1629
          %v1631 = vcombine.high %v1610, %v1326
          %v1633 = vunpack.c.l.s4 1983009808
          %v1634 = vunpack.c.0.s8 %v1633
          %v1635 = vlaneseq
          %v1636 = vshrl.u32 %v1635, 7
          %v1637 = vsub.s32 %v1634, %v1636
          %v1638 = vrot.slane %v1610, %v1637
          %v1640 = vunpack.c.l.s4 1983009808
          %v1641 = vunpack.c.0.s8 %v1640
          %v1642 = vlaneseq
          %v1643 = vshrl.u32 %v1642, 7
          %v1644 = vsub.s32 %v1641, %v1643
          %v1645 = vrot.slane %v1631, %v1644
          %v1646 = vcombine.low %v1623, %v1638
          %v1647 = vcombine.high %v1623, %v1638
          %v1649 = vunpack.c.l.s4 1934713408
          %v1650 = vunpack.c.0.s8 %v1649
          %v1651 = vlaneseq
          %v1652 = vshrl.u32 %v1651, 7
          %v1653 = vsub.s32 %v1650, %v1652
          %v1654 = vrot.slane %v1646, %v1653
          %v1656 = vunpack.c.l.s4 1934713408
          %v1657 = vunpack.c.0.s8 %v1656
          %v1658 = vlaneseq
          %v1659 = vshrl.u32 %v1658, 7
          %v1660 = vsub.s32 %v1657, %v1659
          %v1661 = vrot.slane %v1647, %v1660
          %v1662 = vcombine.low %v1630, %v1645
          %v1663 = vcombine.high %v1630, %v1645
          %v1665 = vunpack.c.l.s4 1934713408
          %v1666 = vunpack.c.0.s8 %v1665
          %v1667 = vlaneseq
          %v1668 = vshrl.u32 %v1667, 7
          %v1669 = vsub.s32 %v1666, %v1668
          %v1670 = vrot.slane %v1662, %v1669
          %v1672 = vunpack.c.l.s4 1934713408
          %v1673 = vunpack.c.0.s8 %v1672
          %v1674 = vlaneseq
          %v1675 = vshrl.u32 %v1674, 7
          %v1676 = vsub.s32 %v1673, %v1675
          %v1677 = vrot.slane %v1663, %v1676
          %v1678 = vcombine.high %v1654, 0
          %v1679 = vcombine.high %v1661, 0
          %v1680 = vcombine.high %v1670, 0
          %v1681 = vcombine.high %v1677, 0
          %v1682 = vcombine.high %v1606, %v1329
          %v1684 = vunpack.c.l.s4 1983009808
          %v1685 = vunpack.c.0.s8 %v1684
          %v1686 = vlaneseq
          %v1687 = vshrl.u32 %v1686, 7
          %v1688 = vsub.s32 %v1685, %v1687
          %v1689 = vrot.slane %v1606, %v1688
          %v1691 = vunpack.c.l.s4 1983009808
          %v1692 = vunpack.c.0.s8 %v1691
          %v1693 = vlaneseq
          %v1694 = vshrl.u32 %v1693, 7
          %v1695 = vsub.s32 %v1692, %v1694
          %v1696 = vrot.slane %v1682, %v1695
          %v1697 = vcombine.high %v1614, %v1329
          %v1699 = vunpack.c.l.s4 1983009808
          %v1700 = vunpack.c.0.s8 %v1699
          %v1701 = vlaneseq
          %v1702 = vshrl.u32 %v1701, 7
          %v1703 = vsub.s32 %v1700, %v1702
          %v1704 = vrot.slane %v1614, %v1703
          %v1706 = vunpack.c.l.s4 1983009808
          %v1707 = vunpack.c.0.s8 %v1706
          %v1708 = vlaneseq
          %v1709 = vshrl.u32 %v1708, 7
          %v1710 = vsub.s32 %v1707, %v1709
          %v1711 = vrot.slane %v1697, %v1710
          %v1712 = vcombine.low %v1689, %v1704
          %v1713 = vcombine.high %v1689, %v1704
          %v1715 = vunpack.c.l.s4 1934713408
          %v1716 = vunpack.c.0.s8 %v1715
          %v1717 = vlaneseq
          %v1718 = vshrl.u32 %v1717, 7
          %v1719 = vsub.s32 %v1716, %v1718
          %v1720 = vrot.slane %v1712, %v1719
          %v1722 = vunpack.c.l.s4 1934713408
          %v1723 = vunpack.c.0.s8 %v1722
          %v1724 = vlaneseq
          %v1725 = vshrl.u32 %v1724, 7
          %v1726 = vsub.s32 %v1723, %v1725
          %v1727 = vrot.slane %v1713, %v1726
          %v1728 = vcombine.low %v1696, %v1711
          %v1729 = vcombine.high %v1696, %v1711
          %v1731 = vunpack.c.l.s4 1934713408
          %v1732 = vunpack.c.0.s8 %v1731
          %v1733 = vlaneseq
          %v1734 = vshrl.u32 %v1733, 7
          %v1735 = vsub.s32 %v1732, %v1734
          %v1736 = vrot.slane %v1728, %v1735
          %v1738 = vunpack.c.l.s4 1934713408
          %v1739 = vunpack.c.0.s8 %v1738
          %v1740 = vlaneseq
          %v1741 = vshrl.u32 %v1740, 7
          %v1742 = vsub.s32 %v1739, %v1741
          %v1743 = vrot.slane %v1729, %v1742
          %v1744 = vcombine.high %v1720, 0
          %v1745 = vcombine.high %v1727, 0
          %v1746 = vcombine.high %v1736, 0
          %v1747 = vcombine.high %v1743, 0
          %1748 = vst.msk [vmem:[#allocation3] sm:$0x3] %vm1463, %v1654
          %1749 = vst.msk [vmem:[#allocation3 + $0x2] sm:$0x3] %vm1463, %v1720
          %1750 = vst.msk [vmem:[#allocation3 + $0x4] sm:$0x3] %vm1463, %v1678
          %1751 = vst.msk [vmem:[#allocation3 + $0x6] sm:$0x3] %vm1463, %v1744
          %1752 = vst.msk [vmem:[#allocation3 + $0x8] sm:$0x3] %vm1463, %v1661
          %1753 = vst.msk [vmem:[#allocation3 + $0xa] sm:$0x3] %vm1463, %v1727
          %1754 = vst.msk [vmem:[#allocation3 + $0xc] sm:$0x3] %vm1463, %v1679
          %1755 = vst.msk [vmem:[#allocation3 + $0xe] sm:$0x3] %vm1463, %v1745
          %1756 = vst.msk [vmem:[#allocation3 + $0x10] sm:$0x3] %vm1463, %v1670
          %1757 = vst.msk [vmem:[#allocation3 + $0x12] sm:$0x3] %vm1463, %v1736
          %1758 = vst.msk [vmem:[#allocation3 + $0x14] sm:$0x3] %vm1463, %v1680
          %1759 = vst.msk [vmem:[#allocation3 + $0x16] sm:$0x3] %vm1463, %v1746
          %1760 = vst.msk [vmem:[#allocation3 + $0x18] sm:$0x3] %vm1463, %v1677
          %1761 = vst.msk [vmem:[#allocation3 + $0x1a] sm:$0x3] %vm1463, %v1743
          %1762 = vst.msk [vmem:[#allocation3 + $0x1c] sm:$0x3] %vm1463, %v1681
          %1763 = vst.msk [vmem:[#allocation3 + $0x1e] sm:$0x3] %vm1463, %v1747
          %v1764 = vpack.c.bf16 %v1194, %v1193
          %v1765 = vld [vmem:[#allocation27] sm:$0xf]
          %v1766 = vld [vmem:[#allocation27 + $0x4] sm:$0xf]
          %v1767 = vld [vmem:[#allocation27 + $0x8] sm:$0xf]
          %v1768 = vld [vmem:[#allocation27 + $0xc] sm:$0xf]
          %v1769 = vld [vmem:[#allocation27 + $0x10] sm:$0xf]
          %v1770 = vld [vmem:[#allocation27 + $0x14] sm:$0xf]
          %v1771 = vld [vmem:[#allocation27 + $0x18] sm:$0xf]
          %v1772 = vld [vmem:[#allocation27 + $0x1c] sm:$0xf]
          %v1773 = vld [vmem:[#allocation27 + $0x20] sm:$0xf]
          %v1774 = vld [vmem:[#allocation27 + $0x24] sm:$0xf]
          %v1775 = vld [vmem:[#allocation27 + $0x28] sm:$0xf]
          %v1776 = vld [vmem:[#allocation27 + $0x2c] sm:$0xf]
          %v1777 = vld [vmem:[#allocation27 + $0x30] sm:$0xf]
          %v1778 = vld [vmem:[#allocation27 + $0x34] sm:$0xf]
          %v1779 = vld [vmem:[#allocation27 + $0x38] sm:$0xf]
          %v1780 = vld [vmem:[#allocation27 + $0x3c] sm:$0xf]
          %v1797 = vunpack.c.l.b16 %v1765
          %v1798 = vunpack.c.l.b16 %v1766
          %v1799 = vunpack.c.l.b16 %v1767
          %v1800 = vunpack.c.l.b16 %v1768
          %v1801 = vunpack.c.l.b16 %v1769
          %v1802 = vunpack.c.l.b16 %v1770
          %v1803 = vunpack.c.l.b16 %v1771
          %v1804 = vunpack.c.l.b16 %v1772
          %v1805 = vunpack.c.l.b16 %v1773
          %v1806 = vunpack.c.l.b16 %v1774
          %v1807 = vunpack.c.l.b16 %v1775
          %v1808 = vunpack.c.l.b16 %v1776
          %v1809 = vunpack.c.l.b16 %v1777
          %v1810 = vunpack.c.l.b16 %v1778
          %v1811 = vunpack.c.l.b16 %v1779
          %v1812 = vunpack.c.l.b16 %v1780
          %v1813 = vpack.c.b16 %v1798, %v1797
          %v1814 = vpack.c.b16 %v1800, %v1799
          %v1815 = vpack.c.b16 %v1802, %v1801
          %v1816 = vpack.c.b16 %v1804, %v1803
          %v1817 = vpack.c.b16 %v1806, %v1805
          %v1818 = vpack.c.b16 %v1808, %v1807
          %v1819 = vpack.c.b16 %v1810, %v1809
          %v1820 = vpack.c.b16 %v1812, %v1811
          %1829 = vmatprep.subr.bf16.mxu0 0
          %1830 = vmatpush1.bf16.msra.mxu0 %v1813
          %1831 = vmatprep.subr.bf16.mxu0 0
          %1832 = vmatpush1.bf16.msra.mxu0 %v1814
          %1833 = vmatprep.subr.bf16.mxu0 0
          %1834 = vmatpush1.bf16.msra.mxu0 %v1815
          %1835 = vmatprep.subr.bf16.mxu0 0
          %1836 = vmatpush1.bf16.msra.mxu0 %v1816
          %1837 = vmatprep.subr.bf16.mxu0 0
          %1838 = vmatpush1.bf16.msra.mxu0 %v1817
          %1839 = vmatprep.subr.bf16.mxu0 0
          %1840 = vmatpush1.bf16.msra.mxu0 %v1818
          %1841 = vmatprep.subr.bf16.mxu0 0
          %1842 = vmatpush1.bf16.msra.mxu0 %v1819
          %1843 = vmatprep.subr.bf16.mxu0 0
          %1844 = vmatpush1.bf16.msra.mxu0 %v1820
          %1845 = vmatprep.subr.bf16.mxu0 0
          %1846 = vmatpush1.bf16.msra.mxu0 0
          %1847 = vmatprep.subr.bf16.mxu0 0
          %1848 = vmatpush1.bf16.msra.mxu0 0
          %1849 = vmatprep.subr.bf16.mxu0 0
          %1850 = vmatpush1.bf16.msra.mxu0 0
          %1851 = vmatprep.subr.bf16.mxu0 0
          %1852 = vmatpush1.bf16.msra.mxu0 0
          %1853 = vmatprep.subr.bf16.mxu0 0
          %1854 = vmatpush1.bf16.msra.mxu0 0
          %1855 = vmatprep.subr.bf16.mxu0 0
          %1856 = vmatpush1.bf16.msra.mxu0 0
          %1857 = vmatprep.subr.bf16.mxu0 0
          %1858 = vmatpush1.bf16.msra.mxu0 0
          %1859 = vmatprep.subr.bf16.mxu0 0
          %1860 = vmatpush1.bf16.msra.mxu0 0
          %1861 = vmatprep.mubr.bf16.mxu0 0
          %1862 = vmatmul.mubr.bf16.gmra.mrb[0].mxu0 %v1764
          %v1863 = vpop.f32.mrb[0].mxu0
          %v1864 = vadd.f32 0.0, %v1863
          %v1865 = vpop.f32.mrb[0].mxu0
          %v1866 = vpop.f32.mrb[0].mxu0
          %v1867 = vadd.f32 0.0, %v1866
          %v1868 = vpop.f32.mrb[0].mxu0
          %1869 = vdwg.mxu0
          %v1870 = vpack.c.bf16 %v1867, %v1864
          %1872 = vrot.lane.b32.xlu0 %v1870, 96
          %v1873 = vpop.permute.xlu0 %1872
          %1874 = vrot.lane.b32.xlu0 %v1870, 64
          %v1875 = vpop.permute.xlu0 %1874
          %1876 = vrot.lane.b32.xlu0 %v1870, 32
          %v1877 = vpop.permute.xlu0 %1876
          %v1880 = vpack.i.b16 %v1873, %v1870
          %v1882 = vshrl.u32 %v1870, 16
          %v1883 = vshrl.u32 %v1873, 16
          %v1884 = vpack.i.b16 %v1883, %v1882
          %v1888 = vpack.i.b16 %v1877, %v1875
          %v1890 = vshrl.u32 %v1875, 16
          %v1891 = vshrl.u32 %v1877, 16
          %v1892 = vpack.i.b16 %v1891, %v1890
          %v1894 = vcombine.high %v1880, %v1326
          %v1896 = vunpack.c.l.s4 1983009808
          %v1897 = vunpack.c.0.s8 %v1896
          %v1898 = vlaneseq
          %v1899 = vshrl.u32 %v1898, 7
          %v1900 = vsub.s32 %v1897, %v1899
          %v1901 = vrot.slane %v1880, %v1900
          %v1903 = vunpack.c.l.s4 1983009808
          %v1904 = vunpack.c.0.s8 %v1903
          %v1905 = vlaneseq
          %v1906 = vshrl.u32 %v1905, 7
          %v1907 = vsub.s32 %v1904, %v1906
          %v1908 = vrot.slane %v1894, %v1907
          %v1909 = vcombine.high %v1888, %v1326
          %v1911 = vunpack.c.l.s4 1983009808
          %v1912 = vunpack.c.0.s8 %v1911
          %v1913 = vlaneseq
          %v1914 = vshrl.u32 %v1913, 7
          %v1915 = vsub.s32 %v1912, %v1914
          %v1916 = vrot.slane %v1888, %v1915
          %v1918 = vunpack.c.l.s4 1983009808
          %v1919 = vunpack.c.0.s8 %v1918
          %v1920 = vlaneseq
          %v1921 = vshrl.u32 %v1920, 7
          %v1922 = vsub.s32 %v1919, %v1921
          %v1923 = vrot.slane %v1909, %v1922
          %v1924 = vcombine.low %v1901, %v1916
          %v1925 = vcombine.high %v1901, %v1916
          %v1927 = vunpack.c.l.s4 1934713408
          %v1928 = vunpack.c.0.s8 %v1927
          %v1929 = vlaneseq
          %v1930 = vshrl.u32 %v1929, 7
          %v1931 = vsub.s32 %v1928, %v1930
          %v1932 = vrot.slane %v1924, %v1931
          %v1934 = vunpack.c.l.s4 1934713408
          %v1935 = vunpack.c.0.s8 %v1934
          %v1936 = vlaneseq
          %v1937 = vshrl.u32 %v1936, 7
          %v1938 = vsub.s32 %v1935, %v1937
          %v1939 = vrot.slane %v1925, %v1938
          %v1940 = vcombine.low %v1908, %v1923
          %v1941 = vcombine.high %v1908, %v1923
          %v1943 = vunpack.c.l.s4 1934713408
          %v1944 = vunpack.c.0.s8 %v1943
          %v1945 = vlaneseq
          %v1946 = vshrl.u32 %v1945, 7
          %v1947 = vsub.s32 %v1944, %v1946
          %v1948 = vrot.slane %v1940, %v1947
          %v1950 = vunpack.c.l.s4 1934713408
          %v1951 = vunpack.c.0.s8 %v1950
          %v1952 = vlaneseq
          %v1953 = vshrl.u32 %v1952, 7
          %v1954 = vsub.s32 %v1951, %v1953
          %v1955 = vrot.slane %v1941, %v1954
          %v1956 = vcombine.high %v1932, 0
          %v1957 = vcombine.high %v1939, 0
          %v1958 = vcombine.high %v1948, 0
          %v1959 = vcombine.high %v1955, 0
          %v1960 = vcombine.high %v1884, %v1329
          %v1962 = vunpack.c.l.s4 1983009808
          %v1963 = vunpack.c.0.s8 %v1962
          %v1964 = vlaneseq
          %v1965 = vshrl.u32 %v1964, 7
          %v1966 = vsub.s32 %v1963, %v1965
          %v1967 = vrot.slane %v1884, %v1966
          %v1969 = vunpack.c.l.s4 1983009808
          %v1970 = vunpack.c.0.s8 %v1969
          %v1971 = vlaneseq
          %v1972 = vshrl.u32 %v1971, 7
          %v1973 = vsub.s32 %v1970, %v1972
          %v1974 = vrot.slane %v1960, %v1973
          %v1975 = vcombine.high %v1892, %v1329
          %v1977 = vunpack.c.l.s4 1983009808
          %v1978 = vunpack.c.0.s8 %v1977
          %v1979 = vlaneseq
          %v1980 = vshrl.u32 %v1979, 7
          %v1981 = vsub.s32 %v1978, %v1980
          %v1982 = vrot.slane %v1892, %v1981
          %v1984 = vunpack.c.l.s4 1983009808
          %v1985 = vunpack.c.0.s8 %v1984
          %v1986 = vlaneseq
          %v1987 = vshrl.u32 %v1986, 7
          %v1988 = vsub.s32 %v1985, %v1987
          %v1989 = vrot.slane %v1975, %v1988
          %v1990 = vcombine.low %v1967, %v1982
          %v1991 = vcombine.high %v1967, %v1982
          %v1993 = vunpack.c.l.s4 1934713408
          %v1994 = vunpack.c.0.s8 %v1993
          %v1995 = vlaneseq
          %v1996 = vshrl.u32 %v1995, 7
          %v1997 = vsub.s32 %v1994, %v1996
          %v1998 = vrot.slane %v1990, %v1997
          %v2000 = vunpack.c.l.s4 1934713408
          %v2001 = vunpack.c.0.s8 %v2000
          %v2002 = vlaneseq
          %v2003 = vshrl.u32 %v2002, 7
          %v2004 = vsub.s32 %v2001, %v2003
          %v2005 = vrot.slane %v1991, %v2004
          %v2006 = vcombine.low %v1974, %v1989
          %v2007 = vcombine.high %v1974, %v1989
          %v2009 = vunpack.c.l.s4 1934713408
          %v2010 = vunpack.c.0.s8 %v2009
          %v2011 = vlaneseq
          %v2012 = vshrl.u32 %v2011, 7
          %v2013 = vsub.s32 %v2010, %v2012
          %v2014 = vrot.slane %v2006, %v2013
          %v2016 = vunpack.c.l.s4 1934713408
          %v2017 = vunpack.c.0.s8 %v2016
          %v2018 = vlaneseq
          %v2019 = vshrl.u32 %v2018, 7
          %v2020 = vsub.s32 %v2017, %v2019
          %v2021 = vrot.slane %v2007, %v2020
          %v2022 = vcombine.high %v1998, 0
          %v2023 = vcombine.high %v2005, 0
          %v2024 = vcombine.high %v2014, 0
          %v2025 = vcombine.high %v2021, 0
          %2026 = vst.msk [vmem:[#allocation4] sm:$0x3] %vm1463, %v1932
          %2027 = vst.msk [vmem:[#allocation4 + $0x2] sm:$0x3] %vm1463, %v1998
          %2028 = vst.msk [vmem:[#allocation4 + $0x4] sm:$0x3] %vm1463, %v1956
          %2029 = vst.msk [vmem:[#allocation4 + $0x6] sm:$0x3] %vm1463, %v2022
          %2030 = vst.msk [vmem:[#allocation4 + $0x8] sm:$0x3] %vm1463, %v1939
          %2031 = vst.msk [vmem:[#allocation4 + $0xa] sm:$0x3] %vm1463, %v2005
          %2032 = vst.msk [vmem:[#allocation4 + $0xc] sm:$0x3] %vm1463, %v1957
          %2033 = vst.msk [vmem:[#allocation4 + $0xe] sm:$0x3] %vm1463, %v2023
          %2034 = vst.msk [vmem:[#allocation4 + $0x10] sm:$0x3] %vm1463, %v1948
          %2035 = vst.msk [vmem:[#allocation4 + $0x12] sm:$0x3] %vm1463, %v2014
          %2036 = vst.msk [vmem:[#allocation4 + $0x14] sm:$0x3] %vm1463, %v1958
          %2037 = vst.msk [vmem:[#allocation4 + $0x16] sm:$0x3] %vm1463, %v2024
          %2038 = vst.msk [vmem:[#allocation4 + $0x18] sm:$0x3] %vm1463, %v1955
          %2039 = vst.msk [vmem:[#allocation4 + $0x1a] sm:$0x3] %vm1463, %v2021
          %2040 = vst.msk [vmem:[#allocation4 + $0x1c] sm:$0x3] %vm1463, %v1959
          %2041 = vst.msk [vmem:[#allocation4 + $0x1e] sm:$0x3] %vm1463, %v2025
          %v2042 = vld [vmem:[#allocation29] sm:$0xf]
          %v2043 = vld [vmem:[#allocation29 + $0x4] sm:$0xf]
          %v2044 = vld [vmem:[#allocation29 + $0x8] sm:$0xf]
          %v2045 = vld [vmem:[#allocation29 + $0xc] sm:$0xf]
          %v2046 = vld [vmem:[#allocation29 + $0x10] sm:$0xf]
          %v2047 = vld [vmem:[#allocation29 + $0x14] sm:$0xf]
          %v2048 = vld [vmem:[#allocation29 + $0x18] sm:$0xf]
          %v2049 = vld [vmem:[#allocation29 + $0x1c] sm:$0xf]
          %v2050 = vld [vmem:[#allocation29 + $0x20] sm:$0xf]
          %v2051 = vld [vmem:[#allocation29 + $0x24] sm:$0xf]
          %v2052 = vld [vmem:[#allocation29 + $0x28] sm:$0xf]
          %v2053 = vld [vmem:[#allocation29 + $0x2c] sm:$0xf]
          %v2054 = vld [vmem:[#allocation29 + $0x30] sm:$0xf]
          %v2055 = vld [vmem:[#allocation29 + $0x34] sm:$0xf]
          %v2056 = vld [vmem:[#allocation29 + $0x38] sm:$0xf]
          %v2057 = vld [vmem:[#allocation29 + $0x3c] sm:$0xf]
          %v2058 = vld [vmem:[#allocation30] sm:$0x1]
          %v2060 = vlaneseq
          %v2061 = vshrl.u32 %v2060, 7
          %v2062 = vsub.s32 0, %v2061
          %v2063 = vrot.slane %v2058, %v2062
          %v2081 = vunpack.c.l.b16 %v2042
          %v2082 = vunpack.c.l.b16 %v2043
          %v2083 = vunpack.c.l.b16 %v2044
          %v2084 = vunpack.c.l.b16 %v2045
          %v2085 = vunpack.c.l.b16 %v2046
          %v2086 = vunpack.c.l.b16 %v2047
          %v2087 = vunpack.c.l.b16 %v2048
          %v2088 = vunpack.c.l.b16 %v2049
          %v2089 = vunpack.c.l.b16 %v2050
          %v2090 = vunpack.c.l.b16 %v2051
          %v2091 = vunpack.c.l.b16 %v2052
          %v2092 = vunpack.c.l.b16 %v2053
          %v2093 = vunpack.c.l.b16 %v2054
          %v2094 = vunpack.c.l.b16 %v2055
          %v2095 = vunpack.c.l.b16 %v2056
          %v2096 = vunpack.c.l.b16 %v2057
          %v2097 = vpack.c.b16 %v2082, %v2081
          %v2098 = vpack.c.b16 %v2084, %v2083
          %v2099 = vpack.c.b16 %v2086, %v2085
          %v2100 = vpack.c.b16 %v2088, %v2087
          %v2101 = vpack.c.b16 %v2090, %v2089
          %v2102 = vpack.c.b16 %v2092, %v2091
          %v2103 = vpack.c.b16 %v2094, %v2093
          %v2104 = vpack.c.b16 %v2096, %v2095
          %2113 = vmatprep.subr.bf16.mxu0 0
          %2114 = vmatpush1.bf16.msra.mxu0 %v2097
          %2115 = vmatprep.subr.bf16.mxu0 0
          %2116 = vmatpush1.bf16.msra.mxu0 %v2098
          %2117 = vmatprep.subr.bf16.mxu0 0
          %2118 = vmatpush1.bf16.msra.mxu0 %v2099
          %2119 = vmatprep.subr.bf16.mxu0 0
          %2120 = vmatpush1.bf16.msra.mxu0 %v2100
          %2121 = vmatprep.subr.bf16.mxu0 0
          %2122 = vmatpush1.bf16.msra.mxu0 %v2101
          %2123 = vmatprep.subr.bf16.mxu0 0
          %2124 = vmatpush1.bf16.msra.mxu0 %v2102
          %2125 = vmatprep.subr.bf16.mxu0 0
          %2126 = vmatpush1.bf16.msra.mxu0 %v2103
          %2127 = vmatprep.subr.bf16.mxu0 0
          %2128 = vmatpush1.bf16.msra.mxu0 %v2104
          %2129 = vmatprep.subr.bf16.mxu0 0
          %2130 = vmatpush1.bf16.msra.mxu0 0
          %2131 = vmatprep.subr.bf16.mxu0 0
          %2132 = vmatpush1.bf16.msra.mxu0 0
          %2133 = vmatprep.subr.bf16.mxu0 0
          %2134 = vmatpush1.bf16.msra.mxu0 0
          %2135 = vmatprep.subr.bf16.mxu0 0
          %2136 = vmatpush1.bf16.msra.mxu0 0
          %2137 = vmatprep.subr.bf16.mxu0 0
          %2138 = vmatpush1.bf16.msra.mxu0 0
          %2139 = vmatprep.subr.bf16.mxu0 0
          %2140 = vmatpush1.bf16.msra.mxu0 0
          %2141 = vmatprep.subr.bf16.mxu0 0
          %2142 = vmatpush1.bf16.msra.mxu0 0
          %2143 = vmatprep.subr.bf16.mxu0 0
          %2144 = vmatpush1.bf16.msra.mxu0 0
          %2145 = vmatprep.mubr.bf16.mxu0 0
          %2146 = vmatmul.mubr.bf16.gmra.mrb[0].mxu0 %v1764
          %v2147 = vpop.f32.mrb[0].mxu0
          %v2148 = vadd.f32 %v2063, %v2147
          %v2149 = vpop.f32.mrb[0].mxu0
          %v2150 = vpop.f32.mrb[0].mxu0
          %v2151 = vadd.f32 %v2063, %v2150
          %v2152 = vpop.f32.mrb[0].mxu0
          %2153 = vdwg.mxu0
          %v2154 = vpack.c.bf16 %v2151, %v2148
          %2156 = vrot.lane.b32.xlu0 %v2154, 96
          %v2157 = vpop.permute.xlu0 %2156
          %2158 = vrot.lane.b32.xlu0 %v2154, 64
          %v2159 = vpop.permute.xlu0 %2158
          %2160 = vrot.lane.b32.xlu0 %v2154, 32
          %v2161 = vpop.permute.xlu0 %2160
          %v2164 = vpack.i.b16 %v2157, %v2154
          %v2166 = vshrl.u32 %v2154, 16
          %v2167 = vshrl.u32 %v2157, 16
          %v2168 = vpack.i.b16 %v2167, %v2166
          %v2172 = vpack.i.b16 %v2161, %v2159
          %v2174 = vshrl.u32 %v2159, 16
          %v2175 = vshrl.u32 %v2161, 16
          %v2176 = vpack.i.b16 %v2175, %v2174
          %v2178 = vcombine.high %v2164, %v1326
          %v2180 = vunpack.c.l.s4 1983009808
          %v2181 = vunpack.c.0.s8 %v2180
          %v2182 = vlaneseq
          %v2183 = vshrl.u32 %v2182, 7
          %v2184 = vsub.s32 %v2181, %v2183
          %v2185 = vrot.slane %v2164, %v2184
          %v2187 = vunpack.c.l.s4 1983009808
          %v2188 = vunpack.c.0.s8 %v2187
          %v2189 = vlaneseq
          %v2190 = vshrl.u32 %v2189, 7
          %v2191 = vsub.s32 %v2188, %v2190
          %v2192 = vrot.slane %v2178, %v2191
          %v2193 = vcombine.high %v2172, %v1326
          %v2195 = vunpack.c.l.s4 1983009808
          %v2196 = vunpack.c.0.s8 %v2195
          %v2197 = vlaneseq
          %v2198 = vshrl.u32 %v2197, 7
          %v2199 = vsub.s32 %v2196, %v2198
          %v2200 = vrot.slane %v2172, %v2199
          %v2202 = vunpack.c.l.s4 1983009808
          %v2203 = vunpack.c.0.s8 %v2202
          %v2204 = vlaneseq
          %v2205 = vshrl.u32 %v2204, 7
          %v2206 = vsub.s32 %v2203, %v2205
          %v2207 = vrot.slane %v2193, %v2206
          %v2208 = vcombine.low %v2185, %v2200
          %v2209 = vcombine.high %v2185, %v2200
          %v2211 = vunpack.c.l.s4 1934713408
          %v2212 = vunpack.c.0.s8 %v2211
          %v2213 = vlaneseq
          %v2214 = vshrl.u32 %v2213, 7
          %v2215 = vsub.s32 %v2212, %v2214
          %v2216 = vrot.slane %v2208, %v2215
          %v2218 = vunpack.c.l.s4 1934713408
          %v2219 = vunpack.c.0.s8 %v2218
          %v2220 = vlaneseq
          %v2221 = vshrl.u32 %v2220, 7
          %v2222 = vsub.s32 %v2219, %v2221
          %v2223 = vrot.slane %v2209, %v2222
          %v2224 = vcombine.low %v2192, %v2207
          %v2225 = vcombine.high %v2192, %v2207
          %v2227 = vunpack.c.l.s4 1934713408
          %v2228 = vunpack.c.0.s8 %v2227
          %v2229 = vlaneseq
          %v2230 = vshrl.u32 %v2229, 7
          %v2231 = vsub.s32 %v2228, %v2230
          %v2232 = vrot.slane %v2224, %v2231
          %v2234 = vunpack.c.l.s4 1934713408
          %v2235 = vunpack.c.0.s8 %v2234
          %v2236 = vlaneseq
          %v2237 = vshrl.u32 %v2236, 7
          %v2238 = vsub.s32 %v2235, %v2237
          %v2239 = vrot.slane %v2225, %v2238
          %v2240 = vcombine.high %v2216, 0
          %v2241 = vcombine.high %v2223, 0
          %v2242 = vcombine.high %v2232, 0
          %v2243 = vcombine.high %v2239, 0
          %v2244 = vcombine.high %v2168, %v1329
          %v2246 = vunpack.c.l.s4 1983009808
          %v2247 = vunpack.c.0.s8 %v2246
          %v2248 = vlaneseq
          %v2249 = vshrl.u32 %v2248, 7
          %v2250 = vsub.s32 %v2247, %v2249
          %v2251 = vrot.slane %v2168, %v2250
          %v2253 = vunpack.c.l.s4 1983009808
          %v2254 = vunpack.c.0.s8 %v2253
          %v2255 = vlaneseq
          %v2256 = vshrl.u32 %v2255, 7
          %v2257 = vsub.s32 %v2254, %v2256
          %v2258 = vrot.slane %v2244, %v2257
          %v2259 = vcombine.high %v2176, %v1329
          %v2261 = vunpack.c.l.s4 1983009808
          %v2262 = vunpack.c.0.s8 %v2261
          %v2263 = vlaneseq
          %v2264 = vshrl.u32 %v2263, 7
          %v2265 = vsub.s32 %v2262, %v2264
          %v2266 = vrot.slane %v2176, %v2265
          %v2268 = vunpack.c.l.s4 1983009808
          %v2269 = vunpack.c.0.s8 %v2268
          %v2270 = vlaneseq
          %v2271 = vshrl.u32 %v2270, 7
          %v2272 = vsub.s32 %v2269, %v2271
          %v2273 = vrot.slane %v2259, %v2272
          %v2274 = vcombine.low %v2251, %v2266
          %v2275 = vcombine.high %v2251, %v2266
          %v2277 = vunpack.c.l.s4 1934713408
          %v2278 = vunpack.c.0.s8 %v2277
          %v2279 = vlaneseq
          %v2280 = vshrl.u32 %v2279, 7
          %v2281 = vsub.s32 %v2278, %v2280
          %v2282 = vrot.slane %v2274, %v2281
          %v2284 = vunpack.c.l.s4 1934713408
          %v2285 = vunpack.c.0.s8 %v2284
          %v2286 = vlaneseq
          %v2287 = vshrl.u32 %v2286, 7
          %v2288 = vsub.s32 %v2285, %v2287
          %v2289 = vrot.slane %v2275, %v2288
          %v2290 = vcombine.low %v2258, %v2273
          %v2291 = vcombine.high %v2258, %v2273
          %v2293 = vunpack.c.l.s4 1934713408
          %v2294 = vunpack.c.0.s8 %v2293
          %v2295 = vlaneseq
          %v2296 = vshrl.u32 %v2295, 7
          %v2297 = vsub.s32 %v2294, %v2296
          %v2298 = vrot.slane %v2290, %v2297
          %v2300 = vunpack.c.l.s4 1934713408
          %v2301 = vunpack.c.0.s8 %v2300
          %v2302 = vlaneseq
          %v2303 = vshrl.u32 %v2302, 7
          %v2304 = vsub.s32 %v2301, %v2303
          %v2305 = vrot.slane %v2291, %v2304
          %v2306 = vcombine.high %v2282, 0
          %v2307 = vcombine.high %v2289, 0
          %v2308 = vcombine.high %v2298, 0
          %v2309 = vcombine.high %v2305, 0
          %2310 = vst.msk [vmem:[#allocation5] sm:$0x3] %vm1463, %v2216
          %2311 = vst.msk [vmem:[#allocation5 + $0x2] sm:$0x3] %vm1463, %v2282
          %2312 = vst.msk [vmem:[#allocation5 + $0x4] sm:$0x3] %vm1463, %v2240
          %2313 = vst.msk [vmem:[#allocation5 + $0x6] sm:$0x3] %vm1463, %v2306
          %2314 = vst.msk [vmem:[#allocation5 + $0x8] sm:$0x3] %vm1463, %v2223
          %2315 = vst.msk [vmem:[#allocation5 + $0xa] sm:$0x3] %vm1463, %v2289
          %2316 = vst.msk [vmem:[#allocation5 + $0xc] sm:$0x3] %vm1463, %v2241
          %2317 = vst.msk [vmem:[#allocation5 + $0xe] sm:$0x3] %vm1463, %v2307
          %2318 = vst.msk [vmem:[#allocation5 + $0x10] sm:$0x3] %vm1463, %v2232
          %2319 = vst.msk [vmem:[#allocation5 + $0x12] sm:$0x3] %vm1463, %v2298
          %2320 = vst.msk [vmem:[#allocation5 + $0x14] sm:$0x3] %vm1463, %v2242
          %2321 = vst.msk [vmem:[#allocation5 + $0x16] sm:$0x3] %vm1463, %v2308
          %2322 = vst.msk [vmem:[#allocation5 + $0x18] sm:$0x3] %vm1463, %v2239
          %2323 = vst.msk [vmem:[#allocation5 + $0x1a] sm:$0x3] %vm1463, %v2305
          %2324 = vst.msk [vmem:[#allocation5 + $0x1c] sm:$0x3] %vm1463, %v2243
          %2325 = vst.msk [vmem:[#allocation5 + $0x1e] sm:$0x3] %vm1463, %v2309
        $region208: #{tpu_custom_call.1} parent=131 // pred_fallthru
          _
        %v2326 = vld [vmem:[%s1015] sm:$0xff]
        %v2327 = vld [vmem:[%s1042] sm:$0xff]
        %v2328 = vpack.c.bf16 %v2326, %v2326
        %v2329 = vld [vmem:[#allocation14] sm:$0xf]
        %v2330 = vld [vmem:[#allocation14 + $0x4] sm:$0xf]
        %v2331 = vld [vmem:[#allocation14 + $0x8] sm:$0xf]
        %v2332 = vld [vmem:[#allocation14 + $0xc] sm:$0xf]
        %v2333 = vld [vmem:[#allocation14 + $0x10] sm:$0xf]
        %v2334 = vld [vmem:[#allocation14 + $0x14] sm:$0xf]
        %v2335 = vld [vmem:[#allocation14 + $0x18] sm:$0xf]
        %v2336 = vld [vmem:[#allocation14 + $0x1c] sm:$0xf]
        %v2337 = vld [vmem:[#allocation14 + $0x20] sm:$0xf]
        %v2338 = vld [vmem:[#allocation14 + $0x24] sm:$0xf]
        %v2339 = vld [vmem:[#allocation14 + $0x28] sm:$0xf]
        %v2340 = vld [vmem:[#allocation14 + $0x2c] sm:$0xf]
        %v2341 = vld [vmem:[#allocation14 + $0x30] sm:$0xf]
        %v2342 = vld [vmem:[#allocation14 + $0x34] sm:$0xf]
        %v2343 = vld [vmem:[#allocation14 + $0x38] sm:$0xf]
        %v2344 = vld [vmem:[#allocation14 + $0x3c] sm:$0xf]
        %v2345 = vld [vmem:[%s5] sm:$0x1]
        %v2347 = vlaneseq
        %v2348 = vshrl.u32 %v2347, 7
        %v2349 = vsub.s32 0, %v2348
        %v2350 = vrot.slane %v2345, %v2349
        %v2368 = vunpack.c.l.b16 %v2329
        %v2369 = vunpack.c.l.b16 %v2330
        %v2370 = vunpack.c.l.b16 %v2331
        %v2371 = vunpack.c.l.b16 %v2332
        %v2372 = vunpack.c.l.b16 %v2333
        %v2373 = vunpack.c.l.b16 %v2334
        %v2374 = vunpack.c.l.b16 %v2335
        %v2375 = vunpack.c.l.b16 %v2336
        %v2376 = vunpack.c.l.b16 %v2337
        %v2377 = vunpack.c.l.b16 %v2338
        %v2378 = vunpack.c.l.b16 %v2339
        %v2379 = vunpack.c.l.b16 %v2340
        %v2380 = vunpack.c.l.b16 %v2341
        %v2381 = vunpack.c.l.b16 %v2342
        %v2382 = vunpack.c.l.b16 %v2343
        %v2383 = vunpack.c.l.b16 %v2344
        %v2384 = vpack.c.b16 %v2369, %v2368
        %v2385 = vpack.c.b16 %v2371, %v2370
        %v2386 = vpack.c.b16 %v2373, %v2372
        %v2387 = vpack.c.b16 %v2375, %v2374
        %v2388 = vpack.c.b16 %v2377, %v2376
        %v2389 = vpack.c.b16 %v2379, %v2378
        %v2390 = vpack.c.b16 %v2381, %v2380
        %v2391 = vpack.c.b16 %v2383, %v2382
        %2400 = vmatprep.subr.bf16.mxu0 0
        %2401 = vmatpush1.bf16.msra.mxu0 %v2384
        %2402 = vmatprep.subr.bf16.mxu0 0
        %2403 = vmatpush1.bf16.msra.mxu0 %v2385
        %2404 = vmatprep.subr.bf16.mxu0 0
        %2405 = vmatpush1.bf16.msra.mxu0 %v2386
        %2406 = vmatprep.subr.bf16.mxu0 0
        %2407 = vmatpush1.bf16.msra.mxu0 %v2387
        %2408 = vmatprep.subr.bf16.mxu0 0
        %2409 = vmatpush1.bf16.msra.mxu0 %v2388
        %2410 = vmatprep.subr.bf16.mxu0 0
        %2411 = vmatpush1.bf16.msra.mxu0 %v2389
        %2412 = vmatprep.subr.bf16.mxu0 0
        %2413 = vmatpush1.bf16.msra.mxu0 %v2390
        %2414 = vmatprep.subr.bf16.mxu0 0
        %2415 = vmatpush1.bf16.msra.mxu0 %v2391
        %2416 = vmatprep.subr.bf16.mxu0 0
        %2417 = vmatpush1.bf16.msra.mxu0 0
        %2418 = vmatprep.subr.bf16.mxu0 0
        %2419 = vmatpush1.bf16.msra.mxu0 0
        %2420 = vmatprep.subr.bf16.mxu0 0
        %2421 = vmatpush1.bf16.msra.mxu0 0
        %2422 = vmatprep.subr.bf16.mxu0 0
        %2423 = vmatpush1.bf16.msra.mxu0 0
        %2424 = vmatprep.subr.bf16.mxu0 0
        %2425 = vmatpush1.bf16.msra.mxu0 0
        %2426 = vmatprep.subr.bf16.mxu0 0
        %2427 = vmatpush1.bf16.msra.mxu0 0
        %2428 = vmatprep.subr.bf16.mxu0 0
        %2429 = vmatpush1.bf16.msra.mxu0 0
        %2430 = vmatprep.subr.bf16.mxu0 0
        %2431 = vmatpush1.bf16.msra.mxu0 0
        %2432 = vmatprep.mubr.bf16.mxu0 0
        %2433 = vmatmul.mubr.bf16.gmra.mrb[0].mxu0 %v2328
        %v2434 = vpop.f32.mrb[0].mxu0
        %v2435 = vadd.f32 %v2350, %v2434
        %v2436 = vpop.f32.mrb[0].mxu0
        %v2437 = vpop.f32.mrb[0].mxu0
        %v2438 = vpop.f32.mrb[0].mxu0
        %2439 = vdwg.mxu0
        %v2440 = vpack.c.bf16 %v2435, %v2435
        %2442 = vrot.lane.b32.xlu0 %v2440, 96
        %v2443 = vpop.permute.xlu0 %2442
        %2444 = vrot.lane.b32.xlu0 %v2440, 64
        %v2445 = vpop.permute.xlu0 %2444
        %2446 = vrot.lane.b32.xlu0 %v2440, 32
        %v2447 = vpop.permute.xlu0 %2446
        %v2449 = vunpack.c.l.s4 1983009808
        %v2450 = vunpack.c.0.s8 %v2449
        %v2451 = vlaneseq
        %v2452 = vshrl.u32 %v2451, 7
        %v2453 = vsub.s32 %v2450, %v2452
        %v2454 = vrot.slane %v2440, %v2453
        %v2457 = vunpack.c.l.s4 1983009808
        %v2458 = vunpack.c.0.s8 %v2457
        %v2459 = vlaneseq
        %v2460 = vshrl.u32 %v2459, 7
        %v2461 = vsub.s32 %v2458, %v2460
        %v2462 = vrot.slane %v2445, %v2461
        %v2463 = vcombine.low %v2454, %v2462
        %v2464 = vcombine.high %v2454, %v2462
        %v2466 = vunpack.c.l.s4 1934713408
        %v2467 = vunpack.c.0.s8 %v2466
        %v2468 = vlaneseq
        %v2469 = vshrl.u32 %v2468, 7
        %v2470 = vsub.s32 %v2467, %v2469
        %v2471 = vrot.slane %v2463, %v2470
        %v2473 = vunpack.c.l.s4 1934713408
        %v2474 = vunpack.c.0.s8 %v2473
        %v2475 = vlaneseq
        %v2476 = vshrl.u32 %v2475, 7
        %v2477 = vsub.s32 %v2474, %v2476
        %v2478 = vrot.slane %v2464, %v2477
        %v2479 = vcombine.high %v2471, 0
        %v2480 = vcombine.high %v2478, 0
        %v2483 = vunpack.c.l.s4 1983009808
        %v2484 = vunpack.c.0.s8 %v2483
        %v2485 = vlaneseq
        %v2486 = vshrl.u32 %v2485, 7
        %v2487 = vsub.s32 %v2484, %v2486
        %v2488 = vrot.slane %v2443, %v2487
        %v2491 = vunpack.c.l.s4 1983009808
        %v2492 = vunpack.c.0.s8 %v2491
        %v2493 = vlaneseq
        %v2494 = vshrl.u32 %v2493, 7
        %v2495 = vsub.s32 %v2492, %v2494
        %v2496 = vrot.slane %v2447, %v2495
        %v2497 = vcombine.low %v2488, %v2496
        %v2498 = vcombine.high %v2488, %v2496
        %v2500 = vunpack.c.l.s4 1934713408
        %v2501 = vunpack.c.0.s8 %v2500
        %v2502 = vlaneseq
        %v2503 = vshrl.u32 %v2502, 7
        %v2504 = vsub.s32 %v2501, %v2503
        %v2505 = vrot.slane %v2497, %v2504
        %v2507 = vunpack.c.l.s4 1934713408
        %v2508 = vunpack.c.0.s8 %v2507
        %v2509 = vlaneseq
        %v2510 = vshrl.u32 %v2509, 7
        %v2511 = vsub.s32 %v2508, %v2510
        %v2512 = vrot.slane %v2498, %v2511
        %v2513 = vcombine.high %v2505, 0
        %v2514 = vcombine.high %v2512, 0
        %v2517 = vpack.i.b16 %v2505, %v2471
        %v2518 = vshrl.u32 %v2471, 16
        %v2519 = vshrl.u32 %v2505, 16
        %v2520 = vpack.i.b16 %v2519, %v2518
        %v2523 = vpack.i.b16 %v2513, %v2479
        %v2524 = vshrl.u32 %v2479, 16
        %v2525 = vshrl.u32 %v2513, 16
        %v2526 = vpack.i.b16 %v2525, %v2524
        %v2529 = vpack.i.b16 %v2512, %v2478
        %v2530 = vshrl.u32 %v2478, 16
        %v2531 = vshrl.u32 %v2512, 16
        %v2532 = vpack.i.b16 %v2531, %v2530
        %v2535 = vpack.i.b16 %v2514, %v2480
        %v2536 = vshrl.u32 %v2480, 16
        %v2537 = vshrl.u32 %v2514, 16
        %v2538 = vpack.i.b16 %v2537, %v2536
        %v2539 = vld [vmem:[#allocation2] sm:$0x3]
        %v2540 = vld [vmem:[#allocation2 + $0x2] sm:$0x3]
        %v2541 = vld [vmem:[#allocation2 + $0x4] sm:$0x3]
        %v2542 = vld [vmem:[#allocation2 + $0x6] sm:$0x3]
        %v2543 = vld [vmem:[#allocation2 + $0x8] sm:$0x3]
        %v2544 = vld [vmem:[#allocation2 + $0xa] sm:$0x3]
        %v2545 = vld [vmem:[#allocation2 + $0xc] sm:$0x3]
        %v2546 = vld [vmem:[#allocation2 + $0xe] sm:$0x3]
        %v2547 = vld [vmem:[#allocation2 + $0x10] sm:$0x3]
        %v2548 = vld [vmem:[#allocation2 + $0x12] sm:$0x3]
        %v2549 = vld [vmem:[#allocation2 + $0x14] sm:$0x3]
        %v2550 = vld [vmem:[#allocation2 + $0x16] sm:$0x3]
        %v2551 = vld [vmem:[#allocation2 + $0x18] sm:$0x3]
        %v2552 = vld [vmem:[#allocation2 + $0x1a] sm:$0x3]
        %v2553 = vld [vmem:[#allocation2 + $0x1c] sm:$0x3]
        %v2554 = vld [vmem:[#allocation2 + $0x1e] sm:$0x3]
        %v2555 = vld [vmem:[#allocation3] sm:$0x3]
        %v2556 = vld [vmem:[#allocation3 + $0x2] sm:$0x3]
        %v2557 = vld [vmem:[#allocation3 + $0x4] sm:$0x3]
        %v2558 = vld [vmem:[#allocation3 + $0x6] sm:$0x3]
        %v2559 = vld [vmem:[#allocation3 + $0x8] sm:$0x3]
        %v2560 = vld [vmem:[#allocation3 + $0xa] sm:$0x3]
        %v2561 = vld [vmem:[#allocation3 + $0xc] sm:$0x3]
        %v2562 = vld [vmem:[#allocation3 + $0xe] sm:$0x3]
        %v2563 = vld [vmem:[#allocation3 + $0x10] sm:$0x3]
        %v2564 = vld [vmem:[#allocation3 + $0x12] sm:$0x3]
        %v2565 = vld [vmem:[#allocation3 + $0x14] sm:$0x3]
        %v2566 = vld [vmem:[#allocation3 + $0x16] sm:$0x3]
        %v2567 = vld [vmem:[#allocation3 + $0x18] sm:$0x3]
        %v2568 = vld [vmem:[#allocation3 + $0x1a] sm:$0x3]
        %v2569 = vld [vmem:[#allocation3 + $0x1c] sm:$0x3]
        %v2570 = vld [vmem:[#allocation3 + $0x1e] sm:$0x3]
        %v2571 = vunpack.c.l.b16 %v2517
        %v2572 = vunpack.c.l.b16 %v2520
        %v2573 = vunpack.c.l.b16 %v2523
        %v2574 = vunpack.c.l.b16 %v2526
        %v2575 = vunpack.c.l.b16 %v2529
        %v2576 = vunpack.c.l.b16 %v2532
        %v2577 = vunpack.c.l.b16 %v2535
        %v2578 = vunpack.c.l.b16 %v2538
        %v2579 = vrot.slane %v2572, 7
        %vm2580 = vcmask 1041409
        %v2581 = vsel %vm2580, %v2579, %v2571
        %v2582 = vrot.slane %v2573, 6
        %vm2583 = vcmask 1042434
        %v2584 = vsel %vm2583, %v2582, %v2581
        %v2585 = vrot.slane %v2574, 5
        %vm2586 = vcmask 1043459
        %v2587 = vsel %vm2586, %v2585, %v2584
        %v2588 = vrot.slane %v2575, 4
        %vm2589 = vcmask 1044484
        %v2590 = vsel %vm2589, %v2588, %v2587
        %v2591 = vrot.slane %v2576, 3
        %vm2592 = vcmask 1045509
        %v2593 = vsel %vm2592, %v2591, %v2590
        %v2594 = vrot.slane %v2577, 2
        %vm2595 = vcmask 1046534
        %v2596 = vsel %vm2595, %v2594, %v2593
        %v2597 = vrot.slane %v2578, 1
        %vm2598 = vcmask 1047559
        %v2599 = vsel %vm2598, %v2597, %v2596
        %v2600 = vpack.c.b16 %v2599, %v2599
        %v2618 = vunpack.c.l.s4 1983009808
        %v2619 = vunpack.c.0.s8 %v2618
        %v2620 = vlaneseq
        %v2621 = vshrl.u32 %v2620, 7
        %v2622 = vsub.s32 %v2619, %v2621
        %v2623 = vrot.slane %v2539, %v2622
        %v2625 = vunpack.c.l.s4 1983009808
        %v2626 = vunpack.c.0.s8 %v2625
        %v2627 = vlaneseq
        %v2628 = vshrl.u32 %v2627, 7
        %v2629 = vsub.s32 %v2626, %v2628
        %v2630 = vrot.slane %v2540, %v2629
        %v2632 = vunpack.c.l.s4 1983009808
        %v2633 = vunpack.c.0.s8 %v2632
        %v2634 = vlaneseq
        %v2635 = vshrl.u32 %v2634, 7
        %v2636 = vsub.s32 %v2633, %v2635
        %v2637 = vrot.slane %v2541, %v2636
        %v2639 = vunpack.c.l.s4 1983009808
        %v2640 = vunpack.c.0.s8 %v2639
        %v2641 = vlaneseq
        %v2642 = vshrl.u32 %v2641, 7
        %v2643 = vsub.s32 %v2640, %v2642
        %v2644 = vrot.slane %v2542, %v2643
        %v2646 = vunpack.c.l.s4 1983009808
        %v2647 = vunpack.c.0.s8 %v2646
        %v2648 = vlaneseq
        %v2649 = vshrl.u32 %v2648, 7
        %v2650 = vsub.s32 %v2647, %v2649
        %v2651 = vrot.slane %v2543, %v2650
        %v2653 = vunpack.c.l.s4 1983009808
        %v2654 = vunpack.c.0.s8 %v2653
        %v2655 = vlaneseq
        %v2656 = vshrl.u32 %v2655, 7
        %v2657 = vsub.s32 %v2654, %v2656
        %v2658 = vrot.slane %v2544, %v2657
        %v2660 = vunpack.c.l.s4 1983009808
        %v2661 = vunpack.c.0.s8 %v2660
        %v2662 = vlaneseq
        %v2663 = vshrl.u32 %v2662, 7
        %v2664 = vsub.s32 %v2661, %v2663
        %v2665 = vrot.slane %v2545, %v2664
        %v2667 = vunpack.c.l.s4 1983009808
        %v2668 = vunpack.c.0.s8 %v2667
        %v2669 = vlaneseq
        %v2670 = vshrl.u32 %v2669, 7
        %v2671 = vsub.s32 %v2668, %v2670
        %v2672 = vrot.slane %v2546, %v2671
        %v2674 = vunpack.c.l.s4 1983009808
        %v2675 = vunpack.c.0.s8 %v2674
        %v2676 = vlaneseq
        %v2677 = vshrl.u32 %v2676, 7
        %v2678 = vsub.s32 %v2675, %v2677
        %v2679 = vrot.slane %v2547, %v2678
        %v2681 = vunpack.c.l.s4 1983009808
        %v2682 = vunpack.c.0.s8 %v2681
        %v2683 = vlaneseq
        %v2684 = vshrl.u32 %v2683, 7
        %v2685 = vsub.s32 %v2682, %v2684
        %v2686 = vrot.slane %v2548, %v2685
        %v2688 = vunpack.c.l.s4 1983009808
        %v2689 = vunpack.c.0.s8 %v2688
        %v2690 = vlaneseq
        %v2691 = vshrl.u32 %v2690, 7
        %v2692 = vsub.s32 %v2689, %v2691
        %v2693 = vrot.slane %v2549, %v2692
        %v2695 = vunpack.c.l.s4 1983009808
        %v2696 = vunpack.c.0.s8 %v2695
        %v2697 = vlaneseq
        %v2698 = vshrl.u32 %v2697, 7
        %v2699 = vsub.s32 %v2696, %v2698
        %v2700 = vrot.slane %v2550, %v2699
        %v2702 = vunpack.c.l.s4 1983009808
        %v2703 = vunpack.c.0.s8 %v2702
        %v2704 = vlaneseq
        %v2705 = vshrl.u32 %v2704, 7
        %v2706 = vsub.s32 %v2703, %v2705
        %v2707 = vrot.slane %v2551, %v2706
        %v2709 = vunpack.c.l.s4 1983009808
        %v2710 = vunpack.c.0.s8 %v2709
        %v2711 = vlaneseq
        %v2712 = vshrl.u32 %v2711, 7
        %v2713 = vsub.s32 %v2710, %v2712
        %v2714 = vrot.slane %v2552, %v2713
        %v2716 = vunpack.c.l.s4 1983009808
        %v2717 = vunpack.c.0.s8 %v2716
        %v2718 = vlaneseq
        %v2719 = vshrl.u32 %v2718, 7
        %v2720 = vsub.s32 %v2717, %v2719
        %v2721 = vrot.slane %v2553, %v2720
        %v2723 = vunpack.c.l.s4 1983009808
        %v2724 = vunpack.c.0.s8 %v2723
        %v2725 = vlaneseq
        %v2726 = vshrl.u32 %v2725, 7
        %v2727 = vsub.s32 %v2724, %v2726
        %v2728 = vrot.slane %v2554, %v2727
        %v2729 = vunpack.c.l.b16 %v2623
        %v2730 = vunpack.c.l.b16 %v2630
        %v2731 = vunpack.c.l.b16 %v2637
        %v2732 = vunpack.c.l.b16 %v2644
        %v2733 = vunpack.c.l.b16 %v2651
        %v2734 = vunpack.c.l.b16 %v2658
        %v2735 = vunpack.c.l.b16 %v2665
        %v2736 = vunpack.c.l.b16 %v2672
        %v2737 = vunpack.c.l.b16 %v2679
        %v2738 = vunpack.c.l.b16 %v2686
        %v2739 = vunpack.c.l.b16 %v2693
        %v2740 = vunpack.c.l.b16 %v2700
        %v2741 = vunpack.c.l.b16 %v2707
        %v2742 = vunpack.c.l.b16 %v2714
        %v2743 = vunpack.c.l.b16 %v2721
        %v2744 = vunpack.c.l.b16 %v2728
        %v2745 = vrot.slane %v2730, 7
        %v2746 = vsel %vm2580, %v2745, %v2729
        %v2747 = vrot.slane %v2731, 6
        %v2748 = vsel %vm2583, %v2747, %v2746
        %v2749 = vrot.slane %v2732, 5
        %v2750 = vsel %vm2586, %v2749, %v2748
        %v2751 = vrot.slane %v2733, 4
        %v2752 = vsel %vm2589, %v2751, %v2750
        %v2753 = vrot.slane %v2734, 3
        %v2754 = vsel %vm2592, %v2753, %v2752
        %v2755 = vrot.slane %v2735, 2
        %v2756 = vsel %vm2595, %v2755, %v2754
        %v2757 = vrot.slane %v2736, 1
        %v2758 = vsel %vm2598, %v2757, %v2756
        %v2759 = vrot.slane %v2738, 7
        %v2760 = vsel %vm2580, %v2759, %v2737
        %v2761 = vrot.slane %v2739, 6
        %v2762 = vsel %vm2583, %v2761, %v2760
        %v2763 = vrot.slane %v2740, 5
        %v2764 = vsel %vm2586, %v2763, %v2762
        %v2765 = vrot.slane %v2741, 4
        %v2766 = vsel %vm2589, %v2765, %v2764
        %v2767 = vrot.slane %v2742, 3
        %v2768 = vsel %vm2592, %v2767, %v2766
        %v2769 = vrot.slane %v2743, 2
        %v2770 = vsel %vm2595, %v2769, %v2768
        %v2771 = vrot.slane %v2744, 1
        %v2772 = vsel %vm2598, %v2771, %v2770
        %v2773 = vpack.c.b16 %v2772, %v2758
        %vm2774 = vcmask 261120
        %v2776 = vsel %vm2774, %v2600, 0
        %v2779 = vsel %vm2774, %v2773, 0
        %2781 = vmatprep.subr.bf16.mxu0 0
        %2782 = vmatpush1.bf16.xpose.msra.mxu0 %v2779
        %2783 = vmatprep.subr.bf16.mxu0 0
        %2784 = vmatpush1.bf16.xpose.msra.mxu0 0
        %2785 = vmatprep.subr.bf16.mxu0 0
        %2786 = vmatpush1.bf16.xpose.msra.mxu0 0
        %2787 = vmatprep.subr.bf16.mxu0 0
        %2788 = vmatpush1.bf16.xpose.msra.mxu0 0
        %2789 = vmatprep.subr.bf16.mxu0 0
        %2790 = vmatpush1.bf16.xpose.msra.mxu0 0
        %2791 = vmatprep.subr.bf16.mxu0 0
        %2792 = vmatpush1.bf16.xpose.msra.mxu0 0
        %2793 = vmatprep.subr.bf16.mxu0 0
        %2794 = vmatpush1.bf16.xpose.msra.mxu0 0
        %2795 = vmatprep.subr.bf16.mxu0 0
        %2796 = vmatpush1.bf16.xpose.msra.mxu0 0
        %2797 = vmatprep.subr.bf16.mxu0 0
        %2798 = vmatpush1.bf16.xpose.msra.mxu0 0
        %2799 = vmatprep.subr.bf16.mxu0 0
        %2800 = vmatpush1.bf16.xpose.msra.mxu0 0
        %2801 = vmatprep.subr.bf16.mxu0 0
        %2802 = vmatpush1.bf16.xpose.msra.mxu0 0
        %2803 = vmatprep.subr.bf16.mxu0 0
        %2804 = vmatpush1.bf16.xpose.msra.mxu0 0
        %2805 = vmatprep.subr.bf16.mxu0 0
        %2806 = vmatpush1.bf16.xpose.msra.mxu0 0
        %2807 = vmatprep.subr.bf16.mxu0 0
        %2808 = vmatpush1.bf16.xpose.msra.mxu0 0
        %2809 = vmatprep.subr.bf16.mxu0 0
        %2810 = vmatpush1.bf16.xpose.msra.mxu0 0
        %2811 = vmatprep.subr.bf16.mxu0 0
        %2812 = vmatpush1.bf16.xpose.msra.mxu0 0
        %2813 = vmatprep.mubr.bf16.mxu0 0
        %2814 = vmatmul.mubr.bf16.gmra.mrb[0].mxu0 %v2776
        %v2815 = vpop.f32.mrb[0].mxu0
        %v2816 = vadd.f32 %v2327, %v2815
        %v2817 = vpop.f32.mrb[0].mxu0
        %v2818 = vpop.f32.mrb[0].mxu0
        %v2819 = vpop.f32.mrb[0].mxu0
        %2820 = vdwg.mxu0
        %vm2821 = vcmask 130048
        %v2822 = vsel %vm2821, %v2816, -inf
        %2823 = vmax.xlane.f32.xlu0 %v2822
        %v2824 = vpop.xlane.xlu0 %2823
        %v2825 = vsub.f32 %v2816, %v2824
        %v2826 = vmul.f32 %v2825, 1.442695
        %v2827 = vpow.pop %v2826
        %v2828 = vsel %vm2821, %v2827, 0.0
        %2829 = vadd.xlane.f32.xlu0 %v2828
        %v2830 = vpop.xlane.xlu0 %2829
        %v2831 = vrcp.pop %v2830
        %v2832 = vmul.f32 %v2827, %v2831
        %v2833 = vpack.c.bf16 %v2832, %v2832
        %v2851 = vunpack.c.l.s4 1983009808
        %v2852 = vunpack.c.0.s8 %v2851
        %v2853 = vlaneseq
        %v2854 = vshrl.u32 %v2853, 7
        %v2855 = vsub.s32 %v2852, %v2854
        %v2856 = vrot.slane %v2555, %v2855
        %v2858 = vunpack.c.l.s4 1983009808
        %v2859 = vunpack.c.0.s8 %v2858
        %v2860 = vlaneseq
        %v2861 = vshrl.u32 %v2860, 7
        %v2862 = vsub.s32 %v2859, %v2861
        %v2863 = vrot.slane %v2556, %v2862
        %v2865 = vunpack.c.l.s4 1983009808
        %v2866 = vunpack.c.0.s8 %v2865
        %v2867 = vlaneseq
        %v2868 = vshrl.u32 %v2867, 7
        %v2869 = vsub.s32 %v2866, %v2868
        %v2870 = vrot.slane %v2557, %v2869
        %v2872 = vunpack.c.l.s4 1983009808
        %v2873 = vunpack.c.0.s8 %v2872
        %v2874 = vlaneseq
        %v2875 = vshrl.u32 %v2874, 7
        %v2876 = vsub.s32 %v2873, %v2875
        %v2877 = vrot.slane %v2558, %v2876
        %v2879 = vunpack.c.l.s4 1983009808
        %v2880 = vunpack.c.0.s8 %v2879
        %v2881 = vlaneseq
        %v2882 = vshrl.u32 %v2881, 7
        %v2883 = vsub.s32 %v2880, %v2882
        %v2884 = vrot.slane %v2559, %v2883
        %v2886 = vunpack.c.l.s4 1983009808
        %v2887 = vunpack.c.0.s8 %v2886
        %v2888 = vlaneseq
        %v2889 = vshrl.u32 %v2888, 7
        %v2890 = vsub.s32 %v2887, %v2889
        %v2891 = vrot.slane %v2560, %v2890
        %v2893 = vunpack.c.l.s4 1983009808
        %v2894 = vunpack.c.0.s8 %v2893
        %v2895 = vlaneseq
        %v2896 = vshrl.u32 %v2895, 7
        %v2897 = vsub.s32 %v2894, %v2896
        %v2898 = vrot.slane %v2561, %v2897
        %v2900 = vunpack.c.l.s4 1983009808
        %v2901 = vunpack.c.0.s8 %v2900
        %v2902 = vlaneseq
        %v2903 = vshrl.u32 %v2902, 7
        %v2904 = vsub.s32 %v2901, %v2903
        %v2905 = vrot.slane %v2562, %v2904
        %v2907 = vunpack.c.l.s4 1983009808
        %v2908 = vunpack.c.0.s8 %v2907
        %v2909 = vlaneseq
        %v2910 = vshrl.u32 %v2909, 7
        %v2911 = vsub.s32 %v2908, %v2910
        %v2912 = vrot.slane %v2563, %v2911
        %v2914 = vunpack.c.l.s4 1983009808
        %v2915 = vunpack.c.0.s8 %v2914
        %v2916 = vlaneseq
        %v2917 = vshrl.u32 %v2916, 7
        %v2918 = vsub.s32 %v2915, %v2917
        %v2919 = vrot.slane %v2564, %v2918
        %v2921 = vunpack.c.l.s4 1983009808
        %v2922 = vunpack.c.0.s8 %v2921
        %v2923 = vlaneseq
        %v2924 = vshrl.u32 %v2923, 7
        %v2925 = vsub.s32 %v2922, %v2924
        %v2926 = vrot.slane %v2565, %v2925
        %v2928 = vunpack.c.l.s4 1983009808
        %v2929 = vunpack.c.0.s8 %v2928
        %v2930 = vlaneseq
        %v2931 = vshrl.u32 %v2930, 7
        %v2932 = vsub.s32 %v2929, %v2931
        %v2933 = vrot.slane %v2566, %v2932
        %v2935 = vunpack.c.l.s4 1983009808
        %v2936 = vunpack.c.0.s8 %v2935
        %v2937 = vlaneseq
        %v2938 = vshrl.u32 %v2937, 7
        %v2939 = vsub.s32 %v2936, %v2938
        %v2940 = vrot.slane %v2567, %v2939
        %v2942 = vunpack.c.l.s4 1983009808
        %v2943 = vunpack.c.0.s8 %v2942
        %v2944 = vlaneseq
        %v2945 = vshrl.u32 %v2944, 7
        %v2946 = vsub.s32 %v2943, %v2945
        %v2947 = vrot.slane %v2568, %v2946
        %v2949 = vunpack.c.l.s4 1983009808
        %v2950 = vunpack.c.0.s8 %v2949
        %v2951 = vlaneseq
        %v2952 = vshrl.u32 %v2951, 7
        %v2953 = vsub.s32 %v2950, %v2952
        %v2954 = vrot.slane %v2569, %v2953
        %v2956 = vunpack.c.l.s4 1983009808
        %v2957 = vunpack.c.0.s8 %v2956
        %v2958 = vlaneseq
        %v2959 = vshrl.u32 %v2958, 7
        %v2960 = vsub.s32 %v2957, %v2959
        %v2961 = vrot.slane %v2570, %v2960
        %v2962 = vunpack.c.l.b16 %v2856
        %v2963 = vunpack.c.l.b16 %v2863
        %v2964 = vunpack.c.l.b16 %v2870
        %v2965 = vunpack.c.l.b16 %v2877
        %v2966 = vunpack.c.l.b16 %v2884
        %v2967 = vunpack.c.l.b16 %v2891
        %v2968 = vunpack.c.l.b16 %v2898
        %v2969 = vunpack.c.l.b16 %v2905
        %v2970 = vunpack.c.l.b16 %v2912
        %v2971 = vunpack.c.l.b16 %v2919
        %v2972 = vunpack.c.l.b16 %v2926
        %v2973 = vunpack.c.l.b16 %v2933
        %v2974 = vunpack.c.l.b16 %v2940
        %v2975 = vunpack.c.l.b16 %v2947
        %v2976 = vunpack.c.l.b16 %v2954
        %v2977 = vunpack.c.l.b16 %v2961
        %v2978 = vrot.slane %v2963, 7
        %v2979 = vsel %vm2580, %v2978, %v2962
        %v2980 = vrot.slane %v2964, 6
        %v2981 = vsel %vm2583, %v2980, %v2979
        %v2982 = vrot.slane %v2965, 5
        %v2983 = vsel %vm2586, %v2982, %v2981
        %v2984 = vrot.slane %v2966, 4
        %v2985 = vsel %vm2589, %v2984, %v2983
        %v2986 = vrot.slane %v2967, 3
        %v2987 = vsel %vm2592, %v2986, %v2985
        %v2988 = vrot.slane %v2968, 2
        %v2989 = vsel %vm2595, %v2988, %v2987
        %v2990 = vrot.slane %v2969, 1
        %v2991 = vsel %vm2598, %v2990, %v2989
        %v2992 = vrot.slane %v2971, 7
        %v2993 = vsel %vm2580, %v2992, %v2970
        %v2994 = vrot.slane %v2972, 6
        %v2995 = vsel %vm2583, %v2994, %v2993
        %v2996 = vrot.slane %v2973, 5
        %v2997 = vsel %vm2586, %v2996, %v2995
        %v2998 = vrot.slane %v2974, 4
        %v2999 = vsel %vm2589, %v2998, %v2997
        %v3000 = vrot.slane %v2975, 3
        %v3001 = vsel %vm2592, %v3000, %v2999
        %v3002 = vrot.slane %v2976, 2
        %v3003 = vsel %vm2595, %v3002, %v3001
        %v3004 = vrot.slane %v2977, 1
        %v3005 = vsel %vm2598, %v3004, %v3003
        %v3006 = vpack.c.b16 %v3005, %v2991
        %v3009 = vsel %vm2821, %v2833, 0
        %3011 = vmatprep.subr.bf16.mxu0 0
        %3012 = vmatpush1.bf16.msra.mxu0 %v3006
        %3013 = vmatprep.subr.bf16.mxu0 0
        %3014 = vmatpush1.bf16.msra.mxu0 0
        %3015 = vmatprep.subr.bf16.mxu0 0
        %3016 = vmatpush1.bf16.msra.mxu0 0
        %3017 = vmatprep.subr.bf16.mxu0 0
        %3018 = vmatpush1.bf16.msra.mxu0 0
        %3019 = vmatprep.subr.bf16.mxu0 0
        %3020 = vmatpush1.bf16.msra.mxu0 0
        %3021 = vmatprep.subr.bf16.mxu0 0
        %3022 = vmatpush1.bf16.msra.mxu0 0
        %3023 = vmatprep.subr.bf16.mxu0 0
        %3024 = vmatpush1.bf16.msra.mxu0 0
        %3025 = vmatprep.subr.bf16.mxu0 0
        %3026 = vmatpush1.bf16.msra.mxu0 0
        %3027 = vmatprep.subr.bf16.mxu0 0
        %3028 = vmatpush1.bf16.msra.mxu0 0
        %3029 = vmatprep.subr.bf16.mxu0 0
        %3030 = vmatpush1.bf16.msra.mxu0 0
        %3031 = vmatprep.subr.bf16.mxu0 0
        %3032 = vmatpush1.bf16.msra.mxu0 0
        %3033 = vmatprep.subr.bf16.mxu0 0
        %3034 = vmatpush1.bf16.msra.mxu0 0
        %3035 = vmatprep.subr.bf16.mxu0 0
        %3036 = vmatpush1.bf16.msra.mxu0 0
        %3037 = vmatprep.subr.bf16.mxu0 0
        %3038 = vmatpush1.bf16.msra.mxu0 0
        %3039 = vmatprep.subr.bf16.mxu0 0
        %3040 = vmatpush1.bf16.msra.mxu0 0
        %3041 = vmatprep.subr.bf16.mxu0 0
        %3042 = vmatpush1.bf16.msra.mxu0 0
        %3043 = vmatprep.mubr.bf16.mxu0 0
        %3044 = vmatmul.mubr.bf16.gmra.mrb[0].mxu0 %v3009
        %v3045 = vpop.f32.mrb[0].mxu0
        %v3046 = vadd.f32 0.0, %v3045
        %v3047 = vpop.f32.mrb[0].mxu0
        %v3048 = vpop.f32.mrb[0].mxu0
        %v3049 = vpop.f32.mrb[0].mxu0
        %3050 = vdwg.mxu0
        %v3051 = vrot.slane %v2571, 1
        %v3052 = vsel %vm2580, %v2572, %v3051
        %v3053 = vrot.slane %v2573, 7
        %v3054 = vsel %vm2583, %v3053, %v3052
        %v3055 = vrot.slane %v2574, 6
        %v3056 = vsel %vm2586, %v3055, %v3054
        %v3057 = vrot.slane %v2575, 5
        %v3058 = vsel %vm2589, %v3057, %v3056
        %v3059 = vrot.slane %v2576, 4
        %v3060 = vsel %vm2592, %v3059, %v3058
        %v3061 = vrot.slane %v2577, 3
        %v3062 = vsel %vm2595, %v3061, %v3060
        %v3063 = vrot.slane %v2578, 2
        %v3064 = vsel %vm2598, %v3063, %v3062
        %v3065 = vpack.c.b16 %v3064, %v3064
        %v3066 = vrot.slane %v2729, 1
        %v3067 = vsel %vm2580, %v2730, %v3066
        %v3068 = vrot.slane %v2731, 7
        %v3069 = vsel %vm2583, %v3068, %v3067
        %v3070 = vrot.slane %v2732, 6
        %v3071 = vsel %vm2586, %v3070, %v3069
        %v3072 = vrot.slane %v2733, 5
        %v3073 = vsel %vm2589, %v3072, %v3071
        %v3074 = vrot.slane %v2734, 4
        %v3075 = vsel %vm2592, %v3074, %v3073
        %v3076 = vrot.slane %v2735, 3
        %v3077 = vsel %vm2595, %v3076, %v3075
        %v3078 = vrot.slane %v2736, 2
        %v3079 = vsel %vm2598, %v3078, %v3077
        %v3080 = vrot.slane %v2737, 1
        %v3081 = vsel %vm2580, %v2738, %v3080
        %v3082 = vrot.slane %v2739, 7
        %v3083 = vsel %vm2583, %v3082, %v3081
        %v3084 = vrot.slane %v2740, 6
        %v3085 = vsel %vm2586, %v3084, %v3083
        %v3086 = vrot.slane %v2741, 5
        %v3087 = vsel %vm2589, %v3086, %v3085
        %v3088 = vrot.slane %v2742, 4
        %v3089 = vsel %vm2592, %v3088, %v3087
        %v3090 = vrot.slane %v2743, 3
        %v3091 = vsel %vm2595, %v3090, %v3089
        %v3092 = vrot.slane %v2744, 2
        %v3093 = vsel %vm2598, %v3092, %v3091
        %v3094 = vpack.c.b16 %v3093, %v3079
        %v3096 = vsel %vm2774, %v3065, 0
        %v3099 = vsel %vm2774, %v3094, 0
        %3101 = vmatprep.subr.bf16.mxu0 0
        %3102 = vmatpush1.bf16.xpose.msra.mxu0 %v3099
        %3103 = vmatprep.subr.bf16.mxu0 0
        %3104 = vmatpush1.bf16.xpose.msra.mxu0 0
        %3105 = vmatprep.subr.bf16.mxu0 0
        %3106 = vmatpush1.bf16.xpose.msra.mxu0 0
        %3107 = vmatprep.subr.bf16.mxu0 0
        %3108 = vmatpush1.bf16.xpose.msra.mxu0 0
        %3109 = vmatprep.subr.bf16.mxu0 0
        %3110 = vmatpush1.bf16.xpose.msra.mxu0 0
        %3111 = vmatprep.subr.bf16.mxu0 0
        %3112 = vmatpush1.bf16.xpose.msra.mxu0 0
        %3113 = vmatprep.subr.bf16.mxu0 0
        %3114 = vmatpush1.bf16.xpose.msra.mxu0 0
        %3115 = vmatprep.subr.bf16.mxu0 0
        %3116 = vmatpush1.bf16.xpose.msra.mxu0 0
        %3117 = vmatprep.subr.bf16.mxu0 0
        %3118 = vmatpush1.bf16.xpose.msra.mxu0 0
        %3119 = vmatprep.subr.bf16.mxu0 0
        %3120 = vmatpush1.bf16.xpose.msra.mxu0 0
        %3121 = vmatprep.subr.bf16.mxu0 0
        %3122 = vmatpush1.bf16.xpose.msra.mxu0 0
        %3123 = vmatprep.subr.bf16.mxu0 0
        %3124 = vmatpush1.bf16.xpose.msra.mxu0 0
        %3125 = vmatprep.subr.bf16.mxu0 0
        %3126 = vmatpush1.bf16.xpose.msra.mxu0 0
        %3127 = vmatprep.subr.bf16.mxu0 0
        %3128 = vmatpush1.bf16.xpose.msra.mxu0 0
        %3129 = vmatprep.subr.bf16.mxu0 0
        %3130 = vmatpush1.bf16.xpose.msra.mxu0 0
        %3131 = vmatprep.subr.bf16.mxu0 0
        %3132 = vmatpush1.bf16.xpose.msra.mxu0 0
        %3133 = vmatprep.mubr.bf16.mxu0 0
        %3134 = vmatmul.mubr.bf16.gmra.mrb[0].mxu0 %v3096
        %v3135 = vpop.f32.mrb[0].mxu0
        %v3136 = vadd.f32 %v2327, %v3135
        %v3137 = vpop.f32.mrb[0].mxu0
        %v3138 = vpop.f32.mrb[0].mxu0
        %v3139 = vpop.f32.mrb[0].mxu0
        %3140 = vdwg.mxu0
        %v3141 = vsel %vm2821, %v3136, -inf
        %3142 = vmax.xlane.f32.xlu0 %v3141
        %v3143 = vpop.xlane.xlu0 %3142
        %v3144 = vsub.f32 %v3136, %v3143
        %v3145 = vmul.f32 %v3144, 1.442695
        %v3146 = vpow.pop %v3145
        %v3147 = vsel %vm2821, %v3146, 0.0
        %3148 = vadd.xlane.f32.xlu0 %v3147
        %v3149 = vpop.xlane.xlu0 %3148
        %v3150 = vrcp.pop %v3149
        %v3151 = vmul.f32 %v3146, %v3150
        %v3152 = vpack.c.bf16 %v3151, %v3151
        %v3153 = vrot.slane %v2962, 1
        %v3154 = vsel %vm2580, %v2963, %v3153
        %v3155 = vrot.slane %v2964, 7
        %v3156 = vsel %vm2583, %v3155, %v3154
        %v3157 = vrot.slane %v2965, 6
        %v3158 = vsel %vm2586, %v3157, %v3156
        %v3159 = vrot.slane %v2966, 5
        %v3160 = vsel %vm2589, %v3159, %v3158
        %v3161 = vrot.slane %v2967, 4
        %v3162 = vsel %vm2592, %v3161, %v3160
        %v3163 = vrot.slane %v2968, 3
        %v3164 = vsel %vm2595, %v3163, %v3162
        %v3165 = vrot.slane %v2969, 2
        %v3166 = vsel %vm2598, %v3165, %v3164
        %v3167 = vrot.slane %v2970, 1
        %v3168 = vsel %vm2580, %v2971, %v3167
        %v3169 = vrot.slane %v2972, 7
        %v3170 = vsel %vm2583, %v3169, %v3168
        %v3171 = vrot.slane %v2973, 6
        %v3172 = vsel %vm2586, %v3171, %v3170
        %v3173 = vrot.slane %v2974, 5
        %v3174 = vsel %vm2589, %v3173, %v3172
        %v3175 = vrot.slane %v2975, 4
        %v3176 = vsel %vm2592, %v3175, %v3174
        %v3177 = vrot.slane %v2976, 3
        %v3178 = vsel %vm2595, %v3177, %v3176
        %v3179 = vrot.slane %v2977, 2
        %v3180 = vsel %vm2598, %v3179, %v3178
        %v3181 = vpack.c.b16 %v3180, %v3166
        %v3184 = vsel %vm2821, %v3152, 0
        %3186 = vmatprep.subr.bf16.mxu0 0
        %3187 = vmatpush1.bf16.msra.mxu0 %v3181
        %3188 = vmatprep.subr.bf16.mxu0 0
        %3189 = vmatpush1.bf16.msra.mxu0 0
        %3190 = vmatprep.subr.bf16.mxu0 0
        %3191 = vmatpush1.bf16.msra.mxu0 0
        %3192 = vmatprep.subr.bf16.mxu0 0
        %3193 = vmatpush1.bf16.msra.mxu0 0
        %3194 = vmatprep.subr.bf16.mxu0 0
        %3195 = vmatpush1.bf16.msra.mxu0 0
        %3196 = vmatprep.subr.bf16.mxu0 0
        %3197 = vmatpush1.bf16.msra.mxu0 0
        %3198 = vmatprep.subr.bf16.mxu0 0
        %3199 = vmatpush1.bf16.msra.mxu0 0
        %3200 = vmatprep.subr.bf16.mxu0 0
        %3201 = vmatpush1.bf16.msra.mxu0 0
        %3202 = vmatprep.subr.bf16.mxu0 0
        %3203 = vmatpush1.bf16.msra.mxu0 0
        %3204 = vmatprep.subr.bf16.mxu0 0
        %3205 = vmatpush1.bf16.msra.mxu0 0
        %3206 = vmatprep.subr.bf16.mxu0 0
        %3207 = vmatpush1.bf16.msra.mxu0 0
        %3208 = vmatprep.subr.bf16.mxu0 0
        %3209 = vmatpush1.bf16.msra.mxu0 0
        %3210 = vmatprep.subr.bf16.mxu0 0
        %3211 = vmatpush1.bf16.msra.mxu0 0
        %3212 = vmatprep.subr.bf16.mxu0 0
        %3213 = vmatpush1.bf16.msra.mxu0 0
        %3214 = vmatprep.subr.bf16.mxu0 0
        %3215 = vmatpush1.bf16.msra.mxu0 0
        %3216 = vmatprep.subr.bf16.mxu0 0
        %3217 = vmatpush1.bf16.msra.mxu0 0
        %3218 = vmatprep.mubr.bf16.mxu0 0
        %3219 = vmatmul.mubr.bf16.gmra.mrb[0].mxu0 %v3184
        %v3220 = vpop.f32.mrb[0].mxu0
        %v3221 = vadd.f32 0.0, %v3220
        %v3222 = vpop.f32.mrb[0].mxu0
        %v3223 = vpop.f32.mrb[0].mxu0
        %v3224 = vpop.f32.mrb[0].mxu0
        %3225 = vdwg.mxu0
        %v3226 = vrot.slane %v2571, 2
        %v3227 = vrot.slane %v2572, 1
        %v3228 = vsel %vm2580, %v3227, %v3226
        %v3229 = vsel %vm2583, %v2573, %v3228
        %v3230 = vrot.slane %v2574, 7
        %v3231 = vsel %vm2586, %v3230, %v3229
        %v3232 = vrot.slane %v2575, 6
        %v3233 = vsel %vm2589, %v3232, %v3231
        %v3234 = vrot.slane %v2576, 5
        %v3235 = vsel %vm2592, %v3234, %v3233
        %v3236 = vrot.slane %v2577, 4
        %v3237 = vsel %vm2595, %v3236, %v3235
        %v3238 = vrot.slane %v2578, 3
        %v3239 = vsel %vm2598, %v3238, %v3237
        %v3240 = vpack.c.b16 %v3239, %v3239
        %v3241 = vrot.slane %v2729, 2
        %v3242 = vrot.slane %v2730, 1
        %v3243 = vsel %vm2580, %v3242, %v3241
        %v3244 = vsel %vm2583, %v2731, %v3243
        %v3245 = vrot.slane %v2732, 7
        %v3246 = vsel %vm2586, %v3245, %v3244
        %v3247 = vrot.slane %v2733, 6
        %v3248 = vsel %vm2589, %v3247, %v3246
        %v3249 = vrot.slane %v2734, 5
        %v3250 = vsel %vm2592, %v3249, %v3248
        %v3251 = vrot.slane %v2735, 4
        %v3252 = vsel %vm2595, %v3251, %v3250
        %v3253 = vrot.slane %v2736, 3
        %v3254 = vsel %vm2598, %v3253, %v3252
        %v3255 = vrot.slane %v2737, 2
        %v3256 = vrot.slane %v2738, 1
        %v3257 = vsel %vm2580, %v3256, %v3255
        %v3258 = vsel %vm2583, %v2739, %v3257
        %v3259 = vrot.slane %v2740, 7
        %v3260 = vsel %vm2586, %v3259, %v3258
        %v3261 = vrot.slane %v2741, 6
        %v3262 = vsel %vm2589, %v3261, %v3260
        %v3263 = vrot.slane %v2742, 5
        %v3264 = vsel %vm2592, %v3263, %v3262
        %v3265 = vrot.slane %v2743, 4
        %v3266 = vsel %vm2595, %v3265, %v3264
        %v3267 = vrot.slane %v2744, 3
        %v3268 = vsel %vm2598, %v3267, %v3266
        %v3269 = vpack.c.b16 %v3268, %v3254
        %v3271 = vsel %vm2774, %v3240, 0
        %v3274 = vsel %vm2774, %v3269, 0
        %3276 = vmatprep.subr.bf16.mxu0 0
        %3277 = vmatpush1.bf16.xpose.msra.mxu0 %v3274
        %3278 = vmatprep.subr.bf16.mxu0 0
        %3279 = vmatpush1.bf16.xpose.msra.mxu0 0
        %3280 = vmatprep.subr.bf16.mxu0 0
        %3281 = vmatpush1.bf16.xpose.msra.mxu0 0
        %3282 = vmatprep.subr.bf16.mxu0 0
        %3283 = vmatpush1.bf16.xpose.msra.mxu0 0
        %3284 = vmatprep.subr.bf16.mxu0 0
        %3285 = vmatpush1.bf16.xpose.msra.mxu0 0
        %3286 = vmatprep.subr.bf16.mxu0 0
        %3287 = vmatpush1.bf16.xpose.msra.mxu0 0
        %3288 = vmatprep.subr.bf16.mxu0 0
        %3289 = vmatpush1.bf16.xpose.msra.mxu0 0
        %3290 = vmatprep.subr.bf16.mxu0 0
        %3291 = vmatpush1.bf16.xpose.msra.mxu0 0
        %3292 = vmatprep.subr.bf16.mxu0 0
        %3293 = vmatpush1.bf16.xpose.msra.mxu0 0
        %3294 = vmatprep.subr.bf16.mxu0 0
        %3295 = vmatpush1.bf16.xpose.msra.mxu0 0
        %3296 = vmatprep.subr.bf16.mxu0 0
        %3297 = vmatpush1.bf16.xpose.msra.mxu0 0
        %3298 = vmatprep.subr.bf16.mxu0 0
        %3299 = vmatpush1.bf16.xpose.msra.mxu0 0
        %3300 = vmatprep.subr.bf16.mxu0 0
        %3301 = vmatpush1.bf16.xpose.msra.mxu0 0
        %3302 = vmatprep.subr.bf16.mxu0 0
        %3303 = vmatpush1.bf16.xpose.msra.mxu0 0
        %3304 = vmatprep.subr.bf16.mxu0 0
        %3305 = vmatpush1.bf16.xpose.msra.mxu0 0
        %3306 = vmatprep.subr.bf16.mxu0 0
        %3307 = vmatpush1.bf16.xpose.msra.mxu0 0
        %3308 = vmatprep.mubr.bf16.mxu0 0
        %3309 = vmatmul.mubr.bf16.gmra.mrb[0].mxu0 %v3271
        %v3310 = vpop.f32.mrb[0].mxu0
        %v3311 = vadd.f32 %v2327, %v3310
        %v3312 = vpop.f32.mrb[0].mxu0
        %v3313 = vpop.f32.mrb[0].mxu0
        %v3314 = vpop.f32.mrb[0].mxu0
        %3315 = vdwg.mxu0
        %v3316 = vsel %vm2821, %v3311, -inf
        %3317 = vmax.xlane.f32.xlu0 %v3316
        %v3318 = vpop.xlane.xlu0 %3317
        %v3319 = vsub.f32 %v3311, %v3318
        %v3320 = vmul.f32 %v3319, 1.442695
        %v3321 = vpow.pop %v3320
        %v3322 = vsel %vm2821, %v3321, 0.0
        %3323 = vadd.xlane.f32.xlu0 %v3322
        %v3324 = vpop.xlane.xlu0 %3323
        %v3325 = vrcp.pop %v3324
        %v3326 = vmul.f32 %v3321, %v3325
        %v3327 = vpack.c.bf16 %v3326, %v3326
        %v3328 = vrot.slane %v2962, 2
        %v3329 = vrot.slane %v2963, 1
        %v3330 = vsel %vm2580, %v3329, %v3328
        %v3331 = vsel %vm2583, %v2964, %v3330
        %v3332 = vrot.slane %v2965, 7
        %v3333 = vsel %vm2586, %v3332, %v3331
        %v3334 = vrot.slane %v2966, 6
        %v3335 = vsel %vm2589, %v3334, %v3333
        %v3336 = vrot.slane %v2967, 5
        %v3337 = vsel %vm2592, %v3336, %v3335
        %v3338 = vrot.slane %v2968, 4
        %v3339 = vsel %vm2595, %v3338, %v3337
        %v3340 = vrot.slane %v2969, 3
        %v3341 = vsel %vm2598, %v3340, %v3339
        %v3342 = vrot.slane %v2970, 2
        %v3343 = vrot.slane %v2971, 1
        %v3344 = vsel %vm2580, %v3343, %v3342
        %v3345 = vsel %vm2583, %v2972, %v3344
        %v3346 = vrot.slane %v2973, 7
        %v3347 = vsel %vm2586, %v3346, %v3345
        %v3348 = vrot.slane %v2974, 6
        %v3349 = vsel %vm2589, %v3348, %v3347
        %v3350 = vrot.slane %v2975, 5
        %v3351 = vsel %vm2592, %v3350, %v3349
        %v3352 = vrot.slane %v2976, 4
        %v3353 = vsel %vm2595, %v3352, %v3351
        %v3354 = vrot.slane %v2977, 3
        %v3355 = vsel %vm2598, %v3354, %v3353
        %v3356 = vpack.c.b16 %v3355, %v3341
        %v3359 = vsel %vm2821, %v3327, 0
        %3361 = vmatprep.subr.bf16.mxu0 0
        %3362 = vmatpush1.bf16.msra.mxu0 %v3356
        %3363 = vmatprep.subr.bf16.mxu0 0
        %3364 = vmatpush1.bf16.msra.mxu0 0
        %3365 = vmatprep.subr.bf16.mxu0 0
        %3366 = vmatpush1.bf16.msra.mxu0 0
        %3367 = vmatprep.subr.bf16.mxu0 0
        %3368 = vmatpush1.bf16.msra.mxu0 0
        %3369 = vmatprep.subr.bf16.mxu0 0
        %3370 = vmatpush1.bf16.msra.mxu0 0
        %3371 = vmatprep.subr.bf16.mxu0 0
        %3372 = vmatpush1.bf16.msra.mxu0 0
        %3373 = vmatprep.subr.bf16.mxu0 0
        %3374 = vmatpush1.bf16.msra.mxu0 0
        %3375 = vmatprep.subr.bf16.mxu0 0
        %3376 = vmatpush1.bf16.msra.mxu0 0
        %3377 = vmatprep.subr.bf16.mxu0 0
        %3378 = vmatpush1.bf16.msra.mxu0 0
        %3379 = vmatprep.subr.bf16.mxu0 0
        %3380 = vmatpush1.bf16.msra.mxu0 0
        %3381 = vmatprep.subr.bf16.mxu0 0
        %3382 = vmatpush1.bf16.msra.mxu0 0
        %3383 = vmatprep.subr.bf16.mxu0 0
        %3384 = vmatpush1.bf16.msra.mxu0 0
        %3385 = vmatprep.subr.bf16.mxu0 0
        %3386 = vmatpush1.bf16.msra.mxu0 0
        %3387 = vmatprep.subr.bf16.mxu0 0
        %3388 = vmatpush1.bf16.msra.mxu0 0
        %3389 = vmatprep.subr.bf16.mxu0 0
        %3390 = vmatpush1.bf16.msra.mxu0 0
        %3391 = vmatprep.subr.bf16.mxu0 0
        %3392 = vmatpush1.bf16.msra.mxu0 0
        %3393 = vmatprep.mubr.bf16.mxu0 0
        %3394 = vmatmul.mubr.bf16.gmra.mrb[0].mxu0 %v3359
        %v3395 = vpop.f32.mrb[0].mxu0
        %v3396 = vadd.f32 0.0, %v3395
        %v3397 = vpop.f32.mrb[0].mxu0
        %v3398 = vpop.f32.mrb[0].mxu0
        %v3399 = vpop.f32.mrb[0].mxu0
        %3400 = vdwg.mxu0
        %v3401 = vrot.slane %v2571, 3
        %v3402 = vrot.slane %v2572, 2
        %v3403 = vsel %vm2580, %v3402, %v3401
        %v3404 = vrot.slane %v2573, 1
        %v3405 = vsel %vm2583, %v3404, %v3403
        %v3406 = vsel %vm2586, %v2574, %v3405
        %v3407 = vrot.slane %v2575, 7
        %v3408 = vsel %vm2589, %v3407, %v3406
        %v3409 = vrot.slane %v2576, 6
        %v3410 = vsel %vm2592, %v3409, %v3408
        %v3411 = vrot.slane %v2577, 5
        %v3412 = vsel %vm2595, %v3411, %v3410
        %v3413 = vrot.slane %v2578, 4
        %v3414 = vsel %vm2598, %v3413, %v3412
        %v3415 = vpack.c.b16 %v3414, %v3414
        %v3416 = vrot.slane %v2729, 3
        %v3417 = vrot.slane %v2730, 2
        %v3418 = vsel %vm2580, %v3417, %v3416
        %v3419 = vrot.slane %v2731, 1
        %v3420 = vsel %vm2583, %v3419, %v3418
        %v3421 = vsel %vm2586, %v2732, %v3420
        %v3422 = vrot.slane %v2733, 7
        %v3423 = vsel %vm2589, %v3422, %v3421
        %v3424 = vrot.slane %v2734, 6
        %v3425 = vsel %vm2592, %v3424, %v3423
        %v3426 = vrot.slane %v2735, 5
        %v3427 = vsel %vm2595, %v3426, %v3425
        %v3428 = vrot.slane %v2736, 4
        %v3429 = vsel %vm2598, %v3428, %v3427
        %v3430 = vrot.slane %v2737, 3
        %v3431 = vrot.slane %v2738, 2
        %v3432 = vsel %vm2580, %v3431, %v3430
        %v3433 = vrot.slane %v2739, 1
        %v3434 = vsel %vm2583, %v3433, %v3432
        %v3435 = vsel %vm2586, %v2740, %v3434
        %v3436 = vrot.slane %v2741, 7
        %v3437 = vsel %vm2589, %v3436, %v3435
        %v3438 = vrot.slane %v2742, 6
        %v3439 = vsel %vm2592, %v3438, %v3437
        %v3440 = vrot.slane %v2743, 5
        %v3441 = vsel %vm2595, %v3440, %v3439
        %v3442 = vrot.slane %v2744, 4
        %v3443 = vsel %vm2598, %v3442, %v3441
        %v3444 = vpack.c.b16 %v3443, %v3429
        %v3446 = vsel %vm2774, %v3415, 0
        %v3449 = vsel %vm2774, %v3444, 0
        %3451 = vmatprep.subr.bf16.mxu0 0
        %3452 = vmatpush1.bf16.xpose.msra.mxu0 %v3449
        %3453 = vmatprep.subr.bf16.mxu0 0
        %3454 = vmatpush1.bf16.xpose.msra.mxu0 0
        %3455 = vmatprep.subr.bf16.mxu0 0
        %3456 = vmatpush1.bf16.xpose.msra.mxu0 0
        %3457 = vmatprep.subr.bf16.mxu0 0
        %3458 = vmatpush1.bf16.xpose.msra.mxu0 0
        %3459 = vmatprep.subr.bf16.mxu0 0
        %3460 = vmatpush1.bf16.xpose.msra.mxu0 0
        %3461 = vmatprep.subr.bf16.mxu0 0
        %3462 = vmatpush1.bf16.xpose.msra.mxu0 0
        %3463 = vmatprep.subr.bf16.mxu0 0
        %3464 = vmatpush1.bf16.xpose.msra.mxu0 0
        %3465 = vmatprep.subr.bf16.mxu0 0
        %3466 = vmatpush1.bf16.xpose.msra.mxu0 0
        %3467 = vmatprep.subr.bf16.mxu0 0
        %3468 = vmatpush1.bf16.xpose.msra.mxu0 0
        %3469 = vmatprep.subr.bf16.mxu0 0
        %3470 = vmatpush1.bf16.xpose.msra.mxu0 0
        %3471 = vmatprep.subr.bf16.mxu0 0
        %3472 = vmatpush1.bf16.xpose.msra.mxu0 0
        %3473 = vmatprep.subr.bf16.mxu0 0
        %3474 = vmatpush1.bf16.xpose.msra.mxu0 0
        %3475 = vmatprep.subr.bf16.mxu0 0
        %3476 = vmatpush1.bf16.xpose.msra.mxu0 0
        %3477 = vmatprep.subr.bf16.mxu0 0
        %3478 = vmatpush1.bf16.xpose.msra.mxu0 0
        %3479 = vmatprep.subr.bf16.mxu0 0
        %3480 = vmatpush1.bf16.xpose.msra.mxu0 0
        %3481 = vmatprep.subr.bf16.mxu0 0
        %3482 = vmatpush1.bf16.xpose.msra.mxu0 0
        %3483 = vmatprep.mubr.bf16.mxu0 0
        %3484 = vmatmul.mubr.bf16.gmra.mrb[0].mxu0 %v3446
        %v3485 = vpop.f32.mrb[0].mxu0
        %v3486 = vadd.f32 %v2327, %v3485
        %v3487 = vpop.f32.mrb[0].mxu0
        %v3488 = vpop.f32.mrb[0].mxu0
        %v3489 = vpop.f32.mrb[0].mxu0
        %3490 = vdwg.mxu0
        %v3491 = vsel %vm2821, %v3486, -inf
        %3492 = vmax.xlane.f32.xlu0 %v3491
        %v3493 = vpop.xlane.xlu0 %3492
        %v3494 = vsub.f32 %v3486, %v3493
        %v3495 = vmul.f32 %v3494, 1.442695
        %v3496 = vpow.pop %v3495
        %v3497 = vsel %vm2821, %v3496, 0.0
        %3498 = vadd.xlane.f32.xlu0 %v3497
        %v3499 = vpop.xlane.xlu0 %3498
        %v3500 = vrcp.pop %v3499
        %v3501 = vmul.f32 %v3496, %v3500
        %v3502 = vpack.c.bf16 %v3501, %v3501
        %v3503 = vrot.slane %v2962, 3
        %v3504 = vrot.slane %v2963, 2
        %v3505 = vsel %vm2580, %v3504, %v3503
        %v3506 = vrot.slane %v2964, 1
        %v3507 = vsel %vm2583, %v3506, %v3505
        %v3508 = vsel %vm2586, %v2965, %v3507
        %v3509 = vrot.slane %v2966, 7
        %v3510 = vsel %vm2589, %v3509, %v3508
        %v3511 = vrot.slane %v2967, 6
        %v3512 = vsel %vm2592, %v3511, %v3510
        %v3513 = vrot.slane %v2968, 5
        %v3514 = vsel %vm2595, %v3513, %v3512
        %v3515 = vrot.slane %v2969, 4
        %v3516 = vsel %vm2598, %v3515, %v3514
        %v3517 = vrot.slane %v2970, 3
        %v3518 = vrot.slane %v2971, 2
        %v3519 = vsel %vm2580, %v3518, %v3517
        %v3520 = vrot.slane %v2972, 1
        %v3521 = vsel %vm2583, %v3520, %v3519
        %v3522 = vsel %vm2586, %v2973, %v3521
        %v3523 = vrot.slane %v2974, 7
        %v3524 = vsel %vm2589, %v3523, %v3522
        %v3525 = vrot.slane %v2975, 6
        %v3526 = vsel %vm2592, %v3525, %v3524
        %v3527 = vrot.slane %v2976, 5
        %v3528 = vsel %vm2595, %v3527, %v3526
        %v3529 = vrot.slane %v2977, 4
        %v3530 = vsel %vm2598, %v3529, %v3528
        %v3531 = vpack.c.b16 %v3530, %v3516
        %v3534 = vsel %vm2821, %v3502, 0
        %3536 = vmatprep.subr.bf16.mxu0 0
        %3537 = vmatpush1.bf16.msra.mxu0 %v3531
        %3538 = vmatprep.subr.bf16.mxu0 0
        %3539 = vmatpush1.bf16.msra.mxu0 0
        %3540 = vmatprep.subr.bf16.mxu0 0
        %3541 = vmatpush1.bf16.msra.mxu0 0
        %3542 = vmatprep.subr.bf16.mxu0 0
        %3543 = vmatpush1.bf16.msra.mxu0 0
        %3544 = vmatprep.subr.bf16.mxu0 0
        %3545 = vmatpush1.bf16.msra.mxu0 0
        %3546 = vmatprep.subr.bf16.mxu0 0
        %3547 = vmatpush1.bf16.msra.mxu0 0
        %3548 = vmatprep.subr.bf16.mxu0 0
        %3549 = vmatpush1.bf16.msra.mxu0 0
        %3550 = vmatprep.subr.bf16.mxu0 0
        %3551 = vmatpush1.bf16.msra.mxu0 0
        %3552 = vmatprep.subr.bf16.mxu0 0
        %3553 = vmatpush1.bf16.msra.mxu0 0
        %3554 = vmatprep.subr.bf16.mxu0 0
        %3555 = vmatpush1.bf16.msra.mxu0 0
        %3556 = vmatprep.subr.bf16.mxu0 0
        %3557 = vmatpush1.bf16.msra.mxu0 0
        %3558 = vmatprep.subr.bf16.mxu0 0
        %3559 = vmatpush1.bf16.msra.mxu0 0
        %3560 = vmatprep.subr.bf16.mxu0 0
        %3561 = vmatpush1.bf16.msra.mxu0 0
        %3562 = vmatprep.subr.bf16.mxu0 0
        %3563 = vmatpush1.bf16.msra.mxu0 0
        %3564 = vmatprep.subr.bf16.mxu0 0
        %3565 = vmatpush1.bf16.msra.mxu0 0
        %3566 = vmatprep.subr.bf16.mxu0 0
        %3567 = vmatpush1.bf16.msra.mxu0 0
        %3568 = vmatprep.mubr.bf16.mxu0 0
        %3569 = vmatmul.mubr.bf16.gmra.mrb[0].mxu0 %v3534
        %v3570 = vpop.f32.mrb[0].mxu0
        %v3571 = vadd.f32 0.0, %v3570
        %v3572 = vpop.f32.mrb[0].mxu0
        %v3573 = vpop.f32.mrb[0].mxu0
        %v3574 = vpop.f32.mrb[0].mxu0
        %3575 = vdwg.mxu0
        %v3576 = vpack.c.bf16 %v3046, %v3046
        %v3577 = vld [vmem:[#allocation18] sm:$0xf]
        %v3578 = vld [vmem:[#allocation18 + $0x4] sm:$0xf]
        %v3579 = vld [vmem:[#allocation18 + $0x8] sm:$0xf]
        %v3580 = vld [vmem:[#allocation18 + $0xc] sm:$0xf]
        %v3581 = vpack.c.bf16 %v3221, %v3221
        %s3582 = scalar_lea.vmem [#allocation18], 16
        %v3583 = vld [vmem:[%s3582] sm:$0xf]
        %v3584 = vld [vmem:[%s3582 + $0x4] sm:$0xf]
        %v3585 = vld [vmem:[%s3582 + $0x8] sm:$0xf]
        %v3586 = vld [vmem:[%s3582 + $0xc] sm:$0xf]
        %v3591 = vunpack.c.l.b16 %v3583
        %v3592 = vunpack.c.l.b16 %v3584
        %v3593 = vunpack.c.l.b16 %v3585
        %v3594 = vunpack.c.l.b16 %v3586
        %v3595 = vpack.c.b16 %v3592, %v3591
        %v3596 = vpack.c.b16 %v3594, %v3593
        %v3600 = vsel %vm2774, %v3581, 0
        %3602 = vmatprep.subr.bf16.mxu0 0
        %3603 = vmatpush1.bf16.msra.mxu0 %v3595
        %3604 = vmatprep.subr.bf16.mxu0 0
        %3605 = vmatpush1.bf16.msra.mxu0 %v3596
        %3606 = vmatprep.subr.bf16.mxu0 0
        %3607 = vmatpush1.bf16.msra.mxu0 0
        %3608 = vmatprep.subr.bf16.mxu0 0
        %3609 = vmatpush1.bf16.msra.mxu0 0
        %3610 = vmatprep.subr.bf16.mxu0 0
        %3611 = vmatpush1.bf16.msra.mxu0 0
        %3612 = vmatprep.subr.bf16.mxu0 0
        %3613 = vmatpush1.bf16.msra.mxu0 0
        %3614 = vmatprep.subr.bf16.mxu0 0
        %3615 = vmatpush1.bf16.msra.mxu0 0
        %3616 = vmatprep.subr.bf16.mxu0 0
        %3617 = vmatpush1.bf16.msra.mxu0 0
        %3618 = vmatprep.subr.bf16.mxu0 0
        %3619 = vmatpush1.bf16.msra.mxu0 0
        %3620 = vmatprep.subr.bf16.mxu0 0
        %3621 = vmatpush1.bf16.msra.mxu0 0
        %3622 = vmatprep.subr.bf16.mxu0 0
        %3623 = vmatpush1.bf16.msra.mxu0 0
        %3624 = vmatprep.subr.bf16.mxu0 0
        %3625 = vmatpush1.bf16.msra.mxu0 0
        %3626 = vmatprep.subr.bf16.mxu0 0
        %3627 = vmatpush1.bf16.msra.mxu0 0
        %3628 = vmatprep.subr.bf16.mxu0 0
        %3629 = vmatpush1.bf16.msra.mxu0 0
        %3630 = vmatprep.subr.bf16.mxu0 0
        %3631 = vmatpush1.bf16.msra.mxu0 0
        %3632 = vmatprep.subr.bf16.mxu0 0
        %3633 = vmatpush1.bf16.msra.mxu0 0
        %3634 = vmatprep.mubr.bf16.mxu0 0
        %3635 = vmatmul.mubr.bf16.gmra.mrb[0].mxu0 %v3600
        %v3636 = vpop.f32.mrb[0].mxu0
        %v3637 = vadd.f32 0.0, %v3636
        %v3638 = vpop.f32.mrb[0].mxu0
        %v3639 = vpop.f32.mrb[0].mxu0
        %v3640 = vpop.f32.mrb[0].mxu0
        %3641 = vdwg.mxu0
        %v3646 = vunpack.c.l.b16 %v3577
        %v3647 = vunpack.c.l.b16 %v3578
        %v3648 = vunpack.c.l.b16 %v3579
        %v3649 = vunpack.c.l.b16 %v3580
        %v3650 = vpack.c.b16 %v3647, %v3646
        %v3651 = vpack.c.b16 %v3649, %v3648
        %v3655 = vsel %vm2774, %v3576, 0
        %3657 = vmatprep.subr.bf16.mxu0 0
        %3658 = vmatpush1.bf16.msra.mxu0 %v3650
        %3659 = vmatprep.subr.bf16.mxu0 0
        %3660 = vmatpush1.bf16.msra.mxu0 %v3651
        %3661 = vmatprep.subr.bf16.mxu0 0
        %3662 = vmatpush1.bf16.msra.mxu0 0
        %3663 = vmatprep.subr.bf16.mxu0 0
        %3664 = vmatpush1.bf16.msra.mxu0 0
        %3665 = vmatprep.subr.bf16.mxu0 0
        %3666 = vmatpush1.bf16.msra.mxu0 0
        %3667 = vmatprep.subr.bf16.mxu0 0
        %3668 = vmatpush1.bf16.msra.mxu0 0
        %3669 = vmatprep.subr.bf16.mxu0 0
        %3670 = vmatpush1.bf16.msra.mxu0 0
        %3671 = vmatprep.subr.bf16.mxu0 0
        %3672 = vmatpush1.bf16.msra.mxu0 0
        %3673 = vmatprep.subr.bf16.mxu0 0
        %3674 = vmatpush1.bf16.msra.mxu0 0
        %3675 = vmatprep.subr.bf16.mxu0 0
        %3676 = vmatpush1.bf16.msra.mxu0 0
        %3677 = vmatprep.subr.bf16.mxu0 0
        %3678 = vmatpush1.bf16.msra.mxu0 0
        %3679 = vmatprep.subr.bf16.mxu0 0
        %3680 = vmatpush1.bf16.msra.mxu0 0
        %3681 = vmatprep.subr.bf16.mxu0 0
        %3682 = vmatpush1.bf16.msra.mxu0 0
        %3683 = vmatprep.subr.bf16.mxu0 0
        %3684 = vmatpush1.bf16.msra.mxu0 0
        %3685 = vmatprep.subr.bf16.mxu0 0
        %3686 = vmatpush1.bf16.msra.mxu0 0
        %3687 = vmatprep.subr.bf16.mxu0 0
        %3688 = vmatpush1.bf16.msra.mxu0 0
        %3689 = vmatprep.mubr.bf16.mxu0 0
        %3690 = vmatmul.mubr.bf16.gmra.mrb[0].mxu0 %v3655
        %v3691 = vpop.f32.mrb[0].mxu0
        %v3692 = vadd.f32 %v3637, %v3691
        %v3693 = vpop.f32.mrb[0].mxu0
        %v3694 = vpop.f32.mrb[0].mxu0
        %v3695 = vpop.f32.mrb[0].mxu0
        %3696 = vdwg.mxu0
        %v3697 = vpack.c.bf16 %v3396, %v3396
        %s3698 = scalar_lea.vmem [#allocation18], 32
        %v3699 = vld [vmem:[%s3698] sm:$0xf]
        %v3700 = vld [vmem:[%s3698 + $0x4] sm:$0xf]
        %v3701 = vld [vmem:[%s3698 + $0x8] sm:$0xf]
        %v3702 = vld [vmem:[%s3698 + $0xc] sm:$0xf]
        %v3707 = vunpack.c.l.b16 %v3699
        %v3708 = vunpack.c.l.b16 %v3700
        %v3709 = vunpack.c.l.b16 %v3701
        %v3710 = vunpack.c.l.b16 %v3702
        %v3711 = vpack.c.b16 %v3708, %v3707
        %v3712 = vpack.c.b16 %v3710, %v3709
        %v3716 = vsel %vm2774, %v3697, 0
        %3718 = vmatprep.subr.bf16.mxu0 0
        %3719 = vmatpush1.bf16.msra.mxu0 %v3711
        %3720 = vmatprep.subr.bf16.mxu0 0
        %3721 = vmatpush1.bf16.msra.mxu0 %v3712
        %3722 = vmatprep.subr.bf16.mxu0 0
        %3723 = vmatpush1.bf16.msra.mxu0 0
        %3724 = vmatprep.subr.bf16.mxu0 0
        %3725 = vmatpush1.bf16.msra.mxu0 0
        %3726 = vmatprep.subr.bf16.mxu0 0
        %3727 = vmatpush1.bf16.msra.mxu0 0
        %3728 = vmatprep.subr.bf16.mxu0 0
        %3729 = vmatpush1.bf16.msra.mxu0 0
        %3730 = vmatprep.subr.bf16.mxu0 0
        %3731 = vmatpush1.bf16.msra.mxu0 0
        %3732 = vmatprep.subr.bf16.mxu0 0
        %3733 = vmatpush1.bf16.msra.mxu0 0
        %3734 = vmatprep.subr.bf16.mxu0 0
        %3735 = vmatpush1.bf16.msra.mxu0 0
        %3736 = vmatprep.subr.bf16.mxu0 0
        %3737 = vmatpush1.bf16.msra.mxu0 0
        %3738 = vmatprep.subr.bf16.mxu0 0
        %3739 = vmatpush1.bf16.msra.mxu0 0
        %3740 = vmatprep.subr.bf16.mxu0 0
        %3741 = vmatpush1.bf16.msra.mxu0 0
        %3742 = vmatprep.subr.bf16.mxu0 0
        %3743 = vmatpush1.bf16.msra.mxu0 0
        %3744 = vmatprep.subr.bf16.mxu0 0
        %3745 = vmatpush1.bf16.msra.mxu0 0
        %3746 = vmatprep.subr.bf16.mxu0 0
        %3747 = vmatpush1.bf16.msra.mxu0 0
        %3748 = vmatprep.subr.bf16.mxu0 0
        %3749 = vmatpush1.bf16.msra.mxu0 0
        %3750 = vmatprep.mubr.bf16.mxu0 0
        %3751 = vmatmul.mubr.bf16.gmra.mrb[0].mxu0 %v3716
        %v3752 = vpop.f32.mrb[0].mxu0
        %v3753 = vadd.f32 0.0, %v3752
        %v3754 = vpop.f32.mrb[0].mxu0
        %v3755 = vpop.f32.mrb[0].mxu0
        %v3756 = vpop.f32.mrb[0].mxu0
        %3757 = vdwg.mxu0
        %v3758 = vadd.f32 %v3692, %v3753
        %v3759 = vpack.c.bf16 %v3571, %v3571
        %s3760 = scalar_lea.vmem [#allocation18], 48
        %v3761 = vld [vmem:[%s3760] sm:$0xf]
        %v3762 = vld [vmem:[%s3760 + $0x4] sm:$0xf]
        %v3763 = vld [vmem:[%s3760 + $0x8] sm:$0xf]
        %v3764 = vld [vmem:[%s3760 + $0xc] sm:$0xf]
        %v3769 = vunpack.c.l.b16 %v3761
        %v3770 = vunpack.c.l.b16 %v3762
        %v3771 = vunpack.c.l.b16 %v3763
        %v3772 = vunpack.c.l.b16 %v3764
        %v3773 = vpack.c.b16 %v3770, %v3769
        %v3774 = vpack.c.b16 %v3772, %v3771
        %v3778 = vsel %vm2774, %v3759, 0
        %3780 = vmatprep.subr.bf16.mxu0 0
        %3781 = vmatpush1.bf16.msra.mxu0 %v3773
        %3782 = vmatprep.subr.bf16.mxu0 0
        %3783 = vmatpush1.bf16.msra.mxu0 %v3774
        %3784 = vmatprep.subr.bf16.mxu0 0
        %3785 = vmatpush1.bf16.msra.mxu0 0
        %3786 = vmatprep.subr.bf16.mxu0 0
        %3787 = vmatpush1.bf16.msra.mxu0 0
        %3788 = vmatprep.subr.bf16.mxu0 0
        %3789 = vmatpush1.bf16.msra.mxu0 0
        %3790 = vmatprep.subr.bf16.mxu0 0
        %3791 = vmatpush1.bf16.msra.mxu0 0
        %3792 = vmatprep.subr.bf16.mxu0 0
        %3793 = vmatpush1.bf16.msra.mxu0 0
        %3794 = vmatprep.subr.bf16.mxu0 0
        %3795 = vmatpush1.bf16.msra.mxu0 0
        %3796 = vmatprep.subr.bf16.mxu0 0
        %3797 = vmatpush1.bf16.msra.mxu0 0
        %3798 = vmatprep.subr.bf16.mxu0 0
        %3799 = vmatpush1.bf16.msra.mxu0 0
        %3800 = vmatprep.subr.bf16.mxu0 0
        %3801 = vmatpush1.bf16.msra.mxu0 0
        %3802 = vmatprep.subr.bf16.mxu0 0
        %3803 = vmatpush1.bf16.msra.mxu0 0
        %3804 = vmatprep.subr.bf16.mxu0 0
        %3805 = vmatpush1.bf16.msra.mxu0 0
        %3806 = vmatprep.subr.bf16.mxu0 0
        %3807 = vmatpush1.bf16.msra.mxu0 0
        %3808 = vmatprep.subr.bf16.mxu0 0
        %3809 = vmatpush1.bf16.msra.mxu0 0
        %3810 = vmatprep.subr.bf16.mxu0 0
        %3811 = vmatpush1.bf16.msra.mxu0 0
        %3812 = vmatprep.mubr.bf16.mxu0 0
        %3813 = vmatmul.mubr.bf16.gmra.mrb[0].mxu0 %v3778
        %v3814 = vpop.f32.mrb[0].mxu0
        %v3815 = vadd.f32 0.0, %v3814
        %v3816 = vpop.f32.mrb[0].mxu0
        %v3817 = vpop.f32.mrb[0].mxu0
        %v3818 = vpop.f32.mrb[0].mxu0
        %3819 = vdwg.mxu0
        %v3820 = vadd.f32 %v3758, %v3815
        %v3821 = vld [vmem:[#allocation20] sm:$0x1]
        %v3823 = vlaneseq
        %v3824 = vshrl.u32 %v3823, 7
        %v3825 = vsub.s32 0, %v3824
        %v3826 = vrot.slane %v3821, %v3825
        %v3828 = vadd.f32 %v3820, %v3826
        %v3829 = vadd.f32 %v2326, %v3828
        %3830 = vadd.xlane.f32.xlu0 %v3829
        %v3831 = vpop.xlane.xlu0 %3830
        %v3832 = vrcp.pop 128.0
        %v3833 = vmul.f32 %v3831, %v3832
        %v3834 = vsub.f32 %v3829, %v3833
        %v3835 = vmul.f32 %v3834, %v3834
        %3836 = vadd.xlane.f32.xlu0 %v3835
        %v3837 = vpop.xlane.xlu0 %3836
        %v3838 = vmul.f32 %v3837, %v3832
        %v3839 = vadd.f32 %v3838, 1e-05
        %v3840 = vrsqrt.pop %v3839
        %v3841 = vmul.f32 %v3834, %v3840
        %v3842 = vld [vmem:[#allocation21] sm:$0x1]
        %v3844 = vlaneseq
        %v3845 = vshrl.u32 %v3844, 7
        %v3846 = vsub.s32 0, %v3845
        %v3847 = vrot.slane %v3842, %v3846
        %v3849 = vmul.f32 %v3841, %v3847
        %v3850 = vld [vmem:[#allocation23] sm:$0x1]
        %v3852 = vlaneseq
        %v3853 = vshrl.u32 %v3852, 7
        %v3854 = vsub.s32 0, %v3853
        %v3855 = vrot.slane %v3850, %v3854
        %v3857 = vadd.f32 %v3849, %v3855
        %v3858 = vpack.c.bf16 %v3857, %v3857
        %v3859 = vld [vmem:[#allocation24] sm:$0xf]
        %v3860 = vld [vmem:[#allocation24 + $0x4] sm:$0xf]
        %v3861 = vld [vmem:[#allocation24 + $0x8] sm:$0xf]
        %v3862 = vld [vmem:[#allocation24 + $0xc] sm:$0xf]
        %v3863 = vld [vmem:[#allocation24 + $0x10] sm:$0xf]
        %v3864 = vld [vmem:[#allocation24 + $0x14] sm:$0xf]
        %v3865 = vld [vmem:[#allocation24 + $0x18] sm:$0xf]
        %v3866 = vld [vmem:[#allocation24 + $0x1c] sm:$0xf]
        %v3867 = vld [vmem:[#allocation24 + $0x20] sm:$0xf]
        %v3868 = vld [vmem:[#allocation24 + $0x24] sm:$0xf]
        %v3869 = vld [vmem:[#allocation24 + $0x28] sm:$0xf]
        %v3870 = vld [vmem:[#allocation24 + $0x2c] sm:$0xf]
        %v3871 = vld [vmem:[#allocation24 + $0x30] sm:$0xf]
        %v3872 = vld [vmem:[#allocation24 + $0x34] sm:$0xf]
        %v3873 = vld [vmem:[#allocation24 + $0x38] sm:$0xf]
        %v3874 = vld [vmem:[#allocation24 + $0x3c] sm:$0xf]
        %v3875 = vld [vmem:[#allocation26] sm:$0x1]
        %v3877 = vlaneseq
        %v3878 = vshrl.u32 %v3877, 7
        %v3879 = vsub.s32 0, %v3878
        %v3880 = vrot.slane %v3875, %v3879
        %v3898 = vunpack.c.l.b16 %v3859
        %v3899 = vunpack.c.l.b16 %v3860
        %v3900 = vunpack.c.l.b16 %v3861
        %v3901 = vunpack.c.l.b16 %v3862
        %v3902 = vunpack.c.l.b16 %v3863
        %v3903 = vunpack.c.l.b16 %v3864
        %v3904 = vunpack.c.l.b16 %v3865
        %v3905 = vunpack.c.l.b16 %v3866
        %v3906 = vunpack.c.l.b16 %v3867
        %v3907 = vunpack.c.l.b16 %v3868
        %v3908 = vunpack.c.l.b16 %v3869
        %v3909 = vunpack.c.l.b16 %v3870
        %v3910 = vunpack.c.l.b16 %v3871
        %v3911 = vunpack.c.l.b16 %v3872
        %v3912 = vunpack.c.l.b16 %v3873
        %v3913 = vunpack.c.l.b16 %v3874
        %v3914 = vpack.c.b16 %v3899, %v3898
        %v3915 = vpack.c.b16 %v3901, %v3900
        %v3916 = vpack.c.b16 %v3903, %v3902
        %v3917 = vpack.c.b16 %v3905, %v3904
        %v3918 = vpack.c.b16 %v3907, %v3906
        %v3919 = vpack.c.b16 %v3909, %v3908
        %v3920 = vpack.c.b16 %v3911, %v3910
        %v3921 = vpack.c.b16 %v3913, %v3912
        %3930 = vmatprep.subr.bf16.mxu0 0
        %3931 = vmatpush1.bf16.msra.mxu0 %v3914
        %3932 = vmatprep.subr.bf16.mxu0 0
        %3933 = vmatpush1.bf16.msra.mxu0 %v3915
        %3934 = vmatprep.subr.bf16.mxu0 0
        %3935 = vmatpush1.bf16.msra.mxu0 %v3916
        %3936 = vmatprep.subr.bf16.mxu0 0
        %3937 = vmatpush1.bf16.msra.mxu0 %v3917
        %3938 = vmatprep.subr.bf16.mxu0 0
        %3939 = vmatpush1.bf16.msra.mxu0 %v3918
        %3940 = vmatprep.subr.bf16.mxu0 0
        %3941 = vmatpush1.bf16.msra.mxu0 %v3919
        %3942 = vmatprep.subr.bf16.mxu0 0
        %3943 = vmatpush1.bf16.msra.mxu0 %v3920
        %3944 = vmatprep.subr.bf16.mxu0 0
        %3945 = vmatpush1.bf16.msra.mxu0 %v3921
        %3946 = vmatprep.subr.bf16.mxu0 0
        %3947 = vmatpush1.bf16.msra.mxu0 0
        %3948 = vmatprep.subr.bf16.mxu0 0
        %3949 = vmatpush1.bf16.msra.mxu0 0
        %3950 = vmatprep.subr.bf16.mxu0 0
        %3951 = vmatpush1.bf16.msra.mxu0 0
        %3952 = vmatprep.subr.bf16.mxu0 0
        %3953 = vmatpush1.bf16.msra.mxu0 0
        %3954 = vmatprep.subr.bf16.mxu0 0
        %3955 = vmatpush1.bf16.msra.mxu0 0
        %3956 = vmatprep.subr.bf16.mxu0 0
        %3957 = vmatpush1.bf16.msra.mxu0 0
        %3958 = vmatprep.subr.bf16.mxu0 0
        %3959 = vmatpush1.bf16.msra.mxu0 0
        %3960 = vmatprep.subr.bf16.mxu0 0
        %3961 = vmatpush1.bf16.msra.mxu0 0
        %3962 = vmatprep.mubr.bf16.mxu0 0
        %3963 = vmatmul.mubr.bf16.gmra.mrb[0].mxu0 %v3858
        %v3964 = vpop.f32.mrb[0].mxu0
        %v3965 = vadd.f32 %v3880, %v3964
        %v3966 = vpop.f32.mrb[0].mxu0
        %v3967 = vpop.f32.mrb[0].mxu0
        %v3968 = vpop.f32.mrb[0].mxu0
        %3969 = vdwg.mxu0
        %v3970 = vpack.c.bf16 %v3965, %v3965
        %3972 = vrot.lane.b32.xlu0 %v3970, 96
        %v3973 = vpop.permute.xlu0 %3972
        %3974 = vrot.lane.b32.xlu0 %v3970, 64
        %v3975 = vpop.permute.xlu0 %3974
        %3976 = vrot.lane.b32.xlu0 %v3970, 32
        %v3977 = vpop.permute.xlu0 %3976
        %v3979 = vunpack.c.l.s4 1983009808
        %v3980 = vunpack.c.0.s8 %v3979
        %v3981 = vlaneseq
        %v3982 = vshrl.u32 %v3981, 7
        %v3983 = vsub.s32 %v3980, %v3982
        %v3984 = vrot.slane %v3970, %v3983
        %v3987 = vunpack.c.l.s4 1983009808
        %v3988 = vunpack.c.0.s8 %v3987
        %v3989 = vlaneseq
        %v3990 = vshrl.u32 %v3989, 7
        %v3991 = vsub.s32 %v3988, %v3990
        %v3992 = vrot.slane %v3975, %v3991
        %v3993 = vcombine.low %v3984, %v3992
        %v3994 = vcombine.high %v3984, %v3992
        %v3996 = vunpack.c.l.s4 1934713408
        %v3997 = vunpack.c.0.s8 %v3996
        %v3998 = vlaneseq
        %v3999 = vshrl.u32 %v3998, 7
        %v4000 = vsub.s32 %v3997, %v3999
        %v4001 = vrot.slane %v3993, %v4000
        %v4003 = vunpack.c.l.s4 1934713408
        %v4004 = vunpack.c.0.s8 %v4003
        %v4005 = vlaneseq
        %v4006 = vshrl.u32 %v4005, 7
        %v4007 = vsub.s32 %v4004, %v4006
        %v4008 = vrot.slane %v3994, %v4007
        %v4009 = vcombine.high %v4001, 0
        %v4010 = vcombine.high %v4008, 0
        %v4013 = vunpack.c.l.s4 1983009808
        %v4014 = vunpack.c.0.s8 %v4013
        %v4015 = vlaneseq
        %v4016 = vshrl.u32 %v4015, 7
        %v4017 = vsub.s32 %v4014, %v4016
        %v4018 = vrot.slane %v3973, %v4017
        %v4021 = vunpack.c.l.s4 1983009808
        %v4022 = vunpack.c.0.s8 %v4021
        %v4023 = vlaneseq
        %v4024 = vshrl.u32 %v4023, 7
        %v4025 = vsub.s32 %v4022, %v4024
        %v4026 = vrot.slane %v3977, %v4025
        %v4027 = vcombine.low %v4018, %v4026
        %v4028 = vcombine.high %v4018, %v4026
        %v4030 = vunpack.c.l.s4 1934713408
        %v4031 = vunpack.c.0.s8 %v4030
        %v4032 = vlaneseq
        %v4033 = vshrl.u32 %v4032, 7
        %v4034 = vsub.s32 %v4031, %v4033
        %v4035 = vrot.slane %v4027, %v4034
        %v4037 = vunpack.c.l.s4 1934713408
        %v4038 = vunpack.c.0.s8 %v4037
        %v4039 = vlaneseq
        %v4040 = vshrl.u32 %v4039, 7
        %v4041 = vsub.s32 %v4038, %v4040
        %v4042 = vrot.slane %v4028, %v4041
        %v4043 = vcombine.high %v4035, 0
        %v4044 = vcombine.high %v4042, 0
        %v4047 = vpack.i.b16 %v4035, %v4001
        %v4048 = vshrl.u32 %v4001, 16
        %v4049 = vshrl.u32 %v4035, 16
        %v4050 = vpack.i.b16 %v4049, %v4048
        %v4053 = vpack.i.b16 %v4043, %v4009
        %v4054 = vshrl.u32 %v4009, 16
        %v4055 = vshrl.u32 %v4043, 16
        %v4056 = vpack.i.b16 %v4055, %v4054
        %v4059 = vpack.i.b16 %v4042, %v4008
        %v4060 = vshrl.u32 %v4008, 16
        %v4061 = vshrl.u32 %v4042, 16
        %v4062 = vpack.i.b16 %v4061, %v4060
        %v4065 = vpack.i.b16 %v4044, %v4010
        %v4066 = vshrl.u32 %v4010, 16
        %v4067 = vshrl.u32 %v4044, 16
        %v4068 = vpack.i.b16 %v4067, %v4066
        %v4069 = vld [vmem:[#allocation4] sm:$0x3]
        %v4070 = vld [vmem:[#allocation4 + $0x2] sm:$0x3]
        %v4071 = vld [vmem:[#allocation4 + $0x4] sm:$0x3]
        %v4072 = vld [vmem:[#allocation4 + $0x6] sm:$0x3]
        %v4073 = vld [vmem:[#allocation4 + $0x8] sm:$0x3]
        %v4074 = vld [vmem:[#allocation4 + $0xa] sm:$0x3]
        %v4075 = vld [vmem:[#allocation4 + $0xc] sm:$0x3]
        %v4076 = vld [vmem:[#allocation4 + $0xe] sm:$0x3]
        %v4077 = vld [vmem:[#allocation4 + $0x10] sm:$0x3]
        %v4078 = vld [vmem:[#allocation4 + $0x12] sm:$0x3]
        %v4079 = vld [vmem:[#allocation4 + $0x14] sm:$0x3]
        %v4080 = vld [vmem:[#allocation4 + $0x16] sm:$0x3]
        %v4081 = vld [vmem:[#allocation4 + $0x18] sm:$0x3]
        %v4082 = vld [vmem:[#allocation4 + $0x1a] sm:$0x3]
        %v4083 = vld [vmem:[#allocation4 + $0x1c] sm:$0x3]
        %v4084 = vld [vmem:[#allocation4 + $0x1e] sm:$0x3]
        %v4085 = vld [vmem:[#allocation5] sm:$0x3]
        %v4086 = vld [vmem:[#allocation5 + $0x2] sm:$0x3]
        %v4087 = vld [vmem:[#allocation5 + $0x4] sm:$0x3]
        %v4088 = vld [vmem:[#allocation5 + $0x6] sm:$0x3]
        %v4089 = vld [vmem:[#allocation5 + $0x8] sm:$0x3]
        %v4090 = vld [vmem:[#allocation5 + $0xa] sm:$0x3]
        %v4091 = vld [vmem:[#allocation5 + $0xc] sm:$0x3]
        %v4092 = vld [vmem:[#allocation5 + $0xe] sm:$0x3]
        %v4093 = vld [vmem:[#allocation5 + $0x10] sm:$0x3]
        %v4094 = vld [vmem:[#allocation5 + $0x12] sm:$0x3]
        %v4095 = vld [vmem:[#allocation5 + $0x14] sm:$0x3]
        %v4096 = vld [vmem:[#allocation5 + $0x16] sm:$0x3]
        %v4097 = vld [vmem:[#allocation5 + $0x18] sm:$0x3]
        %v4098 = vld [vmem:[#allocation5 + $0x1a] sm:$0x3]
        %v4099 = vld [vmem:[#allocation5 + $0x1c] sm:$0x3]
        %v4100 = vld [vmem:[#allocation5 + $0x1e] sm:$0x3]
        %v4101 = vunpack.c.l.b16 %v4047
        %v4102 = vunpack.c.l.b16 %v4050
        %v4103 = vunpack.c.l.b16 %v4053
        %v4104 = vunpack.c.l.b16 %v4056
        %v4105 = vunpack.c.l.b16 %v4059
        %v4106 = vunpack.c.l.b16 %v4062
        %v4107 = vunpack.c.l.b16 %v4065
        %v4108 = vunpack.c.l.b16 %v4068
        %v4109 = vrot.slane %v4102, 7
        %v4110 = vsel %vm2580, %v4109, %v4101
        %v4111 = vrot.slane %v4103, 6
        %v4112 = vsel %vm2583, %v4111, %v4110
        %v4113 = vrot.slane %v4104, 5
        %v4114 = vsel %vm2586, %v4113, %v4112
        %v4115 = vrot.slane %v4105, 4
        %v4116 = vsel %vm2589, %v4115, %v4114
        %v4117 = vrot.slane %v4106, 3
        %v4118 = vsel %vm2592, %v4117, %v4116
        %v4119 = vrot.slane %v4107, 2
        %v4120 = vsel %vm2595, %v4119, %v4118
        %v4121 = vrot.slane %v4108, 1
        %v4122 = vsel %vm2598, %v4121, %v4120
        %v4123 = vpack.c.b16 %v4122, %v4122
        %v4141 = vunpack.c.l.s4 1983009808
        %v4142 = vunpack.c.0.s8 %v4141
        %v4143 = vlaneseq
        %v4144 = vshrl.u32 %v4143, 7
        %v4145 = vsub.s32 %v4142, %v4144
        %v4146 = vrot.slane %v4069, %v4145
        %v4148 = vunpack.c.l.s4 1983009808
        %v4149 = vunpack.c.0.s8 %v4148
        %v4150 = vlaneseq
        %v4151 = vshrl.u32 %v4150, 7
        %v4152 = vsub.s32 %v4149, %v4151
        %v4153 = vrot.slane %v4070, %v4152
        %v4155 = vunpack.c.l.s4 1983009808
        %v4156 = vunpack.c.0.s8 %v4155
        %v4157 = vlaneseq
        %v4158 = vshrl.u32 %v4157, 7
        %v4159 = vsub.s32 %v4156, %v4158
        %v4160 = vrot.slane %v4071, %v4159
        %v4162 = vunpack.c.l.s4 1983009808
        %v4163 = vunpack.c.0.s8 %v4162
        %v4164 = vlaneseq
        %v4165 = vshrl.u32 %v4164, 7
        %v4166 = vsub.s32 %v4163, %v4165
        %v4167 = vrot.slane %v4072, %v4166
        %v4169 = vunpack.c.l.s4 1983009808
        %v4170 = vunpack.c.0.s8 %v4169
        %v4171 = vlaneseq
        %v4172 = vshrl.u32 %v4171, 7
        %v4173 = vsub.s32 %v4170, %v4172
        %v4174 = vrot.slane %v4073, %v4173
        %v4176 = vunpack.c.l.s4 1983009808
        %v4177 = vunpack.c.0.s8 %v4176
        %v4178 = vlaneseq
        %v4179 = vshrl.u32 %v4178, 7
        %v4180 = vsub.s32 %v4177, %v4179
        %v4181 = vrot.slane %v4074, %v4180
        %v4183 = vunpack.c.l.s4 1983009808
        %v4184 = vunpack.c.0.s8 %v4183
        %v4185 = vlaneseq
        %v4186 = vshrl.u32 %v4185, 7
        %v4187 = vsub.s32 %v4184, %v4186
        %v4188 = vrot.slane %v4075, %v4187
        %v4190 = vunpack.c.l.s4 1983009808
        %v4191 = vunpack.c.0.s8 %v4190
        %v4192 = vlaneseq
        %v4193 = vshrl.u32 %v4192, 7
        %v4194 = vsub.s32 %v4191, %v4193
        %v4195 = vrot.slane %v4076, %v4194
        %v4197 = vunpack.c.l.s4 1983009808
        %v4198 = vunpack.c.0.s8 %v4197
        %v4199 = vlaneseq
        %v4200 = vshrl.u32 %v4199, 7
        %v4201 = vsub.s32 %v4198, %v4200
        %v4202 = vrot.slane %v4077, %v4201
        %v4204 = vunpack.c.l.s4 1983009808
        %v4205 = vunpack.c.0.s8 %v4204
        %v4206 = vlaneseq
        %v4207 = vshrl.u32 %v4206, 7
        %v4208 = vsub.s32 %v4205, %v4207
        %v4209 = vrot.slane %v4078, %v4208
        %v4211 = vunpack.c.l.s4 1983009808
        %v4212 = vunpack.c.0.s8 %v4211
        %v4213 = vlaneseq
        %v4214 = vshrl.u32 %v4213, 7
        %v4215 = vsub.s32 %v4212, %v4214
        %v4216 = vrot.slane %v4079, %v4215
        %v4218 = vunpack.c.l.s4 1983009808
        %v4219 = vunpack.c.0.s8 %v4218
        %v4220 = vlaneseq
        %v4221 = vshrl.u32 %v4220, 7
        %v4222 = vsub.s32 %v4219, %v4221
        %v4223 = vrot.slane %v4080, %v4222
        %v4225 = vunpack.c.l.s4 1983009808
        %v4226 = vunpack.c.0.s8 %v4225
        %v4227 = vlaneseq
        %v4228 = vshrl.u32 %v4227, 7
        %v4229 = vsub.s32 %v4226, %v4228
        %v4230 = vrot.slane %v4081, %v4229
        %v4232 = vunpack.c.l.s4 1983009808
        %v4233 = vunpack.c.0.s8 %v4232
        %v4234 = vlaneseq
        %v4235 = vshrl.u32 %v4234, 7
        %v4236 = vsub.s32 %v4233, %v4235
        %v4237 = vrot.slane %v4082, %v4236
        %v4239 = vunpack.c.l.s4 1983009808
        %v4240 = vunpack.c.0.s8 %v4239
        %v4241 = vlaneseq
        %v4242 = vshrl.u32 %v4241, 7
        %v4243 = vsub.s32 %v4240, %v4242
        %v4244 = vrot.slane %v4083, %v4243
        %v4246 = vunpack.c.l.s4 1983009808
        %v4247 = vunpack.c.0.s8 %v4246
        %v4248 = vlaneseq
        %v4249 = vshrl.u32 %v4248, 7
        %v4250 = vsub.s32 %v4247, %v4249
        %v4251 = vrot.slane %v4084, %v4250
        %v4252 = vunpack.c.l.b16 %v4146
        %v4253 = vunpack.c.l.b16 %v4153
        %v4254 = vunpack.c.l.b16 %v4160
        %v4255 = vunpack.c.l.b16 %v4167
        %v4256 = vunpack.c.l.b16 %v4174
        %v4257 = vunpack.c.l.b16 %v4181
        %v4258 = vunpack.c.l.b16 %v4188
        %v4259 = vunpack.c.l.b16 %v4195
        %v4260 = vunpack.c.l.b16 %v4202
        %v4261 = vunpack.c.l.b16 %v4209
        %v4262 = vunpack.c.l.b16 %v4216
        %v4263 = vunpack.c.l.b16 %v4223
        %v4264 = vunpack.c.l.b16 %v4230
        %v4265 = vunpack.c.l.b16 %v4237
        %v4266 = vunpack.c.l.b16 %v4244
        %v4267 = vunpack.c.l.b16 %v4251
        %v4268 = vrot.slane %v4253, 7
        %v4269 = vsel %vm2580, %v4268, %v4252
        %v4270 = vrot.slane %v4254, 6
        %v4271 = vsel %vm2583, %v4270, %v4269
        %v4272 = vrot.slane %v4255, 5
        %v4273 = vsel %vm2586, %v4272, %v4271
        %v4274 = vrot.slane %v4256, 4
        %v4275 = vsel %vm2589, %v4274, %v4273
        %v4276 = vrot.slane %v4257, 3
        %v4277 = vsel %vm2592, %v4276, %v4275
        %v4278 = vrot.slane %v4258, 2
        %v4279 = vsel %vm2595, %v4278, %v4277
        %v4280 = vrot.slane %v4259, 1
        %v4281 = vsel %vm2598, %v4280, %v4279
        %v4282 = vrot.slane %v4261, 7
        %v4283 = vsel %vm2580, %v4282, %v4260
        %v4284 = vrot.slane %v4262, 6
        %v4285 = vsel %vm2583, %v4284, %v4283
        %v4286 = vrot.slane %v4263, 5
        %v4287 = vsel %vm2586, %v4286, %v4285
        %v4288 = vrot.slane %v4264, 4
        %v4289 = vsel %vm2589, %v4288, %v4287
        %v4290 = vrot.slane %v4265, 3
        %v4291 = vsel %vm2592, %v4290, %v4289
        %v4292 = vrot.slane %v4266, 2
        %v4293 = vsel %vm2595, %v4292, %v4291
        %v4294 = vrot.slane %v4267, 1
        %v4295 = vsel %vm2598, %v4294, %v4293
        %v4296 = vpack.c.b16 %v4295, %v4281
        %v4298 = vsel %vm2774, %v4123, 0
        %v4301 = vsel %vm2774, %v4296, 0
        %4303 = vmatprep.subr.bf16.mxu0 0
        %4304 = vmatpush1.bf16.xpose.msra.mxu0 %v4301
        %4305 = vmatprep.subr.bf16.mxu0 0
        %4306 = vmatpush1.bf16.xpose.msra.mxu0 0
        %4307 = vmatprep.subr.bf16.mxu0 0
        %4308 = vmatpush1.bf16.xpose.msra.mxu0 0
        %4309 = vmatprep.subr.bf16.mxu0 0
        %4310 = vmatpush1.bf16.xpose.msra.mxu0 0
        %4311 = vmatprep.subr.bf16.mxu0 0
        %4312 = vmatpush1.bf16.xpose.msra.mxu0 0
        %4313 = vmatprep.subr.bf16.mxu0 0
        %4314 = vmatpush1.bf16.xpose.msra.mxu0 0
        %4315 = vmatprep.subr.bf16.mxu0 0
        %4316 = vmatpush1.bf16.xpose.msra.mxu0 0
        %4317 = vmatprep.subr.bf16.mxu0 0
        %4318 = vmatpush1.bf16.xpose.msra.mxu0 0
        %4319 = vmatprep.subr.bf16.mxu0 0
        %4320 = vmatpush1.bf16.xpose.msra.mxu0 0
        %4321 = vmatprep.subr.bf16.mxu0 0
        %4322 = vmatpush1.bf16.xpose.msra.mxu0 0
        %4323 = vmatprep.subr.bf16.mxu0 0
        %4324 = vmatpush1.bf16.xpose.msra.mxu0 0
        %4325 = vmatprep.subr.bf16.mxu0 0
        %4326 = vmatpush1.bf16.xpose.msra.mxu0 0
        %4327 = vmatprep.subr.bf16.mxu0 0
        %4328 = vmatpush1.bf16.xpose.msra.mxu0 0
        %4329 = vmatprep.subr.bf16.mxu0 0
        %4330 = vmatpush1.bf16.xpose.msra.mxu0 0
        %4331 = vmatprep.subr.bf16.mxu0 0
        %4332 = vmatpush1.bf16.xpose.msra.mxu0 0
        %4333 = vmatprep.subr.bf16.mxu0 0
        %4334 = vmatpush1.bf16.xpose.msra.mxu0 0
        %4335 = vmatprep.mubr.bf16.mxu0 0
        %4336 = vmatmul.mubr.bf16.gmra.mrb[0].mxu0 %v4298
        %v4337 = vpop.f32.mrb[0].mxu0
        %v4338 = vadd.f32 0.0, %v4337
        %v4339 = vpop.f32.mrb[0].mxu0
        %v4340 = vpop.f32.mrb[0].mxu0
        %v4341 = vpop.f32.mrb[0].mxu0
        %4342 = vdwg.mxu0
        %v4343 = vsel %vm2821, %v4338, -inf
        %4344 = vmax.xlane.f32.xlu0 %v4343
        %v4345 = vpop.xlane.xlu0 %4344
        %v4346 = vsub.f32 %v4338, %v4345
        %v4347 = vmul.f32 %v4346, 1.442695
        %v4348 = vpow.pop %v4347
        %v4349 = vsel %vm2821, %v4348, 0.0
        %4350 = vadd.xlane.f32.xlu0 %v4349
        %v4351 = vpop.xlane.xlu0 %4350
        %v4352 = vrcp.pop %v4351
        %v4353 = vmul.f32 %v4348, %v4352
        %v4354 = vpack.c.bf16 %v4353, %v4353
        %v4372 = vunpack.c.l.s4 1983009808
        %v4373 = vunpack.c.0.s8 %v4372
        %v4374 = vlaneseq
        %v4375 = vshrl.u32 %v4374, 7
        %v4376 = vsub.s32 %v4373, %v4375
        %v4377 = vrot.slane %v4085, %v4376
        %v4379 = vunpack.c.l.s4 1983009808
        %v4380 = vunpack.c.0.s8 %v4379
        %v4381 = vlaneseq
        %v4382 = vshrl.u32 %v4381, 7
        %v4383 = vsub.s32 %v4380, %v4382
        %v4384 = vrot.slane %v4086, %v4383
        %v4386 = vunpack.c.l.s4 1983009808
        %v4387 = vunpack.c.0.s8 %v4386
        %v4388 = vlaneseq
        %v4389 = vshrl.u32 %v4388, 7
        %v4390 = vsub.s32 %v4387, %v4389
        %v4391 = vrot.slane %v4087, %v4390
        %v4393 = vunpack.c.l.s4 1983009808
        %v4394 = vunpack.c.0.s8 %v4393
        %v4395 = vlaneseq
        %v4396 = vshrl.u32 %v4395, 7
        %v4397 = vsub.s32 %v4394, %v4396
        %v4398 = vrot.slane %v4088, %v4397
        %v4400 = vunpack.c.l.s4 1983009808
        %v4401 = vunpack.c.0.s8 %v4400
        %v4402 = vlaneseq
        %v4403 = vshrl.u32 %v4402, 7
        %v4404 = vsub.s32 %v4401, %v4403
        %v4405 = vrot.slane %v4089, %v4404
        %v4407 = vunpack.c.l.s4 1983009808
        %v4408 = vunpack.c.0.s8 %v4407
        %v4409 = vlaneseq
        %v4410 = vshrl.u32 %v4409, 7
        %v4411 = vsub.s32 %v4408, %v4410
        %v4412 = vrot.slane %v4090, %v4411
        %v4414 = vunpack.c.l.s4 1983009808
        %v4415 = vunpack.c.0.s8 %v4414
        %v4416 = vlaneseq
        %v4417 = vshrl.u32 %v4416, 7
        %v4418 = vsub.s32 %v4415, %v4417
        %v4419 = vrot.slane %v4091, %v4418
        %v4421 = vunpack.c.l.s4 1983009808
        %v4422 = vunpack.c.0.s8 %v4421
        %v4423 = vlaneseq
        %v4424 = vshrl.u32 %v4423, 7
        %v4425 = vsub.s32 %v4422, %v4424
        %v4426 = vrot.slane %v4092, %v4425
        %v4428 = vunpack.c.l.s4 1983009808
        %v4429 = vunpack.c.0.s8 %v4428
        %v4430 = vlaneseq
        %v4431 = vshrl.u32 %v4430, 7
        %v4432 = vsub.s32 %v4429, %v4431
        %v4433 = vrot.slane %v4093, %v4432
        %v4435 = vunpack.c.l.s4 1983009808
        %v4436 = vunpack.c.0.s8 %v4435
        %v4437 = vlaneseq
        %v4438 = vshrl.u32 %v4437, 7
        %v4439 = vsub.s32 %v4436, %v4438
        %v4440 = vrot.slane %v4094, %v4439
        %v4442 = vunpack.c.l.s4 1983009808
        %v4443 = vunpack.c.0.s8 %v4442
        %v4444 = vlaneseq
        %v4445 = vshrl.u32 %v4444, 7
        %v4446 = vsub.s32 %v4443, %v4445
        %v4447 = vrot.slane %v4095, %v4446
        %v4449 = vunpack.c.l.s4 1983009808
        %v4450 = vunpack.c.0.s8 %v4449
        %v4451 = vlaneseq
        %v4452 = vshrl.u32 %v4451, 7
        %v4453 = vsub.s32 %v4450, %v4452
        %v4454 = vrot.slane %v4096, %v4453
        %v4456 = vunpack.c.l.s4 1983009808
        %v4457 = vunpack.c.0.s8 %v4456
        %v4458 = vlaneseq
        %v4459 = vshrl.u32 %v4458, 7
        %v4460 = vsub.s32 %v4457, %v4459
        %v4461 = vrot.slane %v4097, %v4460
        %v4463 = vunpack.c.l.s4 1983009808
        %v4464 = vunpack.c.0.s8 %v4463
        %v4465 = vlaneseq
        %v4466 = vshrl.u32 %v4465, 7
        %v4467 = vsub.s32 %v4464, %v4466
        %v4468 = vrot.slane %v4098, %v4467
        %v4470 = vunpack.c.l.s4 1983009808
        %v4471 = vunpack.c.0.s8 %v4470
        %v4472 = vlaneseq
        %v4473 = vshrl.u32 %v4472, 7
        %v4474 = vsub.s32 %v4471, %v4473
        %v4475 = vrot.slane %v4099, %v4474
        %v4477 = vunpack.c.l.s4 1983009808
        %v4478 = vunpack.c.0.s8 %v4477
        %v4479 = vlaneseq
        %v4480 = vshrl.u32 %v4479, 7
        %v4481 = vsub.s32 %v4478, %v4480
        %v4482 = vrot.slane %v4100, %v4481
        %v4483 = vunpack.c.l.b16 %v4377
        %v4484 = vunpack.c.l.b16 %v4384
        %v4485 = vunpack.c.l.b16 %v4391
        %v4486 = vunpack.c.l.b16 %v4398
        %v4487 = vunpack.c.l.b16 %v4405
        %v4488 = vunpack.c.l.b16 %v4412
        %v4489 = vunpack.c.l.b16 %v4419
        %v4490 = vunpack.c.l.b16 %v4426
        %v4491 = vunpack.c.l.b16 %v4433
        %v4492 = vunpack.c.l.b16 %v4440
        %v4493 = vunpack.c.l.b16 %v4447
        %v4494 = vunpack.c.l.b16 %v4454
        %v4495 = vunpack.c.l.b16 %v4461
        %v4496 = vunpack.c.l.b16 %v4468
        %v4497 = vunpack.c.l.b16 %v4475
        %v4498 = vunpack.c.l.b16 %v4482
        %v4499 = vrot.slane %v4484, 7
        %v4500 = vsel %vm2580, %v4499, %v4483
        %v4501 = vrot.slane %v4485, 6
        %v4502 = vsel %vm2583, %v4501, %v4500
        %v4503 = vrot.slane %v4486, 5
        %v4504 = vsel %vm2586, %v4503, %v4502
        %v4505 = vrot.slane %v4487, 4
        %v4506 = vsel %vm2589, %v4505, %v4504
        %v4507 = vrot.slane %v4488, 3
        %v4508 = vsel %vm2592, %v4507, %v4506
        %v4509 = vrot.slane %v4489, 2
        %v4510 = vsel %vm2595, %v4509, %v4508
        %v4511 = vrot.slane %v4490, 1
        %v4512 = vsel %vm2598, %v4511, %v4510
        %v4513 = vrot.slane %v4492, 7
        %v4514 = vsel %vm2580, %v4513, %v4491
        %v4515 = vrot.slane %v4493, 6
        %v4516 = vsel %vm2583, %v4515, %v4514
        %v4517 = vrot.slane %v4494, 5
        %v4518 = vsel %vm2586, %v4517, %v4516
        %v4519 = vrot.slane %v4495, 4
        %v4520 = vsel %vm2589, %v4519, %v4518
        %v4521 = vrot.slane %v4496, 3
        %v4522 = vsel %vm2592, %v4521, %v4520
        %v4523 = vrot.slane %v4497, 2
        %v4524 = vsel %vm2595, %v4523, %v4522
        %v4525 = vrot.slane %v4498, 1
        %v4526 = vsel %vm2598, %v4525, %v4524
        %v4527 = vpack.c.b16 %v4526, %v4512
        %v4530 = vsel %vm2821, %v4354, 0
        %4532 = vmatprep.subr.bf16.mxu0 0
        %4533 = vmatpush1.bf16.msra.mxu0 %v4527
        %4534 = vmatprep.subr.bf16.mxu0 0
        %4535 = vmatpush1.bf16.msra.mxu0 0
        %4536 = vmatprep.subr.bf16.mxu0 0
        %4537 = vmatpush1.bf16.msra.mxu0 0
        %4538 = vmatprep.subr.bf16.mxu0 0
        %4539 = vmatpush1.bf16.msra.mxu0 0
        %4540 = vmatprep.subr.bf16.mxu0 0
        %4541 = vmatpush1.bf16.msra.mxu0 0
        %4542 = vmatprep.subr.bf16.mxu0 0
        %4543 = vmatpush1.bf16.msra.mxu0 0
        %4544 = vmatprep.subr.bf16.mxu0 0
        %4545 = vmatpush1.bf16.msra.mxu0 0
        %4546 = vmatprep.subr.bf16.mxu0 0
        %4547 = vmatpush1.bf16.msra.mxu0 0
        %4548 = vmatprep.subr.bf16.mxu0 0
        %4549 = vmatpush1.bf16.msra.mxu0 0
        %4550 = vmatprep.subr.bf16.mxu0 0
        %4551 = vmatpush1.bf16.msra.mxu0 0
        %4552 = vmatprep.subr.bf16.mxu0 0
        %4553 = vmatpush1.bf16.msra.mxu0 0
        %4554 = vmatprep.subr.bf16.mxu0 0
        %4555 = vmatpush1.bf16.msra.mxu0 0
        %4556 = vmatprep.subr.bf16.mxu0 0
        %4557 = vmatpush1.bf16.msra.mxu0 0
        %4558 = vmatprep.subr.bf16.mxu0 0
        %4559 = vmatpush1.bf16.msra.mxu0 0
        %4560 = vmatprep.subr.bf16.mxu0 0
        %4561 = vmatpush1.bf16.msra.mxu0 0
        %4562 = vmatprep.subr.bf16.mxu0 0
        %4563 = vmatpush1.bf16.msra.mxu0 0
        %4564 = vmatprep.mubr.bf16.mxu0 0
        %4565 = vmatmul.mubr.bf16.gmra.mrb[0].mxu0 %v4530
        %v4566 = vpop.f32.mrb[0].mxu0
        %v4567 = vadd.f32 0.0, %v4566
        %v4568 = vpop.f32.mrb[0].mxu0
        %v4569 = vpop.f32.mrb[0].mxu0
        %v4570 = vpop.f32.mrb[0].mxu0
        %4571 = vdwg.mxu0
        %v4572 = vrot.slane %v4101, 1
        %v4573 = vsel %vm2580, %v4102, %v4572
        %v4574 = vrot.slane %v4103, 7
        %v4575 = vsel %vm2583, %v4574, %v4573
        %v4576 = vrot.slane %v4104, 6
        %v4577 = vsel %vm2586, %v4576, %v4575
        %v4578 = vrot.slane %v4105, 5
        %v4579 = vsel %vm2589, %v4578, %v4577
        %v4580 = vrot.slane %v4106, 4
        %v4581 = vsel %vm2592, %v4580, %v4579
        %v4582 = vrot.slane %v4107, 3
        %v4583 = vsel %vm2595, %v4582, %v4581
        %v4584 = vrot.slane %v4108, 2
        %v4585 = vsel %vm2598, %v4584, %v4583
        %v4586 = vpack.c.b16 %v4585, %v4585
        %v4587 = vrot.slane %v4252, 1
        %v4588 = vsel %vm2580, %v4253, %v4587
        %v4589 = vrot.slane %v4254, 7
        %v4590 = vsel %vm2583, %v4589, %v4588
        %v4591 = vrot.slane %v4255, 6
        %v4592 = vsel %vm2586, %v4591, %v4590
        %v4593 = vrot.slane %v4256, 5
        %v4594 = vsel %vm2589, %v4593, %v4592
        %v4595 = vrot.slane %v4257, 4
        %v4596 = vsel %vm2592, %v4595, %v4594
        %v4597 = vrot.slane %v4258, 3
        %v4598 = vsel %vm2595, %v4597, %v4596
        %v4599 = vrot.slane %v4259, 2
        %v4600 = vsel %vm2598, %v4599, %v4598
        %v4601 = vrot.slane %v4260, 1
        %v4602 = vsel %vm2580, %v4261, %v4601
        %v4603 = vrot.slane %v4262, 7
        %v4604 = vsel %vm2583, %v4603, %v4602
        %v4605 = vrot.slane %v4263, 6
        %v4606 = vsel %vm2586, %v4605, %v4604
        %v4607 = vrot.slane %v4264, 5
        %v4608 = vsel %vm2589, %v4607, %v4606
        %v4609 = vrot.slane %v4265, 4
        %v4610 = vsel %vm2592, %v4609, %v4608
        %v4611 = vrot.slane %v4266, 3
        %v4612 = vsel %vm2595, %v4611, %v4610
        %v4613 = vrot.slane %v4267, 2
        %v4614 = vsel %vm2598, %v4613, %v4612
        %v4615 = vpack.c.b16 %v4614, %v4600
        %v4617 = vsel %vm2774, %v4586, 0
        %v4620 = vsel %vm2774, %v4615, 0
        %4622 = vmatprep.subr.bf16.mxu0 0
        %4623 = vmatpush1.bf16.xpose.msra.mxu0 %v4620
        %4624 = vmatprep.subr.bf16.mxu0 0
        %4625 = vmatpush1.bf16.xpose.msra.mxu0 0
        %4626 = vmatprep.subr.bf16.mxu0 0
        %4627 = vmatpush1.bf16.xpose.msra.mxu0 0
        %4628 = vmatprep.subr.bf16.mxu0 0
        %4629 = vmatpush1.bf16.xpose.msra.mxu0 0
        %4630 = vmatprep.subr.bf16.mxu0 0
        %4631 = vmatpush1.bf16.xpose.msra.mxu0 0
        %4632 = vmatprep.subr.bf16.mxu0 0
        %4633 = vmatpush1.bf16.xpose.msra.mxu0 0
        %4634 = vmatprep.subr.bf16.mxu0 0
        %4635 = vmatpush1.bf16.xpose.msra.mxu0 0
        %4636 = vmatprep.subr.bf16.mxu0 0
        %4637 = vmatpush1.bf16.xpose.msra.mxu0 0
        %4638 = vmatprep.subr.bf16.mxu0 0
        %4639 = vmatpush1.bf16.xpose.msra.mxu0 0
        %4640 = vmatprep.subr.bf16.mxu0 0
        %4641 = vmatpush1.bf16.xpose.msra.mxu0 0
        %4642 = vmatprep.subr.bf16.mxu0 0
        %4643 = vmatpush1.bf16.xpose.msra.mxu0 0
        %4644 = vmatprep.subr.bf16.mxu0 0
        %4645 = vmatpush1.bf16.xpose.msra.mxu0 0
        %4646 = vmatprep.subr.bf16.mxu0 0
        %4647 = vmatpush1.bf16.xpose.msra.mxu0 0
        %4648 = vmatprep.subr.bf16.mxu0 0
        %4649 = vmatpush1.bf16.xpose.msra.mxu0 0
        %4650 = vmatprep.subr.bf16.mxu0 0
        %4651 = vmatpush1.bf16.xpose.msra.mxu0 0
        %4652 = vmatprep.subr.bf16.mxu0 0
        %4653 = vmatpush1.bf16.xpose.msra.mxu0 0
        %4654 = vmatprep.mubr.bf16.mxu0 0
        %4655 = vmatmul.mubr.bf16.gmra.mrb[0].mxu0 %v4617
        %v4656 = vpop.f32.mrb[0].mxu0
        %v4657 = vadd.f32 0.0, %v4656
        %v4658 = vpop.f32.mrb[0].mxu0
        %v4659 = vpop.f32.mrb[0].mxu0
        %v4660 = vpop.f32.mrb[0].mxu0
        %4661 = vdwg.mxu0
        %v4662 = vsel %vm2821, %v4657, -inf
        %4663 = vmax.xlane.f32.xlu0 %v4662
        %v4664 = vpop.xlane.xlu0 %4663
        %v4665 = vsub.f32 %v4657, %v4664
        %v4666 = vmul.f32 %v4665, 1.442695
        %v4667 = vpow.pop %v4666
        %v4668 = vsel %vm2821, %v4667, 0.0
        %4669 = vadd.xlane.f32.xlu0 %v4668
        %v4670 = vpop.xlane.xlu0 %4669
        %v4671 = vrcp.pop %v4670
        %v4672 = vmul.f32 %v4667, %v4671
        %v4673 = vpack.c.bf16 %v4672, %v4672
        %v4674 = vrot.slane %v4483, 1
        %v4675 = vsel %vm2580, %v4484, %v4674
        %v4676 = vrot.slane %v4485, 7
        %v4677 = vsel %vm2583, %v4676, %v4675
        %v4678 = vrot.slane %v4486, 6
        %v4679 = vsel %vm2586, %v4678, %v4677
        %v4680 = vrot.slane %v4487, 5
        %v4681 = vsel %vm2589, %v4680, %v4679
        %v4682 = vrot.slane %v4488, 4
        %v4683 = vsel %vm2592, %v4682, %v4681
        %v4684 = vrot.slane %v4489, 3
        %v4685 = vsel %vm2595, %v4684, %v4683
        %v4686 = vrot.slane %v4490, 2
        %v4687 = vsel %vm2598, %v4686, %v4685
        %v4688 = vrot.slane %v4491, 1
        %v4689 = vsel %vm2580, %v4492, %v4688
        %v4690 = vrot.slane %v4493, 7
        %v4691 = vsel %vm2583, %v4690, %v4689
        %v4692 = vrot.slane %v4494, 6
        %v4693 = vsel %vm2586, %v4692, %v4691
        %v4694 = vrot.slane %v4495, 5
        %v4695 = vsel %vm2589, %v4694, %v4693
        %v4696 = vrot.slane %v4496, 4
        %v4697 = vsel %vm2592, %v4696, %v4695
        %v4698 = vrot.slane %v4497, 3
        %v4699 = vsel %vm2595, %v4698, %v4697
        %v4700 = vrot.slane %v4498, 2
        %v4701 = vsel %vm2598, %v4700, %v4699
        %v4702 = vpack.c.b16 %v4701, %v4687
        %v4705 = vsel %vm2821, %v4673, 0
        %4707 = vmatprep.subr.bf16.mxu0 0
        %4708 = vmatpush1.bf16.msra.mxu0 %v4702
        %4709 = vmatprep.subr.bf16.mxu0 0
        %4710 = vmatpush1.bf16.msra.mxu0 0
        %4711 = vmatprep.subr.bf16.mxu0 0
        %4712 = vmatpush1.bf16.msra.mxu0 0
        %4713 = vmatprep.subr.bf16.mxu0 0
        %4714 = vmatpush1.bf16.msra.mxu0 0
        %4715 = vmatprep.subr.bf16.mxu0 0
        %4716 = vmatpush1.bf16.msra.mxu0 0
        %4717 = vmatprep.subr.bf16.mxu0 0
        %4718 = vmatpush1.bf16.msra.mxu0 0
        %4719 = vmatprep.subr.bf16.mxu0 0
        %4720 = vmatpush1.bf16.msra.mxu0 0
        %4721 = vmatprep.subr.bf16.mxu0 0
        %4722 = vmatpush1.bf16.msra.mxu0 0
        %4723 = vmatprep.subr.bf16.mxu0 0
        %4724 = vmatpush1.bf16.msra.mxu0 0
        %4725 = vmatprep.subr.bf16.mxu0 0
        %4726 = vmatpush1.bf16.msra.mxu0 0
        %4727 = vmatprep.subr.bf16.mxu0 0
        %4728 = vmatpush1.bf16.msra.mxu0 0
        %4729 = vmatprep.subr.bf16.mxu0 0
        %4730 = vmatpush1.bf16.msra.mxu0 0
        %4731 = vmatprep.subr.bf16.mxu0 0
        %4732 = vmatpush1.bf16.msra.mxu0 0
        %4733 = vmatprep.subr.bf16.mxu0 0
        %4734 = vmatpush1.bf16.msra.mxu0 0
        %4735 = vmatprep.subr.bf16.mxu0 0
        %4736 = vmatpush1.bf16.msra.mxu0 0
        %4737 = vmatprep.subr.bf16.mxu0 0
        %4738 = vmatpush1.bf16.msra.mxu0 0
        %4739 = vmatprep.mubr.bf16.mxu0 0
        %4740 = vmatmul.mubr.bf16.gmra.mrb[0].mxu0 %v4705
        %v4741 = vpop.f32.mrb[0].mxu0
        %v4742 = vadd.f32 0.0, %v4741
        %v4743 = vpop.f32.mrb[0].mxu0
        %v4744 = vpop.f32.mrb[0].mxu0
        %v4745 = vpop.f32.mrb[0].mxu0
        %4746 = vdwg.mxu0
        %v4747 = vrot.slane %v4101, 2
        %v4748 = vrot.slane %v4102, 1
        %v4749 = vsel %vm2580, %v4748, %v4747
        %v4750 = vsel %vm2583, %v4103, %v4749
        %v4751 = vrot.slane %v4104, 7
        %v4752 = vsel %vm2586, %v4751, %v4750
        %v4753 = vrot.slane %v4105, 6
        %v4754 = vsel %vm2589, %v4753, %v4752
        %v4755 = vrot.slane %v4106, 5
        %v4756 = vsel %vm2592, %v4755, %v4754
        %v4757 = vrot.slane %v4107, 4
        %v4758 = vsel %vm2595, %v4757, %v4756
        %v4759 = vrot.slane %v4108, 3
        %v4760 = vsel %vm2598, %v4759, %v4758
        %v4761 = vpack.c.b16 %v4760, %v4760
        %v4762 = vrot.slane %v4252, 2
        %v4763 = vrot.slane %v4253, 1
        %v4764 = vsel %vm2580, %v4763, %v4762
        %v4765 = vsel %vm2583, %v4254, %v4764
        %v4766 = vrot.slane %v4255, 7
        %v4767 = vsel %vm2586, %v4766, %v4765
        %v4768 = vrot.slane %v4256, 6
        %v4769 = vsel %vm2589, %v4768, %v4767
        %v4770 = vrot.slane %v4257, 5
        %v4771 = vsel %vm2592, %v4770, %v4769
        %v4772 = vrot.slane %v4258, 4
        %v4773 = vsel %vm2595, %v4772, %v4771
        %v4774 = vrot.slane %v4259, 3
        %v4775 = vsel %vm2598, %v4774, %v4773
        %v4776 = vrot.slane %v4260, 2
        %v4777 = vrot.slane %v4261, 1
        %v4778 = vsel %vm2580, %v4777, %v4776
        %v4779 = vsel %vm2583, %v4262, %v4778
        %v4780 = vrot.slane %v4263, 7
        %v4781 = vsel %vm2586, %v4780, %v4779
        %v4782 = vrot.slane %v4264, 6
        %v4783 = vsel %vm2589, %v4782, %v4781
        %v4784 = vrot.slane %v4265, 5
        %v4785 = vsel %vm2592, %v4784, %v4783
        %v4786 = vrot.slane %v4266, 4
        %v4787 = vsel %vm2595, %v4786, %v4785
        %v4788 = vrot.slane %v4267, 3
        %v4789 = vsel %vm2598, %v4788, %v4787
        %v4790 = vpack.c.b16 %v4789, %v4775
        %v4792 = vsel %vm2774, %v4761, 0
        %v4795 = vsel %vm2774, %v4790, 0
        %4797 = vmatprep.subr.bf16.mxu0 0
        %4798 = vmatpush1.bf16.xpose.msra.mxu0 %v4795
        %4799 = vmatprep.subr.bf16.mxu0 0
        %4800 = vmatpush1.bf16.xpose.msra.mxu0 0
        %4801 = vmatprep.subr.bf16.mxu0 0
        %4802 = vmatpush1.bf16.xpose.msra.mxu0 0
        %4803 = vmatprep.subr.bf16.mxu0 0
        %4804 = vmatpush1.bf16.xpose.msra.mxu0 0
        %4805 = vmatprep.subr.bf16.mxu0 0
        %4806 = vmatpush1.bf16.xpose.msra.mxu0 0
        %4807 = vmatprep.subr.bf16.mxu0 0
        %4808 = vmatpush1.bf16.xpose.msra.mxu0 0
        %4809 = vmatprep.subr.bf16.mxu0 0
        %4810 = vmatpush1.bf16.xpose.msra.mxu0 0
        %4811 = vmatprep.subr.bf16.mxu0 0
        %4812 = vmatpush1.bf16.xpose.msra.mxu0 0
        %4813 = vmatprep.subr.bf16.mxu0 0
        %4814 = vmatpush1.bf16.xpose.msra.mxu0 0
        %4815 = vmatprep.subr.bf16.mxu0 0
        %4816 = vmatpush1.bf16.xpose.msra.mxu0 0
        %4817 = vmatprep.subr.bf16.mxu0 0
        %4818 = vmatpush1.bf16.xpose.msra.mxu0 0
        %4819 = vmatprep.subr.bf16.mxu0 0
        %4820 = vmatpush1.bf16.xpose.msra.mxu0 0
        %4821 = vmatprep.subr.bf16.mxu0 0
        %4822 = vmatpush1.bf16.xpose.msra.mxu0 0
        %4823 = vmatprep.subr.bf16.mxu0 0
        %4824 = vmatpush1.bf16.xpose.msra.mxu0 0
        %4825 = vmatprep.subr.bf16.mxu0 0
        %4826 = vmatpush1.bf16.xpose.msra.mxu0 0
        %4827 = vmatprep.subr.bf16.mxu0 0
        %4828 = vmatpush1.bf16.xpose.msra.mxu0 0
        %4829 = vmatprep.mubr.bf16.mxu0 0
        %4830 = vmatmul.mubr.bf16.gmra.mrb[0].mxu0 %v4792
        %v4831 = vpop.f32.mrb[0].mxu0
        %v4832 = vadd.f32 0.0, %v4831
        %v4833 = vpop.f32.mrb[0].mxu0
        %v4834 = vpop.f32.mrb[0].mxu0
        %v4835 = vpop.f32.mrb[0].mxu0
        %4836 = vdwg.mxu0
        %v4837 = vsel %vm2821, %v4832, -inf
        %4838 = vmax.xlane.f32.xlu0 %v4837
        %v4839 = vpop.xlane.xlu0 %4838
        %v4840 = vsub.f32 %v4832, %v4839
        %v4841 = vmul.f32 %v4840, 1.442695
        %v4842 = vpow.pop %v4841
        %v4843 = vsel %vm2821, %v4842, 0.0
        %4844 = vadd.xlane.f32.xlu0 %v4843
        %v4845 = vpop.xlane.xlu0 %4844
        %v4846 = vrcp.pop %v4845
        %v4847 = vmul.f32 %v4842, %v4846
        %v4848 = vpack.c.bf16 %v4847, %v4847
        %v4849 = vrot.slane %v4483, 2
        %v4850 = vrot.slane %v4484, 1
        %v4851 = vsel %vm2580, %v4850, %v4849
        %v4852 = vsel %vm2583, %v4485, %v4851
        %v4853 = vrot.slane %v4486, 7
        %v4854 = vsel %vm2586, %v4853, %v4852
        %v4855 = vrot.slane %v4487, 6
        %v4856 = vsel %vm2589, %v4855, %v4854
        %v4857 = vrot.slane %v4488, 5
        %v4858 = vsel %vm2592, %v4857, %v4856
        %v4859 = vrot.slane %v4489, 4
        %v4860 = vsel %vm2595, %v4859, %v4858
        %v4861 = vrot.slane %v4490, 3
        %v4862 = vsel %vm2598, %v4861, %v4860
        %v4863 = vrot.slane %v4491, 2
        %v4864 = vrot.slane %v4492, 1
        %v4865 = vsel %vm2580, %v4864, %v4863
        %v4866 = vsel %vm2583, %v4493, %v4865
        %v4867 = vrot.slane %v4494, 7
        %v4868 = vsel %vm2586, %v4867, %v4866
        %v4869 = vrot.slane %v4495, 6
        %v4870 = vsel %vm2589, %v4869, %v4868
        %v4871 = vrot.slane %v4496, 5
        %v4872 = vsel %vm2592, %v4871, %v4870
        %v4873 = vrot.slane %v4497, 4
        %v4874 = vsel %vm2595, %v4873, %v4872
        %v4875 = vrot.slane %v4498, 3
        %v4876 = vsel %vm2598, %v4875, %v4874
        %v4877 = vpack.c.b16 %v4876, %v4862
        %v4880 = vsel %vm2821, %v4848, 0
        %4882 = vmatprep.subr.bf16.mxu0 0
        %4883 = vmatpush1.bf16.msra.mxu0 %v4877
        %4884 = vmatprep.subr.bf16.mxu0 0
        %4885 = vmatpush1.bf16.msra.mxu0 0
        %4886 = vmatprep.subr.bf16.mxu0 0
        %4887 = vmatpush1.bf16.msra.mxu0 0
        %4888 = vmatprep.subr.bf16.mxu0 0
        %4889 = vmatpush1.bf16.msra.mxu0 0
        %4890 = vmatprep.subr.bf16.mxu0 0
        %4891 = vmatpush1.bf16.msra.mxu0 0
        %4892 = vmatprep.subr.bf16.mxu0 0
        %4893 = vmatpush1.bf16.msra.mxu0 0
        %4894 = vmatprep.subr.bf16.mxu0 0
        %4895 = vmatpush1.bf16.msra.mxu0 0
        %4896 = vmatprep.subr.bf16.mxu0 0
        %4897 = vmatpush1.bf16.msra.mxu0 0
        %4898 = vmatprep.subr.bf16.mxu0 0
        %4899 = vmatpush1.bf16.msra.mxu0 0
        %4900 = vmatprep.subr.bf16.mxu0 0
        %4901 = vmatpush1.bf16.msra.mxu0 0
        %4902 = vmatprep.subr.bf16.mxu0 0
        %4903 = vmatpush1.bf16.msra.mxu0 0
        %4904 = vmatprep.subr.bf16.mxu0 0
        %4905 = vmatpush1.bf16.msra.mxu0 0
        %4906 = vmatprep.subr.bf16.mxu0 0
        %4907 = vmatpush1.bf16.msra.mxu0 0
        %4908 = vmatprep.subr.bf16.mxu0 0
        %4909 = vmatpush1.bf16.msra.mxu0 0
        %4910 = vmatprep.subr.bf16.mxu0 0
        %4911 = vmatpush1.bf16.msra.mxu0 0
        %4912 = vmatprep.subr.bf16.mxu0 0
        %4913 = vmatpush1.bf16.msra.mxu0 0
        %4914 = vmatprep.mubr.bf16.mxu0 0
        %4915 = vmatmul.mubr.bf16.gmra.mrb[0].mxu0 %v4880
        %v4916 = vpop.f32.mrb[0].mxu0
        %v4917 = vadd.f32 0.0, %v4916
        %v4918 = vpop.f32.mrb[0].mxu0
        %v4919 = vpop.f32.mrb[0].mxu0
        %v4920 = vpop.f32.mrb[0].mxu0
        %4921 = vdwg.mxu0
        %v4922 = vrot.slane %v4101, 3
        %v4923 = vrot.slane %v4102, 2
        %v4924 = vsel %vm2580, %v4923, %v4922
        %v4925 = vrot.slane %v4103, 1
        %v4926 = vsel %vm2583, %v4925, %v4924
        %v4927 = vsel %vm2586, %v4104, %v4926
        %v4928 = vrot.slane %v4105, 7
        %v4929 = vsel %vm2589, %v4928, %v4927
        %v4930 = vrot.slane %v4106, 6
        %v4931 = vsel %vm2592, %v4930, %v4929
        %v4932 = vrot.slane %v4107, 5
        %v4933 = vsel %vm2595, %v4932, %v4931
        %v4934 = vrot.slane %v4108, 4
        %v4935 = vsel %vm2598, %v4934, %v4933
        %v4936 = vpack.c.b16 %v4935, %v4935
        %v4937 = vrot.slane %v4252, 3
        %v4938 = vrot.slane %v4253, 2
        %v4939 = vsel %vm2580, %v4938, %v4937
        %v4940 = vrot.slane %v4254, 1
        %v4941 = vsel %vm2583, %v4940, %v4939
        %v4942 = vsel %vm2586, %v4255, %v4941
        %v4943 = vrot.slane %v4256, 7
        %v4944 = vsel %vm2589, %v4943, %v4942
        %v4945 = vrot.slane %v4257, 6
        %v4946 = vsel %vm2592, %v4945, %v4944
        %v4947 = vrot.slane %v4258, 5
        %v4948 = vsel %vm2595, %v4947, %v4946
        %v4949 = vrot.slane %v4259, 4
        %v4950 = vsel %vm2598, %v4949, %v4948
        %v4951 = vrot.slane %v4260, 3
        %v4952 = vrot.slane %v4261, 2
        %v4953 = vsel %vm2580, %v4952, %v4951
        %v4954 = vrot.slane %v4262, 1
        %v4955 = vsel %vm2583, %v4954, %v4953
        %v4956 = vsel %vm2586, %v4263, %v4955
        %v4957 = vrot.slane %v4264, 7
        %v4958 = vsel %vm2589, %v4957, %v4956
        %v4959 = vrot.slane %v4265, 6
        %v4960 = vsel %vm2592, %v4959, %v4958
        %v4961 = vrot.slane %v4266, 5
        %v4962 = vsel %vm2595, %v4961, %v4960
        %v4963 = vrot.slane %v4267, 4
        %v4964 = vsel %vm2598, %v4963, %v4962
        %v4965 = vpack.c.b16 %v4964, %v4950
        %v4967 = vsel %vm2774, %v4936, 0
        %v4970 = vsel %vm2774, %v4965, 0
        %4972 = vmatprep.subr.bf16.mxu0 0
        %4973 = vmatpush1.bf16.xpose.msra.mxu0 %v4970
        %4974 = vmatprep.subr.bf16.mxu0 0
        %4975 = vmatpush1.bf16.xpose.msra.mxu0 0
        %4976 = vmatprep.subr.bf16.mxu0 0
        %4977 = vmatpush1.bf16.xpose.msra.mxu0 0
        %4978 = vmatprep.subr.bf16.mxu0 0
        %4979 = vmatpush1.bf16.xpose.msra.mxu0 0
        %4980 = vmatprep.subr.bf16.mxu0 0
        %4981 = vmatpush1.bf16.xpose.msra.mxu0 0
        %4982 = vmatprep.subr.bf16.mxu0 0
        %4983 = vmatpush1.bf16.xpose.msra.mxu0 0
        %4984 = vmatprep.subr.bf16.mxu0 0
        %4985 = vmatpush1.bf16.xpose.msra.mxu0 0
        %4986 = vmatprep.subr.bf16.mxu0 0
        %4987 = vmatpush1.bf16.xpose.msra.mxu0 0
        %4988 = vmatprep.subr.bf16.mxu0 0
        %4989 = vmatpush1.bf16.xpose.msra.mxu0 0
        %4990 = vmatprep.subr.bf16.mxu0 0
        %4991 = vmatpush1.bf16.xpose.msra.mxu0 0
        %4992 = vmatprep.subr.bf16.mxu0 0
        %4993 = vmatpush1.bf16.xpose.msra.mxu0 0
        %4994 = vmatprep.subr.bf16.mxu0 0
        %4995 = vmatpush1.bf16.xpose.msra.mxu0 0
        %4996 = vmatprep.subr.bf16.mxu0 0
        %4997 = vmatpush1.bf16.xpose.msra.mxu0 0
        %4998 = vmatprep.subr.bf16.mxu0 0
        %4999 = vmatpush1.bf16.xpose.msra.mxu0 0
        %5000 = vmatprep.subr.bf16.mxu0 0
        %5001 = vmatpush1.bf16.xpose.msra.mxu0 0
        %5002 = vmatprep.subr.bf16.mxu0 0
        %5003 = vmatpush1.bf16.xpose.msra.mxu0 0
        %5004 = vmatprep.mubr.bf16.mxu0 0
        %5005 = vmatmul.mubr.bf16.gmra.mrb[0].mxu0 %v4967
        %v5006 = vpop.f32.mrb[0].mxu0
        %v5007 = vadd.f32 0.0, %v5006
        %v5008 = vpop.f32.mrb[0].mxu0
        %v5009 = vpop.f32.mrb[0].mxu0
        %v5010 = vpop.f32.mrb[0].mxu0
        %5011 = vdwg.mxu0
        %v5012 = vsel %vm2821, %v5007, -inf
        %5013 = vmax.xlane.f32.xlu0 %v5012
        %v5014 = vpop.xlane.xlu0 %5013
        %v5015 = vsub.f32 %v5007, %v5014
        %v5016 = vmul.f32 %v5015, 1.442695
        %v5017 = vpow.pop %v5016
        %v5018 = vsel %vm2821, %v5017, 0.0
        %5019 = vadd.xlane.f32.xlu0 %v5018
        %v5020 = vpop.xlane.xlu0 %5019
        %v5021 = vrcp.pop %v5020
        %v5022 = vmul.f32 %v5017, %v5021
        %v5023 = vpack.c.bf16 %v5022, %v5022
        %v5024 = vrot.slane %v4483, 3
        %v5025 = vrot.slane %v4484, 2
        %v5026 = vsel %vm2580, %v5025, %v5024
        %v5027 = vrot.slane %v4485, 1
        %v5028 = vsel %vm2583, %v5027, %v5026
        %v5029 = vsel %vm2586, %v4486, %v5028
        %v5030 = vrot.slane %v4487, 7
        %v5031 = vsel %vm2589, %v5030, %v5029
        %v5032 = vrot.slane %v4488, 6
        %v5033 = vsel %vm2592, %v5032, %v5031
        %v5034 = vrot.slane %v4489, 5
        %v5035 = vsel %vm2595, %v5034, %v5033
        %v5036 = vrot.slane %v4490, 4
        %v5037 = vsel %vm2598, %v5036, %v5035
        %v5038 = vrot.slane %v4491, 3
        %v5039 = vrot.slane %v4492, 2
        %v5040 = vsel %vm2580, %v5039, %v5038
        %v5041 = vrot.slane %v4493, 1
        %v5042 = vsel %vm2583, %v5041, %v5040
        %v5043 = vsel %vm2586, %v4494, %v5042
        %v5044 = vrot.slane %v4495, 7
        %v5045 = vsel %vm2589, %v5044, %v5043
        %v5046 = vrot.slane %v4496, 6
        %v5047 = vsel %vm2592, %v5046, %v5045
        %v5048 = vrot.slane %v4497, 5
        %v5049 = vsel %vm2595, %v5048, %v5047
        %v5050 = vrot.slane %v4498, 4
        %v5051 = vsel %vm2598, %v5050, %v5049
        %v5052 = vpack.c.b16 %v5051, %v5037
        %v5055 = vsel %vm2821, %v5023, 0
        %5057 = vmatprep.subr.bf16.mxu0 0
        %5058 = vmatpush1.bf16.msra.mxu0 %v5052
        %5059 = vmatprep.subr.bf16.mxu0 0
        %5060 = vmatpush1.bf16.msra.mxu0 0
        %5061 = vmatprep.subr.bf16.mxu0 0
        %5062 = vmatpush1.bf16.msra.mxu0 0
        %5063 = vmatprep.subr.bf16.mxu0 0
        %5064 = vmatpush1.bf16.msra.mxu0 0
        %5065 = vmatprep.subr.bf16.mxu0 0
        %5066 = vmatpush1.bf16.msra.mxu0 0
        %5067 = vmatprep.subr.bf16.mxu0 0
        %5068 = vmatpush1.bf16.msra.mxu0 0
        %5069 = vmatprep.subr.bf16.mxu0 0
        %5070 = vmatpush1.bf16.msra.mxu0 0
        %5071 = vmatprep.subr.bf16.mxu0 0
        %5072 = vmatpush1.bf16.msra.mxu0 0
        %5073 = vmatprep.subr.bf16.mxu0 0
        %5074 = vmatpush1.bf16.msra.mxu0 0
        %5075 = vmatprep.subr.bf16.mxu0 0
        %5076 = vmatpush1.bf16.msra.mxu0 0
        %5077 = vmatprep.subr.bf16.mxu0 0
        %5078 = vmatpush1.bf16.msra.mxu0 0
        %5079 = vmatprep.subr.bf16.mxu0 0
        %5080 = vmatpush1.bf16.msra.mxu0 0
        %5081 = vmatprep.subr.bf16.mxu0 0
        %5082 = vmatpush1.bf16.msra.mxu0 0
        %5083 = vmatprep.subr.bf16.mxu0 0
        %5084 = vmatpush1.bf16.msra.mxu0 0
        %5085 = vmatprep.subr.bf16.mxu0 0
        %5086 = vmatpush1.bf16.msra.mxu0 0
        %5087 = vmatprep.subr.bf16.mxu0 0
        %5088 = vmatpush1.bf16.msra.mxu0 0
        %5089 = vmatprep.mubr.bf16.mxu0 0
        %5090 = vmatmul.mubr.bf16.gmra.mrb[0].mxu0 %v5055
        %v5091 = vpop.f32.mrb[0].mxu0
        %v5092 = vadd.f32 0.0, %v5091
        %v5093 = vpop.f32.mrb[0].mxu0
        %v5094 = vpop.f32.mrb[0].mxu0
        %v5095 = vpop.f32.mrb[0].mxu0
        %5096 = vdwg.mxu0
        %v5097 = vpack.c.bf16 %v4567, %v4567
        %v5098 = vld [vmem:[%s18] sm:$0xf]
        %v5099 = vld [vmem:[%s18 + $0x4] sm:$0xf]
        %v5100 = vld [vmem:[%s18 + $0x8] sm:$0xf]
        %v5101 = vld [vmem:[%s18 + $0xc] sm:$0xf]
        %v5102 = vpack.c.bf16 %v4742, %v4742
        %s5103 = scalar_lea.vmem %s18, 16
        %v5104 = vld [vmem:[%s5103] sm:$0xf]
        %v5105 = vld [vmem:[%s5103 + $0x4] sm:$0xf]
        %v5106 = vld [vmem:[%s5103 + $0x8] sm:$0xf]
        %v5107 = vld [vmem:[%s5103 + $0xc] sm:$0xf]
        %v5112 = vunpack.c.l.b16 %v5104
        %v5113 = vunpack.c.l.b16 %v5105
        %v5114 = vunpack.c.l.b16 %v5106
        %v5115 = vunpack.c.l.b16 %v5107
        %v5116 = vpack.c.b16 %v5113, %v5112
        %v5117 = vpack.c.b16 %v5115, %v5114
        %v5121 = vsel %vm2774, %v5102, 0
        %5123 = vmatprep.subr.bf16.mxu0 0
        %5124 = vmatpush1.bf16.msra.mxu0 %v5116
        %5125 = vmatprep.subr.bf16.mxu0 0
        %5126 = vmatpush1.bf16.msra.mxu0 %v5117
        %5127 = vmatprep.subr.bf16.mxu0 0
        %5128 = vmatpush1.bf16.msra.mxu0 0
        %5129 = vmatprep.subr.bf16.mxu0 0
        %5130 = vmatpush1.bf16.msra.mxu0 0
        %5131 = vmatprep.subr.bf16.mxu0 0
        %5132 = vmatpush1.bf16.msra.mxu0 0
        %5133 = vmatprep.subr.bf16.mxu0 0
        %5134 = vmatpush1.bf16.msra.mxu0 0
        %5135 = vmatprep.subr.bf16.mxu0 0
        %5136 = vmatpush1.bf16.msra.mxu0 0
        %5137 = vmatprep.subr.bf16.mxu0 0
        %5138 = vmatpush1.bf16.msra.mxu0 0
        %5139 = vmatprep.subr.bf16.mxu0 0
        %5140 = vmatpush1.bf16.msra.mxu0 0
        %5141 = vmatprep.subr.bf16.mxu0 0
        %5142 = vmatpush1.bf16.msra.mxu0 0
        %5143 = vmatprep.subr.bf16.mxu0 0
        %5144 = vmatpush1.bf16.msra.mxu0 0
        %5145 = vmatprep.subr.bf16.mxu0 0
        %5146 = vmatpush1.bf16.msra.mxu0 0
        %5147 = vmatprep.subr.bf16.mxu0 0
        %5148 = vmatpush1.bf16.msra.mxu0 0
        %5149 = vmatprep.subr.bf16.mxu0 0
        %5150 = vmatpush1.bf16.msra.mxu0 0
        %5151 = vmatprep.subr.bf16.mxu0 0
        %5152 = vmatpush1.bf16.msra.mxu0 0
        %5153 = vmatprep.subr.bf16.mxu0 0
        %5154 = vmatpush1.bf16.msra.mxu0 0
        %5155 = vmatprep.mubr.bf16.mxu0 0
        %5156 = vmatmul.mubr.bf16.gmra.mrb[0].mxu0 %v5121
        %v5157 = vpop.f32.mrb[0].mxu0
        %v5158 = vadd.f32 0.0, %v5157
        %v5159 = vpop.f32.mrb[0].mxu0
        %v5160 = vpop.f32.mrb[0].mxu0
        %v5161 = vpop.f32.mrb[0].mxu0
        %5162 = vdwg.mxu0
        %v5167 = vunpack.c.l.b16 %v5098
        %v5168 = vunpack.c.l.b16 %v5099
        %v5169 = vunpack.c.l.b16 %v5100
        %v5170 = vunpack.c.l.b16 %v5101
        %v5171 = vpack.c.b16 %v5168, %v5167
        %v5172 = vpack.c.b16 %v5170, %v5169
        %v5176 = vsel %vm2774, %v5097, 0
        %5178 = vmatprep.subr.bf16.mxu0 0
        %5179 = vmatpush1.bf16.msra.mxu0 %v5171
        %5180 = vmatprep.subr.bf16.mxu0 0
        %5181 = vmatpush1.bf16.msra.mxu0 %v5172
        %5182 = vmatprep.subr.bf16.mxu0 0
        %5183 = vmatpush1.bf16.msra.mxu0 0
        %5184 = vmatprep.subr.bf16.mxu0 0
        %5185 = vmatpush1.bf16.msra.mxu0 0
        %5186 = vmatprep.subr.bf16.mxu0 0
        %5187 = vmatpush1.bf16.msra.mxu0 0
        %5188 = vmatprep.subr.bf16.mxu0 0
        %5189 = vmatpush1.bf16.msra.mxu0 0
        %5190 = vmatprep.subr.bf16.mxu0 0
        %5191 = vmatpush1.bf16.msra.mxu0 0
        %5192 = vmatprep.subr.bf16.mxu0 0
        %5193 = vmatpush1.bf16.msra.mxu0 0
        %5194 = vmatprep.subr.bf16.mxu0 0
        %5195 = vmatpush1.bf16.msra.mxu0 0
        %5196 = vmatprep.subr.bf16.mxu0 0
        %5197 = vmatpush1.bf16.msra.mxu0 0
        %5198 = vmatprep.subr.bf16.mxu0 0
        %5199 = vmatpush1.bf16.msra.mxu0 0
        %5200 = vmatprep.subr.bf16.mxu0 0
        %5201 = vmatpush1.bf16.msra.mxu0 0
        %5202 = vmatprep.subr.bf16.mxu0 0
        %5203 = vmatpush1.bf16.msra.mxu0 0
        %5204 = vmatprep.subr.bf16.mxu0 0
        %5205 = vmatpush1.bf16.msra.mxu0 0
        %5206 = vmatprep.subr.bf16.mxu0 0
        %5207 = vmatpush1.bf16.msra.mxu0 0
        %5208 = vmatprep.subr.bf16.mxu0 0
        %5209 = vmatpush1.bf16.msra.mxu0 0
        %5210 = vmatprep.mubr.bf16.mxu0 0
        %5211 = vmatmul.mubr.bf16.gmra.mrb[0].mxu0 %v5176
        %v5212 = vpop.f32.mrb[0].mxu0
        %v5213 = vadd.f32 %v5158, %v5212
        %v5214 = vpop.f32.mrb[0].mxu0
        %v5215 = vpop.f32.mrb[0].mxu0
        %v5216 = vpop.f32.mrb[0].mxu0
        %5217 = vdwg.mxu0
        %v5218 = vpack.c.bf16 %v4917, %v4917
        %s5219 = scalar_lea.vmem %s18, 32
        %v5220 = vld [vmem:[%s5219] sm:$0xf]
        %v5221 = vld [vmem:[%s5219 + $0x4] sm:$0xf]
        %v5222 = vld [vmem:[%s5219 + $0x8] sm:$0xf]
        %v5223 = vld [vmem:[%s5219 + $0xc] sm:$0xf]
        %v5228 = vunpack.c.l.b16 %v5220
        %v5229 = vunpack.c.l.b16 %v5221
        %v5230 = vunpack.c.l.b16 %v5222
        %v5231 = vunpack.c.l.b16 %v5223
        %v5232 = vpack.c.b16 %v5229, %v5228
        %v5233 = vpack.c.b16 %v5231, %v5230
        %v5237 = vsel %vm2774, %v5218, 0
        %5239 = vmatprep.subr.bf16.mxu0 0
        %5240 = vmatpush1.bf16.msra.mxu0 %v5232
        %5241 = vmatprep.subr.bf16.mxu0 0
        %5242 = vmatpush1.bf16.msra.mxu0 %v5233
        %5243 = vmatprep.subr.bf16.mxu0 0
        %5244 = vmatpush1.bf16.msra.mxu0 0
        %5245 = vmatprep.subr.bf16.mxu0 0
        %5246 = vmatpush1.bf16.msra.mxu0 0
        %5247 = vmatprep.subr.bf16.mxu0 0
        %5248 = vmatpush1.bf16.msra.mxu0 0
        %5249 = vmatprep.subr.bf16.mxu0 0
        %5250 = vmatpush1.bf16.msra.mxu0 0
        %5251 = vmatprep.subr.bf16.mxu0 0
        %5252 = vmatpush1.bf16.msra.mxu0 0
        %5253 = vmatprep.subr.bf16.mxu0 0
        %5254 = vmatpush1.bf16.msra.mxu0 0
        %5255 = vmatprep.subr.bf16.mxu0 0
        %5256 = vmatpush1.bf16.msra.mxu0 0
        %5257 = vmatprep.subr.bf16.mxu0 0
        %5258 = vmatpush1.bf16.msra.mxu0 0
        %5259 = vmatprep.subr.bf16.mxu0 0
        %5260 = vmatpush1.bf16.msra.mxu0 0
        %5261 = vmatprep.subr.bf16.mxu0 0
        %5262 = vmatpush1.bf16.msra.mxu0 0
        %5263 = vmatprep.subr.bf16.mxu0 0
        %5264 = vmatpush1.bf16.msra.mxu0 0
        %5265 = vmatprep.subr.bf16.mxu0 0
        %5266 = vmatpush1.bf16.msra.mxu0 0
        %5267 = vmatprep.subr.bf16.mxu0 0
        %5268 = vmatpush1.bf16.msra.mxu0 0
        %5269 = vmatprep.subr.bf16.mxu0 0
        %5270 = vmatpush1.bf16.msra.mxu0 0
        %5271 = vmatprep.mubr.bf16.mxu0 0
        %5272 = vmatmul.mubr.bf16.gmra.mrb[0].mxu0 %v5237
        %v5273 = vpop.f32.mrb[0].mxu0
        %v5274 = vadd.f32 0.0, %v5273
        %v5275 = vpop.f32.mrb[0].mxu0
        %v5276 = vpop.f32.mrb[0].mxu0
        %v5277 = vpop.f32.mrb[0].mxu0
        %5278 = vdwg.mxu0
        %v5279 = vadd.f32 %v5213, %v5274
        %v5280 = vpack.c.bf16 %v5092, %v5092
        %s5281 = scalar_lea.vmem %s18, 48
        %v5282 = vld [vmem:[%s5281] sm:$0xf]
        %v5283 = vld [vmem:[%s5281 + $0x4] sm:$0xf]
        %v5284 = vld [vmem:[%s5281 + $0x8] sm:$0xf]
        %v5285 = vld [vmem:[%s5281 + $0xc] sm:$0xf]
        %v5290 = vunpack.c.l.b16 %v5282
        %v5291 = vunpack.c.l.b16 %v5283
        %v5292 = vunpack.c.l.b16 %v5284
        %v5293 = vunpack.c.l.b16 %v5285
        %v5294 = vpack.c.b16 %v5291, %v5290
        %v5295 = vpack.c.b16 %v5293, %v5292
        %v5299 = vsel %vm2774, %v5280, 0
        %5301 = vmatprep.subr.bf16.mxu0 0
        %5302 = vmatpush1.bf16.msra.mxu0 %v5294
        %5303 = vmatprep.subr.bf16.mxu0 0
        %5304 = vmatpush1.bf16.msra.mxu0 %v5295
        %5305 = vmatprep.subr.bf16.mxu0 0
        %5306 = vmatpush1.bf16.msra.mxu0 0
        %5307 = vmatprep.subr.bf16.mxu0 0
        %5308 = vmatpush1.bf16.msra.mxu0 0
        %5309 = vmatprep.subr.bf16.mxu0 0
        %5310 = vmatpush1.bf16.msra.mxu0 0
        %5311 = vmatprep.subr.bf16.mxu0 0
        %5312 = vmatpush1.bf16.msra.mxu0 0
        %5313 = vmatprep.subr.bf16.mxu0 0
        %5314 = vmatpush1.bf16.msra.mxu0 0
        %5315 = vmatprep.subr.bf16.mxu0 0
        %5316 = vmatpush1.bf16.msra.mxu0 0
        %5317 = vmatprep.subr.bf16.mxu0 0
        %5318 = vmatpush1.bf16.msra.mxu0 0
        %5319 = vmatprep.subr.bf16.mxu0 0
        %5320 = vmatpush1.bf16.msra.mxu0 0
        %5321 = vmatprep.subr.bf16.mxu0 0
        %5322 = vmatpush1.bf16.msra.mxu0 0
        %5323 = vmatprep.subr.bf16.mxu0 0
        %5324 = vmatpush1.bf16.msra.mxu0 0
        %5325 = vmatprep.subr.bf16.mxu0 0
        %5326 = vmatpush1.bf16.msra.mxu0 0
        %5327 = vmatprep.subr.bf16.mxu0 0
        %5328 = vmatpush1.bf16.msra.mxu0 0
        %5329 = vmatprep.subr.bf16.mxu0 0
        %5330 = vmatpush1.bf16.msra.mxu0 0
        %5331 = vmatprep.subr.bf16.mxu0 0
        %5332 = vmatpush1.bf16.msra.mxu0 0
        %5333 = vmatprep.mubr.bf16.mxu0 0
        %5334 = vmatmul.mubr.bf16.gmra.mrb[0].mxu0 %v5299
        %v5335 = vpop.f32.mrb[0].mxu0
        %v5336 = vadd.f32 0.0, %v5335
        %v5337 = vpop.f32.mrb[0].mxu0
        %v5338 = vpop.f32.mrb[0].mxu0
        %v5339 = vpop.f32.mrb[0].mxu0
        %5340 = vdwg.mxu0
        %v5341 = vadd.f32 %v5279, %v5336
        %v5342 = vld [vmem:[%s19] sm:$0x1]
        %v5344 = vlaneseq
        %v5345 = vshrl.u32 %v5344, 7
        %v5346 = vsub.s32 0, %v5345
        %v5347 = vrot.slane %v5342, %v5346
        %v5349 = vadd.f32 %v5341, %v5347
        %v5350 = vadd.f32 %v3857, %v5349
        %5351 = vadd.xlane.f32.xlu0 %v5350
        %v5352 = vpop.xlane.xlu0 %5351
        %v5353 = vmul.f32 %v5352, %v3832
        %v5354 = vsub.f32 %v5350, %v5353
        %v5355 = vmul.f32 %v5354, %v5354
        %5356 = vadd.xlane.f32.xlu0 %v5355
        %v5357 = vpop.xlane.xlu0 %5356
        %v5358 = vmul.f32 %v5357, %v3832
        %v5359 = vadd.f32 %v5358, 1e-05
        %v5360 = vrsqrt.pop %v5359
        %v5361 = vmul.f32 %v5354, %v5360
        %v5362 = vld [vmem:[%s20] sm:$0x1]
        %v5364 = vlaneseq
        %v5365 = vshrl.u32 %v5364, 7
        %v5366 = vsub.s32 0, %v5365
        %v5367 = vrot.slane %v5362, %v5366
        %v5369 = vmul.f32 %v5361, %v5367
        %v5370 = vld [vmem:[%s21] sm:$0x1]
        %v5372 = vlaneseq
        %v5373 = vshrl.u32 %v5372, 7
        %v5374 = vsub.s32 0, %v5373
        %v5375 = vrot.slane %v5370, %v5374
        %v5377 = vadd.f32 %v5369, %v5375
        %v5378 = vpack.c.bf16 %v5377, %v5377
        %v5379 = vld [vmem:[#allocation32] sm:$0xff]
        %v5380 = vld [vmem:[#allocation32 + $0x8] sm:$0xff]
        %v5381 = vld [vmem:[#allocation32 + $0x10] sm:$0xff]
        %v5382 = vld [vmem:[#allocation32 + $0x18] sm:$0xff]
        %v5383 = vld [vmem:[#allocation32 + $0x20] sm:$0xff]
        %v5384 = vld [vmem:[#allocation32 + $0x28] sm:$0xff]
        %v5385 = vld [vmem:[#allocation32 + $0x30] sm:$0xff]
        %v5386 = vld [vmem:[#allocation32 + $0x38] sm:$0xff]
        %v5387 = vld [vmem:[#allocation32 + $0x40] sm:$0xff]
        %v5388 = vld [vmem:[#allocation32 + $0x48] sm:$0xff]
        %v5389 = vld [vmem:[#allocation32 + $0x50] sm:$0xff]
        %v5390 = vld [vmem:[#allocation32 + $0x58] sm:$0xff]
        %v5391 = vld [vmem:[#allocation32 + $0x60] sm:$0xff]
        %v5392 = vld [vmem:[#allocation32 + $0x68] sm:$0xff]
        %v5393 = vld [vmem:[#allocation32 + $0x70] sm:$0xff]
        %v5394 = vld [vmem:[#allocation32 + $0x78] sm:$0xff]
        %v5395 = vld [vmem:[%s23] sm:$0x3]
        %v5397 = vlaneseq
        %v5398 = vshrl.u32 %v5397, 7
        %v5399 = vsub.s32 0, %v5398
        %v5400 = vrot.slane %v5395, %v5399
        %v5401 = vlaneseq
        %v5402 = vshrl.u32 %v5401, 7
        %v5403 = vsub.s32 1, %v5402
        %v5404 = vrot.slane %v5395, %v5403
        %v5423 = vunpack.c.l.b16 %v5379
        %v5424 = vunpack.c.h.b16 %v5379
        %v5425 = vunpack.c.l.b16 %v5380
        %v5426 = vunpack.c.h.b16 %v5380
        %v5427 = vunpack.c.l.b16 %v5381
        %v5428 = vunpack.c.h.b16 %v5381
        %v5429 = vunpack.c.l.b16 %v5382
        %v5430 = vunpack.c.h.b16 %v5382
        %v5431 = vunpack.c.l.b16 %v5383
        %v5432 = vunpack.c.h.b16 %v5383
        %v5433 = vunpack.c.l.b16 %v5384
        %v5434 = vunpack.c.h.b16 %v5384
        %v5435 = vunpack.c.l.b16 %v5385
        %v5436 = vunpack.c.h.b16 %v5385
        %v5437 = vunpack.c.l.b16 %v5386
        %v5438 = vunpack.c.h.b16 %v5386
        %v5439 = vunpack.c.l.b16 %v5387
        %v5440 = vunpack.c.h.b16 %v5387
        %v5441 = vunpack.c.l.b16 %v5388
        %v5442 = vunpack.c.h.b16 %v5388
        %v5443 = vunpack.c.l.b16 %v5389
        %v5444 = vunpack.c.h.b16 %v5389
        %v5445 = vunpack.c.l.b16 %v5390
        %v5446 = vunpack.c.h.b16 %v5390
        %v5447 = vunpack.c.l.b16 %v5391
        %v5448 = vunpack.c.h.b16 %v5391
        %v5449 = vunpack.c.l.b16 %v5392
        %v5450 = vunpack.c.h.b16 %v5392
        %v5451 = vunpack.c.l.b16 %v5393
        %v5452 = vunpack.c.h.b16 %v5393
        %v5453 = vunpack.c.l.b16 %v5394
        %v5454 = vunpack.c.h.b16 %v5394
        %v5455 = vpack.c.b16 %v5425, %v5423
        %v5456 = vpack.c.b16 %v5426, %v5424
        %v5457 = vpack.c.b16 %v5429, %v5427
        %v5458 = vpack.c.b16 %v5430, %v5428
        %v5459 = vpack.c.b16 %v5433, %v5431
        %v5460 = vpack.c.b16 %v5434, %v5432
        %v5461 = vpack.c.b16 %v5437, %v5435
        %v5462 = vpack.c.b16 %v5438, %v5436
        %v5463 = vpack.c.b16 %v5441, %v5439
        %v5464 = vpack.c.b16 %v5442, %v5440
        %v5465 = vpack.c.b16 %v5445, %v5443
        %v5466 = vpack.c.b16 %v5446, %v5444
        %v5467 = vpack.c.b16 %v5449, %v5447
        %v5468 = vpack.c.b16 %v5450, %v5448
        %v5469 = vpack.c.b16 %v5453, %v5451
        %v5470 = vpack.c.b16 %v5454, %v5452
        %5487 = vmatprep.subr.bf16.mxu0 %v5456
        %5488 = vmatpush1.bf16.msra.mxu0 %v5455
        %5489 = vmatprep.subr.bf16.mxu0 %v5458
        %5490 = vmatpush1.bf16.msra.mxu0 %v5457
        %5491 = vmatprep.subr.bf16.mxu0 %v5460
        %5492 = vmatpush1.bf16.msra.mxu0 %v5459
        %5493 = vmatprep.subr.bf16.mxu0 %v5462
        %5494 = vmatpush1.bf16.msra.mxu0 %v5461
        %5495 = vmatprep.subr.bf16.mxu0 %v5464
        %5496 = vmatpush1.bf16.msra.mxu0 %v5463
        %5497 = vmatprep.subr.bf16.mxu0 %v5466
        %5498 = vmatpush1.bf16.msra.mxu0 %v5465
        %5499 = vmatprep.subr.bf16.mxu0 %v5468
        %5500 = vmatpush1.bf16.msra.mxu0 %v5467
        %5501 = vmatprep.subr.bf16.mxu0 %v5470
        %5502 = vmatpush1.bf16.msra.mxu0 %v5469
        %5503 = vmatprep.subr.bf16.mxu0 0
        %5504 = vmatpush1.bf16.msra.mxu0 0
        %5505 = vmatprep.subr.bf16.mxu0 0
        %5506 = vmatpush1.bf16.msra.mxu0 0
        %5507 = vmatprep.subr.bf16.mxu0 0
        %5508 = vmatpush1.bf16.msra.mxu0 0
        %5509 = vmatprep.subr.bf16.mxu0 0
        %5510 = vmatpush1.bf16.msra.mxu0 0
        %5511 = vmatprep.subr.bf16.mxu0 0
        %5512 = vmatpush1.bf16.msra.mxu0 0
        %5513 = vmatprep.subr.bf16.mxu0 0
        %5514 = vmatpush1.bf16.msra.mxu0 0
        %5515 = vmatprep.subr.bf16.mxu0 0
        %5516 = vmatpush1.bf16.msra.mxu0 0
        %5517 = vmatprep.subr.bf16.mxu0 0
        %5518 = vmatpush1.bf16.msra.mxu0 0
        %5519 = vmatprep.mubr.bf16.mxu0 0
        %5520 = vmatmul.mubr.bf16.gmra.mrb[0].mxu0 %v5378
        %v5521 = vpop.f32.mrb[0].mxu0
        %v5522 = vadd.f32 %v5400, %v5521
        %v5523 = vpop.f32.mrb[0].mxu0
        %v5524 = vadd.f32 %v5404, %v5523
        %v5525 = vpop.f32.mrb[0].mxu0
        %v5526 = vpop.f32.mrb[0].mxu0
        %5527 = vdwg.mxu0
        %v5528 = vmul.f32 %v5522, %v5522
        %v5529 = vmul.f32 %v5524, %v5524
        %v5530 = vmul.f32 %v5522, %v5528
        %v5531 = vmul.f32 %v5524, %v5529
        %v5532 = vmul.f32 %v5530, 0.044715
        %v5533 = vmul.f32 %v5531, 0.044715
        %v5534 = vadd.f32 %v5522, %v5532
        %v5535 = vadd.f32 %v5524, %v5533
        %v5536 = vmul.f32 %v5534, 0.7978846
        %v5537 = vmul.f32 %v5535, 0.7978846
        %v5538 = vtanh.pop %v5536
        %v5539 = vtanh.pop %v5537
        %v5540 = vadd.f32 %v5538, 1.0
        %v5541 = vadd.f32 %v5539, 1.0
        %v5542 = vmul.f32 %v5540, 0.5
        %v5543 = vmul.f32 %v5541, 0.5
        %v5544 = vmul.f32 %v5522, %v5542
        %v5545 = vmul.f32 %v5524, %v5543
        %v5546 = vpack.c.bf16 %v5544, %v5544
        %v5547 = vpack.c.bf16 %v5545, %v5545
        %v5548 = vld [vmem:[#allocation33] sm:$0xf]
        %v5549 = vld [vmem:[#allocation33 + $0x4] sm:$0xf]
        %v5550 = vld [vmem:[#allocation33 + $0x8] sm:$0xf]
        %v5551 = vld [vmem:[#allocation33 + $0xc] sm:$0xf]
        %v5552 = vld [vmem:[#allocation33 + $0x10] sm:$0xf]
        %v5553 = vld [vmem:[#allocation33 + $0x14] sm:$0xf]
        %v5554 = vld [vmem:[#allocation33 + $0x18] sm:$0xf]
        %v5555 = vld [vmem:[#allocation33 + $0x1c] sm:$0xf]
        %v5556 = vld [vmem:[#allocation33 + $0x20] sm:$0xf]
        %v5557 = vld [vmem:[#allocation33 + $0x24] sm:$0xf]
        %v5558 = vld [vmem:[#allocation33 + $0x28] sm:$0xf]
        %v5559 = vld [vmem:[#allocation33 + $0x2c] sm:$0xf]
        %v5560 = vld [vmem:[#allocation33 + $0x30] sm:$0xf]
        %v5561 = vld [vmem:[#allocation33 + $0x34] sm:$0xf]
        %v5562 = vld [vmem:[#allocation33 + $0x38] sm:$0xf]
        %v5563 = vld [vmem:[#allocation33 + $0x3c] sm:$0xf]
        %v5564 = vld [vmem:[#allocation33 + $0x40] sm:$0xf]
        %v5565 = vld [vmem:[#allocation33 + $0x44] sm:$0xf]
        %v5566 = vld [vmem:[#allocation33 + $0x48] sm:$0xf]
        %v5567 = vld [vmem:[#allocation33 + $0x4c] sm:$0xf]
        %v5568 = vld [vmem:[#allocation33 + $0x50] sm:$0xf]
        %v5569 = vld [vmem:[#allocation33 + $0x54] sm:$0xf]
        %v5570 = vld [vmem:[#allocation33 + $0x58] sm:$0xf]
        %v5571 = vld [vmem:[#allocation33 + $0x5c] sm:$0xf]
        %v5572 = vld [vmem:[#allocation33 + $0x60] sm:$0xf]
        %v5573 = vld [vmem:[#allocation33 + $0x64] sm:$0xf]
        %v5574 = vld [vmem:[#allocation33 + $0x68] sm:$0xf]
        %v5575 = vld [vmem:[#allocation33 + $0x6c] sm:$0xf]
        %v5576 = vld [vmem:[#allocation33 + $0x70] sm:$0xf]
        %v5577 = vld [vmem:[#allocation33 + $0x74] sm:$0xf]
        %v5578 = vld [vmem:[#allocation33 + $0x78] sm:$0xf]
        %v5579 = vld [vmem:[#allocation33 + $0x7c] sm:$0xf]
        %v5580 = vld [vmem:[%s25] sm:$0x1]
        %v5582 = vlaneseq
        %v5583 = vshrl.u32 %v5582, 7
        %v5584 = vsub.s32 0, %v5583
        %v5585 = vrot.slane %v5580, %v5584
        %v5619 = vunpack.c.l.b16 %v5548
        %v5620 = vunpack.c.l.b16 %v5549
        %v5621 = vunpack.c.l.b16 %v5550
        %v5622 = vunpack.c.l.b16 %v5551
        %v5623 = vunpack.c.l.b16 %v5552
        %v5624 = vunpack.c.l.b16 %v5553
        %v5625 = vunpack.c.l.b16 %v5554
        %v5626 = vunpack.c.l.b16 %v5555
        %v5627 = vunpack.c.l.b16 %v5556
        %v5628 = vunpack.c.l.b16 %v5557
        %v5629 = vunpack.c.l.b16 %v5558
        %v5630 = vunpack.c.l.b16 %v5559
        %v5631 = vunpack.c.l.b16 %v5560
        %v5632 = vunpack.c.l.b16 %v5561
        %v5633 = vunpack.c.l.b16 %v5562
        %v5634 = vunpack.c.l.b16 %v5563
        %v5635 = vunpack.c.l.b16 %v5564
        %v5636 = vunpack.c.l.b16 %v5565
        %v5637 = vunpack.c.l.b16 %v5566
        %v5638 = vunpack.c.l.b16 %v5567
        %v5639 = vunpack.c.l.b16 %v5568
        %v5640 = vunpack.c.l.b16 %v5569
        %v5641 = vunpack.c.l.b16 %v5570
        %v5642 = vunpack.c.l.b16 %v5571
        %v5643 = vunpack.c.l.b16 %v5572
        %v5644 = vunpack.c.l.b16 %v5573
        %v5645 = vunpack.c.l.b16 %v5574
        %v5646 = vunpack.c.l.b16 %v5575
        %v5647 = vunpack.c.l.b16 %v5576
        %v5648 = vunpack.c.l.b16 %v5577
        %v5649 = vunpack.c.l.b16 %v5578
        %v5650 = vunpack.c.l.b16 %v5579
        %v5651 = vpack.c.b16 %v5620, %v5619
        %v5652 = vpack.c.b16 %v5622, %v5621
        %v5653 = vpack.c.b16 %v5624, %v5623
        %v5654 = vpack.c.b16 %v5626, %v5625
        %v5655 = vpack.c.b16 %v5628, %v5627
        %v5656 = vpack.c.b16 %v5630, %v5629
        %v5657 = vpack.c.b16 %v5632, %v5631
        %v5658 = vpack.c.b16 %v5634, %v5633
        %v5659 = vpack.c.b16 %v5636, %v5635
        %v5660 = vpack.c.b16 %v5638, %v5637
        %v5661 = vpack.c.b16 %v5640, %v5639
        %v5662 = vpack.c.b16 %v5642, %v5641
        %v5663 = vpack.c.b16 %v5644, %v5643
        %v5664 = vpack.c.b16 %v5646, %v5645
        %v5665 = vpack.c.b16 %v5648, %v5647
        %v5666 = vpack.c.b16 %v5650, %v5649
        %5683 = vmatprep.subr.bf16.mxu0 0
        %5684 = vmatpush1.bf16.msra.mxu0 %v5651
        %5685 = vmatprep.subr.bf16.mxu0 0
        %5686 = vmatpush1.bf16.msra.mxu0 %v5652
        %5687 = vmatprep.subr.bf16.mxu0 0
        %5688 = vmatpush1.bf16.msra.mxu0 %v5653
        %5689 = vmatprep.subr.bf16.mxu0 0
        %5690 = vmatpush1.bf16.msra.mxu0 %v5654
        %5691 = vmatprep.subr.bf16.mxu0 0
        %5692 = vmatpush1.bf16.msra.mxu0 %v5655
        %5693 = vmatprep.subr.bf16.mxu0 0
        %5694 = vmatpush1.bf16.msra.mxu0 %v5656
        %5695 = vmatprep.subr.bf16.mxu0 0
        %5696 = vmatpush1.bf16.msra.mxu0 %v5657
        %5697 = vmatprep.subr.bf16.mxu0 0
        %5698 = vmatpush1.bf16.msra.mxu0 %v5658
        %5699 = vmatprep.subr.bf16.mxu0 0
        %5700 = vmatpush1.bf16.msra.mxu0 %v5659
        %5701 = vmatprep.subr.bf16.mxu0 0
        %5702 = vmatpush1.bf16.msra.mxu0 %v5660
        %5703 = vmatprep.subr.bf16.mxu0 0
        %5704 = vmatpush1.bf16.msra.mxu0 %v5661
        %5705 = vmatprep.subr.bf16.mxu0 0
        %5706 = vmatpush1.bf16.msra.mxu0 %v5662
        %5707 = vmatprep.subr.bf16.mxu0 0
        %5708 = vmatpush1.bf16.msra.mxu0 %v5663
        %5709 = vmatprep.subr.bf16.mxu0 0
        %5710 = vmatpush1.bf16.msra.mxu0 %v5664
        %5711 = vmatprep.subr.bf16.mxu0 0
        %5712 = vmatpush1.bf16.msra.mxu0 %v5665
        %5713 = vmatprep.subr.bf16.mxu0 0
        %5714 = vmatpush1.bf16.msra.mxu0 %v5666
        %5715 = vmatprep.mubr.bf16.mxu0 %v5547
        %5716 = vmatmul.mubr.bf16.gmra.mrb[0].mxu0 %v5546
        %v5717 = vpop.f32.mrb[0].mxu0
        %v5718 = vadd.f32 %v5585, %v5717
        %v5719 = vpop.f32.mrb[0].mxu0
        %v5720 = vpop.f32.mrb[0].mxu0
        %v5721 = vpop.f32.mrb[0].mxu0
        %5722 = vdwg.mxu0
        %v5723 = vadd.f32 %v5377, %v5718
        %5724 = vadd.xlane.f32.xlu0 %v5723
        %v5725 = vpop.xlane.xlu0 %5724
        %v5726 = vmul.f32 %v5725, %v3832
        %v5727 = vsub.f32 %v5723, %v5726
        %v5728 = vmul.f32 %v5727, %v5727
        %5729 = vadd.xlane.f32.xlu0 %v5728
        %v5730 = vpop.xlane.xlu0 %5729
        %v5731 = vmul.f32 %v5730, %v3832
        %v5732 = vadd.f32 %v5731, 1e-05
        %v5733 = vrsqrt.pop %v5732
        %v5734 = vmul.f32 %v5727, %v5733
        %v5735 = vld [vmem:[%s26] sm:$0x1]
        %v5737 = vlaneseq
        %v5738 = vshrl.u32 %v5737, 7
        %v5739 = vsub.s32 0, %v5738
        %v5740 = vrot.slane %v5735, %v5739
        %v5742 = vmul.f32 %v5734, %v5740
        %v5743 = vld [vmem:[%s27] sm:$0x1]
        %v5745 = vlaneseq
        %v5746 = vshrl.u32 %v5745, 7
        %v5747 = vsub.s32 0, %v5746
        %v5748 = vrot.slane %v5743, %v5747
        %v5750 = vadd.f32 %v5742, %v5748
        %5751 = vst [vmem:[%s1185] sm:$0xff] %v5750
        %s5752 = sand.u32 %s690, 1
        %s5753 = scalar_lea.sflag [#allocation8], %s5752
        %s5754 = sand.u32 %s690, 1
        %s5755 = smul.addr %s5754, 8
        %s5756 = scalar_lea.vmem [#allocation35], %s5755
        // Predicated region
        $region209: #{tpu_custom_call.1} parent=131 // pred_check
          %p5757 = pneg %p700
        $region210: #{tpu_custom_call.1} parent=131 // pred_check_branch
          %5759 = sbr.rel (%p5757) target = $region212
        $region211: #{tpu_custom_call.1} parent=131 // pred_region
          %s5761 = ssub.s32 128, 128
          %5762 = vsyncadd %s5753, %s5761
          %s5763 = smul.addr %s62, 2
          %s5764 = sadd.s32 %s63, %s5763
          %s5765 = smul.addr %s5764, 128
          %s5766 = scalar_lea.hbm %s28, %s5765
          %s5768 = sshll.u32 %s5756, 4
          %s5769 = int_to_ptr.vmem [resolvable:$true] %s5768
          %5771 = dma.vmem_to_hbm [thread:$0]  %s5769, 128, %s5766, %s5753
        $region212: #{tpu_custom_call.1} parent=131 // pred_fallthru
          _
      $region132: #{tpu_custom_call.1} parent=5 // pred_fallthru
        _
      %p5772 = scmp.le.s32.totalorder 2, %s53
      // Predicated region
      $region213: #{tpu_custom_call.1} parent=5 // pred_check
        %p5773 = pneg %p5772
      $region214: #{tpu_custom_call.1} parent=5 // pred_check_branch
        %5775 = sbr.rel (%p5773) target = $region216
      $region215: #{tpu_custom_call.1} parent=5 // pred_region
        %s5776 = ssub.s32 %s53, 2
        // Predicated region
        $region217: #{tpu_custom_call.1} parent=215 // pred_check
          %p5777 = pneg %p706
        $region218: #{tpu_custom_call.1} parent=215 // pred_check_branch
          %5779 = sbr.rel (%p5777) target = $region220
        $region219: #{tpu_custom_call.1} parent=215 // pred_region
          %s5780 = sand.u32 %s691, 1
          %s5781 = scalar_lea.sflag [#allocation8], %s5780
          %s5782 = sand.u32 %s691, 1
          %s5783 = smul.addr %s5782, 8
          %s5784 = scalar_lea.vmem [#allocation35], %s5783
          %5785 = dma.done %s5781, 128
        $region220: #{tpu_custom_call.1} parent=215 // pred_fallthru
          _
      $region216: #{tpu_custom_call.1} parent=5 // pred_fallthru
        _
    $region6: #{tpu_custom_call.1} parent=1 // loop_footer
      %s57 = sadd.s32 1, %s53
    $region7: #{tpu_custom_call.1} parent=1 // loop_footer_branch
      %52 = sbr.rel target = $region3
    $region8: #{tpu_custom_call.1} parent=1 // loop_exit
      _
    %5786 = vsyncpa [#allocation7], 1
    %s5787 = scalar_lea.sflag [#allocation7], 1
    %5788 = vsyncpa %s5787, 1
    %5789 = vsyncpa [#allocation10], 1
    %s5790 = scalar_lea.sflag [#allocation10], 1
    %5791 = vsyncpa %s5790, 1
    %5792 = vsyncpa [#allocation13], 1
    %s5793 = scalar_lea.sflag [#allocation13], 1
    %5794 = vsyncpa %s5793, 1
    %5795 = vsyncpa [#allocation16], 1
    %5796 = vsyncpa [#allocation19], 1
    %5797 = vsyncpa [#allocation22], 1
    %5798 = vsyncpa [#allocation25], 1
    %5799 = vsyncpa [#allocation28], 1
    %5800 = vsyncpa [#allocation31], 1
    %5801 = vsyncpa [#allocation34], 1
    %5802 = vsyncpa [#allocation8], 1
    %s5803 = scalar_lea.sflag [#allocation8], 1
    %5804 = vsyncpa %s5803, 1

</llo_original>
